<compile_context>
chip_gen: v7x
topology: tpu7x:2x2x1
jax: 0.10.0
libtpu: 0.0.40
codegen_flags: <defaults>
</compile_context>

<pallas_src>
import functools

import jax
import jax.numpy as jnp
from jax.experimental import pallas as pl
from jax.experimental.pallas import tpu as pltpu

_BN_EPS = 1e-5
_MXU_DTYPE = jnp.bfloat16   # MXU operand dtype (accumulation stays f32)


# ---------------------------------------------------------------------------
# In-kernel helpers (all shapes static).
# ---------------------------------------------------------------------------
def _store_padded(pad_ref, val):
    """Write `val` (BB, H, W, C) into pad_ref (BB, H+2, W+2, C) with a zero border.

    Only outer-dim (non-tiled) ref slices are used for the stores; the left/right
    zero columns are folded into the interior value with a tiny sublane concat.
    The whole buffer is rewritten every grid step -> safe under "parallel" semantics.
    """
    BB, H, W, C = val.shape
    zcol = jnp.zeros((BB, H, 1, C), val.dtype)
    pad_ref[:, 1:H + 1, :, :] = jnp.concatenate([zcol, val, zcol], axis=2)
    zrow = jnp.zeros((BB, 1, W + 2, C), val.dtype)
    pad_ref[:, 0:1, :, :] = zrow
    pad_ref[:, H + 1:H + 2, :, :] = zrow


def _im2col3x3(pad_ref, H, W):
    """(BB, H+2, W+2, C) padded scratch ref -> (BB*H*W, 9*C) f32 patch matrix.

    Column ordering is (dh, dw, cin), matching the flattened HWIO weights.
    """
    BB = pad_ref.shape[0]
    C = pad_ref.shape[3]
    taps = [pad_ref[:, dh:dh + H, dw:dw + W, :]
            for dh in range(3) for dw in range(3)]
    return jnp.concatenate(taps, axis=-1).reshape(BB * H * W, 9 * C)


# ---------------------------------------------------------------------------
# Fused kernel: encoder + seg head + crossfield head for one batch block.
# ---------------------------------------------------------------------------
def _encoder_decoder_kernel(x_ref,
                            enc_w_ref, enc_b_ref,
                            seg_w3_ref, seg_b3_ref,
                            seg_w1_ref, seg_b1r_ref, seg_w1t_ref, seg_b1c_ref,
                            cf_w3f_ref, cf_w3s_ref, cf_b3_ref,
                            cf_w1t_ref, cf_b1c_ref,
                            seg_out_ref, cf_out_ref,
                            xpad_ref, fpad_ref, spad_ref,
                            *, H, W):
    cdt = _MXU_DTYPE
    f32 = jnp.float32
    BB = x_ref.shape[0]
    HW = H * W
    FEAT = enc_w_ref.shape[1]
    SEG = seg_w1_ref.shape[1]

    # ---- synthetic encoder: Conv3x3(Cin -> F) + ReLU -------------------------
    _store_padded(xpad_ref, x_ref[...])
    p_x = _im2col3x3(xpad_ref, H, W).astype(cdt)                 # (BB*HW, 9*Cin)
    feat = jnp.dot(p_x, enc_w_ref[...],
                   preferred_element_type=f32) + enc_b_ref[...]
    feat = jnp.maximum(feat, 0.0)                                # (BB*HW, F) f32

    # ---- feature patches: built ONCE, reused by both heads -------------------
    _store_padded(fpad_ref, feat.reshape(BB, H, W, FEAT))
    p_f = _im2col3x3(fpad_ref, H, W).astype(cdt)                 # (BB*HW, 9*F)

    # ---- seg head: Conv3x3 (BN folded) -> ReLU -> Conv1x1 -> Sigmoid ----------
    h = jnp.maximum(
        jnp.dot(p_f, seg_w3_ref[...], preferred_element_type=f32) + seg_b3_ref[...],
        0.0)                                                     # (BB*HW, F) f32
    # NHWC-ordered seg (feeds the crossfield head; mirrors cat([feat, seg.detach()]))
    seg = jax.nn.sigmoid(
        jnp.dot(h.astype(cdt), seg_w1_ref[...], preferred_element_type=f32)
        + seg_b1r_ref[...])                                      # (BB*HW, S) f32
    # Lane-dense seg for the output store: (S, BB*HW) straight off the MXU.
    h_t = h.T.astype(cdt)                                        # (F, BB*HW)
    seg_t = jax.nn.sigmoid(
        jnp.dot(seg_w1t_ref[...], h_t, preferred_element_type=f32)
        + seg_b1c_ref[...])                                      # (S, BB*HW) f32

    # ---- crossfield head on cat([features, seg]) via split 3x3 weights --------
    _store_padded(spad_ref, seg.reshape(BB, H, W, SEG))
    p_s = _im2col3x3(spad_ref, H, W).astype(cdt)                 # (BB*HW, 9*S)
    h2 = (jnp.dot(p_f, cf_w3f_ref[...], preferred_element_type=f32)
          + jnp.dot(p_s, cf_w3s_ref[...], preferred_element_type=f32)
          + cf_b3_ref[...])
    h2 = jnp.maximum(h2, 0.0)                                    # (BB*HW, F) f32
    h2_t = h2.T.astype(cdt)                                      # (F, BB*HW)
    cf_t = 2.0 * jnp.tanh(
        jnp.dot(cf_w1t_ref[...], h2_t, preferred_element_type=f32)
        + cf_b1c_ref[...])                                       # (CF, BB*HW) f32

    # ---- lane-dense output stores: channels on sublanes, H*W on lanes ---------
    for b in range(BB):
        px = slice(b * HW, (b + 1) * HW)
        seg_out_ref[b] = seg_t[:, px].astype(seg_out_ref.dtype)
        cf_out_ref[b] = cf_t[:, px].astype(cf_out_ref.dtype)


# ---------------------------------------------------------------------------
# Wrapper: trace-time BN folding, weight splitting/flattening, pallas_call plumbing.
# ---------------------------------------------------------------------------
def _fold_bn(w3, b3, gamma, beta, mean, var):
    """Fold inference-mode BatchNorm into the preceding conv (f32)."""
    scale = gamma * jax.lax.rsqrt(var + _BN_EPS)
    return w3 * scale[None, None, None, :], (b3 - mean) * scale + beta


def _flatten_w3(w3):
    """HWIO (3, 3, Cin, Cout) -> (9*Cin, Cout), rows ordered (dh, dw, cin)."""
    _, _, cin, cout = w3.shape
    return w3.reshape(9 * cin, cout)


def _pick_batch_block(B):
    """Images per grid step; keep >=2 grid steps so v7x megacore can split the grid."""
    if B <= 2:
        return 1
    bb = min(8, B // 2)
    while B % bb:
        bb -= 1
    return max(bb, 1)


def _vmem_limit_bytes(BB, H, W, CIN, FEAT, SEG, CF):
    """Rough per-step VMEM footprint (lane-padding pessimism), clamped to v7x physical."""
    hw = H * W
    pad = (H + 2) * (W + 2)
    est = 0
    est += 4 * BB * pad * (CIN + FEAT + SEG)            # f32 padded scratch buffers
    est += 2 * BB * hw * 9 * (CIN + FEAT + SEG)         # bf16 patch matrices
    est += 4 * BB * hw * 6 * max(FEAT, 128)             # f32 intermediates (lane padded)
    est += 2 * 4 * BB * hw * (CIN + SEG + CF)           # double-buffered in/out blocks
    est += 4 * 9 * (CIN + 2 * FEAT + SEG) * FEAT        # weights
    return int(min(max(2 * est, 32 * 1024 * 1024), 64 * 1024 * 1024))


def encoder_decoder_forward(x_image_nchw, params):
    """compute_seg=True, compute_crossfield=True, use_images=True, use_lidar=False."""
    x = jnp.transpose(x_image_nchw, (0, 2, 3, 1)).astype(jnp.float32)   # NCHW -> NHWC
    B, H, W, CIN = x.shape
    FEAT = params["enc_w3"].shape[-1]
    SEG = params["seg_w1"].shape[-1]
    CF = params["cf_w1"].shape[-1]
    BB = _pick_batch_block(B)
    assert B % BB == 0

    f32, bf16 = jnp.float32, _MXU_DTYPE
    row = lambda t: t.reshape(1, -1).astype(f32)
    col = lambda t: t.reshape(-1, 1).astype(f32)

    # Fold BN (running stats) into the 3x3 convs in f32, then cast weights to bf16.
    g, b_, m, v = params["seg_bn"]
    seg_w3, seg_b3 = _fold_bn(params["seg_w3"], params["seg_b3"], g, b_, m, v)
    g, b_, m, v = params["cf_bn"]
    cf_w3, cf_b3 = _fold_bn(params["cf_w3"], params["cf_b3"], g, b_, m, v)
    # Split the crossfield 3x3 weight along input channels so feature patches are reused.
    cf_w3_feat = cf_w3[:, :, :FEAT, :].reshape(9 * FEAT, FEAT)
    cf_w3_seg = cf_w3[:, :, FEAT:, :].reshape(9 * SEG, FEAT)

    args = (
        x,
        _flatten_w3(params["enc_w3"]).astype(bf16), row(params["enc_b3"]),
        _flatten_w3(seg_w3).astype(bf16),           row(seg_b3),
        params["seg_w1"].astype(bf16),              row(params["seg_b1"]),
        params["seg_w1"].T.astype(bf16),            col(params["seg_b1"]),
        cf_w3_feat.astype(bf16), cf_w3_seg.astype(bf16), row(cf_b3),
        params["cf_w1"].T.astype(bf16),             col(params["cf_b1"]),
    )

    def _w(shape):
        zeros = (0,) * len(shape)
        return pl.BlockSpec(shape, lambda b: zeros)

    in_specs = [
        pl.BlockSpec((BB, H, W, CIN), lambda b: (b, 0, 0, 0)),   # x (batch block)
        _w((9 * CIN, FEAT)), _w((1, FEAT)),                      # enc w3 / b3
        _w((9 * FEAT, FEAT)), _w((1, FEAT)),                     # seg w3 (BN folded) / b3
        _w((FEAT, SEG)), _w((1, SEG)),                           # seg w1 / b1 (row)
        _w((SEG, FEAT)), _w((SEG, 1)),                           # seg w1^T / b1 (col)
        _w((9 * FEAT, FEAT)), _w((9 * SEG, FEAT)), _w((1, FEAT)),  # cf w3 split / b3
        _w((CF, FEAT)), _w((CF, 1)),                             # cf w1^T / b1 (col)
    ]
    out_specs = (
        pl.BlockSpec((BB, SEG, H * W), lambda b: (b, 0, 0)),
        pl.BlockSpec((BB, CF, H * W), lambda b: (b, 0, 0)),
    )
    scratch_shapes = [
        pltpu.VMEM((BB, H + 2, W + 2, CIN), f32),   # padded input
        pltpu.VMEM((BB, H + 2, W + 2, FEAT), f32),  # padded features
        pltpu.VMEM((BB, H + 2, W + 2, SEG), f32),   # padded seg
    ]

    kernel = functools.partial(_encoder_decoder_kernel, H=H, W=W)

    seg_cf_first, cf_cf_first = pl.pallas_call(
        kernel,
        out_shape=(jax.ShapeDtypeStruct((B, SEG, H * W), f32),
                   jax.ShapeDtypeStruct((B, CF, H * W), f32)),
        grid=(B // BB,),
        in_specs=in_specs,
        out_specs=out_specs,
        scratch_shapes=scratch_shapes,
        compiler_params=pltpu.CompilerParams(
            dimension_semantics=("parallel",),
            vmem_limit_bytes=_vmem_limit_bytes(BB, H, W, CIN, FEAT, SEG, CF)),
    )(*args)

    # (B, C, H*W) -> (B, C, H, W): layout-compatible reshape (no transpose pass).
    return {
        "seg": seg_cf_first.reshape(B, SEG, H, W),
        "crossfield": cf_cf_first.reshape(B, CF, H, W),
    }


# ---------------------------------------------------------------------------
# Parameter construction (deterministic, synthetic).
# ---------------------------------------------------------------------------
def make_params(key, in_channels, feat_dim, seg_channels, crossfield_channels):
    ks = jax.random.split(key, 12)
    scale = 0.05

    conv3 = lambda k, ci, co: scale * jax.random.normal(k, (3, 3, ci, co), jnp.float32)
    conv1 = lambda k, ci, co: scale * jax.random.normal(k, (ci, co), jnp.float32)

    def bn(kg, kb, c):
        gamma = 1.0 + 0.1 * jax.random.normal(kg, (c,), jnp.float32)
        beta = 0.1 * jax.random.normal(kb, (c,), jnp.float32)
        return gamma, beta, jnp.zeros((c,), jnp.float32), jnp.ones((c,), jnp.float32)

    return {
        # Synthetic encoder: Conv3x3(in -> feat) + ReLU
        "enc_w3": conv3(ks[0], in_channels, feat_dim),
        "enc_b3": jnp.zeros((feat_dim,), jnp.float32),
        # seg_module: Conv3x3, BN, ReLU, Conv1x1, Sigmoid
        "seg_w3": conv3(ks[1], feat_dim, feat_dim),
        "seg_b3": scale * jax.random.normal(ks[2], (feat_dim,), jnp.float32),
        "seg_bn": bn(ks[3], ks[4], feat_dim),
        "seg_w1": conv1(ks[5], feat_dim, seg_channels),
        "seg_b1": scale * jax.random.normal(ks[6], (seg_channels,), jnp.float32),
        # crossfield_module: Conv3x3(feat+seg -> feat), BN, ReLU, Conv1x1(feat -> 4), Tanh, *2
        "cf_w3": conv3(ks[7], feat_dim + seg_channels, feat_dim),
        "cf_b3": scale * jax.random.normal(ks[8], (feat_dim,), jnp.float32),
        "cf_bn": bn(ks[9], ks[10], feat_dim),
        "cf_w1": conv1(ks[11], feat_dim, crossfield_channels),
        "cf_b1": jnp.zeros((crossfield_channels,), jnp.float32),
    }


# ---------------------------------------------------------------------------
# Pure-JAX (f32) reference for correctness checking.
# ---------------------------------------------------------------------------
def _reference_forward(x_image_nchw, params):
    x = jnp.transpose(x_image_nchw, (0, 2, 3, 1)).astype(jnp.float32)

    def conv3(v, w, b):
        y = jax.lax.conv_general_dilated(
            v, w, (1, 1), "SAME", dimension_numbers=("NHWC", "HWIO", "NHWC"))
        return y + b

    def bn(v, g, be, m, var):
        return (v - m) * jax.lax.rsqrt(var + _BN_EPS) * g + be

    feat = jax.nn.relu(conv3(x, params["enc_w3"], params["enc_b3"]))
    g, be, m, v = params["seg_bn"]
    h = jax.nn.relu(bn(conv3(feat, params["seg_w3"], params["seg_b3"]), g, be, m, v))
    seg = jax.nn.sigmoid(jnp.einsum("bhwc,cd->bhwd", h, params["seg_w1"])
                         + params["seg_b1"])
    cat = jnp.concatenate([feat, seg], axis=-1)
    g, be, m, v = params["cf_bn"]
    h2 = jax.nn.relu(bn(conv3(cat, params["cf_w3"], params["cf_b3"]), g, be, m, v))
    cf = 2.0 * jnp.tanh(jnp.einsum("bhwc,cd->bhwd", h2, params["cf_w1"])
                        + params["cf_b1"])
    return {"seg": jnp.transpose(seg, (0, 3, 1, 2)),
            "crossfield": jnp.transpose(cf, (0, 3, 1, 2))}


if __name__ == "__main__":
    # Small, module-consistent shapes:
    #   batch=2, image channels=3, spatial 16x16, backbone_out_features=32,
    #   seg_channels = compute_vertex + compute_edge + compute_interior = 3,
    #   crossfield_channels = 4.
    B, IN_CH, H, W = 2, 3, 16, 16
    FEAT, SEG_CH, CF_CH = 32, 3, 4

    key = jax.random.PRNGKey(0)
    k_x, k_p = jax.random.split(key)
    x_image = jax.random.normal(k_x, (B, IN_CH, H, W), jnp.float32)
    params = make_params(k_p, IN_CH, FEAT, SEG_CH, CF_CH)

    outputs = jax.jit(encoder_decoder_forward)(x_image, params)
    jax.block_until_ready(outputs)

    assert outputs["seg"].shape == (B, SEG_CH, H, W)
    assert outputs["crossfield"].shape == (B, CF_CH, H, W)
    # Activation-range sanity (sigmoid in (0,1); 2*tanh in [-2,2]).
    assert bool(jnp.all((outputs["seg"] > 0.0) & (outputs["seg"] < 1.0)))
    assert bool(jnp.all(jnp.abs(outputs["crossfield"]) <= 2.0))

    # Numerical check vs f32 pure-JAX reference (bf16 MXU operands -> loose tol).
    ref = jax.jit(_reference_forward)(x_image, params)
    jax.block_until_ready(ref)
    seg_err = float(jnp.max(jnp.abs(outputs["seg"] - ref["seg"])))
    cf_err = float(jnp.max(jnp.abs(outputs["crossfield"] - ref["crossfield"])))
    assert seg_err < 3e-2, f"seg max abs err {seg_err}"
    assert cf_err < 3e-2, f"crossfield max abs err {cf_err}"

    print("KERNEL_OK")
</pallas_src>

<mosaic_0001>
module attributes {stable_mosaic.version = 11 : i64} {
  func.func @_encoder_decoder_kernel(%arg0: i32, %arg1: memref<1x16x16x3xf32, #tpu.memory_space<vmem>>, %arg2: memref<27x32xbf16, #tpu.memory_space<vmem>>, %arg3: memref<1x32xf32, #tpu.memory_space<vmem>>, %arg4: memref<288x32xbf16, #tpu.memory_space<vmem>>, %arg5: memref<1x32xf32, #tpu.memory_space<vmem>>, %arg6: memref<32x3xbf16, #tpu.memory_space<vmem>>, %arg7: memref<1x3xf32, #tpu.memory_space<vmem>>, %arg8: memref<3x32xbf16, #tpu.memory_space<vmem>>, %arg9: memref<3x1xf32, #tpu.memory_space<vmem>>, %arg10: memref<288x32xbf16, #tpu.memory_space<vmem>>, %arg11: memref<27x32xbf16, #tpu.memory_space<vmem>>, %arg12: memref<1x32xf32, #tpu.memory_space<vmem>>, %arg13: memref<4x32xbf16, #tpu.memory_space<vmem>>, %arg14: memref<4x1xf32, #tpu.memory_space<vmem>>, %arg15: memref<1x3x256xf32, #tpu.memory_space<vmem>>, %arg16: memref<1x4x256xf32, #tpu.memory_space<vmem>>, %arg17: memref<1x18x18x3xf32, #tpu.memory_space<vmem>>, %arg18: memref<1x18x18x32xf32, #tpu.memory_space<vmem>>, %arg19: memref<1x18x18x3xf32, #tpu.memory_space<vmem>>) attributes {dimension_semantics = [#tpu.dimension_semantics<parallel>], iteration_bounds = array<i64: 2>, scalar_prefetch = 0 : i64, scratch_operands = 3 : i64, tpu.core_type = #tpu.core_type<tc>, window_params = [{transform_indices = @transform_0, window_bounds = array<i64: 1, 16, 16, 3>}, {pipeline_mode = #tpu.pipeline_mode<synchronous>, transform_indices = @transform_1, window_bounds = array<i64: 27, 32>}, {pipeline_mode = #tpu.pipeline_mode<synchronous>, transform_indices = @transform_2, window_bounds = array<i64: 1, 32>}, {pipeline_mode = #tpu.pipeline_mode<synchronous>, transform_indices = @transform_3, window_bounds = array<i64: 288, 32>}, {pipeline_mode = #tpu.pipeline_mode<synchronous>, transform_indices = @transform_4, window_bounds = array<i64: 1, 32>}, {pipeline_mode = #tpu.pipeline_mode<synchronous>, transform_indices = @transform_5, window_bounds = array<i64: 32, 3>}, {pipeline_mode = #tpu.pipeline_mode<synchronous>, transform_indices = @transform_6, window_bounds = array<i64: 1, 3>}, {pipeline_mode = #tpu.pipeline_mode<synchronous>, transform_indices = @transform_7, window_bounds = array<i64: 3, 32>}, {pipeline_mode = #tpu.pipeline_mode<synchronous>, transform_indices = @transform_8, window_bounds = array<i64: 3, 1>}, {pipeline_mode = #tpu.pipeline_mode<synchronous>, transform_indices = @transform_9, window_bounds = array<i64: 288, 32>}, {pipeline_mode = #tpu.pipeline_mode<synchronous>, transform_indices = @transform_10, window_bounds = array<i64: 27, 32>}, {pipeline_mode = #tpu.pipeline_mode<synchronous>, transform_indices = @transform_11, window_bounds = array<i64: 1, 32>}, {pipeline_mode = #tpu.pipeline_mode<synchronous>, transform_indices = @transform_12, window_bounds = array<i64: 4, 32>}, {pipeline_mode = #tpu.pipeline_mode<synchronous>, transform_indices = @transform_13, window_bounds = array<i64: 4, 1>}, {transform_indices = @transform_14, window_bounds = array<i64: 1, 3, 256>}, {transform_indices = @transform_15, window_bounds = array<i64: 1, 4, 256>}]} {
    %c0 = arith.constant 0 : index
    %c0_0 = arith.constant 0 : index
    %c0_1 = arith.constant 0 : index
    %c0_2 = arith.constant 0 : index
    %0 = vector.load %arg1[%c0, %c0_0, %c0_1, %c0_2] : memref<1x16x16x3xf32, #tpu.memory_space<vmem>>, vector<1x16x16x3xf32>
    %cst = arith.constant 0.000000e+00 : f32
    %1 = vector.broadcast %cst : f32 to vector<1x16x1x3xf32>
    %2 = tpu.concatenate %1, %0, %1 in 2 : vector<1x16x1x3xf32>, vector<1x16x16x3xf32>, vector<1x16x1x3xf32> -> vector<1x16x18x3xf32>
    %c0_3 = arith.constant 0 : index
    %c1 = arith.constant 1 : index
    %c0_4 = arith.constant 0 : index
    %c0_5 = arith.constant 0 : index
    %3 = vector.load %arg17[%c0_3, %c1, %c0_4, %c0_5] : memref<1x18x18x3xf32, #tpu.memory_space<vmem>>, vector<1x16x18x3xf32>
    tpu.vector_store %arg17[%c0_3, %c1, %c0_4, %c0_5], %2 {strides = array<i32>} : memref<1x18x18x3xf32, #tpu.memory_space<vmem>>, vector<1x16x18x3xf32>,
    %cst_6 = arith.constant 0.000000e+00 : f32
    %4 = vector.broadcast %cst_6 : f32 to vector<1x1x18x3xf32>
    %c0_7 = arith.constant 0 : index
    %c0_8 = arith.constant 0 : index
    %c0_9 = arith.constant 0 : index
    %c0_10 = arith.constant 0 : index
    %5 = vector.load %arg17[%c0_7, %c0_8, %c0_9, %c0_10] : memref<1x18x18x3xf32, #tpu.memory_space<vmem>>, vector<1x1x18x3xf32>
    tpu.vector_store %arg17[%c0_7, %c0_8, %c0_9, %c0_10], %4 {strides = array<i32>} : memref<1x18x18x3xf32, #tpu.memory_space<vmem>>, vector<1x1x18x3xf32>,
    %c0_11 = arith.constant 0 : index
    %c17 = arith.constant 17 : index
    %c0_12 = arith.constant 0 : index
    %c0_13 = arith.constant 0 : index
    %6 = vector.load %arg17[%c0_11, %c17, %c0_12, %c0_13] : memref<1x18x18x3xf32, #tpu.memory_space<vmem>>, vector<1x1x18x3xf32>
    tpu.vector_store %arg17[%c0_11, %c17, %c0_12, %c0_13], %4 {strides = array<i32>} : memref<1x18x18x3xf32, #tpu.memory_space<vmem>>, vector<1x1x18x3xf32>,
    %c0_14 = arith.constant 0 : index
    %c0_15 = arith.constant 0 : index
    %c0_16 = arith.constant 0 : index
    %c0_17 = arith.constant 0 : index
    %7 = vector.load %arg17[%c0_14, %c0_15, %c0_16, %c0_17] : memref<1x18x18x3xf32, #tpu.memory_space<vmem>>, vector<1x16x16x3xf32>
    %c0_18 = arith.constant 0 : index
    %c0_19 = arith.constant 0 : index
    %c1_20 = arith.constant 1 : index
    %c0_21 = arith.constant 0 : index
    %8 = vector.load %arg17[%c0_18, %c0_19, %c1_20, %c0_21] : memref<1x18x18x3xf32, #tpu.memory_space<vmem>>, vector<1x16x16x3xf32>
    %c0_22 = arith.constant 0 : index
    %c0_23 = arith.constant 0 : index
    %c2 = arith.constant 2 : index
    %c0_24 = arith.constant 0 : index
    %9 = vector.load %arg17[%c0_22, %c0_23, %c2, %c0_24] : memref<1x18x18x3xf32, #tpu.memory_space<vmem>>, vector<1x16x16x3xf32>
    %c0_25 = arith.constant 0 : index
    %c1_26 = arith.constant 1 : index
    %c0_27 = arith.constant 0 : index
    %c0_28 = arith.constant 0 : index
    %10 = vector.load %arg17[%c0_25, %c1_26, %c0_27, %c0_28] : memref<1x18x18x3xf32, #tpu.memory_space<vmem>>, vector<1x16x16x3xf32>
    %c0_29 = arith.constant 0 : index
    %c1_30 = arith.constant 1 : index
    %c1_31 = arith.constant 1 : index
    %c0_32 = arith.constant 0 : index
    %11 = vector.load %arg17[%c0_29, %c1_30, %c1_31, %c0_32] : memref<1x18x18x3xf32, #tpu.memory_space<vmem>>, vector<1x16x16x3xf32>
    %c0_33 = arith.constant 0 : index
    %c1_34 = arith.constant 1 : index
    %c2_35 = arith.constant 2 : index
    %c0_36 = arith.constant 0 : index
    %12 = vector.load %arg17[%c0_33, %c1_34, %c2_35, %c0_36] : memref<1x18x18x3xf32, #tpu.memory_space<vmem>>, vector<1x16x16x3xf32>
    %c0_37 = arith.constant 0 : index
    %c2_38 = arith.constant 2 : index
    %c0_39 = arith.constant 0 : index
    %c0_40 = arith.constant 0 : index
    %13 = vector.load %arg17[%c0_37, %c2_38, %c0_39, %c0_40] : memref<1x18x18x3xf32, #tpu.memory_space<vmem>>, vector<1x16x16x3xf32>
    %c0_41 = arith.constant 0 : index
    %c2_42 = arith.constant 2 : index
    %c1_43 = arith.constant 1 : index
    %c0_44 = arith.constant 0 : index
    %14 = vector.load %arg17[%c0_41, %c2_42, %c1_43, %c0_44] : memref<1x18x18x3xf32, #tpu.memory_space<vmem>>, vector<1x16x16x3xf32>
    %c0_45 = arith.constant 0 : index
    %c2_46 = arith.constant 2 : index
    %c2_47 = arith.constant 2 : index
    %c0_48 = arith.constant 0 : index
    %15 = vector.load %arg17[%c0_45, %c2_46, %c2_47, %c0_48] : memref<1x18x18x3xf32, #tpu.memory_space<vmem>>, vector<1x16x16x3xf32>
    %16 = tpu.concatenate %7, %8, %9, %10, %11, %12, %13, %14, %15 in 3 : vector<1x16x16x3xf32>, vector<1x16x16x3xf32>, vector<1x16x16x3xf32>, vector<1x16x16x3xf32>, vector<1x16x16x3xf32>, vector<1x16x16x3xf32>, vector<1x16x16x3xf32>, vector<1x16x16x3xf32>, vector<1x16x16x3xf32> -> vector<1x16x16x27xf32>
    %17 = vector.shape_cast %16 : vector<1x16x16x27xf32> to vector<256x27xf32>
    %18 = arith.truncf %17 : vector<256x27xf32> to vector<256x27xbf16>
    %c0_49 = arith.constant 0 : index
    %c0_50 = arith.constant 0 : index
    %19 = vector.load %arg2[%c0_49, %c0_50] : memref<27x32xbf16, #tpu.memory_space<vmem>>, vector<27x32xbf16>
    %cst_51 = arith.constant dense<0.000000e+00> : vector<256x32xf32>
    %20 = tpu.matmul %18, %19, %cst_51 {dimension_numbers = #tpu.dot_dimension_numbers<[1], [0], [0], [1], [0, 0, 1, 1], [], []>} : vector<256x27xbf16>, vector<27x32xbf16>, vector<256x32xf32> -> vector<256x32xf32>
    %c0_52 = arith.constant 0 : index
    %c0_53 = arith.constant 0 : index
    %21 = vector.load %arg3[%c0_52, %c0_53] : memref<1x32xf32, #tpu.memory_space<vmem>>, vector<1x32xf32>
    %22 = vector.broadcast %21 : vector<1x32xf32> to vector<256x32xf32>
    %23 = arith.addf %20, %22 : vector<256x32xf32>
    %cst_54 = arith.constant 0.000000e+00 : f32
    %24 = vector.broadcast %cst_54 : f32 to vector<256x32xf32>
    %25 = arith.maximumf %23, %24 : vector<256x32xf32>
    %26 = vector.shape_cast %25 : vector<256x32xf32> to vector<1x16x16x32xf32>
    %cst_55 = arith.constant 0.000000e+00 : f32
    %27 = vector.broadcast %cst_55 : f32 to vector<1x16x1x32xf32>
    %28 = tpu.concatenate %27, %26, %27 in 2 : vector<1x16x1x32xf32>, vector<1x16x16x32xf32>, vector<1x16x1x32xf32> -> vector<1x16x18x32xf32>
    %c0_56 = arith.constant 0 : index
    %c1_57 = arith.constant 1 : index
    %c0_58 = arith.constant 0 : index
    %c0_59 = arith.constant 0 : index
    %29 = vector.load %arg18[%c0_56, %c1_57, %c0_58, %c0_59] : memref<1x18x18x32xf32, #tpu.memory_space<vmem>>, vector<1x16x18x32xf32>
    tpu.vector_store %arg18[%c0_56, %c1_57, %c0_58, %c0_59], %28 {strides = array<i32>} : memref<1x18x18x32xf32, #tpu.memory_space<vmem>>, vector<1x16x18x32xf32>,
    %cst_60 = arith.constant 0.000000e+00 : f32
    %30 = vector.broadcast %cst_60 : f32 to vector<1x1x18x32xf32>
    %c0_61 = arith.constant 0 : index
    %c0_62 = arith.constant 0 : index
    %c0_63 = arith.constant 0 : index
    %c0_64 = arith.constant 0 : index
    %31 = vector.load %arg18[%c0_61, %c0_62, %c0_63, %c0_64] : memref<1x18x18x32xf32, #tpu.memory_space<vmem>>, vector<1x1x18x32xf32>
    tpu.vector_store %arg18[%c0_61, %c0_62, %c0_63, %c0_64], %30 {strides = array<i32>} : memref<1x18x18x32xf32, #tpu.memory_space<vmem>>, vector<1x1x18x32xf32>,
    %c0_65 = arith.constant 0 : index
    %c17_66 = arith.constant 17 : index
    %c0_67 = arith.constant 0 : index
    %c0_68 = arith.constant 0 : index
    %32 = vector.load %arg18[%c0_65, %c17_66, %c0_67, %c0_68] : memref<1x18x18x32xf32, #tpu.memory_space<vmem>>, vector<1x1x18x32xf32>
    tpu.vector_store %arg18[%c0_65, %c17_66, %c0_67, %c0_68], %30 {strides = array<i32>} : memref<1x18x18x32xf32, #tpu.memory_space<vmem>>, vector<1x1x18x32xf32>,
    %c0_69 = arith.constant 0 : index
    %c0_70 = arith.constant 0 : index
    %c0_71 = arith.constant 0 : index
    %c0_72 = arith.constant 0 : index
    %33 = vector.load %arg18[%c0_69, %c0_70, %c0_71, %c0_72] : memref<1x18x18x32xf32, #tpu.memory_space<vmem>>, vector<1x16x16x32xf32>
    %c0_73 = arith.constant 0 : index
    %c0_74 = arith.constant 0 : index
    %c1_75 = arith.constant 1 : index
    %c0_76 = arith.constant 0 : index
    %34 = vector.load %arg18[%c0_73, %c0_74, %c1_75, %c0_76] : memref<1x18x18x32xf32, #tpu.memory_space<vmem>>, vector<1x16x16x32xf32>
    %c0_77 = arith.constant 0 : index
    %c0_78 = arith.constant 0 : index
    %c2_79 = arith.constant 2 : index
    %c0_80 = arith.constant 0 : index
    %35 = vector.load %arg18[%c0_77, %c0_78, %c2_79, %c0_80] : memref<1x18x18x32xf32, #tpu.memory_space<vmem>>, vector<1x16x16x32xf32>
    %c0_81 = arith.constant 0 : index
    %c1_82 = arith.constant 1 : index
    %c0_83 = arith.constant 0 : index
    %c0_84 = arith.constant 0 : index
    %36 = vector.load %arg18[%c0_81, %c1_82, %c0_83, %c0_84] : memref<1x18x18x32xf32, #tpu.memory_space<vmem>>, vector<1x16x16x32xf32>
    %c0_85 = arith.constant 0 : index
    %c1_86 = arith.constant 1 : index
    %c1_87 = arith.constant 1 : index
    %c0_88 = arith.constant 0 : index
    %37 = vector.load %arg18[%c0_85, %c1_86, %c1_87, %c0_88] : memref<1x18x18x32xf32, #tpu.memory_space<vmem>>, vector<1x16x16x32xf32>
    %c0_89 = arith.constant 0 : index
    %c1_90 = arith.constant 1 : index
    %c2_91 = arith.constant 2 : index
    %c0_92 = arith.constant 0 : index
    %38 = vector.load %arg18[%c0_89, %c1_90, %c2_91, %c0_92] : memref<1x18x18x32xf32, #tpu.memory_space<vmem>>, vector<1x16x16x32xf32>
    %c0_93 = arith.constant 0 : index
    %c2_94 = arith.constant 2 : index
    %c0_95 = arith.constant 0 : index
    %c0_96 = arith.constant 0 : index
    %39 = vector.load %arg18[%c0_93, %c2_94, %c0_95, %c0_96] : memref<1x18x18x32xf32, #tpu.memory_space<vmem>>, vector<1x16x16x32xf32>
    %c0_97 = arith.constant 0 : index
    %c2_98 = arith.constant 2 : index
    %c1_99 = arith.constant 1 : index
    %c0_100 = arith.constant 0 : index
    %40 = vector.load %arg18[%c0_97, %c2_98, %c1_99, %c0_100] : memref<1x18x18x32xf32, #tpu.memory_space<vmem>>, vector<1x16x16x32xf32>
    %c0_101 = arith.constant 0 : index
    %c2_102 = arith.constant 2 : index
    %c2_103 = arith.constant 2 : index
    %c0_104 = arith.constant 0 : index
    %41 = vector.load %arg18[%c0_101, %c2_102, %c2_103, %c0_104] : memref<1x18x18x32xf32, #tpu.memory_space<vmem>>, vector<1x16x16x32xf32>
    %42 = tpu.concatenate %33, %34, %35, %36, %37, %38, %39, %40, %41 in 3 : vector<1x16x16x32xf32>, vector<1x16x16x32xf32>, vector<1x16x16x32xf32>, vector<1x16x16x32xf32>, vector<1x16x16x32xf32>, vector<1x16x16x32xf32>, vector<1x16x16x32xf32>, vector<1x16x16x32xf32>, vector<1x16x16x32xf32> -> vector<1x16x16x288xf32>
    %43 = vector.shape_cast %42 : vector<1x16x16x288xf32> to vector<256x288xf32>
    %44 = arith.truncf %43 : vector<256x288xf32> to vector<256x288xbf16>
    %c0_105 = arith.constant 0 : index
    %c0_106 = arith.constant 0 : index
    %45 = vector.load %arg4[%c0_105, %c0_106] : memref<288x32xbf16, #tpu.memory_space<vmem>>, vector<288x32xbf16>
    %cst_107 = arith.constant dense<0.000000e+00> : vector<256x32xf32>
    %46 = tpu.matmul %44, %45, %cst_107 {dimension_numbers = #tpu.dot_dimension_numbers<[1], [0], [0], [1], [0, 0, 1, 1], [], []>} : vector<256x288xbf16>, vector<288x32xbf16>, vector<256x32xf32> -> vector<256x32xf32>
    %c0_108 = arith.constant 0 : index
    %c0_109 = arith.constant 0 : index
    %47 = vector.load %arg5[%c0_108, %c0_109] : memref<1x32xf32, #tpu.memory_space<vmem>>, vector<1x32xf32>
    %48 = vector.broadcast %47 : vector<1x32xf32> to vector<256x32xf32>
    %49 = arith.addf %46, %48 : vector<256x32xf32>
    %cst_110 = arith.constant 0.000000e+00 : f32
    %50 = vector.broadcast %cst_110 : f32 to vector<256x32xf32>
    %51 = arith.maximumf %49, %50 : vector<256x32xf32>
    %52 = arith.truncf %51 : vector<256x32xf32> to vector<256x32xbf16>
    %c0_111 = arith.constant 0 : index
    %c0_112 = arith.constant 0 : index
    %53 = vector.load %arg6[%c0_111, %c0_112] : memref<32x3xbf16, #tpu.memory_space<vmem>>, vector<32x3xbf16>
    %cst_113 = arith.constant dense<0.000000e+00> : vector<256x3xf32>
    %54 = tpu.matmul %52, %53, %cst_113 {dimension_numbers = #tpu.dot_dimension_numbers<[1], [0], [0], [1], [0, 0, 1, 1], [], []>} : vector<256x32xbf16>, vector<32x3xbf16>, vector<256x3xf32> -> vector<256x3xf32>
    %c0_114 = arith.constant 0 : index
    %c0_115 = arith.constant 0 : index
    %55 = vector.load %arg7[%c0_114, %c0_115] : memref<1x3xf32, #tpu.memory_space<vmem>>, vector<1x3xf32>
    %56 = vector.broadcast %55 : vector<1x3xf32> to vector<256x3xf32>
    %57 = arith.addf %54, %56 : vector<256x3xf32>
    %58 = arith.negf %57 : vector<256x3xf32>
    %59 = math.exp %58 : vector<256x3xf32>
    %cst_116 = arith.constant 1.000000e+00 : f32
    %60 = vector.broadcast %cst_116 : f32 to vector<256x3xf32>
    %61 = arith.addf %60, %59 : vector<256x3xf32>
    %62 = arith.divf %60, %61 : vector<256x3xf32>
    %63 = tpu.transpose %51, [1, 0] : vector<256x32xf32> -> vector<32x256xf32>
    %64 = arith.truncf %63 : vector<32x256xf32> to vector<32x256xbf16>
    %c0_117 = arith.constant 0 : index
    %c0_118 = arith.constant 0 : index
    %65 = vector.load %arg8[%c0_117, %c0_118] : memref<3x32xbf16, #tpu.memory_space<vmem>>, vector<3x32xbf16>
    %cst_119 = arith.constant dense<0.000000e+00> : vector<3x256xf32>
    %66 = tpu.matmul %65, %64, %cst_119 {dimension_numbers = #tpu.dot_dimension_numbers<[1], [0], [0], [1], [0, 0, 1, 1], [], []>} : vector<3x32xbf16>, vector<32x256xbf16>, vector<3x256xf32> -> vector<3x256xf32>
    %c0_120 = arith.constant 0 : index
    %c0_121 = arith.constant 0 : index
    %67 = vector.load %arg9[%c0_120, %c0_121] : memref<3x1xf32, #tpu.memory_space<vmem>>, vector<3x1xf32>
    %68 = vector.broadcast %67 : vector<3x1xf32> to vector<3x256xf32>
    %69 = arith.addf %66, %68 : vector<3x256xf32>
    %70 = arith.negf %69 : vector<3x256xf32>
    %71 = math.exp %70 : vector<3x256xf32>
    %cst_122 = arith.constant 1.000000e+00 : f32
    %72 = vector.broadcast %cst_122 : f32 to vector<3x256xf32>
    %73 = arith.addf %72, %71 : vector<3x256xf32>
    %74 = arith.divf %72, %73 : vector<3x256xf32>
    %75 = vector.shape_cast %62 : vector<256x3xf32> to vector<1x16x16x3xf32>
    %cst_123 = arith.constant 0.000000e+00 : f32
    %76 = vector.broadcast %cst_123 : f32 to vector<1x16x1x3xf32>
    %77 = tpu.concatenate %76, %75, %76 in 2 : vector<1x16x1x3xf32>, vector<1x16x16x3xf32>, vector<1x16x1x3xf32> -> vector<1x16x18x3xf32>
    %c0_124 = arith.constant 0 : index
    %c1_125 = arith.constant 1 : index
    %c0_126 = arith.constant 0 : index
    %c0_127 = arith.constant 0 : index
    %78 = vector.load %arg19[%c0_124, %c1_125, %c0_126, %c0_127] : memref<1x18x18x3xf32, #tpu.memory_space<vmem>>, vector<1x16x18x3xf32>
    tpu.vector_store %arg19[%c0_124, %c1_125, %c0_126, %c0_127], %77 {strides = array<i32>} : memref<1x18x18x3xf32, #tpu.memory_space<vmem>>, vector<1x16x18x3xf32>,
    %cst_128 = arith.constant 0.000000e+00 : f32
    %79 = vector.broadcast %cst_128 : f32 to vector<1x1x18x3xf32>
    %c0_129 = arith.constant 0 : index
    %c0_130 = arith.constant 0 : index
    %c0_131 = arith.constant 0 : index
    %c0_132 = arith.constant 0 : index
    %80 = vector.load %arg19[%c0_129, %c0_130, %c0_131, %c0_132] : memref<1x18x18x3xf32, #tpu.memory_space<vmem>>, vector<1x1x18x3xf32>
    tpu.vector_store %arg19[%c0_129, %c0_130, %c0_131, %c0_132], %79 {strides = array<i32>} : memref<1x18x18x3xf32, #tpu.memory_space<vmem>>, vector<1x1x18x3xf32>,
    %c0_133 = arith.constant 0 : index
    %c17_134 = arith.constant 17 : index
    %c0_135 = arith.constant 0 : index
    %c0_136 = arith.constant 0 : index
    %81 = vector.load %arg19[%c0_133, %c17_134, %c0_135, %c0_136] : memref<1x18x18x3xf32, #tpu.memory_space<vmem>>, vector<1x1x18x3xf32>
    tpu.vector_store %arg19[%c0_133, %c17_134, %c0_135, %c0_136], %79 {strides = array<i32>} : memref<1x18x18x3xf32, #tpu.memory_space<vmem>>, vector<1x1x18x3xf32>,
    %c0_137 = arith.constant 0 : index
    %c0_138 = arith.constant 0 : index
    %c0_139 = arith.constant 0 : index
    %c0_140 = arith.constant 0 : index
    %82 = vector.load %arg19[%c0_137, %c0_138, %c0_139, %c0_140] : memref<1x18x18x3xf32, #tpu.memory_space<vmem>>, vector<1x16x16x3xf32>
    %c0_141 = arith.constant 0 : index
    %c0_142 = arith.constant 0 : index
    %c1_143 = arith.constant 1 : index
    %c0_144 = arith.constant 0 : index
    %83 = vector.load %arg19[%c0_141, %c0_142, %c1_143, %c0_144] : memref<1x18x18x3xf32, #tpu.memory_space<vmem>>, vector<1x16x16x3xf32>
    %c0_145 = arith.constant 0 : index
    %c0_146 = arith.constant 0 : index
    %c2_147 = arith.constant 2 : index
    %c0_148 = arith.constant 0 : index
    %84 = vector.load %arg19[%c0_145, %c0_146, %c2_147, %c0_148] : memref<1x18x18x3xf32, #tpu.memory_space<vmem>>, vector<1x16x16x3xf32>
    %c0_149 = arith.constant 0 : index
    %c1_150 = arith.constant 1 : index
    %c0_151 = arith.constant 0 : index
    %c0_152 = arith.constant 0 : index
    %85 = vector.load %arg19[%c0_149, %c1_150, %c0_151, %c0_152] : memref<1x18x18x3xf32, #tpu.memory_space<vmem>>, vector<1x16x16x3xf32>
    %c0_153 = arith.constant 0 : index
    %c1_154 = arith.constant 1 : index
    %c1_155 = arith.constant 1 : index
    %c0_156 = arith.constant 0 : index
    %86 = vector.load %arg19[%c0_153, %c1_154, %c1_155, %c0_156] : memref<1x18x18x3xf32, #tpu.memory_space<vmem>>, vector<1x16x16x3xf32>
    %c0_157 = arith.constant 0 : index
    %c1_158 = arith.constant 1 : index
    %c2_159 = arith.constant 2 : index
    %c0_160 = arith.constant 0 : index
    %87 = vector.load %arg19[%c0_157, %c1_158, %c2_159, %c0_160] : memref<1x18x18x3xf32, #tpu.memory_space<vmem>>, vector<1x16x16x3xf32>
    %c0_161 = arith.constant 0 : index
    %c2_162 = arith.constant 2 : index
    %c0_163 = arith.constant 0 : index
    %c0_164 = arith.constant 0 : index
    %88 = vector.load %arg19[%c0_161, %c2_162, %c0_163, %c0_164] : memref<1x18x18x3xf32, #tpu.memory_space<vmem>>, vector<1x16x16x3xf32>
    %c0_165 = arith.constant 0 : index
    %c2_166 = arith.constant 2 : index
    %c1_167 = arith.constant 1 : index
    %c0_168 = arith.constant 0 : index
    %89 = vector.load %arg19[%c0_165, %c2_166, %c1_167, %c0_168] : memref<1x18x18x3xf32, #tpu.memory_space<vmem>>, vector<1x16x16x3xf32>
    %c0_169 = arith.constant 0 : index
    %c2_170 = arith.constant 2 : index
    %c2_171 = arith.constant 2 : index
    %c0_172 = arith.constant 0 : index
    %90 = vector.load %arg19[%c0_169, %c2_170, %c2_171, %c0_172] : memref<1x18x18x3xf32, #tpu.memory_space<vmem>>, vector<1x16x16x3xf32>
    %91 = tpu.concatenate %82, %83, %84, %85, %86, %87, %88, %89, %90 in 3 : vector<1x16x16x3xf32>, vector<1x16x16x3xf32>, vector<1x16x16x3xf32>, vector<1x16x16x3xf32>, vector<1x16x16x3xf32>, vector<1x16x16x3xf32>, vector<1x16x16x3xf32>, vector<1x16x16x3xf32>, vector<1x16x16x3xf32> -> vector<1x16x16x27xf32>
    %92 = vector.shape_cast %91 : vector<1x16x16x27xf32> to vector<256x27xf32>
    %93 = arith.truncf %92 : vector<256x27xf32> to vector<256x27xbf16>
    %c0_173 = arith.constant 0 : index
    %c0_174 = arith.constant 0 : index
    %94 = vector.load %arg10[%c0_173, %c0_174] : memref<288x32xbf16, #tpu.memory_space<vmem>>, vector<288x32xbf16>
    %cst_175 = arith.constant dense<0.000000e+00> : vector<256x32xf32>
    %95 = tpu.matmul %44, %94, %cst_175 {dimension_numbers = #tpu.dot_dimension_numbers<[1], [0], [0], [1], [0, 0, 1, 1], [], []>} : vector<256x288xbf16>, vector<288x32xbf16>, vector<256x32xf32> -> vector<256x32xf32>
    %c0_176 = arith.constant 0 : index
    %c0_177 = arith.constant 0 : index
    %96 = vector.load %arg11[%c0_176, %c0_177] : memref<27x32xbf16, #tpu.memory_space<vmem>>, vector<27x32xbf16>
    %cst_178 = arith.constant dense<0.000000e+00> : vector<256x32xf32>
    %97 = tpu.matmul %93, %96, %cst_178 {dimension_numbers = #tpu.dot_dimension_numbers<[1], [0], [0], [1], [0, 0, 1, 1], [], []>} : vector<256x27xbf16>, vector<27x32xbf16>, vector<256x32xf32> -> vector<256x32xf32>
    %98 = arith.addf %95, %97 : vector<256x32xf32>
    %c0_179 = arith.constant 0 : index
    %c0_180 = arith.constant 0 : index
    %99 = vector.load %arg12[%c0_179, %c0_180] : memref<1x32xf32, #tpu.memory_space<vmem>>, vector<1x32xf32>
    %100 = vector.broadcast %99 : vector<1x32xf32> to vector<256x32xf32>
    %101 = arith.addf %98, %100 : vector<256x32xf32>
    %cst_181 = arith.constant 0.000000e+00 : f32
    %102 = vector.broadcast %cst_181 : f32 to vector<256x32xf32>
    %103 = arith.maximumf %101, %102 : vector<256x32xf32>
    %104 = tpu.transpose %103, [1, 0] : vector<256x32xf32> -> vector<32x256xf32>
    %105 = arith.truncf %104 : vector<32x256xf32> to vector<32x256xbf16>
    %c0_182 = arith.constant 0 : index
    %c0_183 = arith.constant 0 : index
    %106 = vector.load %arg13[%c0_182, %c0_183] : memref<4x32xbf16, #tpu.memory_space<vmem>>, vector<4x32xbf16>
    %cst_184 = arith.constant dense<0.000000e+00> : vector<4x256xf32>
    %107 = tpu.matmul %106, %105, %cst_184 {dimension_numbers = #tpu.dot_dimension_numbers<[1], [0], [0], [1], [0, 0, 1, 1], [], []>} : vector<4x32xbf16>, vector<32x256xbf16>, vector<4x256xf32> -> vector<4x256xf32>
    %c0_185 = arith.constant 0 : index
    %c0_186 = arith.constant 0 : index
    %108 = vector.load %arg14[%c0_185, %c0_186] : memref<4x1xf32, #tpu.memory_space<vmem>>, vector<4x1xf32>
    %109 = vector.broadcast %108 : vector<4x1xf32> to vector<4x256xf32>
    %110 = arith.addf %107, %109 : vector<4x256xf32>
    %111 = math.tanh %110 : vector<4x256xf32>
    %cst_187 = arith.constant 2.000000e+00 : f32
    %112 = vector.broadcast %cst_187 : f32 to vector<4x256xf32>
    %113 = arith.mulf %112, %111 : vector<4x256xf32>
    %c0_188 = arith.constant 0 : index
    %c0_189 = arith.constant 0 : index
    %c0_190 = arith.constant 0 : index
    %114 = vector.load %arg15[%c0_188, %c0_189, %c0_190] : memref<1x3x256xf32, #tpu.memory_space<vmem>>, vector<1x3x256xf32>
    %115 = vector.shape_cast %114 : vector<1x3x256xf32> to vector<3x256xf32>
    %116 = vector.shape_cast %74 : vector<3x256xf32> to vector<1x3x256xf32>
    tpu.vector_store %arg15[%c0_188, %c0_189, %c0_190], %116 {strides = array<i32>} : memref<1x3x256xf32, #tpu.memory_space<vmem>>, vector<1x3x256xf32>,
    %c0_191 = arith.constant 0 : index
    %c0_192 = arith.constant 0 : index
    %c0_193 = arith.constant 0 : index
    %117 = vector.load %arg16[%c0_191, %c0_192, %c0_193] : memref<1x4x256xf32, #tpu.memory_space<vmem>>, vector<1x4x256xf32>
    %118 = vector.shape_cast %117 : vector<1x4x256xf32> to vector<4x256xf32>
    %119 = vector.shape_cast %113 : vector<4x256xf32> to vector<1x4x256xf32>
    tpu.vector_store %arg16[%c0_191, %c0_192, %c0_193], %119 {strides = array<i32>} : memref<1x4x256xf32, #tpu.memory_space<vmem>>, vector<1x4x256xf32>,
    return
  }
  func.func @transform_0(%arg0: i32) -> (i32, i32, i32, i32) {
    %c0_i32 = arith.constant 0 : i32
    %c0_i32_0 = arith.constant 0 : i32
    %c0_i32_1 = arith.constant 0 : i32
    %c0_i32_2 = arith.constant 0 : i32
    return %arg0, %c0_i32, %c0_i32_0, %c0_i32_1 : i32, i32, i32, i32
  }
  func.func @transform_1(%arg0: i32) -> (i32, i32) {
    %c0_i32 = arith.constant 0 : i32
    %c0_i32_0 = arith.constant 0 : i32
    %c0_i32_1 = arith.constant 0 : i32
    return %c0_i32, %c0_i32_0 : i32, i32
  }
  func.func @transform_2(%arg0: i32) -> (i32, i32) {
    %c0_i32 = arith.constant 0 : i32
    %c0_i32_0 = arith.constant 0 : i32
    %c0_i32_1 = arith.constant 0 : i32
    return %c0_i32, %c0_i32_0 : i32, i32
  }
  func.func @transform_3(%arg0: i32) -> (i32, i32) {
    %c0_i32 = arith.constant 0 : i32
    %c0_i32_0 = arith.constant 0 : i32
    %c0_i32_1 = arith.constant 0 : i32
    return %c0_i32, %c0_i32_0 : i32, i32
  }
  func.func @transform_4(%arg0: i32) -> (i32, i32) {
    %c0_i32 = arith.constant 0 : i32
    %c0_i32_0 = arith.constant 0 : i32
    %c0_i32_1 = arith.constant 0 : i32
    return %c0_i32, %c0_i32_0 : i32, i32
  }
  func.func @transform_5(%arg0: i32) -> (i32, i32) {
    %c0_i32 = arith.constant 0 : i32
    %c0_i32_0 = arith.constant 0 : i32
    %c0_i32_1 = arith.constant 0 : i32
    return %c0_i32, %c0_i32_0 : i32, i32
  }
  func.func @transform_6(%arg0: i32) -> (i32, i32) {
    %c0_i32 = arith.constant 0 : i32
    %c0_i32_0 = arith.constant 0 : i32
    %c0_i32_1 = arith.constant 0 : i32
    return %c0_i32, %c0_i32_0 : i32, i32
  }
  func.func @transform_7(%arg0: i32) -> (i32, i32) {
    %c0_i32 = arith.constant 0 : i32
    %c0_i32_0 = arith.constant 0 : i32
    %c0_i32_1 = arith.constant 0 : i32
    return %c0_i32, %c0_i32_0 : i32, i32
  }
  func.func @transform_8(%arg0: i32) -> (i32, i32) {
    %c0_i32 = arith.constant 0 : i32
    %c0_i32_0 = arith.constant 0 : i32
    %c0_i32_1 = arith.constant 0 : i32
    return %c0_i32, %c0_i32_0 : i32, i32
  }
  func.func @transform_9(%arg0: i32) -> (i32, i32) {
    %c0_i32 = arith.constant 0 : i32
    %c0_i32_0 = arith.constant 0 : i32
    %c0_i32_1 = arith.constant 0 : i32
    return %c0_i32, %c0_i32_0 : i32, i32
  }
  func.func @transform_10(%arg0: i32) -> (i32, i32) {
    %c0_i32 = arith.constant 0 : i32
    %c0_i32_0 = arith.constant 0 : i32
    %c0_i32_1 = arith.constant 0 : i32
    return %c0_i32, %c0_i32_0 : i32, i32
  }
  func.func @transform_11(%arg0: i32) -> (i32, i32) {
    %c0_i32 = arith.constant 0 : i32
    %c0_i32_0 = arith.constant 0 : i32
    %c0_i32_1 = arith.constant 0 : i32
    return %c0_i32, %c0_i32_0 : i32, i32
  }
  func.func @transform_12(%arg0: i32) -> (i32, i32) {
    %c0_i32 = arith.constant 0 : i32
    %c0_i32_0 = arith.constant 0 : i32
    %c0_i32_1 = arith.constant 0 : i32
    return %c0_i32, %c0_i32_0 : i32, i32
  }
  func.func @transform_13(%arg0: i32) -> (i32, i32) {
    %c0_i32 = arith.constant 0 : i32
    %c0_i32_0 = arith.constant 0 : i32
    %c0_i32_1 = arith.constant 0 : i32
    return %c0_i32, %c0_i32_0 : i32, i32
  }
  func.func @transform_14(%arg0: i32) -> (i32, i32, i32) {
    %c0_i32 = arith.constant 0 : i32
    %c0_i32_0 = arith.constant 0 : i32
    %c0_i32_1 = arith.constant 0 : i32
    return %arg0, %c0_i32, %c0_i32_0 : i32, i32, i32
  }
  func.func @transform_15(%arg0: i32) -> (i32, i32, i32) {
    %c0_i32 = arith.constant 0 : i32
    %c0_i32_0 = arith.constant 0 : i32
    %c0_i32_1 = arith.constant 0 : i32
    return %arg0, %c0_i32, %c0_i32_0 : i32, i32, i32
  }
}

</mosaic_0001>

<llo_original>
// kernel: encoder_decoder_forward.1
$region0: #{encoder_decoder_forward.1}
  #allocation0 [shape = 'u32[]', space=smem, size = 0x4, offset = 0x4, fixed_abs, tag = 'smem constant byte address 0x4 - core index']
  #allocation1 [shape = 'u32[144,128]{1,0:T(1,128)}', space=vmem, size = 0x12000, scoped, tag = 'internal scratch']
  #allocation2 [shape = 'f32[1,18,18,3]{3,2,1,0:T(8,128)}', space=vmem, size = 0x36000, scoped, tag = 'scratch operand']
  #allocation3 [shape = 'f32[1,18,18,32]{3,2,1,0:T(8,128)}', space=vmem, size = 0x36000, scoped, tag = 'scratch operand']
  #allocation4 [shape = 'f32[1,18,18,3]{3,2,1,0:T(8,128)}', space=vmem, size = 0x36000, scoped, tag = 'scratch operand']
  %s0 = inlined_call_operand.vmem [shape: f32[2,16,16,3], index: 0, kind: input, shape index: {}]
  %s1 = inlined_call_operand.vmem [shape: bf16[27,32], index: 1, kind: input, shape index: {}]
  %s2 = inlined_call_operand.vmem [shape: f32[1,32], index: 2, kind: input, shape index: {}]
  %s3 = inlined_call_operand.vmem [shape: bf16[288,32], index: 3, kind: input, shape index: {}]
  %s4 = inlined_call_operand.vmem [shape: f32[1,32], index: 4, kind: input, shape index: {}]
  %s5 = inlined_call_operand.vmem [shape: bf16[32,3], index: 5, kind: input, shape index: {}]
  %s6 = inlined_call_operand.vmem [shape: f32[1,3], index: 6, kind: input, shape index: {}]
  %s7 = inlined_call_operand.vmem [shape: bf16[3,32], index: 7, kind: input, shape index: {}]
  %s8 = inlined_call_operand.vmem [shape: f32[3,1], index: 8, kind: input, shape index: {}]
  %s9 = inlined_call_operand.vmem [shape: bf16[288,32], index: 9, kind: input, shape index: {}]
  %s10 = inlined_call_operand.vmem [shape: bf16[27,32], index: 10, kind: input, shape index: {}]
  %s11 = inlined_call_operand.vmem [shape: f32[1,32], index: 11, kind: input, shape index: {}]
  %s12 = inlined_call_operand.vmem [shape: bf16[4,32], index: 12, kind: input, shape index: {}]
  %s13 = inlined_call_operand.vmem [shape: f32[4,1], index: 13, kind: input, shape index: {}]
  %s14 = inlined_call_operand.vmem [shape: f32[2,3,256], index: 14, kind: output, shape index: {0}]
  %s15 = inlined_call_operand.vmem [shape: f32[2,4,256], index: 15, kind: output, shape index: {1}]
  %16 = xla_tuple %s14, %s15
  %s17 = sld [smem:[#allocation0]]
  $region97: #{encoder_decoder_forward.1} parent=0
    _
  %s19 = ssub.s32 1, %s17
  %s20 = scalar_select 0, %s19, %s17
  loop: start=0, step=1, limit=4
  $region2: #{encoder_decoder_forward.1} parent=0 // loop_pre_header
    _
  $region3: #{encoder_decoder_forward.1} parent=0 // loop_header
    %s22 = sphi 0, %s26
    %p23 = scmp.ge.s32.totalorder %s22, 4
    %s32 = sphi 0, %s34
    %s35 = sphi 0, %s32
    %s36 = sphi 0, %s35
    %s52 = sphi 0, %s36
    %s56 = sphi 0, %s56
    %s58 = sphi 0, %s56
    %s59 = sphi 0, %s58
    %s73 = sphi 0, %s59
    %s77 = sphi 0, %s77
    %s79 = sphi 0, %s77
    %s80 = sphi 0, %s79
    %s94 = sphi 0, %s80
    %s98 = sphi 0, %s98
    %s100 = sphi 0, %s98
    %s101 = sphi 0, %s100
    %s115 = sphi 0, %s101
    %s119 = sphi 0, %s119
    %s121 = sphi 0, %s119
    %s122 = sphi 0, %s121
    %s136 = sphi 0, %s122
    %s140 = sphi 0, %s140
    %s142 = sphi 0, %s140
    %s143 = sphi 0, %s142
    %s157 = sphi 0, %s143
    %s161 = sphi 0, %s161
    %s163 = sphi 0, %s161
    %s164 = sphi 0, %s163
    %s178 = sphi 0, %s164
    %s182 = sphi 0, %s182
    %s184 = sphi 0, %s182
    %s185 = sphi 0, %s184
    %s199 = sphi 0, %s185
    %s203 = sphi 0, %s203
    %s205 = sphi 0, %s203
    %s206 = sphi 0, %s205
    %s220 = sphi 0, %s206
    %s224 = sphi 0, %s224
    %s226 = sphi 0, %s224
    %s227 = sphi 0, %s226
    %s241 = sphi 0, %s227
    %s245 = sphi 0, %s245
    %s247 = sphi 0, %s245
    %s248 = sphi 0, %s247
    %s262 = sphi 0, %s248
    %s266 = sphi 0, %s266
    %s268 = sphi 0, %s266
    %s269 = sphi 0, %s268
    %s283 = sphi 0, %s269
    %s287 = sphi 0, %s287
    %s289 = sphi 0, %s287
    %s290 = sphi 0, %s289
    %s304 = sphi 0, %s290
    %s308 = sphi 0, %s308
    %s310 = sphi 0, %s308
    %s311 = sphi 0, %s310
    %s325 = sphi 0, %s311
    %s331 = sphi 0, %s333
    %s334 = sphi 0, %s331
    %s335 = sphi 0, %s334
    %s351 = sphi 0, %s335
    %s357 = sphi 0, %s359
    %s360 = sphi 0, %s357
    %s361 = sphi 0, %s360
    %s377 = sphi 0, %s361
  $region4: #{encoder_decoder_forward.1} parent=0 // loop_header_branch
    %25 = sbr.rel (%p23) target = $region8
  $region5: #{encoder_decoder_forward.1} parent=0 // loop_body
    %s27 = ssub.s32 %s22, 1
    %s28 = ssub.s32 %s22, 2
    %s29 = sadd.s32 %s22, 1
    %s30 = ssub.s32 %s22, %s29
    %p31 = scmp.eq.s32.totalorder %s30, 0
    %s33 = sadd.s32 %s32, 1
    %s34 = scalar_select %p31, %s32, %s33
    %p37 = pneg %p31
    %p38 = scmp.eq.s32.totalorder %s22, 1
    %p39 = por %p37, %p38
    %p40 = scmp.ne.s32.totalorder %s32, %s35
    %p41 = scmp.eq.s32.totalorder %s22, 0
    %p42 = por %p40, %p41
    %p43 = scmp.ne.s32.totalorder %s32, %s35
    %p44 = scmp.eq.s32.totalorder %s27, 1
    %p45 = por %p43, %p44
    %p46 = scmp.ne.s32.totalorder %s35, %s36
    %p47 = scmp.eq.s32.totalorder %s27, 0
    %p48 = por %p46, %p47
    %p49 = scmp.ne.s32.totalorder %s35, %s36
    %p50 = scmp.eq.s32.totalorder %s28, 1
    %p51 = por %p49, %p50
    %p53 = scmp.ne.s32.totalorder %s36, %s52
    %p54 = scmp.eq.s32.totalorder %s28, 0
    %p55 = por %p53, %p54
    %s57 = sadd.s32 %s56, 1
    %p60 = scmp.eq.s32.totalorder %s22, 1
    %p61 = scmp.ne.s32.totalorder %s56, %s58
    %p62 = scmp.eq.s32.totalorder %s22, 0
    %p63 = por %p61, %p62
    %p64 = scmp.ne.s32.totalorder %s56, %s58
    %p65 = scmp.eq.s32.totalorder %s27, 1
    %p66 = por %p64, %p65
    %p67 = scmp.ne.s32.totalorder %s58, %s59
    %p68 = scmp.eq.s32.totalorder %s27, 0
    %p69 = por %p67, %p68
    %p70 = scmp.ne.s32.totalorder %s58, %s59
    %p71 = scmp.eq.s32.totalorder %s28, 1
    %p72 = por %p70, %p71
    %p74 = scmp.ne.s32.totalorder %s59, %s73
    %p75 = scmp.eq.s32.totalorder %s28, 0
    %p76 = por %p74, %p75
    %s78 = sadd.s32 %s77, 1
    %p81 = scmp.eq.s32.totalorder %s22, 1
    %p82 = scmp.ne.s32.totalorder %s77, %s79
    %p83 = scmp.eq.s32.totalorder %s22, 0
    %p84 = por %p82, %p83
    %p85 = scmp.ne.s32.totalorder %s77, %s79
    %p86 = scmp.eq.s32.totalorder %s27, 1
    %p87 = por %p85, %p86
    %p88 = scmp.ne.s32.totalorder %s79, %s80
    %p89 = scmp.eq.s32.totalorder %s27, 0
    %p90 = por %p88, %p89
    %p91 = scmp.ne.s32.totalorder %s79, %s80
    %p92 = scmp.eq.s32.totalorder %s28, 1
    %p93 = por %p91, %p92
    %p95 = scmp.ne.s32.totalorder %s80, %s94
    %p96 = scmp.eq.s32.totalorder %s28, 0
    %p97 = por %p95, %p96
    %s99 = sadd.s32 %s98, 1
    %p102 = scmp.eq.s32.totalorder %s22, 1
    %p103 = scmp.ne.s32.totalorder %s98, %s100
    %p104 = scmp.eq.s32.totalorder %s22, 0
    %p105 = por %p103, %p104
    %p106 = scmp.ne.s32.totalorder %s98, %s100
    %p107 = scmp.eq.s32.totalorder %s27, 1
    %p108 = por %p106, %p107
    %p109 = scmp.ne.s32.totalorder %s100, %s101
    %p110 = scmp.eq.s32.totalorder %s27, 0
    %p111 = por %p109, %p110
    %p112 = scmp.ne.s32.totalorder %s100, %s101
    %p113 = scmp.eq.s32.totalorder %s28, 1
    %p114 = por %p112, %p113
    %p116 = scmp.ne.s32.totalorder %s101, %s115
    %p117 = scmp.eq.s32.totalorder %s28, 0
    %p118 = por %p116, %p117
    %s120 = sadd.s32 %s119, 1
    %p123 = scmp.eq.s32.totalorder %s22, 1
    %p124 = scmp.ne.s32.totalorder %s119, %s121
    %p125 = scmp.eq.s32.totalorder %s22, 0
    %p126 = por %p124, %p125
    %p127 = scmp.ne.s32.totalorder %s119, %s121
    %p128 = scmp.eq.s32.totalorder %s27, 1
    %p129 = por %p127, %p128
    %p130 = scmp.ne.s32.totalorder %s121, %s122
    %p131 = scmp.eq.s32.totalorder %s27, 0
    %p132 = por %p130, %p131
    %p133 = scmp.ne.s32.totalorder %s121, %s122
    %p134 = scmp.eq.s32.totalorder %s28, 1
    %p135 = por %p133, %p134
    %p137 = scmp.ne.s32.totalorder %s122, %s136
    %p138 = scmp.eq.s32.totalorder %s28, 0
    %p139 = por %p137, %p138
    %s141 = sadd.s32 %s140, 1
    %p144 = scmp.eq.s32.totalorder %s22, 1
    %p145 = scmp.ne.s32.totalorder %s140, %s142
    %p146 = scmp.eq.s32.totalorder %s22, 0
    %p147 = por %p145, %p146
    %p148 = scmp.ne.s32.totalorder %s140, %s142
    %p149 = scmp.eq.s32.totalorder %s27, 1
    %p150 = por %p148, %p149
    %p151 = scmp.ne.s32.totalorder %s142, %s143
    %p152 = scmp.eq.s32.totalorder %s27, 0
    %p153 = por %p151, %p152
    %p154 = scmp.ne.s32.totalorder %s142, %s143
    %p155 = scmp.eq.s32.totalorder %s28, 1
    %p156 = por %p154, %p155
    %p158 = scmp.ne.s32.totalorder %s143, %s157
    %p159 = scmp.eq.s32.totalorder %s28, 0
    %p160 = por %p158, %p159
    %s162 = sadd.s32 %s161, 1
    %p165 = scmp.eq.s32.totalorder %s22, 1
    %p166 = scmp.ne.s32.totalorder %s161, %s163
    %p167 = scmp.eq.s32.totalorder %s22, 0
    %p168 = por %p166, %p167
    %p169 = scmp.ne.s32.totalorder %s161, %s163
    %p170 = scmp.eq.s32.totalorder %s27, 1
    %p171 = por %p169, %p170
    %p172 = scmp.ne.s32.totalorder %s163, %s164
    %p173 = scmp.eq.s32.totalorder %s27, 0
    %p174 = por %p172, %p173
    %p175 = scmp.ne.s32.totalorder %s163, %s164
    %p176 = scmp.eq.s32.totalorder %s28, 1
    %p177 = por %p175, %p176
    %p179 = scmp.ne.s32.totalorder %s164, %s178
    %p180 = scmp.eq.s32.totalorder %s28, 0
    %p181 = por %p179, %p180
    %s183 = sadd.s32 %s182, 1
    %p186 = scmp.eq.s32.totalorder %s22, 1
    %p187 = scmp.ne.s32.totalorder %s182, %s184
    %p188 = scmp.eq.s32.totalorder %s22, 0
    %p189 = por %p187, %p188
    %p190 = scmp.ne.s32.totalorder %s182, %s184
    %p191 = scmp.eq.s32.totalorder %s27, 1
    %p192 = por %p190, %p191
    %p193 = scmp.ne.s32.totalorder %s184, %s185
    %p194 = scmp.eq.s32.totalorder %s27, 0
    %p195 = por %p193, %p194
    %p196 = scmp.ne.s32.totalorder %s184, %s185
    %p197 = scmp.eq.s32.totalorder %s28, 1
    %p198 = por %p196, %p197
    %p200 = scmp.ne.s32.totalorder %s185, %s199
    %p201 = scmp.eq.s32.totalorder %s28, 0
    %p202 = por %p200, %p201
    %s204 = sadd.s32 %s203, 1
    %p207 = scmp.eq.s32.totalorder %s22, 1
    %p208 = scmp.ne.s32.totalorder %s203, %s205
    %p209 = scmp.eq.s32.totalorder %s22, 0
    %p210 = por %p208, %p209
    %p211 = scmp.ne.s32.totalorder %s203, %s205
    %p212 = scmp.eq.s32.totalorder %s27, 1
    %p213 = por %p211, %p212
    %p214 = scmp.ne.s32.totalorder %s205, %s206
    %p215 = scmp.eq.s32.totalorder %s27, 0
    %p216 = por %p214, %p215
    %p217 = scmp.ne.s32.totalorder %s205, %s206
    %p218 = scmp.eq.s32.totalorder %s28, 1
    %p219 = por %p217, %p218
    %p221 = scmp.ne.s32.totalorder %s206, %s220
    %p222 = scmp.eq.s32.totalorder %s28, 0
    %p223 = por %p221, %p222
    %s225 = sadd.s32 %s224, 1
    %p228 = scmp.eq.s32.totalorder %s22, 1
    %p229 = scmp.ne.s32.totalorder %s224, %s226
    %p230 = scmp.eq.s32.totalorder %s22, 0
    %p231 = por %p229, %p230
    %p232 = scmp.ne.s32.totalorder %s224, %s226
    %p233 = scmp.eq.s32.totalorder %s27, 1
    %p234 = por %p232, %p233
    %p235 = scmp.ne.s32.totalorder %s226, %s227
    %p236 = scmp.eq.s32.totalorder %s27, 0
    %p237 = por %p235, %p236
    %p238 = scmp.ne.s32.totalorder %s226, %s227
    %p239 = scmp.eq.s32.totalorder %s28, 1
    %p240 = por %p238, %p239
    %p242 = scmp.ne.s32.totalorder %s227, %s241
    %p243 = scmp.eq.s32.totalorder %s28, 0
    %p244 = por %p242, %p243
    %s246 = sadd.s32 %s245, 1
    %p249 = scmp.eq.s32.totalorder %s22, 1
    %p250 = scmp.ne.s32.totalorder %s245, %s247
    %p251 = scmp.eq.s32.totalorder %s22, 0
    %p252 = por %p250, %p251
    %p253 = scmp.ne.s32.totalorder %s245, %s247
    %p254 = scmp.eq.s32.totalorder %s27, 1
    %p255 = por %p253, %p254
    %p256 = scmp.ne.s32.totalorder %s247, %s248
    %p257 = scmp.eq.s32.totalorder %s27, 0
    %p258 = por %p256, %p257
    %p259 = scmp.ne.s32.totalorder %s247, %s248
    %p260 = scmp.eq.s32.totalorder %s28, 1
    %p261 = por %p259, %p260
    %p263 = scmp.ne.s32.totalorder %s248, %s262
    %p264 = scmp.eq.s32.totalorder %s28, 0
    %p265 = por %p263, %p264
    %s267 = sadd.s32 %s266, 1
    %p270 = scmp.eq.s32.totalorder %s22, 1
    %p271 = scmp.ne.s32.totalorder %s266, %s268
    %p272 = scmp.eq.s32.totalorder %s22, 0
    %p273 = por %p271, %p272
    %p274 = scmp.ne.s32.totalorder %s266, %s268
    %p275 = scmp.eq.s32.totalorder %s27, 1
    %p276 = por %p274, %p275
    %p277 = scmp.ne.s32.totalorder %s268, %s269
    %p278 = scmp.eq.s32.totalorder %s27, 0
    %p279 = por %p277, %p278
    %p280 = scmp.ne.s32.totalorder %s268, %s269
    %p281 = scmp.eq.s32.totalorder %s28, 1
    %p282 = por %p280, %p281
    %p284 = scmp.ne.s32.totalorder %s269, %s283
    %p285 = scmp.eq.s32.totalorder %s28, 0
    %p286 = por %p284, %p285
    %s288 = sadd.s32 %s287, 1
    %p291 = scmp.eq.s32.totalorder %s22, 1
    %p292 = scmp.ne.s32.totalorder %s287, %s289
    %p293 = scmp.eq.s32.totalorder %s22, 0
    %p294 = por %p292, %p293
    %p295 = scmp.ne.s32.totalorder %s287, %s289
    %p296 = scmp.eq.s32.totalorder %s27, 1
    %p297 = por %p295, %p296
    %p298 = scmp.ne.s32.totalorder %s289, %s290
    %p299 = scmp.eq.s32.totalorder %s27, 0
    %p300 = por %p298, %p299
    %p301 = scmp.ne.s32.totalorder %s289, %s290
    %p302 = scmp.eq.s32.totalorder %s28, 1
    %p303 = por %p301, %p302
    %p305 = scmp.ne.s32.totalorder %s290, %s304
    %p306 = scmp.eq.s32.totalorder %s28, 0
    %p307 = por %p305, %p306
    %s309 = sadd.s32 %s308, 1
    %p312 = scmp.eq.s32.totalorder %s22, 1
    %p313 = scmp.ne.s32.totalorder %s308, %s310
    %p314 = scmp.eq.s32.totalorder %s22, 0
    %p315 = por %p313, %p314
    %p316 = scmp.ne.s32.totalorder %s308, %s310
    %p317 = scmp.eq.s32.totalorder %s27, 1
    %p318 = por %p316, %p317
    %p319 = scmp.ne.s32.totalorder %s310, %s311
    %p320 = scmp.eq.s32.totalorder %s27, 0
    %p321 = por %p319, %p320
    %p322 = scmp.ne.s32.totalorder %s310, %s311
    %p323 = scmp.eq.s32.totalorder %s28, 1
    %p324 = por %p322, %p323
    %p326 = scmp.ne.s32.totalorder %s311, %s325
    %p327 = scmp.eq.s32.totalorder %s28, 0
    %p328 = por %p326, %p327
    %s329 = ssub.s32 %s22, %s29
    %p330 = scmp.eq.s32.totalorder %s329, 0
    %s332 = sadd.s32 %s331, 1
    %s333 = scalar_select %p330, %s331, %s332
    %p336 = pneg %p330
    %p337 = scmp.eq.s32.totalorder %s22, 1
    %p338 = por %p336, %p337
    %p339 = scmp.ne.s32.totalorder %s331, %s334
    %p340 = scmp.eq.s32.totalorder %s22, 0
    %p341 = por %p339, %p340
    %p342 = scmp.ne.s32.totalorder %s331, %s334
    %p343 = scmp.eq.s32.totalorder %s27, 1
    %p344 = por %p342, %p343
    %p345 = scmp.ne.s32.totalorder %s334, %s335
    %p346 = scmp.eq.s32.totalorder %s27, 0
    %p347 = por %p345, %p346
    %p348 = scmp.ne.s32.totalorder %s334, %s335
    %p349 = scmp.eq.s32.totalorder %s28, 1
    %p350 = por %p348, %p349
    %p352 = scmp.ne.s32.totalorder %s335, %s351
    %p353 = scmp.eq.s32.totalorder %s28, 0
    %p354 = por %p352, %p353
    %s355 = ssub.s32 %s22, %s29
    %p356 = scmp.eq.s32.totalorder %s355, 0
    %s358 = sadd.s32 %s357, 1
    %s359 = scalar_select %p356, %s357, %s358
    %p362 = pneg %p356
    %p363 = scmp.eq.s32.totalorder %s22, 1
    %p364 = por %p362, %p363
    %p365 = scmp.ne.s32.totalorder %s357, %s360
    %p366 = scmp.eq.s32.totalorder %s22, 0
    %p367 = por %p365, %p366
    %p368 = scmp.ne.s32.totalorder %s357, %s360
    %p369 = scmp.eq.s32.totalorder %s27, 1
    %p370 = por %p368, %p369
    %p371 = scmp.ne.s32.totalorder %s360, %s361
    %p372 = scmp.eq.s32.totalorder %s27, 0
    %p373 = por %p371, %p372
    %p374 = scmp.ne.s32.totalorder %s360, %s361
    %p375 = scmp.eq.s32.totalorder %s28, 1
    %p376 = por %p374, %p375
    %p378 = scmp.ne.s32.totalorder %s361, %s377
    %p379 = scmp.eq.s32.totalorder %s28, 0
    %p380 = por %p378, %p379
    %p381 = scmp.le.s32.totalorder 1, %s22
    %p382 = scmp.lt.s32.totalorder %s22, 3
    %p383 = pnand %p381, %p382
    %p384 = pneg %p383
    // Predicated region
    $region9: #{encoder_decoder_forward.1} parent=5 // pred_check
      _
    $region10: #{encoder_decoder_forward.1} parent=5 // pred_check_branch
      %386 = sbr.rel (%p383) target = $region12
    $region11: #{encoder_decoder_forward.1} parent=5 // pred_region
      %s387 = ssub.s32 %s22, 1
      // Predicated region
      $region13: #{encoder_decoder_forward.1} parent=11 // pred_check
        %p388 = pneg %p69
      $region14: #{encoder_decoder_forward.1} parent=11 // pred_check_branch
        %390 = sbr.rel (%p388) target = $region16
      $region15: #{encoder_decoder_forward.1} parent=11 // pred_region
        _
      $region16: #{encoder_decoder_forward.1} parent=11 // pred_fallthru
        _
      // Predicated region
      $region17: #{encoder_decoder_forward.1} parent=11 // pred_check
        %p391 = pneg %p90
      $region18: #{encoder_decoder_forward.1} parent=11 // pred_check_branch
        %393 = sbr.rel (%p391) target = $region20
      $region19: #{encoder_decoder_forward.1} parent=11 // pred_region
        _
      $region20: #{encoder_decoder_forward.1} parent=11 // pred_fallthru
        _
      // Predicated region
      $region21: #{encoder_decoder_forward.1} parent=11 // pred_check
        %p394 = pneg %p111
      $region22: #{encoder_decoder_forward.1} parent=11 // pred_check_branch
        %396 = sbr.rel (%p394) target = $region24
      $region23: #{encoder_decoder_forward.1} parent=11 // pred_region
        _
      $region24: #{encoder_decoder_forward.1} parent=11 // pred_fallthru
        _
      // Predicated region
      $region25: #{encoder_decoder_forward.1} parent=11 // pred_check
        %p397 = pneg %p132
      $region26: #{encoder_decoder_forward.1} parent=11 // pred_check_branch
        %399 = sbr.rel (%p397) target = $region28
      $region27: #{encoder_decoder_forward.1} parent=11 // pred_region
        _
      $region28: #{encoder_decoder_forward.1} parent=11 // pred_fallthru
        _
      // Predicated region
      $region29: #{encoder_decoder_forward.1} parent=11 // pred_check
        %p400 = pneg %p153
      $region30: #{encoder_decoder_forward.1} parent=11 // pred_check_branch
        %402 = sbr.rel (%p400) target = $region32
      $region31: #{encoder_decoder_forward.1} parent=11 // pred_region
        _
      $region32: #{encoder_decoder_forward.1} parent=11 // pred_fallthru
        _
      // Predicated region
      $region33: #{encoder_decoder_forward.1} parent=11 // pred_check
        %p403 = pneg %p174
      $region34: #{encoder_decoder_forward.1} parent=11 // pred_check_branch
        %405 = sbr.rel (%p403) target = $region36
      $region35: #{encoder_decoder_forward.1} parent=11 // pred_region
        _
      $region36: #{encoder_decoder_forward.1} parent=11 // pred_fallthru
        _
      // Predicated region
      $region37: #{encoder_decoder_forward.1} parent=11 // pred_check
        %p406 = pneg %p195
      $region38: #{encoder_decoder_forward.1} parent=11 // pred_check_branch
        %408 = sbr.rel (%p406) target = $region40
      $region39: #{encoder_decoder_forward.1} parent=11 // pred_region
        _
      $region40: #{encoder_decoder_forward.1} parent=11 // pred_fallthru
        _
      // Predicated region
      $region41: #{encoder_decoder_forward.1} parent=11 // pred_check
        %p409 = pneg %p216
      $region42: #{encoder_decoder_forward.1} parent=11 // pred_check_branch
        %411 = sbr.rel (%p409) target = $region44
      $region43: #{encoder_decoder_forward.1} parent=11 // pred_region
        _
      $region44: #{encoder_decoder_forward.1} parent=11 // pred_fallthru
        _
      // Predicated region
      $region45: #{encoder_decoder_forward.1} parent=11 // pred_check
        %p412 = pneg %p237
      $region46: #{encoder_decoder_forward.1} parent=11 // pred_check_branch
        %414 = sbr.rel (%p412) target = $region48
      $region47: #{encoder_decoder_forward.1} parent=11 // pred_region
        _
      $region48: #{encoder_decoder_forward.1} parent=11 // pred_fallthru
        _
      // Predicated region
      $region49: #{encoder_decoder_forward.1} parent=11 // pred_check
        %p415 = pneg %p258
      $region50: #{encoder_decoder_forward.1} parent=11 // pred_check_branch
        %417 = sbr.rel (%p415) target = $region52
      $region51: #{encoder_decoder_forward.1} parent=11 // pred_region
        _
      $region52: #{encoder_decoder_forward.1} parent=11 // pred_fallthru
        _
      // Predicated region
      $region53: #{encoder_decoder_forward.1} parent=11 // pred_check
        %p418 = pneg %p279
      $region54: #{encoder_decoder_forward.1} parent=11 // pred_check_branch
        %420 = sbr.rel (%p418) target = $region56
      $region55: #{encoder_decoder_forward.1} parent=11 // pred_region
        _
      $region56: #{encoder_decoder_forward.1} parent=11 // pred_fallthru
        _
      // Predicated region
      $region57: #{encoder_decoder_forward.1} parent=11 // pred_check
        %p421 = pneg %p300
      $region58: #{encoder_decoder_forward.1} parent=11 // pred_check_branch
        %423 = sbr.rel (%p421) target = $region60
      $region59: #{encoder_decoder_forward.1} parent=11 // pred_region
        _
      $region60: #{encoder_decoder_forward.1} parent=11 // pred_fallthru
        _
      // Predicated region
      $region61: #{encoder_decoder_forward.1} parent=11 // pred_check
        %p424 = pneg %p321
      $region62: #{encoder_decoder_forward.1} parent=11 // pred_check_branch
        %426 = sbr.rel (%p424) target = $region64
      $region63: #{encoder_decoder_forward.1} parent=11 // pred_region
        _
      $region64: #{encoder_decoder_forward.1} parent=11 // pred_fallthru
        _
    $region12: #{encoder_decoder_forward.1} parent=5 // pred_fallthru
      _
    %p427 = scmp.lt.s32.totalorder %s22, 2
    // Predicated region
    $region65: #{encoder_decoder_forward.1} parent=5 // pred_check
      %p428 = pneg %p427
    $region66: #{encoder_decoder_forward.1} parent=5 // pred_check_branch
      %430 = sbr.rel (%p428) target = $region68
    $region67: #{encoder_decoder_forward.1} parent=5 // pred_region
      // Predicated region
      $region69: #{encoder_decoder_forward.1} parent=67 // pred_check
        %p431 = pneg %p42
      $region70: #{encoder_decoder_forward.1} parent=67 // pred_check_branch
        %433 = sbr.rel (%p431) target = $region72
      $region71: #{encoder_decoder_forward.1} parent=67 // pred_region
        %p434 = scmp.lt.s32.totalorder %s22, 1
        %s435 = scalar_select %p434, %s22, 1
        %s436 = smul.addr %s435, 32
        %s437 = smul.addr %s436, 8
        %s438 = scalar_lea.vmem %s0, %s437
      $region72: #{encoder_decoder_forward.1} parent=67 // pred_fallthru
        _
    $region68: #{encoder_decoder_forward.1} parent=5 // pred_fallthru
      _
    %p439 = scmp.le.s32.totalorder 1, %s22
    %p440 = scmp.lt.s32.totalorder %s22, 3
    %p441 = pnand %p439, %p440
    %p442 = pneg %p441
    // Predicated region
    $region73: #{encoder_decoder_forward.1} parent=5 // pred_check
      _
    $region74: #{encoder_decoder_forward.1} parent=5 // pred_check_branch
      %444 = sbr.rel (%p441) target = $region76
    $region75: #{encoder_decoder_forward.1} parent=5 // pred_region
      %s445 = ssub.s32 %s22, 1
      %p446 = scmp.lt.s32.totalorder %s27, 1
      %s447 = scalar_select %p446, %s27, 1
      %s448 = smul.addr %s447, 32
      %s449 = smul.addr %s448, 8
      %s450 = scalar_lea.vmem %s0, %s449
      %p451 = pneg %p48
      %p452 = pneg %p45
      %p453 = pneg %p69
      %p454 = pneg %p66
      %p455 = pneg %p90
      %p456 = pneg %p87
      %p457 = pneg %p111
      %p458 = pneg %p108
      %p459 = pneg %p132
      %p460 = pneg %p129
      %p461 = pneg %p153
      %p462 = pneg %p150
      %p463 = pneg %p174
      %p464 = pneg %p171
      %p465 = pneg %p195
      %p466 = pneg %p192
      %p467 = pneg %p216
      %p468 = pneg %p213
      %p469 = pneg %p237
      %p470 = pneg %p234
      %p471 = pneg %p258
      %p472 = pneg %p255
      %p473 = pneg %p279
      %p474 = pneg %p276
      %p475 = pneg %p300
      %p476 = pneg %p297
      %p477 = pneg %p321
      %p478 = pneg %p318
      %p479 = pneg %p347
      %p480 = pneg %p344
      %p481 = scmp.lt.s32.totalorder %s27, 1
      %s482 = scalar_select %p481, %s27, 1
      %s483 = smul.addr %s482, 2
      %s484 = smul.addr %s483, 4
      %s485 = scalar_lea.vmem %s14, %s484
      %p486 = pneg %p373
      %p487 = pneg %p370
      %p488 = scmp.lt.s32.totalorder %s27, 1
      %s489 = scalar_select %p488, %s27, 1
      %s490 = smul.addr %s489, 2
      %s491 = smul.addr %s490, 4
      %s492 = scalar_lea.vmem %s15, %s491
      %p493 = scmp.lt.s32.totalorder %s27, 1
      %s494 = scalar_select %p493, %s27, 1
      %s495 = smul.addr %s494, 32
      %s496 = smul.addr %s495, 8
      %s497 = scalar_lea.vmem %s0, %s496
      %p498 = scmp.lt.s32.totalorder %s27, 1
      %s499 = scalar_select %p498, %s27, 1
      %s500 = smul.addr %s499, 2
      %s501 = smul.addr %s500, 4
      %s502 = scalar_lea.vmem %s14, %s501
      %p503 = scmp.lt.s32.totalorder %s27, 1
      %s504 = scalar_select %p503, %s27, 1
      %s505 = smul.addr %s504, 2
      %s506 = smul.addr %s505, 4
      %s507 = scalar_lea.vmem %s15, %s506
      %v509 = vld [vmem:[%s497] sm:$0xff]
      %v510 = vld [vmem:[%s497 + $0x8] sm:$0xff]
      %v511 = vld [vmem:[%s497 + $0x10] sm:$0xff]
      %v512 = vld [vmem:[%s497 + $0x18] sm:$0xff]
      %v513 = vld [vmem:[%s497 + $0x20] sm:$0xff]
      %v514 = vld [vmem:[%s497 + $0x28] sm:$0xff]
      %v515 = vld [vmem:[%s497 + $0x30] sm:$0xff]
      %v516 = vld [vmem:[%s497 + $0x38] sm:$0xff]
      %v517 = vld [vmem:[%s497 + $0x40] sm:$0xff]
      %v518 = vld [vmem:[%s497 + $0x48] sm:$0xff]
      %v519 = vld [vmem:[%s497 + $0x50] sm:$0xff]
      %v520 = vld [vmem:[%s497 + $0x58] sm:$0xff]
      %v521 = vld [vmem:[%s497 + $0x60] sm:$0xff]
      %v522 = vld [vmem:[%s497 + $0x68] sm:$0xff]
      %v523 = vld [vmem:[%s497 + $0x70] sm:$0xff]
      %v524 = vld [vmem:[%s497 + $0x78] sm:$0xff]
      %v525 = vld [vmem:[%s497 + $0x80] sm:$0xff]
      %v526 = vld [vmem:[%s497 + $0x88] sm:$0xff]
      %v527 = vld [vmem:[%s497 + $0x90] sm:$0xff]
      %v528 = vld [vmem:[%s497 + $0x98] sm:$0xff]
      %v529 = vld [vmem:[%s497 + $0xa0] sm:$0xff]
      %v530 = vld [vmem:[%s497 + $0xa8] sm:$0xff]
      %v531 = vld [vmem:[%s497 + $0xb0] sm:$0xff]
      %v532 = vld [vmem:[%s497 + $0xb8] sm:$0xff]
      %v533 = vld [vmem:[%s497 + $0xc0] sm:$0xff]
      %v534 = vld [vmem:[%s497 + $0xc8] sm:$0xff]
      %v535 = vld [vmem:[%s497 + $0xd0] sm:$0xff]
      %v536 = vld [vmem:[%s497 + $0xd8] sm:$0xff]
      %v537 = vld [vmem:[%s497 + $0xe0] sm:$0xff]
      %v538 = vld [vmem:[%s497 + $0xe8] sm:$0xff]
      %v539 = vld [vmem:[%s497 + $0xf0] sm:$0xff]
      %v540 = vld [vmem:[%s497 + $0xf8] sm:$0xff]
      %vm573 = vcmask 1040384
      %v574 = vrot.slane %v509, 7
      %v575 = vrot.slane %v510, 7
      %v576 = vsel %vm573, %v574, %v575
      %v577 = vrot.slane %v511, 7
      %v578 = vrot.slane %v512, 7
      %v579 = vsel %vm573, %v577, %v578
      %v580 = vrot.slane %v513, 7
      %v581 = vrot.slane %v514, 7
      %v582 = vsel %vm573, %v580, %v581
      %v583 = vrot.slane %v515, 7
      %v584 = vrot.slane %v516, 7
      %v585 = vsel %vm573, %v583, %v584
      %v586 = vrot.slane %v517, 7
      %v587 = vrot.slane %v518, 7
      %v588 = vsel %vm573, %v586, %v587
      %v589 = vrot.slane %v519, 7
      %v590 = vrot.slane %v520, 7
      %v591 = vsel %vm573, %v589, %v590
      %v592 = vrot.slane %v521, 7
      %v593 = vrot.slane %v522, 7
      %v594 = vsel %vm573, %v592, %v593
      %v595 = vrot.slane %v523, 7
      %v596 = vrot.slane %v524, 7
      %v597 = vsel %vm573, %v595, %v596
      %v598 = vrot.slane %v525, 7
      %v599 = vrot.slane %v526, 7
      %v600 = vsel %vm573, %v598, %v599
      %v601 = vrot.slane %v527, 7
      %v602 = vrot.slane %v528, 7
      %v603 = vsel %vm573, %v601, %v602
      %v604 = vrot.slane %v529, 7
      %v605 = vrot.slane %v530, 7
      %v606 = vsel %vm573, %v604, %v605
      %v607 = vrot.slane %v531, 7
      %v608 = vrot.slane %v532, 7
      %v609 = vsel %vm573, %v607, %v608
      %v610 = vrot.slane %v533, 7
      %v611 = vrot.slane %v534, 7
      %v612 = vsel %vm573, %v610, %v611
      %v613 = vrot.slane %v535, 7
      %v614 = vrot.slane %v536, 7
      %v615 = vsel %vm573, %v613, %v614
      %v616 = vrot.slane %v537, 7
      %v617 = vrot.slane %v538, 7
      %v618 = vsel %vm573, %v616, %v617
      %v619 = vrot.slane %v539, 7
      %v620 = vrot.slane %v540, 7
      %v621 = vsel %vm573, %v619, %v620
      %v670 = vsel %vm573, 0.0, %v574
      %v671 = vsel %vm573, 0.0, %v577
      %v672 = vsel %vm573, 0.0, %v580
      %v673 = vsel %vm573, 0.0, %v583
      %v674 = vsel %vm573, 0.0, %v586
      %v675 = vsel %vm573, 0.0, %v589
      %v676 = vsel %vm573, 0.0, %v592
      %v677 = vsel %vm573, 0.0, %v595
      %v678 = vsel %vm573, 0.0, %v598
      %v679 = vsel %vm573, 0.0, %v601
      %v680 = vsel %vm573, 0.0, %v604
      %v681 = vsel %vm573, 0.0, %v607
      %v682 = vsel %vm573, 0.0, %v610
      %v683 = vsel %vm573, 0.0, %v613
      %v684 = vsel %vm573, 0.0, %v616
      %v685 = vsel %vm573, 0.0, %v619
      %v686 = vsel %vm573, %v575, 0.0
      %v687 = vsel %vm573, %v578, 0.0
      %v688 = vsel %vm573, %v581, 0.0
      %v689 = vsel %vm573, %v584, 0.0
      %v690 = vsel %vm573, %v587, 0.0
      %v691 = vsel %vm573, %v590, 0.0
      %v692 = vsel %vm573, %v593, 0.0
      %v693 = vsel %vm573, %v596, 0.0
      %v694 = vsel %vm573, %v599, 0.0
      %v695 = vsel %vm573, %v602, 0.0
      %v696 = vsel %vm573, %v605, 0.0
      %v697 = vsel %vm573, %v608, 0.0
      %v698 = vsel %vm573, %v611, 0.0
      %v699 = vsel %vm573, %v614, 0.0
      %v700 = vsel %vm573, %v617, 0.0
      %v701 = vsel %vm573, %v620, 0.0
      %s702 = scalar_lea.vmem [#allocation2], 24
      %vm703 = vcmask 23552
      %704 = vst.msk [vmem:[%s702] sm:$0xff] %vm703, %v670
      %705 = vst.msk [vmem:[%s702 + $0x8] sm:$0xff] %vm703, %v576
      %vm706 = vcmask 17408
      %707 = vst.msk [vmem:[%s702 + $0x10] sm:$0x3] %vm706, %v686
      %708 = vst.msk [vmem:[%s702 + $0x18] sm:$0xff] %vm703, %v671
      %709 = vst.msk [vmem:[%s702 + $0x20] sm:$0xff] %vm703, %v579
      %710 = vst.msk [vmem:[%s702 + $0x28] sm:$0x3] %vm706, %v687
      %711 = vst.msk [vmem:[%s702 + $0x30] sm:$0xff] %vm703, %v672
      %712 = vst.msk [vmem:[%s702 + $0x38] sm:$0xff] %vm703, %v582
      %713 = vst.msk [vmem:[%s702 + $0x40] sm:$0x3] %vm706, %v688
      %714 = vst.msk [vmem:[%s702 + $0x48] sm:$0xff] %vm703, %v673
      %715 = vst.msk [vmem:[%s702 + $0x50] sm:$0xff] %vm703, %v585
      %716 = vst.msk [vmem:[%s702 + $0x58] sm:$0x3] %vm706, %v689
      %717 = vst.msk [vmem:[%s702 + $0x60] sm:$0xff] %vm703, %v674
      %718 = vst.msk [vmem:[%s702 + $0x68] sm:$0xff] %vm703, %v588
      %719 = vst.msk [vmem:[%s702 + $0x70] sm:$0x3] %vm706, %v690
      %720 = vst.msk [vmem:[%s702 + $0x78] sm:$0xff] %vm703, %v675
      %721 = vst.msk [vmem:[%s702 + $0x80] sm:$0xff] %vm703, %v591
      %722 = vst.msk [vmem:[%s702 + $0x88] sm:$0x3] %vm706, %v691
      %723 = vst.msk [vmem:[%s702 + $0x90] sm:$0xff] %vm703, %v676
      %724 = vst.msk [vmem:[%s702 + $0x98] sm:$0xff] %vm703, %v594
      %725 = vst.msk [vmem:[%s702 + $0xa0] sm:$0x3] %vm706, %v692
      %726 = vst.msk [vmem:[%s702 + $0xa8] sm:$0xff] %vm703, %v677
      %727 = vst.msk [vmem:[%s702 + $0xb0] sm:$0xff] %vm703, %v597
      %728 = vst.msk [vmem:[%s702 + $0xb8] sm:$0x3] %vm706, %v693
      %729 = vst.msk [vmem:[%s702 + $0xc0] sm:$0xff] %vm703, %v678
      %730 = vst.msk [vmem:[%s702 + $0xc8] sm:$0xff] %vm703, %v600
      %731 = vst.msk [vmem:[%s702 + $0xd0] sm:$0x3] %vm706, %v694
      %732 = vst.msk [vmem:[%s702 + $0xd8] sm:$0xff] %vm703, %v679
      %733 = vst.msk [vmem:[%s702 + $0xe0] sm:$0xff] %vm703, %v603
      %734 = vst.msk [vmem:[%s702 + $0xe8] sm:$0x3] %vm706, %v695
      %735 = vst.msk [vmem:[%s702 + $0xf0] sm:$0xff] %vm703, %v680
      %736 = vst.msk [vmem:[%s702 + $0xf8] sm:$0xff] %vm703, %v606
      %737 = vst.msk [vmem:[%s702 + $0x100] sm:$0x3] %vm706, %v696
      %738 = vst.msk [vmem:[%s702 + $0x108] sm:$0xff] %vm703, %v681
      %739 = vst.msk [vmem:[%s702 + $0x110] sm:$0xff] %vm703, %v609
      %740 = vst.msk [vmem:[%s702 + $0x118] sm:$0x3] %vm706, %v697
      %741 = vst.msk [vmem:[%s702 + $0x120] sm:$0xff] %vm703, %v682
      %742 = vst.msk [vmem:[%s702 + $0x128] sm:$0xff] %vm703, %v612
      %743 = vst.msk [vmem:[%s702 + $0x130] sm:$0x3] %vm706, %v698
      %744 = vst.msk [vmem:[%s702 + $0x138] sm:$0xff] %vm703, %v683
      %745 = vst.msk [vmem:[%s702 + $0x140] sm:$0xff] %vm703, %v615
      %746 = vst.msk [vmem:[%s702 + $0x148] sm:$0x3] %vm706, %v699
      %747 = vst.msk [vmem:[%s702 + $0x150] sm:$0xff] %vm703, %v684
      %748 = vst.msk [vmem:[%s702 + $0x158] sm:$0xff] %vm703, %v618
      %749 = vst.msk [vmem:[%s702 + $0x160] sm:$0x3] %vm706, %v700
      %750 = vst.msk [vmem:[%s702 + $0x168] sm:$0xff] %vm703, %v685
      %751 = vst.msk [vmem:[%s702 + $0x170] sm:$0xff] %vm703, %v621
      %752 = vst.msk [vmem:[%s702 + $0x178] sm:$0x3] %vm706, %v701
      %753 = vst.msk [vmem:[#allocation2] sm:$0xff] %vm703, 0.0
      %754 = vst.msk [vmem:[#allocation2 + $0x8] sm:$0xff] %vm703, 0.0
      %755 = vst.msk [vmem:[#allocation2 + $0x10] sm:$0x3] %vm706, 0.0
      %s756 = scalar_lea.vmem [#allocation2], 408
      %757 = vst.msk [vmem:[%s756] sm:$0xff] %vm703, 0.0
      %758 = vst.msk [vmem:[%s756 + $0x8] sm:$0xff] %vm703, 0.0
      %759 = vst.msk [vmem:[%s756 + $0x10] sm:$0x3] %vm706, 0.0
      %v760 = vld [vmem:[#allocation2] sm:$0xff]
      %v761 = vld [vmem:[#allocation2 + $0x8] sm:$0xff]
      %v762 = vld [vmem:[#allocation2 + $0x18] sm:$0xff]
      %v763 = vld [vmem:[#allocation2 + $0x20] sm:$0xff]
      %v764 = vld [vmem:[#allocation2 + $0x30] sm:$0xff]
      %v765 = vld [vmem:[#allocation2 + $0x38] sm:$0xff]
      %v766 = vld [vmem:[#allocation2 + $0x48] sm:$0xff]
      %v767 = vld [vmem:[#allocation2 + $0x50] sm:$0xff]
      %v768 = vld [vmem:[#allocation2 + $0x60] sm:$0xff]
      %v769 = vld [vmem:[#allocation2 + $0x68] sm:$0xff]
      %v770 = vld [vmem:[#allocation2 + $0x78] sm:$0xff]
      %v771 = vld [vmem:[#allocation2 + $0x80] sm:$0xff]
      %v772 = vld [vmem:[#allocation2 + $0x90] sm:$0xff]
      %v773 = vld [vmem:[#allocation2 + $0x98] sm:$0xff]
      %v774 = vld [vmem:[#allocation2 + $0xa8] sm:$0xff]
      %v775 = vld [vmem:[#allocation2 + $0xb0] sm:$0xff]
      %v776 = vld [vmem:[#allocation2 + $0xc0] sm:$0xff]
      %v777 = vld [vmem:[#allocation2 + $0xc8] sm:$0xff]
      %v778 = vld [vmem:[#allocation2 + $0xd8] sm:$0xff]
      %v779 = vld [vmem:[#allocation2 + $0xe0] sm:$0xff]
      %v780 = vld [vmem:[#allocation2 + $0xf0] sm:$0xff]
      %v781 = vld [vmem:[#allocation2 + $0xf8] sm:$0xff]
      %v782 = vld [vmem:[#allocation2 + $0x108] sm:$0xff]
      %v783 = vld [vmem:[#allocation2 + $0x110] sm:$0xff]
      %v784 = vld [vmem:[#allocation2 + $0x120] sm:$0xff]
      %v785 = vld [vmem:[#allocation2 + $0x128] sm:$0xff]
      %v786 = vld [vmem:[#allocation2 + $0x138] sm:$0xff]
      %v787 = vld [vmem:[#allocation2 + $0x140] sm:$0xff]
      %v788 = vld [vmem:[#allocation2 + $0x150] sm:$0xff]
      %v789 = vld [vmem:[#allocation2 + $0x158] sm:$0xff]
      %v790 = vld [vmem:[#allocation2 + $0x168] sm:$0xff]
      %v791 = vld [vmem:[#allocation2 + $0x170] sm:$0xff]
      %v792 = vld [vmem:[#allocation2 + $0x1] sm:$0xff]
      %v793 = vld [vmem:[#allocation2 + $0x9] sm:$0xff]
      %v794 = vld [vmem:[#allocation2 + $0x19] sm:$0xff]
      %v795 = vld [vmem:[#allocation2 + $0x21] sm:$0xff]
      %v796 = vld [vmem:[#allocation2 + $0x31] sm:$0xff]
      %v797 = vld [vmem:[#allocation2 + $0x39] sm:$0xff]
      %v798 = vld [vmem:[#allocation2 + $0x49] sm:$0xff]
      %v799 = vld [vmem:[#allocation2 + $0x51] sm:$0xff]
      %v800 = vld [vmem:[#allocation2 + $0x61] sm:$0xff]
      %v801 = vld [vmem:[#allocation2 + $0x69] sm:$0xff]
      %v802 = vld [vmem:[#allocation2 + $0x79] sm:$0xff]
      %v803 = vld [vmem:[#allocation2 + $0x81] sm:$0xff]
      %v804 = vld [vmem:[#allocation2 + $0x91] sm:$0xff]
      %v805 = vld [vmem:[#allocation2 + $0x99] sm:$0xff]
      %v806 = vld [vmem:[#allocation2 + $0xa9] sm:$0xff]
      %v807 = vld [vmem:[#allocation2 + $0xb1] sm:$0xff]
      %v808 = vld [vmem:[#allocation2 + $0xc1] sm:$0xff]
      %v809 = vld [vmem:[#allocation2 + $0xc9] sm:$0xff]
      %v810 = vld [vmem:[#allocation2 + $0xd9] sm:$0xff]
      %v811 = vld [vmem:[#allocation2 + $0xe1] sm:$0xff]
      %v812 = vld [vmem:[#allocation2 + $0xf1] sm:$0xff]
      %v813 = vld [vmem:[#allocation2 + $0xf9] sm:$0xff]
      %v814 = vld [vmem:[#allocation2 + $0x109] sm:$0xff]
      %v815 = vld [vmem:[#allocation2 + $0x111] sm:$0xff]
      %v816 = vld [vmem:[#allocation2 + $0x121] sm:$0xff]
      %v817 = vld [vmem:[#allocation2 + $0x129] sm:$0xff]
      %v818 = vld [vmem:[#allocation2 + $0x139] sm:$0xff]
      %v819 = vld [vmem:[#allocation2 + $0x141] sm:$0xff]
      %v820 = vld [vmem:[#allocation2 + $0x151] sm:$0xff]
      %v821 = vld [vmem:[#allocation2 + $0x159] sm:$0xff]
      %v822 = vld [vmem:[#allocation2 + $0x169] sm:$0xff]
      %v823 = vld [vmem:[#allocation2 + $0x171] sm:$0xff]
      %v824 = vld [vmem:[#allocation2 + $0x2] sm:$0xff]
      %v825 = vld [vmem:[#allocation2 + $0xa] sm:$0xff]
      %v826 = vld [vmem:[#allocation2 + $0x1a] sm:$0xff]
      %v827 = vld [vmem:[#allocation2 + $0x22] sm:$0xff]
      %v828 = vld [vmem:[#allocation2 + $0x32] sm:$0xff]
      %v829 = vld [vmem:[#allocation2 + $0x3a] sm:$0xff]
      %v830 = vld [vmem:[#allocation2 + $0x4a] sm:$0xff]
      %v831 = vld [vmem:[#allocation2 + $0x52] sm:$0xff]
      %v832 = vld [vmem:[#allocation2 + $0x62] sm:$0xff]
      %v833 = vld [vmem:[#allocation2 + $0x6a] sm:$0xff]
      %v834 = vld [vmem:[#allocation2 + $0x7a] sm:$0xff]
      %v835 = vld [vmem:[#allocation2 + $0x82] sm:$0xff]
      %v836 = vld [vmem:[#allocation2 + $0x92] sm:$0xff]
      %v837 = vld [vmem:[#allocation2 + $0x9a] sm:$0xff]
      %v838 = vld [vmem:[#allocation2 + $0xaa] sm:$0xff]
      %v839 = vld [vmem:[#allocation2 + $0xb2] sm:$0xff]
      %v840 = vld [vmem:[#allocation2 + $0xc2] sm:$0xff]
      %v841 = vld [vmem:[#allocation2 + $0xca] sm:$0xff]
      %v842 = vld [vmem:[#allocation2 + $0xda] sm:$0xff]
      %v843 = vld [vmem:[#allocation2 + $0xe2] sm:$0xff]
      %v844 = vld [vmem:[#allocation2 + $0xf2] sm:$0xff]
      %v845 = vld [vmem:[#allocation2 + $0xfa] sm:$0xff]
      %v846 = vld [vmem:[#allocation2 + $0x10a] sm:$0xff]
      %v847 = vld [vmem:[#allocation2 + $0x112] sm:$0xff]
      %v848 = vld [vmem:[#allocation2 + $0x122] sm:$0xff]
      %v849 = vld [vmem:[#allocation2 + $0x12a] sm:$0xff]
      %v850 = vld [vmem:[#allocation2 + $0x13a] sm:$0xff]
      %v851 = vld [vmem:[#allocation2 + $0x142] sm:$0xff]
      %v852 = vld [vmem:[#allocation2 + $0x152] sm:$0xff]
      %v853 = vld [vmem:[#allocation2 + $0x15a] sm:$0xff]
      %v854 = vld [vmem:[#allocation2 + $0x16a] sm:$0xff]
      %v855 = vld [vmem:[#allocation2 + $0x172] sm:$0xff]
      %v856 = vld [vmem:[%s702] sm:$0xff]
      %v857 = vld [vmem:[%s702 + $0x8] sm:$0xff]
      %v858 = vld [vmem:[%s702 + $0x18] sm:$0xff]
      %v859 = vld [vmem:[%s702 + $0x20] sm:$0xff]
      %v860 = vld [vmem:[%s702 + $0x30] sm:$0xff]
      %v861 = vld [vmem:[%s702 + $0x38] sm:$0xff]
      %v862 = vld [vmem:[%s702 + $0x48] sm:$0xff]
      %v863 = vld [vmem:[%s702 + $0x50] sm:$0xff]
      %v864 = vld [vmem:[%s702 + $0x60] sm:$0xff]
      %v865 = vld [vmem:[%s702 + $0x68] sm:$0xff]
      %v866 = vld [vmem:[%s702 + $0x78] sm:$0xff]
      %v867 = vld [vmem:[%s702 + $0x80] sm:$0xff]
      %v868 = vld [vmem:[%s702 + $0x90] sm:$0xff]
      %v869 = vld [vmem:[%s702 + $0x98] sm:$0xff]
      %v870 = vld [vmem:[%s702 + $0xa8] sm:$0xff]
      %v871 = vld [vmem:[%s702 + $0xb0] sm:$0xff]
      %v872 = vld [vmem:[%s702 + $0xc0] sm:$0xff]
      %v873 = vld [vmem:[%s702 + $0xc8] sm:$0xff]
      %v874 = vld [vmem:[%s702 + $0xd8] sm:$0xff]
      %v875 = vld [vmem:[%s702 + $0xe0] sm:$0xff]
      %v876 = vld [vmem:[%s702 + $0xf0] sm:$0xff]
      %v877 = vld [vmem:[%s702 + $0xf8] sm:$0xff]
      %v878 = vld [vmem:[%s702 + $0x108] sm:$0xff]
      %v879 = vld [vmem:[%s702 + $0x110] sm:$0xff]
      %v880 = vld [vmem:[%s702 + $0x120] sm:$0xff]
      %v881 = vld [vmem:[%s702 + $0x128] sm:$0xff]
      %v882 = vld [vmem:[%s702 + $0x138] sm:$0xff]
      %v883 = vld [vmem:[%s702 + $0x140] sm:$0xff]
      %v884 = vld [vmem:[%s702 + $0x150] sm:$0xff]
      %v885 = vld [vmem:[%s702 + $0x158] sm:$0xff]
      %v886 = vld [vmem:[%s702 + $0x168] sm:$0xff]
      %v887 = vld [vmem:[%s702 + $0x170] sm:$0xff]
      %v888 = vld [vmem:[%s702 + $0x1] sm:$0xff]
      %v889 = vld [vmem:[%s702 + $0x9] sm:$0xff]
      %v890 = vld [vmem:[%s702 + $0x19] sm:$0xff]
      %v891 = vld [vmem:[%s702 + $0x21] sm:$0xff]
      %v892 = vld [vmem:[%s702 + $0x31] sm:$0xff]
      %v893 = vld [vmem:[%s702 + $0x39] sm:$0xff]
      %v894 = vld [vmem:[%s702 + $0x49] sm:$0xff]
      %v895 = vld [vmem:[%s702 + $0x51] sm:$0xff]
      %v896 = vld [vmem:[%s702 + $0x61] sm:$0xff]
      %v897 = vld [vmem:[%s702 + $0x69] sm:$0xff]
      %v898 = vld [vmem:[%s702 + $0x79] sm:$0xff]
      %v899 = vld [vmem:[%s702 + $0x81] sm:$0xff]
      %v900 = vld [vmem:[%s702 + $0x91] sm:$0xff]
      %v901 = vld [vmem:[%s702 + $0x99] sm:$0xff]
      %v902 = vld [vmem:[%s702 + $0xa9] sm:$0xff]
      %v903 = vld [vmem:[%s702 + $0xb1] sm:$0xff]
      %v904 = vld [vmem:[%s702 + $0xc1] sm:$0xff]
      %v905 = vld [vmem:[%s702 + $0xc9] sm:$0xff]
      %v906 = vld [vmem:[%s702 + $0xd9] sm:$0xff]
      %v907 = vld [vmem:[%s702 + $0xe1] sm:$0xff]
      %v908 = vld [vmem:[%s702 + $0xf1] sm:$0xff]
      %v909 = vld [vmem:[%s702 + $0xf9] sm:$0xff]
      %v910 = vld [vmem:[%s702 + $0x109] sm:$0xff]
      %v911 = vld [vmem:[%s702 + $0x111] sm:$0xff]
      %v912 = vld [vmem:[%s702 + $0x121] sm:$0xff]
      %v913 = vld [vmem:[%s702 + $0x129] sm:$0xff]
      %v914 = vld [vmem:[%s702 + $0x139] sm:$0xff]
      %v915 = vld [vmem:[%s702 + $0x141] sm:$0xff]
      %v916 = vld [vmem:[%s702 + $0x151] sm:$0xff]
      %v917 = vld [vmem:[%s702 + $0x159] sm:$0xff]
      %v918 = vld [vmem:[%s702 + $0x169] sm:$0xff]
      %v919 = vld [vmem:[%s702 + $0x171] sm:$0xff]
      %v920 = vld [vmem:[%s702 + $0x2] sm:$0xff]
      %v921 = vld [vmem:[%s702 + $0xa] sm:$0xff]
      %v922 = vld [vmem:[%s702 + $0x1a] sm:$0xff]
      %v923 = vld [vmem:[%s702 + $0x22] sm:$0xff]
      %v924 = vld [vmem:[%s702 + $0x32] sm:$0xff]
      %v925 = vld [vmem:[%s702 + $0x3a] sm:$0xff]
      %v926 = vld [vmem:[%s702 + $0x4a] sm:$0xff]
      %v927 = vld [vmem:[%s702 + $0x52] sm:$0xff]
      %v928 = vld [vmem:[%s702 + $0x62] sm:$0xff]
      %v929 = vld [vmem:[%s702 + $0x6a] sm:$0xff]
      %v930 = vld [vmem:[%s702 + $0x7a] sm:$0xff]
      %v931 = vld [vmem:[%s702 + $0x82] sm:$0xff]
      %v932 = vld [vmem:[%s702 + $0x92] sm:$0xff]
      %v933 = vld [vmem:[%s702 + $0x9a] sm:$0xff]
      %v934 = vld [vmem:[%s702 + $0xaa] sm:$0xff]
      %v935 = vld [vmem:[%s702 + $0xb2] sm:$0xff]
      %v936 = vld [vmem:[%s702 + $0xc2] sm:$0xff]
      %v937 = vld [vmem:[%s702 + $0xca] sm:$0xff]
      %v938 = vld [vmem:[%s702 + $0xda] sm:$0xff]
      %v939 = vld [vmem:[%s702 + $0xe2] sm:$0xff]
      %v940 = vld [vmem:[%s702 + $0xf2] sm:$0xff]
      %v941 = vld [vmem:[%s702 + $0xfa] sm:$0xff]
      %v942 = vld [vmem:[%s702 + $0x10a] sm:$0xff]
      %v943 = vld [vmem:[%s702 + $0x112] sm:$0xff]
      %v944 = vld [vmem:[%s702 + $0x122] sm:$0xff]
      %v945 = vld [vmem:[%s702 + $0x12a] sm:$0xff]
      %v946 = vld [vmem:[%s702 + $0x13a] sm:$0xff]
      %v947 = vld [vmem:[%s702 + $0x142] sm:$0xff]
      %v948 = vld [vmem:[%s702 + $0x152] sm:$0xff]
      %v949 = vld [vmem:[%s702 + $0x15a] sm:$0xff]
      %v950 = vld [vmem:[%s702 + $0x16a] sm:$0xff]
      %v951 = vld [vmem:[%s702 + $0x172] sm:$0xff]
      %s952 = scalar_lea.vmem [#allocation2], 48
      %v953 = vld [vmem:[%s952] sm:$0xff]
      %v954 = vld [vmem:[%s952 + $0x8] sm:$0xff]
      %v955 = vld [vmem:[%s952 + $0x18] sm:$0xff]
      %v956 = vld [vmem:[%s952 + $0x20] sm:$0xff]
      %v957 = vld [vmem:[%s952 + $0x30] sm:$0xff]
      %v958 = vld [vmem:[%s952 + $0x38] sm:$0xff]
      %v959 = vld [vmem:[%s952 + $0x48] sm:$0xff]
      %v960 = vld [vmem:[%s952 + $0x50] sm:$0xff]
      %v961 = vld [vmem:[%s952 + $0x60] sm:$0xff]
      %v962 = vld [vmem:[%s952 + $0x68] sm:$0xff]
      %v963 = vld [vmem:[%s952 + $0x78] sm:$0xff]
      %v964 = vld [vmem:[%s952 + $0x80] sm:$0xff]
      %v965 = vld [vmem:[%s952 + $0x90] sm:$0xff]
      %v966 = vld [vmem:[%s952 + $0x98] sm:$0xff]
      %v967 = vld [vmem:[%s952 + $0xa8] sm:$0xff]
      %v968 = vld [vmem:[%s952 + $0xb0] sm:$0xff]
      %v969 = vld [vmem:[%s952 + $0xc0] sm:$0xff]
      %v970 = vld [vmem:[%s952 + $0xc8] sm:$0xff]
      %v971 = vld [vmem:[%s952 + $0xd8] sm:$0xff]
      %v972 = vld [vmem:[%s952 + $0xe0] sm:$0xff]
      %v973 = vld [vmem:[%s952 + $0xf0] sm:$0xff]
      %v974 = vld [vmem:[%s952 + $0xf8] sm:$0xff]
      %v975 = vld [vmem:[%s952 + $0x108] sm:$0xff]
      %v976 = vld [vmem:[%s952 + $0x110] sm:$0xff]
      %v977 = vld [vmem:[%s952 + $0x120] sm:$0xff]
      %v978 = vld [vmem:[%s952 + $0x128] sm:$0xff]
      %v979 = vld [vmem:[%s952 + $0x138] sm:$0xff]
      %v980 = vld [vmem:[%s952 + $0x140] sm:$0xff]
      %v981 = vld [vmem:[%s952 + $0x150] sm:$0xff]
      %v982 = vld [vmem:[%s952 + $0x158] sm:$0xff]
      %v983 = vld [vmem:[%s952 + $0x168] sm:$0xff]
      %v984 = vld [vmem:[%s952 + $0x170] sm:$0xff]
      %v985 = vld [vmem:[%s952 + $0x1] sm:$0xff]
      %v986 = vld [vmem:[%s952 + $0x9] sm:$0xff]
      %v987 = vld [vmem:[%s952 + $0x19] sm:$0xff]
      %v988 = vld [vmem:[%s952 + $0x21] sm:$0xff]
      %v989 = vld [vmem:[%s952 + $0x31] sm:$0xff]
      %v990 = vld [vmem:[%s952 + $0x39] sm:$0xff]
      %v991 = vld [vmem:[%s952 + $0x49] sm:$0xff]
      %v992 = vld [vmem:[%s952 + $0x51] sm:$0xff]
      %v993 = vld [vmem:[%s952 + $0x61] sm:$0xff]
      %v994 = vld [vmem:[%s952 + $0x69] sm:$0xff]
      %v995 = vld [vmem:[%s952 + $0x79] sm:$0xff]
      %v996 = vld [vmem:[%s952 + $0x81] sm:$0xff]
      %v997 = vld [vmem:[%s952 + $0x91] sm:$0xff]
      %v998 = vld [vmem:[%s952 + $0x99] sm:$0xff]
      %v999 = vld [vmem:[%s952 + $0xa9] sm:$0xff]
      %v1000 = vld [vmem:[%s952 + $0xb1] sm:$0xff]
      %v1001 = vld [vmem:[%s952 + $0xc1] sm:$0xff]
      %v1002 = vld [vmem:[%s952 + $0xc9] sm:$0xff]
      %v1003 = vld [vmem:[%s952 + $0xd9] sm:$0xff]
      %v1004 = vld [vmem:[%s952 + $0xe1] sm:$0xff]
      %v1005 = vld [vmem:[%s952 + $0xf1] sm:$0xff]
      %v1006 = vld [vmem:[%s952 + $0xf9] sm:$0xff]
      %v1007 = vld [vmem:[%s952 + $0x109] sm:$0xff]
      %v1008 = vld [vmem:[%s952 + $0x111] sm:$0xff]
      %v1009 = vld [vmem:[%s952 + $0x121] sm:$0xff]
      %v1010 = vld [vmem:[%s952 + $0x129] sm:$0xff]
      %v1011 = vld [vmem:[%s952 + $0x139] sm:$0xff]
      %v1012 = vld [vmem:[%s952 + $0x141] sm:$0xff]
      %v1013 = vld [vmem:[%s952 + $0x151] sm:$0xff]
      %v1014 = vld [vmem:[%s952 + $0x159] sm:$0xff]
      %v1015 = vld [vmem:[%s952 + $0x169] sm:$0xff]
      %v1016 = vld [vmem:[%s952 + $0x171] sm:$0xff]
      %v1017 = vld [vmem:[%s952 + $0x2] sm:$0xff]
      %v1018 = vld [vmem:[%s952 + $0xa] sm:$0xff]
      %v1019 = vld [vmem:[%s952 + $0x1a] sm:$0xff]
      %v1020 = vld [vmem:[%s952 + $0x22] sm:$0xff]
      %v1021 = vld [vmem:[%s952 + $0x32] sm:$0xff]
      %v1022 = vld [vmem:[%s952 + $0x3a] sm:$0xff]
      %v1023 = vld [vmem:[%s952 + $0x4a] sm:$0xff]
      %v1024 = vld [vmem:[%s952 + $0x52] sm:$0xff]
      %v1025 = vld [vmem:[%s952 + $0x62] sm:$0xff]
      %v1026 = vld [vmem:[%s952 + $0x6a] sm:$0xff]
      %v1027 = vld [vmem:[%s952 + $0x7a] sm:$0xff]
      %v1028 = vld [vmem:[%s952 + $0x82] sm:$0xff]
      %v1029 = vld [vmem:[%s952 + $0x92] sm:$0xff]
      %v1030 = vld [vmem:[%s952 + $0x9a] sm:$0xff]
      %v1031 = vld [vmem:[%s952 + $0xaa] sm:$0xff]
      %v1032 = vld [vmem:[%s952 + $0xb2] sm:$0xff]
      %v1033 = vld [vmem:[%s952 + $0xc2] sm:$0xff]
      %v1034 = vld [vmem:[%s952 + $0xca] sm:$0xff]
      %v1035 = vld [vmem:[%s952 + $0xda] sm:$0xff]
      %v1036 = vld [vmem:[%s952 + $0xe2] sm:$0xff]
      %v1037 = vld [vmem:[%s952 + $0xf2] sm:$0xff]
      %v1038 = vld [vmem:[%s952 + $0xfa] sm:$0xff]
      %v1039 = vld [vmem:[%s952 + $0x10a] sm:$0xff]
      %v1040 = vld [vmem:[%s952 + $0x112] sm:$0xff]
      %v1041 = vld [vmem:[%s952 + $0x122] sm:$0xff]
      %v1042 = vld [vmem:[%s952 + $0x12a] sm:$0xff]
      %v1043 = vld [vmem:[%s952 + $0x13a] sm:$0xff]
      %v1044 = vld [vmem:[%s952 + $0x142] sm:$0xff]
      %v1045 = vld [vmem:[%s952 + $0x152] sm:$0xff]
      %v1046 = vld [vmem:[%s952 + $0x15a] sm:$0xff]
      %v1047 = vld [vmem:[%s952 + $0x16a] sm:$0xff]
      %v1048 = vld [vmem:[%s952 + $0x172] sm:$0xff]
      %1081 = vrot.lane.b32.xlu0 %v792, 3
      %v1082 = vpop.permute.xlu0 %1081
      %1083 = vrot.lane.b32.xlu0 %v793, 3
      %v1084 = vpop.permute.xlu0 %1083
      %1085 = vrot.lane.b32.xlu0 %v794, 3
      %v1086 = vpop.permute.xlu0 %1085
      %1087 = vrot.lane.b32.xlu0 %v795, 3
      %v1088 = vpop.permute.xlu0 %1087
      %1089 = vrot.lane.b32.xlu0 %v796, 3
      %v1090 = vpop.permute.xlu0 %1089
      %1091 = vrot.lane.b32.xlu0 %v797, 3
      %v1092 = vpop.permute.xlu0 %1091
      %1093 = vrot.lane.b32.xlu0 %v798, 3
      %v1094 = vpop.permute.xlu0 %1093
      %1095 = vrot.lane.b32.xlu0 %v799, 3
      %v1096 = vpop.permute.xlu0 %1095
      %1097 = vrot.lane.b32.xlu0 %v800, 3
      %v1098 = vpop.permute.xlu0 %1097
      %1099 = vrot.lane.b32.xlu0 %v801, 3
      %v1100 = vpop.permute.xlu0 %1099
      %1101 = vrot.lane.b32.xlu0 %v802, 3
      %v1102 = vpop.permute.xlu0 %1101
      %1103 = vrot.lane.b32.xlu0 %v803, 3
      %v1104 = vpop.permute.xlu0 %1103
      %1105 = vrot.lane.b32.xlu0 %v804, 3
      %v1106 = vpop.permute.xlu0 %1105
      %1107 = vrot.lane.b32.xlu0 %v805, 3
      %v1108 = vpop.permute.xlu0 %1107
      %1109 = vrot.lane.b32.xlu0 %v806, 3
      %v1110 = vpop.permute.xlu0 %1109
      %1111 = vrot.lane.b32.xlu0 %v807, 3
      %v1112 = vpop.permute.xlu0 %1111
      %1113 = vrot.lane.b32.xlu0 %v808, 3
      %v1114 = vpop.permute.xlu0 %1113
      %1115 = vrot.lane.b32.xlu0 %v809, 3
      %v1116 = vpop.permute.xlu0 %1115
      %1117 = vrot.lane.b32.xlu0 %v810, 3
      %v1118 = vpop.permute.xlu0 %1117
      %1119 = vrot.lane.b32.xlu0 %v811, 3
      %v1120 = vpop.permute.xlu0 %1119
      %1121 = vrot.lane.b32.xlu0 %v812, 3
      %v1122 = vpop.permute.xlu0 %1121
      %1123 = vrot.lane.b32.xlu0 %v813, 3
      %v1124 = vpop.permute.xlu0 %1123
      %1125 = vrot.lane.b32.xlu0 %v814, 3
      %v1126 = vpop.permute.xlu0 %1125
      %1127 = vrot.lane.b32.xlu0 %v815, 3
      %v1128 = vpop.permute.xlu0 %1127
      %1129 = vrot.lane.b32.xlu0 %v816, 3
      %v1130 = vpop.permute.xlu0 %1129
      %1131 = vrot.lane.b32.xlu0 %v817, 3
      %v1132 = vpop.permute.xlu0 %1131
      %1133 = vrot.lane.b32.xlu0 %v818, 3
      %v1134 = vpop.permute.xlu0 %1133
      %1135 = vrot.lane.b32.xlu0 %v819, 3
      %v1136 = vpop.permute.xlu0 %1135
      %1137 = vrot.lane.b32.xlu0 %v820, 3
      %v1138 = vpop.permute.xlu0 %1137
      %1139 = vrot.lane.b32.xlu0 %v821, 3
      %v1140 = vpop.permute.xlu0 %1139
      %1141 = vrot.lane.b32.xlu0 %v822, 3
      %v1142 = vpop.permute.xlu0 %1141
      %1143 = vrot.lane.b32.xlu0 %v823, 3
      %v1144 = vpop.permute.xlu0 %1143
      %1209 = vrot.lane.b32.xlu0 %v824, 6
      %v1210 = vpop.permute.xlu0 %1209
      %1211 = vrot.lane.b32.xlu0 %v825, 6
      %v1212 = vpop.permute.xlu0 %1211
      %1213 = vrot.lane.b32.xlu0 %v826, 6
      %v1214 = vpop.permute.xlu0 %1213
      %1215 = vrot.lane.b32.xlu0 %v827, 6
      %v1216 = vpop.permute.xlu0 %1215
      %1217 = vrot.lane.b32.xlu0 %v828, 6
      %v1218 = vpop.permute.xlu0 %1217
      %1219 = vrot.lane.b32.xlu0 %v829, 6
      %v1220 = vpop.permute.xlu0 %1219
      %1221 = vrot.lane.b32.xlu0 %v830, 6
      %v1222 = vpop.permute.xlu0 %1221
      %1223 = vrot.lane.b32.xlu0 %v831, 6
      %v1224 = vpop.permute.xlu0 %1223
      %1225 = vrot.lane.b32.xlu0 %v832, 6
      %v1226 = vpop.permute.xlu0 %1225
      %1227 = vrot.lane.b32.xlu0 %v833, 6
      %v1228 = vpop.permute.xlu0 %1227
      %1229 = vrot.lane.b32.xlu0 %v834, 6
      %v1230 = vpop.permute.xlu0 %1229
      %1231 = vrot.lane.b32.xlu0 %v835, 6
      %v1232 = vpop.permute.xlu0 %1231
      %1233 = vrot.lane.b32.xlu0 %v836, 6
      %v1234 = vpop.permute.xlu0 %1233
      %1235 = vrot.lane.b32.xlu0 %v837, 6
      %v1236 = vpop.permute.xlu0 %1235
      %1237 = vrot.lane.b32.xlu0 %v838, 6
      %v1238 = vpop.permute.xlu0 %1237
      %1239 = vrot.lane.b32.xlu0 %v839, 6
      %v1240 = vpop.permute.xlu0 %1239
      %1241 = vrot.lane.b32.xlu0 %v840, 6
      %v1242 = vpop.permute.xlu0 %1241
      %1243 = vrot.lane.b32.xlu0 %v841, 6
      %v1244 = vpop.permute.xlu0 %1243
      %1245 = vrot.lane.b32.xlu0 %v842, 6
      %v1246 = vpop.permute.xlu0 %1245
      %1247 = vrot.lane.b32.xlu0 %v843, 6
      %v1248 = vpop.permute.xlu0 %1247
      %1249 = vrot.lane.b32.xlu0 %v844, 6
      %v1250 = vpop.permute.xlu0 %1249
      %1251 = vrot.lane.b32.xlu0 %v845, 6
      %v1252 = vpop.permute.xlu0 %1251
      %1253 = vrot.lane.b32.xlu0 %v846, 6
      %v1254 = vpop.permute.xlu0 %1253
      %1255 = vrot.lane.b32.xlu0 %v847, 6
      %v1256 = vpop.permute.xlu0 %1255
      %1257 = vrot.lane.b32.xlu0 %v848, 6
      %v1258 = vpop.permute.xlu0 %1257
      %1259 = vrot.lane.b32.xlu0 %v849, 6
      %v1260 = vpop.permute.xlu0 %1259
      %1261 = vrot.lane.b32.xlu0 %v850, 6
      %v1262 = vpop.permute.xlu0 %1261
      %1263 = vrot.lane.b32.xlu0 %v851, 6
      %v1264 = vpop.permute.xlu0 %1263
      %1265 = vrot.lane.b32.xlu0 %v852, 6
      %v1266 = vpop.permute.xlu0 %1265
      %1267 = vrot.lane.b32.xlu0 %v853, 6
      %v1268 = vpop.permute.xlu0 %1267
      %1269 = vrot.lane.b32.xlu0 %v854, 6
      %v1270 = vpop.permute.xlu0 %1269
      %1271 = vrot.lane.b32.xlu0 %v855, 6
      %v1272 = vpop.permute.xlu0 %1271
      %1337 = vrot.lane.b32.xlu0 %v856, 9
      %v1338 = vpop.permute.xlu0 %1337
      %1339 = vrot.lane.b32.xlu0 %v857, 9
      %v1340 = vpop.permute.xlu0 %1339
      %1341 = vrot.lane.b32.xlu0 %v858, 9
      %v1342 = vpop.permute.xlu0 %1341
      %1343 = vrot.lane.b32.xlu0 %v859, 9
      %v1344 = vpop.permute.xlu0 %1343
      %1345 = vrot.lane.b32.xlu0 %v860, 9
      %v1346 = vpop.permute.xlu0 %1345
      %1347 = vrot.lane.b32.xlu0 %v861, 9
      %v1348 = vpop.permute.xlu0 %1347
      %1349 = vrot.lane.b32.xlu0 %v862, 9
      %v1350 = vpop.permute.xlu0 %1349
      %1351 = vrot.lane.b32.xlu0 %v863, 9
      %v1352 = vpop.permute.xlu0 %1351
      %1353 = vrot.lane.b32.xlu0 %v864, 9
      %v1354 = vpop.permute.xlu0 %1353
      %1355 = vrot.lane.b32.xlu0 %v865, 9
      %v1356 = vpop.permute.xlu0 %1355
      %1357 = vrot.lane.b32.xlu0 %v866, 9
      %v1358 = vpop.permute.xlu0 %1357
      %1359 = vrot.lane.b32.xlu0 %v867, 9
      %v1360 = vpop.permute.xlu0 %1359
      %1361 = vrot.lane.b32.xlu0 %v868, 9
      %v1362 = vpop.permute.xlu0 %1361
      %1363 = vrot.lane.b32.xlu0 %v869, 9
      %v1364 = vpop.permute.xlu0 %1363
      %1365 = vrot.lane.b32.xlu0 %v870, 9
      %v1366 = vpop.permute.xlu0 %1365
      %1367 = vrot.lane.b32.xlu0 %v871, 9
      %v1368 = vpop.permute.xlu0 %1367
      %1369 = vrot.lane.b32.xlu0 %v872, 9
      %v1370 = vpop.permute.xlu0 %1369
      %1371 = vrot.lane.b32.xlu0 %v873, 9
      %v1372 = vpop.permute.xlu0 %1371
      %1373 = vrot.lane.b32.xlu0 %v874, 9
      %v1374 = vpop.permute.xlu0 %1373
      %1375 = vrot.lane.b32.xlu0 %v875, 9
      %v1376 = vpop.permute.xlu0 %1375
      %1377 = vrot.lane.b32.xlu0 %v876, 9
      %v1378 = vpop.permute.xlu0 %1377
      %1379 = vrot.lane.b32.xlu0 %v877, 9
      %v1380 = vpop.permute.xlu0 %1379
      %1381 = vrot.lane.b32.xlu0 %v878, 9
      %v1382 = vpop.permute.xlu0 %1381
      %1383 = vrot.lane.b32.xlu0 %v879, 9
      %v1384 = vpop.permute.xlu0 %1383
      %1385 = vrot.lane.b32.xlu0 %v880, 9
      %v1386 = vpop.permute.xlu0 %1385
      %1387 = vrot.lane.b32.xlu0 %v881, 9
      %v1388 = vpop.permute.xlu0 %1387
      %1389 = vrot.lane.b32.xlu0 %v882, 9
      %v1390 = vpop.permute.xlu0 %1389
      %1391 = vrot.lane.b32.xlu0 %v883, 9
      %v1392 = vpop.permute.xlu0 %1391
      %1393 = vrot.lane.b32.xlu0 %v884, 9
      %v1394 = vpop.permute.xlu0 %1393
      %1395 = vrot.lane.b32.xlu0 %v885, 9
      %v1396 = vpop.permute.xlu0 %1395
      %1397 = vrot.lane.b32.xlu0 %v886, 9
      %v1398 = vpop.permute.xlu0 %1397
      %1399 = vrot.lane.b32.xlu0 %v887, 9
      %v1400 = vpop.permute.xlu0 %1399
      %1465 = vrot.lane.b32.xlu0 %v888, 12
      %v1466 = vpop.permute.xlu0 %1465
      %1467 = vrot.lane.b32.xlu0 %v889, 12
      %v1468 = vpop.permute.xlu0 %1467
      %1469 = vrot.lane.b32.xlu0 %v890, 12
      %v1470 = vpop.permute.xlu0 %1469
      %1471 = vrot.lane.b32.xlu0 %v891, 12
      %v1472 = vpop.permute.xlu0 %1471
      %1473 = vrot.lane.b32.xlu0 %v892, 12
      %v1474 = vpop.permute.xlu0 %1473
      %1475 = vrot.lane.b32.xlu0 %v893, 12
      %v1476 = vpop.permute.xlu0 %1475
      %1477 = vrot.lane.b32.xlu0 %v894, 12
      %v1478 = vpop.permute.xlu0 %1477
      %1479 = vrot.lane.b32.xlu0 %v895, 12
      %v1480 = vpop.permute.xlu0 %1479
      %1481 = vrot.lane.b32.xlu0 %v896, 12
      %v1482 = vpop.permute.xlu0 %1481
      %1483 = vrot.lane.b32.xlu0 %v897, 12
      %v1484 = vpop.permute.xlu0 %1483
      %1485 = vrot.lane.b32.xlu0 %v898, 12
      %v1486 = vpop.permute.xlu0 %1485
      %1487 = vrot.lane.b32.xlu0 %v899, 12
      %v1488 = vpop.permute.xlu0 %1487
      %1489 = vrot.lane.b32.xlu0 %v900, 12
      %v1490 = vpop.permute.xlu0 %1489
      %1491 = vrot.lane.b32.xlu0 %v901, 12
      %v1492 = vpop.permute.xlu0 %1491
      %1493 = vrot.lane.b32.xlu0 %v902, 12
      %v1494 = vpop.permute.xlu0 %1493
      %1495 = vrot.lane.b32.xlu0 %v903, 12
      %v1496 = vpop.permute.xlu0 %1495
      %1497 = vrot.lane.b32.xlu0 %v904, 12
      %v1498 = vpop.permute.xlu0 %1497
      %1499 = vrot.lane.b32.xlu0 %v905, 12
      %v1500 = vpop.permute.xlu0 %1499
      %1501 = vrot.lane.b32.xlu0 %v906, 12
      %v1502 = vpop.permute.xlu0 %1501
      %1503 = vrot.lane.b32.xlu0 %v907, 12
      %v1504 = vpop.permute.xlu0 %1503
      %1505 = vrot.lane.b32.xlu0 %v908, 12
      %v1506 = vpop.permute.xlu0 %1505
      %1507 = vrot.lane.b32.xlu0 %v909, 12
      %v1508 = vpop.permute.xlu0 %1507
      %1509 = vrot.lane.b32.xlu0 %v910, 12
      %v1510 = vpop.permute.xlu0 %1509
      %1511 = vrot.lane.b32.xlu0 %v911, 12
      %v1512 = vpop.permute.xlu0 %1511
      %1513 = vrot.lane.b32.xlu0 %v912, 12
      %v1514 = vpop.permute.xlu0 %1513
      %1515 = vrot.lane.b32.xlu0 %v913, 12
      %v1516 = vpop.permute.xlu0 %1515
      %1517 = vrot.lane.b32.xlu0 %v914, 12
      %v1518 = vpop.permute.xlu0 %1517
      %1519 = vrot.lane.b32.xlu0 %v915, 12
      %v1520 = vpop.permute.xlu0 %1519
      %1521 = vrot.lane.b32.xlu0 %v916, 12
      %v1522 = vpop.permute.xlu0 %1521
      %1523 = vrot.lane.b32.xlu0 %v917, 12
      %v1524 = vpop.permute.xlu0 %1523
      %1525 = vrot.lane.b32.xlu0 %v918, 12
      %v1526 = vpop.permute.xlu0 %1525
      %1527 = vrot.lane.b32.xlu0 %v919, 12
      %v1528 = vpop.permute.xlu0 %1527
      %1593 = vrot.lane.b32.xlu0 %v920, 15
      %v1594 = vpop.permute.xlu0 %1593
      %1595 = vrot.lane.b32.xlu0 %v921, 15
      %v1596 = vpop.permute.xlu0 %1595
      %1597 = vrot.lane.b32.xlu0 %v922, 15
      %v1598 = vpop.permute.xlu0 %1597
      %1599 = vrot.lane.b32.xlu0 %v923, 15
      %v1600 = vpop.permute.xlu0 %1599
      %1601 = vrot.lane.b32.xlu0 %v924, 15
      %v1602 = vpop.permute.xlu0 %1601
      %1603 = vrot.lane.b32.xlu0 %v925, 15
      %v1604 = vpop.permute.xlu0 %1603
      %1605 = vrot.lane.b32.xlu0 %v926, 15
      %v1606 = vpop.permute.xlu0 %1605
      %1607 = vrot.lane.b32.xlu0 %v927, 15
      %v1608 = vpop.permute.xlu0 %1607
      %1609 = vrot.lane.b32.xlu0 %v928, 15
      %v1610 = vpop.permute.xlu0 %1609
      %1611 = vrot.lane.b32.xlu0 %v929, 15
      %v1612 = vpop.permute.xlu0 %1611
      %1613 = vrot.lane.b32.xlu0 %v930, 15
      %v1614 = vpop.permute.xlu0 %1613
      %1615 = vrot.lane.b32.xlu0 %v931, 15
      %v1616 = vpop.permute.xlu0 %1615
      %1617 = vrot.lane.b32.xlu0 %v932, 15
      %v1618 = vpop.permute.xlu0 %1617
      %1619 = vrot.lane.b32.xlu0 %v933, 15
      %v1620 = vpop.permute.xlu0 %1619
      %1621 = vrot.lane.b32.xlu0 %v934, 15
      %v1622 = vpop.permute.xlu0 %1621
      %1623 = vrot.lane.b32.xlu0 %v935, 15
      %v1624 = vpop.permute.xlu0 %1623
      %1625 = vrot.lane.b32.xlu0 %v936, 15
      %v1626 = vpop.permute.xlu0 %1625
      %1627 = vrot.lane.b32.xlu0 %v937, 15
      %v1628 = vpop.permute.xlu0 %1627
      %1629 = vrot.lane.b32.xlu0 %v938, 15
      %v1630 = vpop.permute.xlu0 %1629
      %1631 = vrot.lane.b32.xlu0 %v939, 15
      %v1632 = vpop.permute.xlu0 %1631
      %1633 = vrot.lane.b32.xlu0 %v940, 15
      %v1634 = vpop.permute.xlu0 %1633
      %1635 = vrot.lane.b32.xlu0 %v941, 15
      %v1636 = vpop.permute.xlu0 %1635
      %1637 = vrot.lane.b32.xlu0 %v942, 15
      %v1638 = vpop.permute.xlu0 %1637
      %1639 = vrot.lane.b32.xlu0 %v943, 15
      %v1640 = vpop.permute.xlu0 %1639
      %1641 = vrot.lane.b32.xlu0 %v944, 15
      %v1642 = vpop.permute.xlu0 %1641
      %1643 = vrot.lane.b32.xlu0 %v945, 15
      %v1644 = vpop.permute.xlu0 %1643
      %1645 = vrot.lane.b32.xlu0 %v946, 15
      %v1646 = vpop.permute.xlu0 %1645
      %1647 = vrot.lane.b32.xlu0 %v947, 15
      %v1648 = vpop.permute.xlu0 %1647
      %1649 = vrot.lane.b32.xlu0 %v948, 15
      %v1650 = vpop.permute.xlu0 %1649
      %1651 = vrot.lane.b32.xlu0 %v949, 15
      %v1652 = vpop.permute.xlu0 %1651
      %1653 = vrot.lane.b32.xlu0 %v950, 15
      %v1654 = vpop.permute.xlu0 %1653
      %1655 = vrot.lane.b32.xlu0 %v951, 15
      %v1656 = vpop.permute.xlu0 %1655
      %1721 = vrot.lane.b32.xlu0 %v953, 18
      %v1722 = vpop.permute.xlu0 %1721
      %1723 = vrot.lane.b32.xlu0 %v954, 18
      %v1724 = vpop.permute.xlu0 %1723
      %1725 = vrot.lane.b32.xlu0 %v955, 18
      %v1726 = vpop.permute.xlu0 %1725
      %1727 = vrot.lane.b32.xlu0 %v956, 18
      %v1728 = vpop.permute.xlu0 %1727
      %1729 = vrot.lane.b32.xlu0 %v957, 18
      %v1730 = vpop.permute.xlu0 %1729
      %1731 = vrot.lane.b32.xlu0 %v958, 18
      %v1732 = vpop.permute.xlu0 %1731
      %1733 = vrot.lane.b32.xlu0 %v959, 18
      %v1734 = vpop.permute.xlu0 %1733
      %1735 = vrot.lane.b32.xlu0 %v960, 18
      %v1736 = vpop.permute.xlu0 %1735
      %1737 = vrot.lane.b32.xlu0 %v961, 18
      %v1738 = vpop.permute.xlu0 %1737
      %1739 = vrot.lane.b32.xlu0 %v962, 18
      %v1740 = vpop.permute.xlu0 %1739
      %1741 = vrot.lane.b32.xlu0 %v963, 18
      %v1742 = vpop.permute.xlu0 %1741
      %1743 = vrot.lane.b32.xlu0 %v964, 18
      %v1744 = vpop.permute.xlu0 %1743
      %1745 = vrot.lane.b32.xlu0 %v965, 18
      %v1746 = vpop.permute.xlu0 %1745
      %1747 = vrot.lane.b32.xlu0 %v966, 18
      %v1748 = vpop.permute.xlu0 %1747
      %1749 = vrot.lane.b32.xlu0 %v967, 18
      %v1750 = vpop.permute.xlu0 %1749
      %1751 = vrot.lane.b32.xlu0 %v968, 18
      %v1752 = vpop.permute.xlu0 %1751
      %1753 = vrot.lane.b32.xlu0 %v969, 18
      %v1754 = vpop.permute.xlu0 %1753
      %1755 = vrot.lane.b32.xlu0 %v970, 18
      %v1756 = vpop.permute.xlu0 %1755
      %1757 = vrot.lane.b32.xlu0 %v971, 18
      %v1758 = vpop.permute.xlu0 %1757
      %1759 = vrot.lane.b32.xlu0 %v972, 18
      %v1760 = vpop.permute.xlu0 %1759
      %1761 = vrot.lane.b32.xlu0 %v973, 18
      %v1762 = vpop.permute.xlu0 %1761
      %1763 = vrot.lane.b32.xlu0 %v974, 18
      %v1764 = vpop.permute.xlu0 %1763
      %1765 = vrot.lane.b32.xlu0 %v975, 18
      %v1766 = vpop.permute.xlu0 %1765
      %1767 = vrot.lane.b32.xlu0 %v976, 18
      %v1768 = vpop.permute.xlu0 %1767
      %1769 = vrot.lane.b32.xlu0 %v977, 18
      %v1770 = vpop.permute.xlu0 %1769
      %1771 = vrot.lane.b32.xlu0 %v978, 18
      %v1772 = vpop.permute.xlu0 %1771
      %1773 = vrot.lane.b32.xlu0 %v979, 18
      %v1774 = vpop.permute.xlu0 %1773
      %1775 = vrot.lane.b32.xlu0 %v980, 18
      %v1776 = vpop.permute.xlu0 %1775
      %1777 = vrot.lane.b32.xlu0 %v981, 18
      %v1778 = vpop.permute.xlu0 %1777
      %1779 = vrot.lane.b32.xlu0 %v982, 18
      %v1780 = vpop.permute.xlu0 %1779
      %1781 = vrot.lane.b32.xlu0 %v983, 18
      %v1782 = vpop.permute.xlu0 %1781
      %1783 = vrot.lane.b32.xlu0 %v984, 18
      %v1784 = vpop.permute.xlu0 %1783
      %1849 = vrot.lane.b32.xlu0 %v985, 21
      %v1850 = vpop.permute.xlu0 %1849
      %1851 = vrot.lane.b32.xlu0 %v986, 21
      %v1852 = vpop.permute.xlu0 %1851
      %1853 = vrot.lane.b32.xlu0 %v987, 21
      %v1854 = vpop.permute.xlu0 %1853
      %1855 = vrot.lane.b32.xlu0 %v988, 21
      %v1856 = vpop.permute.xlu0 %1855
      %1857 = vrot.lane.b32.xlu0 %v989, 21
      %v1858 = vpop.permute.xlu0 %1857
      %1859 = vrot.lane.b32.xlu0 %v990, 21
      %v1860 = vpop.permute.xlu0 %1859
      %1861 = vrot.lane.b32.xlu0 %v991, 21
      %v1862 = vpop.permute.xlu0 %1861
      %1863 = vrot.lane.b32.xlu0 %v992, 21
      %v1864 = vpop.permute.xlu0 %1863
      %1865 = vrot.lane.b32.xlu0 %v993, 21
      %v1866 = vpop.permute.xlu0 %1865
      %1867 = vrot.lane.b32.xlu0 %v994, 21
      %v1868 = vpop.permute.xlu0 %1867
      %1869 = vrot.lane.b32.xlu0 %v995, 21
      %v1870 = vpop.permute.xlu0 %1869
      %1871 = vrot.lane.b32.xlu0 %v996, 21
      %v1872 = vpop.permute.xlu0 %1871
      %1873 = vrot.lane.b32.xlu0 %v997, 21
      %v1874 = vpop.permute.xlu0 %1873
      %1875 = vrot.lane.b32.xlu0 %v998, 21
      %v1876 = vpop.permute.xlu0 %1875
      %1877 = vrot.lane.b32.xlu0 %v999, 21
      %v1878 = vpop.permute.xlu0 %1877
      %1879 = vrot.lane.b32.xlu0 %v1000, 21
      %v1880 = vpop.permute.xlu0 %1879
      %1881 = vrot.lane.b32.xlu0 %v1001, 21
      %v1882 = vpop.permute.xlu0 %1881
      %1883 = vrot.lane.b32.xlu0 %v1002, 21
      %v1884 = vpop.permute.xlu0 %1883
      %1885 = vrot.lane.b32.xlu0 %v1003, 21
      %v1886 = vpop.permute.xlu0 %1885
      %1887 = vrot.lane.b32.xlu0 %v1004, 21
      %v1888 = vpop.permute.xlu0 %1887
      %1889 = vrot.lane.b32.xlu0 %v1005, 21
      %v1890 = vpop.permute.xlu0 %1889
      %1891 = vrot.lane.b32.xlu0 %v1006, 21
      %v1892 = vpop.permute.xlu0 %1891
      %1893 = vrot.lane.b32.xlu0 %v1007, 21
      %v1894 = vpop.permute.xlu0 %1893
      %1895 = vrot.lane.b32.xlu0 %v1008, 21
      %v1896 = vpop.permute.xlu0 %1895
      %1897 = vrot.lane.b32.xlu0 %v1009, 21
      %v1898 = vpop.permute.xlu0 %1897
      %1899 = vrot.lane.b32.xlu0 %v1010, 21
      %v1900 = vpop.permute.xlu0 %1899
      %1901 = vrot.lane.b32.xlu0 %v1011, 21
      %v1902 = vpop.permute.xlu0 %1901
      %1903 = vrot.lane.b32.xlu0 %v1012, 21
      %v1904 = vpop.permute.xlu0 %1903
      %1905 = vrot.lane.b32.xlu0 %v1013, 21
      %v1906 = vpop.permute.xlu0 %1905
      %1907 = vrot.lane.b32.xlu0 %v1014, 21
      %v1908 = vpop.permute.xlu0 %1907
      %1909 = vrot.lane.b32.xlu0 %v1015, 21
      %v1910 = vpop.permute.xlu0 %1909
      %1911 = vrot.lane.b32.xlu0 %v1016, 21
      %v1912 = vpop.permute.xlu0 %1911
      %1977 = vrot.lane.b32.xlu0 %v1017, 24
      %v1978 = vpop.permute.xlu0 %1977
      %1979 = vrot.lane.b32.xlu0 %v1018, 24
      %v1980 = vpop.permute.xlu0 %1979
      %1981 = vrot.lane.b32.xlu0 %v1019, 24
      %v1982 = vpop.permute.xlu0 %1981
      %1983 = vrot.lane.b32.xlu0 %v1020, 24
      %v1984 = vpop.permute.xlu0 %1983
      %1985 = vrot.lane.b32.xlu0 %v1021, 24
      %v1986 = vpop.permute.xlu0 %1985
      %1987 = vrot.lane.b32.xlu0 %v1022, 24
      %v1988 = vpop.permute.xlu0 %1987
      %1989 = vrot.lane.b32.xlu0 %v1023, 24
      %v1990 = vpop.permute.xlu0 %1989
      %1991 = vrot.lane.b32.xlu0 %v1024, 24
      %v1992 = vpop.permute.xlu0 %1991
      %1993 = vrot.lane.b32.xlu0 %v1025, 24
      %v1994 = vpop.permute.xlu0 %1993
      %1995 = vrot.lane.b32.xlu0 %v1026, 24
      %v1996 = vpop.permute.xlu0 %1995
      %1997 = vrot.lane.b32.xlu0 %v1027, 24
      %v1998 = vpop.permute.xlu0 %1997
      %1999 = vrot.lane.b32.xlu0 %v1028, 24
      %v2000 = vpop.permute.xlu0 %1999
      %2001 = vrot.lane.b32.xlu0 %v1029, 24
      %v2002 = vpop.permute.xlu0 %2001
      %2003 = vrot.lane.b32.xlu0 %v1030, 24
      %v2004 = vpop.permute.xlu0 %2003
      %2005 = vrot.lane.b32.xlu0 %v1031, 24
      %v2006 = vpop.permute.xlu0 %2005
      %2007 = vrot.lane.b32.xlu0 %v1032, 24
      %v2008 = vpop.permute.xlu0 %2007
      %2009 = vrot.lane.b32.xlu0 %v1033, 24
      %v2010 = vpop.permute.xlu0 %2009
      %2011 = vrot.lane.b32.xlu0 %v1034, 24
      %v2012 = vpop.permute.xlu0 %2011
      %2013 = vrot.lane.b32.xlu0 %v1035, 24
      %v2014 = vpop.permute.xlu0 %2013
      %2015 = vrot.lane.b32.xlu0 %v1036, 24
      %v2016 = vpop.permute.xlu0 %2015
      %2017 = vrot.lane.b32.xlu0 %v1037, 24
      %v2018 = vpop.permute.xlu0 %2017
      %2019 = vrot.lane.b32.xlu0 %v1038, 24
      %v2020 = vpop.permute.xlu0 %2019
      %2021 = vrot.lane.b32.xlu0 %v1039, 24
      %v2022 = vpop.permute.xlu0 %2021
      %2023 = vrot.lane.b32.xlu0 %v1040, 24
      %v2024 = vpop.permute.xlu0 %2023
      %2025 = vrot.lane.b32.xlu0 %v1041, 24
      %v2026 = vpop.permute.xlu0 %2025
      %2027 = vrot.lane.b32.xlu0 %v1042, 24
      %v2028 = vpop.permute.xlu0 %2027
      %2029 = vrot.lane.b32.xlu0 %v1043, 24
      %v2030 = vpop.permute.xlu0 %2029
      %2031 = vrot.lane.b32.xlu0 %v1044, 24
      %v2032 = vpop.permute.xlu0 %2031
      %2033 = vrot.lane.b32.xlu0 %v1045, 24
      %v2034 = vpop.permute.xlu0 %2033
      %2035 = vrot.lane.b32.xlu0 %v1046, 24
      %v2036 = vpop.permute.xlu0 %2035
      %2037 = vrot.lane.b32.xlu0 %v1047, 24
      %v2038 = vpop.permute.xlu0 %2037
      %2039 = vrot.lane.b32.xlu0 %v1048, 24
      %v2040 = vpop.permute.xlu0 %2039
      %v2073 = vsel %vm703, %v760, %v1082
      %v2074 = vsel %vm703, %v761, %v1084
      %v2075 = vsel %vm703, %v762, %v1086
      %v2076 = vsel %vm703, %v763, %v1088
      %v2077 = vsel %vm703, %v764, %v1090
      %v2078 = vsel %vm703, %v765, %v1092
      %v2079 = vsel %vm703, %v766, %v1094
      %v2080 = vsel %vm703, %v767, %v1096
      %v2081 = vsel %vm703, %v768, %v1098
      %v2082 = vsel %vm703, %v769, %v1100
      %v2083 = vsel %vm703, %v770, %v1102
      %v2084 = vsel %vm703, %v771, %v1104
      %v2085 = vsel %vm703, %v772, %v1106
      %v2086 = vsel %vm703, %v773, %v1108
      %v2087 = vsel %vm703, %v774, %v1110
      %v2088 = vsel %vm703, %v775, %v1112
      %v2089 = vsel %vm703, %v776, %v1114
      %v2090 = vsel %vm703, %v777, %v1116
      %v2091 = vsel %vm703, %v778, %v1118
      %v2092 = vsel %vm703, %v779, %v1120
      %v2093 = vsel %vm703, %v780, %v1122
      %v2094 = vsel %vm703, %v781, %v1124
      %v2095 = vsel %vm703, %v782, %v1126
      %v2096 = vsel %vm703, %v783, %v1128
      %v2097 = vsel %vm703, %v784, %v1130
      %v2098 = vsel %vm703, %v785, %v1132
      %v2099 = vsel %vm703, %v786, %v1134
      %v2100 = vsel %vm703, %v787, %v1136
      %v2101 = vsel %vm703, %v788, %v1138
      %v2102 = vsel %vm703, %v789, %v1140
      %v2103 = vsel %vm703, %v790, %v1142
      %v2104 = vsel %vm703, %v791, %v1144
      %vm2105 = vcmask 48128
      %v2106 = vsel %vm2105, %v2073, %v1210
      %v2107 = vsel %vm2105, %v2074, %v1212
      %v2108 = vsel %vm2105, %v2075, %v1214
      %v2109 = vsel %vm2105, %v2076, %v1216
      %v2110 = vsel %vm2105, %v2077, %v1218
      %v2111 = vsel %vm2105, %v2078, %v1220
      %v2112 = vsel %vm2105, %v2079, %v1222
      %v2113 = vsel %vm2105, %v2080, %v1224
      %v2114 = vsel %vm2105, %v2081, %v1226
      %v2115 = vsel %vm2105, %v2082, %v1228
      %v2116 = vsel %vm2105, %v2083, %v1230
      %v2117 = vsel %vm2105, %v2084, %v1232
      %v2118 = vsel %vm2105, %v2085, %v1234
      %v2119 = vsel %vm2105, %v2086, %v1236
      %v2120 = vsel %vm2105, %v2087, %v1238
      %v2121 = vsel %vm2105, %v2088, %v1240
      %v2122 = vsel %vm2105, %v2089, %v1242
      %v2123 = vsel %vm2105, %v2090, %v1244
      %v2124 = vsel %vm2105, %v2091, %v1246
      %v2125 = vsel %vm2105, %v2092, %v1248
      %v2126 = vsel %vm2105, %v2093, %v1250
      %v2127 = vsel %vm2105, %v2094, %v1252
      %v2128 = vsel %vm2105, %v2095, %v1254
      %v2129 = vsel %vm2105, %v2096, %v1256
      %v2130 = vsel %vm2105, %v2097, %v1258
      %v2131 = vsel %vm2105, %v2098, %v1260
      %v2132 = vsel %vm2105, %v2099, %v1262
      %v2133 = vsel %vm2105, %v2100, %v1264
      %v2134 = vsel %vm2105, %v2101, %v1266
      %v2135 = vsel %vm2105, %v2102, %v1268
      %v2136 = vsel %vm2105, %v2103, %v1270
      %v2137 = vsel %vm2105, %v2104, %v1272
      %vm2138 = vcmask 72704
      %v2139 = vsel %vm2138, %v2106, %v1338
      %v2140 = vsel %vm2138, %v2107, %v1340
      %v2141 = vsel %vm2138, %v2108, %v1342
      %v2142 = vsel %vm2138, %v2109, %v1344
      %v2143 = vsel %vm2138, %v2110, %v1346
      %v2144 = vsel %vm2138, %v2111, %v1348
      %v2145 = vsel %vm2138, %v2112, %v1350
      %v2146 = vsel %vm2138, %v2113, %v1352
      %v2147 = vsel %vm2138, %v2114, %v1354
      %v2148 = vsel %vm2138, %v2115, %v1356
      %v2149 = vsel %vm2138, %v2116, %v1358
      %v2150 = vsel %vm2138, %v2117, %v1360
      %v2151 = vsel %vm2138, %v2118, %v1362
      %v2152 = vsel %vm2138, %v2119, %v1364
      %v2153 = vsel %vm2138, %v2120, %v1366
      %v2154 = vsel %vm2138, %v2121, %v1368
      %v2155 = vsel %vm2138, %v2122, %v1370
      %v2156 = vsel %vm2138, %v2123, %v1372
      %v2157 = vsel %vm2138, %v2124, %v1374
      %v2158 = vsel %vm2138, %v2125, %v1376
      %v2159 = vsel %vm2138, %v2126, %v1378
      %v2160 = vsel %vm2138, %v2127, %v1380
      %v2161 = vsel %vm2138, %v2128, %v1382
      %v2162 = vsel %vm2138, %v2129, %v1384
      %v2163 = vsel %vm2138, %v2130, %v1386
      %v2164 = vsel %vm2138, %v2131, %v1388
      %v2165 = vsel %vm2138, %v2132, %v1390
      %v2166 = vsel %vm2138, %v2133, %v1392
      %v2167 = vsel %vm2138, %v2134, %v1394
      %v2168 = vsel %vm2138, %v2135, %v1396
      %v2169 = vsel %vm2138, %v2136, %v1398
      %v2170 = vsel %vm2138, %v2137, %v1400
      %vm2171 = vcmask 97280
      %v2172 = vsel %vm2171, %v2139, %v1466
      %v2173 = vsel %vm2171, %v2140, %v1468
      %v2174 = vsel %vm2171, %v2141, %v1470
      %v2175 = vsel %vm2171, %v2142, %v1472
      %v2176 = vsel %vm2171, %v2143, %v1474
      %v2177 = vsel %vm2171, %v2144, %v1476
      %v2178 = vsel %vm2171, %v2145, %v1478
      %v2179 = vsel %vm2171, %v2146, %v1480
      %v2180 = vsel %vm2171, %v2147, %v1482
      %v2181 = vsel %vm2171, %v2148, %v1484
      %v2182 = vsel %vm2171, %v2149, %v1486
      %v2183 = vsel %vm2171, %v2150, %v1488
      %v2184 = vsel %vm2171, %v2151, %v1490
      %v2185 = vsel %vm2171, %v2152, %v1492
      %v2186 = vsel %vm2171, %v2153, %v1494
      %v2187 = vsel %vm2171, %v2154, %v1496
      %v2188 = vsel %vm2171, %v2155, %v1498
      %v2189 = vsel %vm2171, %v2156, %v1500
      %v2190 = vsel %vm2171, %v2157, %v1502
      %v2191 = vsel %vm2171, %v2158, %v1504
      %v2192 = vsel %vm2171, %v2159, %v1506
      %v2193 = vsel %vm2171, %v2160, %v1508
      %v2194 = vsel %vm2171, %v2161, %v1510
      %v2195 = vsel %vm2171, %v2162, %v1512
      %v2196 = vsel %vm2171, %v2163, %v1514
      %v2197 = vsel %vm2171, %v2164, %v1516
      %v2198 = vsel %vm2171, %v2165, %v1518
      %v2199 = vsel %vm2171, %v2166, %v1520
      %v2200 = vsel %vm2171, %v2167, %v1522
      %v2201 = vsel %vm2171, %v2168, %v1524
      %v2202 = vsel %vm2171, %v2169, %v1526
      %v2203 = vsel %vm2171, %v2170, %v1528
      %vm2204 = vcmask 121856
      %v2205 = vsel %vm2204, %v2172, %v1594
      %v2206 = vsel %vm2204, %v2173, %v1596
      %v2207 = vsel %vm2204, %v2174, %v1598
      %v2208 = vsel %vm2204, %v2175, %v1600
      %v2209 = vsel %vm2204, %v2176, %v1602
      %v2210 = vsel %vm2204, %v2177, %v1604
      %v2211 = vsel %vm2204, %v2178, %v1606
      %v2212 = vsel %vm2204, %v2179, %v1608
      %v2213 = vsel %vm2204, %v2180, %v1610
      %v2214 = vsel %vm2204, %v2181, %v1612
      %v2215 = vsel %vm2204, %v2182, %v1614
      %v2216 = vsel %vm2204, %v2183, %v1616
      %v2217 = vsel %vm2204, %v2184, %v1618
      %v2218 = vsel %vm2204, %v2185, %v1620
      %v2219 = vsel %vm2204, %v2186, %v1622
      %v2220 = vsel %vm2204, %v2187, %v1624
      %v2221 = vsel %vm2204, %v2188, %v1626
      %v2222 = vsel %vm2204, %v2189, %v1628
      %v2223 = vsel %vm2204, %v2190, %v1630
      %v2224 = vsel %vm2204, %v2191, %v1632
      %v2225 = vsel %vm2204, %v2192, %v1634
      %v2226 = vsel %vm2204, %v2193, %v1636
      %v2227 = vsel %vm2204, %v2194, %v1638
      %v2228 = vsel %vm2204, %v2195, %v1640
      %v2229 = vsel %vm2204, %v2196, %v1642
      %v2230 = vsel %vm2204, %v2197, %v1644
      %v2231 = vsel %vm2204, %v2198, %v1646
      %v2232 = vsel %vm2204, %v2199, %v1648
      %v2233 = vsel %vm2204, %v2200, %v1650
      %v2234 = vsel %vm2204, %v2201, %v1652
      %v2235 = vsel %vm2204, %v2202, %v1654
      %v2236 = vsel %vm2204, %v2203, %v1656
      %vm2237 = vcmask 146432
      %v2238 = vsel %vm2237, %v2205, %v1722
      %v2239 = vsel %vm2237, %v2206, %v1724
      %v2240 = vsel %vm2237, %v2207, %v1726
      %v2241 = vsel %vm2237, %v2208, %v1728
      %v2242 = vsel %vm2237, %v2209, %v1730
      %v2243 = vsel %vm2237, %v2210, %v1732
      %v2244 = vsel %vm2237, %v2211, %v1734
      %v2245 = vsel %vm2237, %v2212, %v1736
      %v2246 = vsel %vm2237, %v2213, %v1738
      %v2247 = vsel %vm2237, %v2214, %v1740
      %v2248 = vsel %vm2237, %v2215, %v1742
      %v2249 = vsel %vm2237, %v2216, %v1744
      %v2250 = vsel %vm2237, %v2217, %v1746
      %v2251 = vsel %vm2237, %v2218, %v1748
      %v2252 = vsel %vm2237, %v2219, %v1750
      %v2253 = vsel %vm2237, %v2220, %v1752
      %v2254 = vsel %vm2237, %v2221, %v1754
      %v2255 = vsel %vm2237, %v2222, %v1756
      %v2256 = vsel %vm2237, %v2223, %v1758
      %v2257 = vsel %vm2237, %v2224, %v1760
      %v2258 = vsel %vm2237, %v2225, %v1762
      %v2259 = vsel %vm2237, %v2226, %v1764
      %v2260 = vsel %vm2237, %v2227, %v1766
      %v2261 = vsel %vm2237, %v2228, %v1768
      %v2262 = vsel %vm2237, %v2229, %v1770
      %v2263 = vsel %vm2237, %v2230, %v1772
      %v2264 = vsel %vm2237, %v2231, %v1774
      %v2265 = vsel %vm2237, %v2232, %v1776
      %v2266 = vsel %vm2237, %v2233, %v1778
      %v2267 = vsel %vm2237, %v2234, %v1780
      %v2268 = vsel %vm2237, %v2235, %v1782
      %v2269 = vsel %vm2237, %v2236, %v1784
      %vm2270 = vcmask 171008
      %v2271 = vsel %vm2270, %v2238, %v1850
      %v2272 = vsel %vm2270, %v2239, %v1852
      %v2273 = vsel %vm2270, %v2240, %v1854
      %v2274 = vsel %vm2270, %v2241, %v1856
      %v2275 = vsel %vm2270, %v2242, %v1858
      %v2276 = vsel %vm2270, %v2243, %v1860
      %v2277 = vsel %vm2270, %v2244, %v1862
      %v2278 = vsel %vm2270, %v2245, %v1864
      %v2279 = vsel %vm2270, %v2246, %v1866
      %v2280 = vsel %vm2270, %v2247, %v1868
      %v2281 = vsel %vm2270, %v2248, %v1870
      %v2282 = vsel %vm2270, %v2249, %v1872
      %v2283 = vsel %vm2270, %v2250, %v1874
      %v2284 = vsel %vm2270, %v2251, %v1876
      %v2285 = vsel %vm2270, %v2252, %v1878
      %v2286 = vsel %vm2270, %v2253, %v1880
      %v2287 = vsel %vm2270, %v2254, %v1882
      %v2288 = vsel %vm2270, %v2255, %v1884
      %v2289 = vsel %vm2270, %v2256, %v1886
      %v2290 = vsel %vm2270, %v2257, %v1888
      %v2291 = vsel %vm2270, %v2258, %v1890
      %v2292 = vsel %vm2270, %v2259, %v1892
      %v2293 = vsel %vm2270, %v2260, %v1894
      %v2294 = vsel %vm2270, %v2261, %v1896
      %v2295 = vsel %vm2270, %v2262, %v1898
      %v2296 = vsel %vm2270, %v2263, %v1900
      %v2297 = vsel %vm2270, %v2264, %v1902
      %v2298 = vsel %vm2270, %v2265, %v1904
      %v2299 = vsel %vm2270, %v2266, %v1906
      %v2300 = vsel %vm2270, %v2267, %v1908
      %v2301 = vsel %vm2270, %v2268, %v1910
      %v2302 = vsel %vm2270, %v2269, %v1912
      %vm2303 = vcmask 195584
      %v2304 = vsel %vm2303, %v2271, %v1978
      %v2305 = vsel %vm2303, %v2272, %v1980
      %v2306 = vsel %vm2303, %v2273, %v1982
      %v2307 = vsel %vm2303, %v2274, %v1984
      %v2308 = vsel %vm2303, %v2275, %v1986
      %v2309 = vsel %vm2303, %v2276, %v1988
      %v2310 = vsel %vm2303, %v2277, %v1990
      %v2311 = vsel %vm2303, %v2278, %v1992
      %v2312 = vsel %vm2303, %v2279, %v1994
      %v2313 = vsel %vm2303, %v2280, %v1996
      %v2314 = vsel %vm2303, %v2281, %v1998
      %v2315 = vsel %vm2303, %v2282, %v2000
      %v2316 = vsel %vm2303, %v2283, %v2002
      %v2317 = vsel %vm2303, %v2284, %v2004
      %v2318 = vsel %vm2303, %v2285, %v2006
      %v2319 = vsel %vm2303, %v2286, %v2008
      %v2320 = vsel %vm2303, %v2287, %v2010
      %v2321 = vsel %vm2303, %v2288, %v2012
      %v2322 = vsel %vm2303, %v2289, %v2014
      %v2323 = vsel %vm2303, %v2290, %v2016
      %v2324 = vsel %vm2303, %v2291, %v2018
      %v2325 = vsel %vm2303, %v2292, %v2020
      %v2326 = vsel %vm2303, %v2293, %v2022
      %v2327 = vsel %vm2303, %v2294, %v2024
      %v2328 = vsel %vm2303, %v2295, %v2026
      %v2329 = vsel %vm2303, %v2296, %v2028
      %v2330 = vsel %vm2303, %v2297, %v2030
      %v2331 = vsel %vm2303, %v2298, %v2032
      %v2332 = vsel %vm2303, %v2299, %v2034
      %v2333 = vsel %vm2303, %v2300, %v2036
      %v2334 = vsel %vm2303, %v2301, %v2038
      %v2335 = vsel %vm2303, %v2302, %v2040
      %v2336 = vpack.c.bf16 %v2305, %v2304
      %v2337 = vpack.c.bf16 %v2307, %v2306
      %v2338 = vpack.c.bf16 %v2309, %v2308
      %v2339 = vpack.c.bf16 %v2311, %v2310
      %v2340 = vpack.c.bf16 %v2313, %v2312
      %v2341 = vpack.c.bf16 %v2315, %v2314
      %v2342 = vpack.c.bf16 %v2317, %v2316
      %v2343 = vpack.c.bf16 %v2319, %v2318
      %v2344 = vpack.c.bf16 %v2321, %v2320
      %v2345 = vpack.c.bf16 %v2323, %v2322
      %v2346 = vpack.c.bf16 %v2325, %v2324
      %v2347 = vpack.c.bf16 %v2327, %v2326
      %v2348 = vpack.c.bf16 %v2329, %v2328
      %v2349 = vpack.c.bf16 %v2331, %v2330
      %v2350 = vpack.c.bf16 %v2333, %v2332
      %v2351 = vpack.c.bf16 %v2335, %v2334
      %v2352 = vld [vmem:[%s1] sm:$0xf]
      %v2353 = vld [vmem:[%s1 + $0x4] sm:$0xf]
      %v2354 = vld [vmem:[%s1 + $0x8] sm:$0xf]
      %v2355 = vld [vmem:[%s1 + $0xc] sm:$0x3]
      %v2356 = vld [vmem:[%s2] sm:$0x1]
      %v2358 = vlaneseq
      %v2359 = vshrl.u32 %v2358, 7
      %v2360 = vsub.s32 0, %v2359
      %v2361 = vrot.slane %v2356, %v2360
      %v2367 = vunpack.c.l.b16 %v2352
      %v2368 = vunpack.c.l.b16 %v2353
      %v2369 = vunpack.c.l.b16 %v2354
      %v2370 = vunpack.c.l.b16 %v2355
      %v2371 = vpack.c.b16 %v2368, %v2367
      %v2372 = vpack.c.b16 %v2370, %v2369
      %vm2374 = vcmask 220160
      %v2376 = vsel %vm2374, %v2336, 0
      %v2379 = vsel %vm2374, %v2337, 0
      %v2382 = vsel %vm2374, %v2338, 0
      %v2385 = vsel %vm2374, %v2339, 0
      %v2388 = vsel %vm2374, %v2340, 0
      %v2391 = vsel %vm2374, %v2341, 0
      %v2394 = vsel %vm2374, %v2342, 0
      %v2397 = vsel %vm2374, %v2343, 0
      %v2400 = vsel %vm2374, %v2344, 0
      %v2403 = vsel %vm2374, %v2345, 0
      %v2406 = vsel %vm2374, %v2346, 0
      %v2409 = vsel %vm2374, %v2347, 0
      %v2412 = vsel %vm2374, %v2348, 0
      %v2415 = vsel %vm2374, %v2349, 0
      %v2418 = vsel %vm2374, %v2350, 0
      %v2421 = vsel %vm2374, %v2351, 0
      %vm2423 = vcmask 1044480
      %vm2424 = vcmask 1045504
      %v2425 = vsel %vm2423, 4294967295, 65535
      %v2426 = vsel %vm2424, %v2425, 0
      %v2428 = vand.u32 %v2372, %v2426
      %2430 = vmatprep.subr.bf16.mxu0 0
      %2431 = vmatpush1.bf16.msra.mxu0 %v2371
      %2432 = vmatprep.subr.bf16.mxu0 0
      %2433 = vmatpush1.bf16.msra.mxu0 %v2428
      %2434 = vmatprep.subr.bf16.mxu0 0
      %2435 = vmatpush1.bf16.msra.mxu0 0
      %2436 = vmatprep.subr.bf16.mxu0 0
      %2437 = vmatpush1.bf16.msra.mxu0 0
      %2438 = vmatprep.subr.bf16.mxu0 0
      %2439 = vmatpush1.bf16.msra.mxu0 0
      %2440 = vmatprep.subr.bf16.mxu0 0
      %2441 = vmatpush1.bf16.msra.mxu0 0
      %2442 = vmatprep.subr.bf16.mxu0 0
      %2443 = vmatpush1.bf16.msra.mxu0 0
      %2444 = vmatprep.subr.bf16.mxu0 0
      %2445 = vmatpush1.bf16.msra.mxu0 0
      %2446 = vmatprep.subr.bf16.mxu0 0
      %2447 = vmatpush1.bf16.msra.mxu0 0
      %2448 = vmatprep.subr.bf16.mxu0 0
      %2449 = vmatpush1.bf16.msra.mxu0 0
      %2450 = vmatprep.subr.bf16.mxu0 0
      %2451 = vmatpush1.bf16.msra.mxu0 0
      %2452 = vmatprep.subr.bf16.mxu0 0
      %2453 = vmatpush1.bf16.msra.mxu0 0
      %2454 = vmatprep.subr.bf16.mxu0 0
      %2455 = vmatpush1.bf16.msra.mxu0 0
      %2456 = vmatprep.subr.bf16.mxu0 0
      %2457 = vmatpush1.bf16.msra.mxu0 0
      %2458 = vmatprep.subr.bf16.mxu0 0
      %2459 = vmatpush1.bf16.msra.mxu0 0
      %2460 = vmatprep.subr.bf16.mxu0 0
      %2461 = vmatpush1.bf16.msra.mxu0 0
      %2462 = vmatprep.mubr.bf16.mxu0 0
      %2463 = vmatmul.mubr.bf16.gmra.mrb[0].mxu0 %v2376
      %v2464 = vpop.f32.mrb[0].mxu0
      %v2465 = vadd.f32 %v2361, %v2464
      %v2466 = vpop.f32.mrb[0].mxu0
      %v2467 = vpop.f32.mrb[0].mxu0
      %v2468 = vadd.f32 %v2361, %v2467
      %v2469 = vpop.f32.mrb[0].mxu0
      %2470 = vmatprep.mubr.bf16.mxu0 0
      %2471 = vmatmul.mubr.bf16.gmra.mrb[0].mxu0 %v2379
      %v2472 = vpop.f32.mrb[0].mxu0
      %v2473 = vadd.f32 %v2361, %v2472
      %v2474 = vpop.f32.mrb[0].mxu0
      %v2475 = vpop.f32.mrb[0].mxu0
      %v2476 = vadd.f32 %v2361, %v2475
      %v2477 = vpop.f32.mrb[0].mxu0
      %2478 = vmatprep.mubr.bf16.mxu0 0
      %2479 = vmatmul.mubr.bf16.gmra.mrb[0].mxu0 %v2382
      %v2480 = vpop.f32.mrb[0].mxu0
      %v2481 = vadd.f32 %v2361, %v2480
      %v2482 = vpop.f32.mrb[0].mxu0
      %v2483 = vpop.f32.mrb[0].mxu0
      %v2484 = vadd.f32 %v2361, %v2483
      %v2485 = vpop.f32.mrb[0].mxu0
      %2486 = vmatprep.mubr.bf16.mxu0 0
      %2487 = vmatmul.mubr.bf16.gmra.mrb[0].mxu0 %v2385
      %v2488 = vpop.f32.mrb[0].mxu0
      %v2489 = vadd.f32 %v2361, %v2488
      %v2490 = vpop.f32.mrb[0].mxu0
      %v2491 = vpop.f32.mrb[0].mxu0
      %v2492 = vadd.f32 %v2361, %v2491
      %v2493 = vpop.f32.mrb[0].mxu0
      %2494 = vmatprep.mubr.bf16.mxu0 0
      %2495 = vmatmul.mubr.bf16.gmra.mrb[0].mxu0 %v2388
      %v2496 = vpop.f32.mrb[0].mxu0
      %v2497 = vadd.f32 %v2361, %v2496
      %v2498 = vpop.f32.mrb[0].mxu0
      %v2499 = vpop.f32.mrb[0].mxu0
      %v2500 = vadd.f32 %v2361, %v2499
      %v2501 = vpop.f32.mrb[0].mxu0
      %2502 = vmatprep.mubr.bf16.mxu0 0
      %2503 = vmatmul.mubr.bf16.gmra.mrb[0].mxu0 %v2391
      %v2504 = vpop.f32.mrb[0].mxu0
      %v2505 = vadd.f32 %v2361, %v2504
      %v2506 = vpop.f32.mrb[0].mxu0
      %v2507 = vpop.f32.mrb[0].mxu0
      %v2508 = vadd.f32 %v2361, %v2507
      %v2509 = vpop.f32.mrb[0].mxu0
      %2510 = vmatprep.mubr.bf16.mxu0 0
      %2511 = vmatmul.mubr.bf16.gmra.mrb[0].mxu0 %v2394
      %v2512 = vpop.f32.mrb[0].mxu0
      %v2513 = vadd.f32 %v2361, %v2512
      %v2514 = vpop.f32.mrb[0].mxu0
      %v2515 = vpop.f32.mrb[0].mxu0
      %v2516 = vadd.f32 %v2361, %v2515
      %v2517 = vpop.f32.mrb[0].mxu0
      %2518 = vmatprep.mubr.bf16.mxu0 0
      %2519 = vmatmul.mubr.bf16.gmra.mrb[0].mxu0 %v2397
      %v2520 = vpop.f32.mrb[0].mxu0
      %v2521 = vadd.f32 %v2361, %v2520
      %v2522 = vpop.f32.mrb[0].mxu0
      %v2523 = vpop.f32.mrb[0].mxu0
      %v2524 = vadd.f32 %v2361, %v2523
      %v2525 = vpop.f32.mrb[0].mxu0
      %2526 = vmatprep.mubr.bf16.mxu0 0
      %2527 = vmatmul.mubr.bf16.gmra.mrb[0].mxu0 %v2400
      %v2528 = vpop.f32.mrb[0].mxu0
      %v2529 = vadd.f32 %v2361, %v2528
      %v2530 = vpop.f32.mrb[0].mxu0
      %v2531 = vpop.f32.mrb[0].mxu0
      %v2532 = vadd.f32 %v2361, %v2531
      %v2533 = vpop.f32.mrb[0].mxu0
      %2534 = vmatprep.mubr.bf16.mxu0 0
      %2535 = vmatmul.mubr.bf16.gmra.mrb[0].mxu0 %v2403
      %v2536 = vpop.f32.mrb[0].mxu0
      %v2537 = vadd.f32 %v2361, %v2536
      %v2538 = vpop.f32.mrb[0].mxu0
      %v2539 = vpop.f32.mrb[0].mxu0
      %v2540 = vadd.f32 %v2361, %v2539
      %v2541 = vpop.f32.mrb[0].mxu0
      %2542 = vmatprep.mubr.bf16.mxu0 0
      %2543 = vmatmul.mubr.bf16.gmra.mrb[0].mxu0 %v2406
      %v2544 = vpop.f32.mrb[0].mxu0
      %v2545 = vadd.f32 %v2361, %v2544
      %v2546 = vpop.f32.mrb[0].mxu0
      %v2547 = vpop.f32.mrb[0].mxu0
      %v2548 = vadd.f32 %v2361, %v2547
      %v2549 = vpop.f32.mrb[0].mxu0
      %2550 = vmatprep.mubr.bf16.mxu0 0
      %2551 = vmatmul.mubr.bf16.gmra.mrb[0].mxu0 %v2409
      %v2552 = vpop.f32.mrb[0].mxu0
      %v2553 = vadd.f32 %v2361, %v2552
      %v2554 = vpop.f32.mrb[0].mxu0
      %v2555 = vpop.f32.mrb[0].mxu0
      %v2556 = vadd.f32 %v2361, %v2555
      %v2557 = vpop.f32.mrb[0].mxu0
      %2558 = vmatprep.mubr.bf16.mxu0 0
      %2559 = vmatmul.mubr.bf16.gmra.mrb[0].mxu0 %v2412
      %v2560 = vpop.f32.mrb[0].mxu0
      %v2561 = vadd.f32 %v2361, %v2560
      %v2562 = vpop.f32.mrb[0].mxu0
      %v2563 = vpop.f32.mrb[0].mxu0
      %v2564 = vadd.f32 %v2361, %v2563
      %v2565 = vpop.f32.mrb[0].mxu0
      %2566 = vmatprep.mubr.bf16.mxu0 0
      %2567 = vmatmul.mubr.bf16.gmra.mrb[0].mxu0 %v2415
      %v2568 = vpop.f32.mrb[0].mxu0
      %v2569 = vadd.f32 %v2361, %v2568
      %v2570 = vpop.f32.mrb[0].mxu0
      %v2571 = vpop.f32.mrb[0].mxu0
      %v2572 = vadd.f32 %v2361, %v2571
      %v2573 = vpop.f32.mrb[0].mxu0
      %2574 = vmatprep.mubr.bf16.mxu0 0
      %2575 = vmatmul.mubr.bf16.gmra.mrb[0].mxu0 %v2418
      %v2576 = vpop.f32.mrb[0].mxu0
      %v2577 = vadd.f32 %v2361, %v2576
      %v2578 = vpop.f32.mrb[0].mxu0
      %v2579 = vpop.f32.mrb[0].mxu0
      %v2580 = vadd.f32 %v2361, %v2579
      %v2581 = vpop.f32.mrb[0].mxu0
      %2582 = vmatprep.mubr.bf16.mxu0 0
      %2583 = vmatmul.mubr.bf16.gmra.mrb[0].mxu0 %v2421
      %v2584 = vpop.f32.mrb[0].mxu0
      %v2585 = vadd.f32 %v2361, %v2584
      %v2586 = vpop.f32.mrb[0].mxu0
      %v2587 = vpop.f32.mrb[0].mxu0
      %v2588 = vadd.f32 %v2361, %v2587
      %v2589 = vpop.f32.mrb[0].mxu0
      %2590 = vdwg.mxu0
      %v2591 = vmax.f32 %v2465, 0.0
      %v2592 = vmax.f32 %v2468, 0.0
      %v2593 = vmax.f32 %v2473, 0.0
      %v2594 = vmax.f32 %v2476, 0.0
      %v2595 = vmax.f32 %v2481, 0.0
      %v2596 = vmax.f32 %v2484, 0.0
      %v2597 = vmax.f32 %v2489, 0.0
      %v2598 = vmax.f32 %v2492, 0.0
      %v2599 = vmax.f32 %v2497, 0.0
      %v2600 = vmax.f32 %v2500, 0.0
      %v2601 = vmax.f32 %v2505, 0.0
      %v2602 = vmax.f32 %v2508, 0.0
      %v2603 = vmax.f32 %v2513, 0.0
      %v2604 = vmax.f32 %v2516, 0.0
      %v2605 = vmax.f32 %v2521, 0.0
      %v2606 = vmax.f32 %v2524, 0.0
      %v2607 = vmax.f32 %v2529, 0.0
      %v2608 = vmax.f32 %v2532, 0.0
      %v2609 = vmax.f32 %v2537, 0.0
      %v2610 = vmax.f32 %v2540, 0.0
      %v2611 = vmax.f32 %v2545, 0.0
      %v2612 = vmax.f32 %v2548, 0.0
      %v2613 = vmax.f32 %v2553, 0.0
      %v2614 = vmax.f32 %v2556, 0.0
      %v2615 = vmax.f32 %v2561, 0.0
      %v2616 = vmax.f32 %v2564, 0.0
      %v2617 = vmax.f32 %v2569, 0.0
      %v2618 = vmax.f32 %v2572, 0.0
      %v2619 = vmax.f32 %v2577, 0.0
      %v2620 = vmax.f32 %v2580, 0.0
      %v2621 = vmax.f32 %v2585, 0.0
      %v2622 = vmax.f32 %v2588, 0.0
      %v2655 = vrot.slane %v2591, 7
      %v2656 = vrot.slane %v2592, 7
      %v2657 = vsel %vm573, %v2655, %v2656
      %v2658 = vrot.slane %v2593, 7
      %v2659 = vrot.slane %v2594, 7
      %v2660 = vsel %vm573, %v2658, %v2659
      %v2661 = vrot.slane %v2595, 7
      %v2662 = vrot.slane %v2596, 7
      %v2663 = vsel %vm573, %v2661, %v2662
      %v2664 = vrot.slane %v2597, 7
      %v2665 = vrot.slane %v2598, 7
      %v2666 = vsel %vm573, %v2664, %v2665
      %v2667 = vrot.slane %v2599, 7
      %v2668 = vrot.slane %v2600, 7
      %v2669 = vsel %vm573, %v2667, %v2668
      %v2670 = vrot.slane %v2601, 7
      %v2671 = vrot.slane %v2602, 7
      %v2672 = vsel %vm573, %v2670, %v2671
      %v2673 = vrot.slane %v2603, 7
      %v2674 = vrot.slane %v2604, 7
      %v2675 = vsel %vm573, %v2673, %v2674
      %v2676 = vrot.slane %v2605, 7
      %v2677 = vrot.slane %v2606, 7
      %v2678 = vsel %vm573, %v2676, %v2677
      %v2679 = vrot.slane %v2607, 7
      %v2680 = vrot.slane %v2608, 7
      %v2681 = vsel %vm573, %v2679, %v2680
      %v2682 = vrot.slane %v2609, 7
      %v2683 = vrot.slane %v2610, 7
      %v2684 = vsel %vm573, %v2682, %v2683
      %v2685 = vrot.slane %v2611, 7
      %v2686 = vrot.slane %v2612, 7
      %v2687 = vsel %vm573, %v2685, %v2686
      %v2688 = vrot.slane %v2613, 7
      %v2689 = vrot.slane %v2614, 7
      %v2690 = vsel %vm573, %v2688, %v2689
      %v2691 = vrot.slane %v2615, 7
      %v2692 = vrot.slane %v2616, 7
      %v2693 = vsel %vm573, %v2691, %v2692
      %v2694 = vrot.slane %v2617, 7
      %v2695 = vrot.slane %v2618, 7
      %v2696 = vsel %vm573, %v2694, %v2695
      %v2697 = vrot.slane %v2619, 7
      %v2698 = vrot.slane %v2620, 7
      %v2699 = vsel %vm573, %v2697, %v2698
      %v2700 = vrot.slane %v2621, 7
      %v2701 = vrot.slane %v2622, 7
      %v2702 = vsel %vm573, %v2700, %v2701
      %v2751 = vsel %vm573, 0.0, %v2655
      %v2752 = vsel %vm573, 0.0, %v2658
      %v2753 = vsel %vm573, 0.0, %v2661
      %v2754 = vsel %vm573, 0.0, %v2664
      %v2755 = vsel %vm573, 0.0, %v2667
      %v2756 = vsel %vm573, 0.0, %v2670
      %v2757 = vsel %vm573, 0.0, %v2673
      %v2758 = vsel %vm573, 0.0, %v2676
      %v2759 = vsel %vm573, 0.0, %v2679
      %v2760 = vsel %vm573, 0.0, %v2682
      %v2761 = vsel %vm573, 0.0, %v2685
      %v2762 = vsel %vm573, 0.0, %v2688
      %v2763 = vsel %vm573, 0.0, %v2691
      %v2764 = vsel %vm573, 0.0, %v2694
      %v2765 = vsel %vm573, 0.0, %v2697
      %v2766 = vsel %vm573, 0.0, %v2700
      %v2767 = vsel %vm573, %v2656, 0.0
      %v2768 = vsel %vm573, %v2659, 0.0
      %v2769 = vsel %vm573, %v2662, 0.0
      %v2770 = vsel %vm573, %v2665, 0.0
      %v2771 = vsel %vm573, %v2668, 0.0
      %v2772 = vsel %vm573, %v2671, 0.0
      %v2773 = vsel %vm573, %v2674, 0.0
      %v2774 = vsel %vm573, %v2677, 0.0
      %v2775 = vsel %vm573, %v2680, 0.0
      %v2776 = vsel %vm573, %v2683, 0.0
      %v2777 = vsel %vm573, %v2686, 0.0
      %v2778 = vsel %vm573, %v2689, 0.0
      %v2779 = vsel %vm573, %v2692, 0.0
      %v2780 = vsel %vm573, %v2695, 0.0
      %v2781 = vsel %vm573, %v2698, 0.0
      %v2782 = vsel %vm573, %v2701, 0.0
      %s2783 = scalar_lea.vmem [#allocation3], 24
      %vm2784 = vcmask 261120
      %2785 = vst.msk [vmem:[%s2783] sm:$0xff] %vm2784, %v2751
      %2786 = vst.msk [vmem:[%s2783 + $0x8] sm:$0xff] %vm2784, %v2657
      %vm2787 = vcmask 254976
      %2788 = vst.msk [vmem:[%s2783 + $0x10] sm:$0x3] %vm2787, %v2767
      %2789 = vst.msk [vmem:[%s2783 + $0x18] sm:$0xff] %vm2784, %v2752
      %2790 = vst.msk [vmem:[%s2783 + $0x20] sm:$0xff] %vm2784, %v2660
      %2791 = vst.msk [vmem:[%s2783 + $0x28] sm:$0x3] %vm2787, %v2768
      %2792 = vst.msk [vmem:[%s2783 + $0x30] sm:$0xff] %vm2784, %v2753
      %2793 = vst.msk [vmem:[%s2783 + $0x38] sm:$0xff] %vm2784, %v2663
      %2794 = vst.msk [vmem:[%s2783 + $0x40] sm:$0x3] %vm2787, %v2769
      %2795 = vst.msk [vmem:[%s2783 + $0x48] sm:$0xff] %vm2784, %v2754
      %2796 = vst.msk [vmem:[%s2783 + $0x50] sm:$0xff] %vm2784, %v2666
      %2797 = vst.msk [vmem:[%s2783 + $0x58] sm:$0x3] %vm2787, %v2770
      %2798 = vst.msk [vmem:[%s2783 + $0x60] sm:$0xff] %vm2784, %v2755
      %2799 = vst.msk [vmem:[%s2783 + $0x68] sm:$0xff] %vm2784, %v2669
      %2800 = vst.msk [vmem:[%s2783 + $0x70] sm:$0x3] %vm2787, %v2771
      %2801 = vst.msk [vmem:[%s2783 + $0x78] sm:$0xff] %vm2784, %v2756
      %2802 = vst.msk [vmem:[%s2783 + $0x80] sm:$0xff] %vm2784, %v2672
      %2803 = vst.msk [vmem:[%s2783 + $0x88] sm:$0x3] %vm2787, %v2772
      %2804 = vst.msk [vmem:[%s2783 + $0x90] sm:$0xff] %vm2784, %v2757
      %2805 = vst.msk [vmem:[%s2783 + $0x98] sm:$0xff] %vm2784, %v2675
      %2806 = vst.msk [vmem:[%s2783 + $0xa0] sm:$0x3] %vm2787, %v2773
      %2807 = vst.msk [vmem:[%s2783 + $0xa8] sm:$0xff] %vm2784, %v2758
      %2808 = vst.msk [vmem:[%s2783 + $0xb0] sm:$0xff] %vm2784, %v2678
      %2809 = vst.msk [vmem:[%s2783 + $0xb8] sm:$0x3] %vm2787, %v2774
      %2810 = vst.msk [vmem:[%s2783 + $0xc0] sm:$0xff] %vm2784, %v2759
      %2811 = vst.msk [vmem:[%s2783 + $0xc8] sm:$0xff] %vm2784, %v2681
      %2812 = vst.msk [vmem:[%s2783 + $0xd0] sm:$0x3] %vm2787, %v2775
      %2813 = vst.msk [vmem:[%s2783 + $0xd8] sm:$0xff] %vm2784, %v2760
      %2814 = vst.msk [vmem:[%s2783 + $0xe0] sm:$0xff] %vm2784, %v2684
      %2815 = vst.msk [vmem:[%s2783 + $0xe8] sm:$0x3] %vm2787, %v2776
      %2816 = vst.msk [vmem:[%s2783 + $0xf0] sm:$0xff] %vm2784, %v2761
      %2817 = vst.msk [vmem:[%s2783 + $0xf8] sm:$0xff] %vm2784, %v2687
      %2818 = vst.msk [vmem:[%s2783 + $0x100] sm:$0x3] %vm2787, %v2777
      %2819 = vst.msk [vmem:[%s2783 + $0x108] sm:$0xff] %vm2784, %v2762
      %2820 = vst.msk [vmem:[%s2783 + $0x110] sm:$0xff] %vm2784, %v2690
      %2821 = vst.msk [vmem:[%s2783 + $0x118] sm:$0x3] %vm2787, %v2778
      %2822 = vst.msk [vmem:[%s2783 + $0x120] sm:$0xff] %vm2784, %v2763
      %2823 = vst.msk [vmem:[%s2783 + $0x128] sm:$0xff] %vm2784, %v2693
      %2824 = vst.msk [vmem:[%s2783 + $0x130] sm:$0x3] %vm2787, %v2779
      %2825 = vst.msk [vmem:[%s2783 + $0x138] sm:$0xff] %vm2784, %v2764
      %2826 = vst.msk [vmem:[%s2783 + $0x140] sm:$0xff] %vm2784, %v2696
      %2827 = vst.msk [vmem:[%s2783 + $0x148] sm:$0x3] %vm2787, %v2780
      %2828 = vst.msk [vmem:[%s2783 + $0x150] sm:$0xff] %vm2784, %v2765
      %2829 = vst.msk [vmem:[%s2783 + $0x158] sm:$0xff] %vm2784, %v2699
      %2830 = vst.msk [vmem:[%s2783 + $0x160] sm:$0x3] %vm2787, %v2781
      %2831 = vst.msk [vmem:[%s2783 + $0x168] sm:$0xff] %vm2784, %v2766
      %2832 = vst.msk [vmem:[%s2783 + $0x170] sm:$0xff] %vm2784, %v2702
      %2833 = vst.msk [vmem:[%s2783 + $0x178] sm:$0x3] %vm2787, %v2782
      %2834 = vst.msk [vmem:[#allocation3] sm:$0xff] %vm2784, 0.0
      %2835 = vst.msk [vmem:[#allocation3 + $0x8] sm:$0xff] %vm2784, 0.0
      %2836 = vst.msk [vmem:[#allocation3 + $0x10] sm:$0x3] %vm2787, 0.0
      %s2837 = scalar_lea.vmem [#allocation3], 408
      %2838 = vst.msk [vmem:[%s2837] sm:$0xff] %vm2784, 0.0
      %2839 = vst.msk [vmem:[%s2837 + $0x8] sm:$0xff] %vm2784, 0.0
      %2840 = vst.msk [vmem:[%s2837 + $0x10] sm:$0x3] %vm2787, 0.0
      %v2841 = vld [vmem:[#allocation3] sm:$0xff]
      %v2842 = vld [vmem:[#allocation3 + $0x8] sm:$0xff]
      %v2843 = vld [vmem:[#allocation3 + $0x18] sm:$0xff]
      %v2844 = vld [vmem:[#allocation3 + $0x20] sm:$0xff]
      %v2845 = vld [vmem:[#allocation3 + $0x30] sm:$0xff]
      %v2846 = vld [vmem:[#allocation3 + $0x38] sm:$0xff]
      %v2847 = vld [vmem:[#allocation3 + $0x48] sm:$0xff]
      %v2848 = vld [vmem:[#allocation3 + $0x50] sm:$0xff]
      %v2849 = vld [vmem:[#allocation3 + $0x60] sm:$0xff]
      %v2850 = vld [vmem:[#allocation3 + $0x68] sm:$0xff]
      %v2851 = vld [vmem:[#allocation3 + $0x78] sm:$0xff]
      %v2852 = vld [vmem:[#allocation3 + $0x80] sm:$0xff]
      %v2853 = vld [vmem:[#allocation3 + $0x90] sm:$0xff]
      %v2854 = vld [vmem:[#allocation3 + $0x98] sm:$0xff]
      %v2855 = vld [vmem:[#allocation3 + $0xa8] sm:$0xff]
      %v2856 = vld [vmem:[#allocation3 + $0xb0] sm:$0xff]
      %v2857 = vld [vmem:[#allocation3 + $0xc0] sm:$0xff]
      %v2858 = vld [vmem:[#allocation3 + $0xc8] sm:$0xff]
      %v2859 = vld [vmem:[#allocation3 + $0xd8] sm:$0xff]
      %v2860 = vld [vmem:[#allocation3 + $0xe0] sm:$0xff]
      %v2861 = vld [vmem:[#allocation3 + $0xf0] sm:$0xff]
      %v2862 = vld [vmem:[#allocation3 + $0xf8] sm:$0xff]
      %v2863 = vld [vmem:[#allocation3 + $0x108] sm:$0xff]
      %v2864 = vld [vmem:[#allocation3 + $0x110] sm:$0xff]
      %v2865 = vld [vmem:[#allocation3 + $0x120] sm:$0xff]
      %v2866 = vld [vmem:[#allocation3 + $0x128] sm:$0xff]
      %v2867 = vld [vmem:[#allocation3 + $0x138] sm:$0xff]
      %v2868 = vld [vmem:[#allocation3 + $0x140] sm:$0xff]
      %v2869 = vld [vmem:[#allocation3 + $0x150] sm:$0xff]
      %v2870 = vld [vmem:[#allocation3 + $0x158] sm:$0xff]
      %v2871 = vld [vmem:[#allocation3 + $0x168] sm:$0xff]
      %v2872 = vld [vmem:[#allocation3 + $0x170] sm:$0xff]
      %v2873 = vld [vmem:[#allocation3 + $0x1] sm:$0xff]
      %v2874 = vld [vmem:[#allocation3 + $0x9] sm:$0xff]
      %v2875 = vld [vmem:[#allocation3 + $0x19] sm:$0xff]
      %v2876 = vld [vmem:[#allocation3 + $0x21] sm:$0xff]
      %v2877 = vld [vmem:[#allocation3 + $0x31] sm:$0xff]
      %v2878 = vld [vmem:[#allocation3 + $0x39] sm:$0xff]
      %v2879 = vld [vmem:[#allocation3 + $0x49] sm:$0xff]
      %v2880 = vld [vmem:[#allocation3 + $0x51] sm:$0xff]
      %v2881 = vld [vmem:[#allocation3 + $0x61] sm:$0xff]
      %v2882 = vld [vmem:[#allocation3 + $0x69] sm:$0xff]
      %v2883 = vld [vmem:[#allocation3 + $0x79] sm:$0xff]
      %v2884 = vld [vmem:[#allocation3 + $0x81] sm:$0xff]
      %v2885 = vld [vmem:[#allocation3 + $0x91] sm:$0xff]
      %v2886 = vld [vmem:[#allocation3 + $0x99] sm:$0xff]
      %v2887 = vld [vmem:[#allocation3 + $0xa9] sm:$0xff]
      %v2888 = vld [vmem:[#allocation3 + $0xb1] sm:$0xff]
      %v2889 = vld [vmem:[#allocation3 + $0xc1] sm:$0xff]
      %v2890 = vld [vmem:[#allocation3 + $0xc9] sm:$0xff]
      %v2891 = vld [vmem:[#allocation3 + $0xd9] sm:$0xff]
      %v2892 = vld [vmem:[#allocation3 + $0xe1] sm:$0xff]
      %v2893 = vld [vmem:[#allocation3 + $0xf1] sm:$0xff]
      %v2894 = vld [vmem:[#allocation3 + $0xf9] sm:$0xff]
      %v2895 = vld [vmem:[#allocation3 + $0x109] sm:$0xff]
      %v2896 = vld [vmem:[#allocation3 + $0x111] sm:$0xff]
      %v2897 = vld [vmem:[#allocation3 + $0x121] sm:$0xff]
      %v2898 = vld [vmem:[#allocation3 + $0x129] sm:$0xff]
      %v2899 = vld [vmem:[#allocation3 + $0x139] sm:$0xff]
      %v2900 = vld [vmem:[#allocation3 + $0x141] sm:$0xff]
      %v2901 = vld [vmem:[#allocation3 + $0x151] sm:$0xff]
      %v2902 = vld [vmem:[#allocation3 + $0x159] sm:$0xff]
      %v2903 = vld [vmem:[#allocation3 + $0x169] sm:$0xff]
      %v2904 = vld [vmem:[#allocation3 + $0x171] sm:$0xff]
      %v2905 = vld [vmem:[#allocation3 + $0x2] sm:$0xff]
      %v2906 = vld [vmem:[#allocation3 + $0xa] sm:$0xff]
      %v2907 = vld [vmem:[#allocation3 + $0x1a] sm:$0xff]
      %v2908 = vld [vmem:[#allocation3 + $0x22] sm:$0xff]
      %v2909 = vld [vmem:[#allocation3 + $0x32] sm:$0xff]
      %v2910 = vld [vmem:[#allocation3 + $0x3a] sm:$0xff]
      %v2911 = vld [vmem:[#allocation3 + $0x4a] sm:$0xff]
      %v2912 = vld [vmem:[#allocation3 + $0x52] sm:$0xff]
      %v2913 = vld [vmem:[#allocation3 + $0x62] sm:$0xff]
      %v2914 = vld [vmem:[#allocation3 + $0x6a] sm:$0xff]
      %v2915 = vld [vmem:[#allocation3 + $0x7a] sm:$0xff]
      %v2916 = vld [vmem:[#allocation3 + $0x82] sm:$0xff]
      %v2917 = vld [vmem:[#allocation3 + $0x92] sm:$0xff]
      %v2918 = vld [vmem:[#allocation3 + $0x9a] sm:$0xff]
      %v2919 = vld [vmem:[#allocation3 + $0xaa] sm:$0xff]
      %v2920 = vld [vmem:[#allocation3 + $0xb2] sm:$0xff]
      %v2921 = vld [vmem:[#allocation3 + $0xc2] sm:$0xff]
      %v2922 = vld [vmem:[#allocation3 + $0xca] sm:$0xff]
      %v2923 = vld [vmem:[#allocation3 + $0xda] sm:$0xff]
      %v2924 = vld [vmem:[#allocation3 + $0xe2] sm:$0xff]
      %v2925 = vld [vmem:[#allocation3 + $0xf2] sm:$0xff]
      %v2926 = vld [vmem:[#allocation3 + $0xfa] sm:$0xff]
      %v2927 = vld [vmem:[#allocation3 + $0x10a] sm:$0xff]
      %v2928 = vld [vmem:[#allocation3 + $0x112] sm:$0xff]
      %v2929 = vld [vmem:[#allocation3 + $0x122] sm:$0xff]
      %v2930 = vld [vmem:[#allocation3 + $0x12a] sm:$0xff]
      %v2931 = vld [vmem:[#allocation3 + $0x13a] sm:$0xff]
      %v2932 = vld [vmem:[#allocation3 + $0x142] sm:$0xff]
      %v2933 = vld [vmem:[#allocation3 + $0x152] sm:$0xff]
      %v2934 = vld [vmem:[#allocation3 + $0x15a] sm:$0xff]
      %v2935 = vld [vmem:[#allocation3 + $0x16a] sm:$0xff]
      %v2936 = vld [vmem:[#allocation3 + $0x172] sm:$0xff]
      %v2937 = vld [vmem:[%s2783] sm:$0xff]
      %v2938 = vld [vmem:[%s2783 + $0x8] sm:$0xff]
      %v2939 = vld [vmem:[%s2783 + $0x18] sm:$0xff]
      %v2940 = vld [vmem:[%s2783 + $0x20] sm:$0xff]
      %v2941 = vld [vmem:[%s2783 + $0x30] sm:$0xff]
      %v2942 = vld [vmem:[%s2783 + $0x38] sm:$0xff]
      %v2943 = vld [vmem:[%s2783 + $0x48] sm:$0xff]
      %v2944 = vld [vmem:[%s2783 + $0x50] sm:$0xff]
      %v2945 = vld [vmem:[%s2783 + $0x60] sm:$0xff]
      %v2946 = vld [vmem:[%s2783 + $0x68] sm:$0xff]
      %v2947 = vld [vmem:[%s2783 + $0x78] sm:$0xff]
      %v2948 = vld [vmem:[%s2783 + $0x80] sm:$0xff]
      %v2949 = vld [vmem:[%s2783 + $0x90] sm:$0xff]
      %v2950 = vld [vmem:[%s2783 + $0x98] sm:$0xff]
      %v2951 = vld [vmem:[%s2783 + $0xa8] sm:$0xff]
      %v2952 = vld [vmem:[%s2783 + $0xb0] sm:$0xff]
      %v2953 = vld [vmem:[%s2783 + $0xc0] sm:$0xff]
      %v2954 = vld [vmem:[%s2783 + $0xc8] sm:$0xff]
      %v2955 = vld [vmem:[%s2783 + $0xd8] sm:$0xff]
      %v2956 = vld [vmem:[%s2783 + $0xe0] sm:$0xff]
      %v2957 = vld [vmem:[%s2783 + $0xf0] sm:$0xff]
      %v2958 = vld [vmem:[%s2783 + $0xf8] sm:$0xff]
      %v2959 = vld [vmem:[%s2783 + $0x108] sm:$0xff]
      %v2960 = vld [vmem:[%s2783 + $0x110] sm:$0xff]
      %v2961 = vld [vmem:[%s2783 + $0x120] sm:$0xff]
      %v2962 = vld [vmem:[%s2783 + $0x128] sm:$0xff]
      %v2963 = vld [vmem:[%s2783 + $0x138] sm:$0xff]
      %v2964 = vld [vmem:[%s2783 + $0x140] sm:$0xff]
      %v2965 = vld [vmem:[%s2783 + $0x150] sm:$0xff]
      %v2966 = vld [vmem:[%s2783 + $0x158] sm:$0xff]
      %v2967 = vld [vmem:[%s2783 + $0x168] sm:$0xff]
      %v2968 = vld [vmem:[%s2783 + $0x170] sm:$0xff]
      %v2969 = vld [vmem:[%s2783 + $0x1] sm:$0xff]
      %v2970 = vld [vmem:[%s2783 + $0x9] sm:$0xff]
      %v2971 = vld [vmem:[%s2783 + $0x19] sm:$0xff]
      %v2972 = vld [vmem:[%s2783 + $0x21] sm:$0xff]
      %v2973 = vld [vmem:[%s2783 + $0x31] sm:$0xff]
      %v2974 = vld [vmem:[%s2783 + $0x39] sm:$0xff]
      %v2975 = vld [vmem:[%s2783 + $0x49] sm:$0xff]
      %v2976 = vld [vmem:[%s2783 + $0x51] sm:$0xff]
      %v2977 = vld [vmem:[%s2783 + $0x61] sm:$0xff]
      %v2978 = vld [vmem:[%s2783 + $0x69] sm:$0xff]
      %v2979 = vld [vmem:[%s2783 + $0x79] sm:$0xff]
      %v2980 = vld [vmem:[%s2783 + $0x81] sm:$0xff]
      %v2981 = vld [vmem:[%s2783 + $0x91] sm:$0xff]
      %v2982 = vld [vmem:[%s2783 + $0x99] sm:$0xff]
      %v2983 = vld [vmem:[%s2783 + $0xa9] sm:$0xff]
      %v2984 = vld [vmem:[%s2783 + $0xb1] sm:$0xff]
      %v2985 = vld [vmem:[%s2783 + $0xc1] sm:$0xff]
      %v2986 = vld [vmem:[%s2783 + $0xc9] sm:$0xff]
      %v2987 = vld [vmem:[%s2783 + $0xd9] sm:$0xff]
      %v2988 = vld [vmem:[%s2783 + $0xe1] sm:$0xff]
      %v2989 = vld [vmem:[%s2783 + $0xf1] sm:$0xff]
      %v2990 = vld [vmem:[%s2783 + $0xf9] sm:$0xff]
      %v2991 = vld [vmem:[%s2783 + $0x109] sm:$0xff]
      %v2992 = vld [vmem:[%s2783 + $0x111] sm:$0xff]
      %v2993 = vld [vmem:[%s2783 + $0x121] sm:$0xff]
      %v2994 = vld [vmem:[%s2783 + $0x129] sm:$0xff]
      %v2995 = vld [vmem:[%s2783 + $0x139] sm:$0xff]
      %v2996 = vld [vmem:[%s2783 + $0x141] sm:$0xff]
      %v2997 = vld [vmem:[%s2783 + $0x151] sm:$0xff]
      %v2998 = vld [vmem:[%s2783 + $0x159] sm:$0xff]
      %v2999 = vld [vmem:[%s2783 + $0x169] sm:$0xff]
      %v3000 = vld [vmem:[%s2783 + $0x171] sm:$0xff]
      %v3001 = vld [vmem:[%s2783 + $0x2] sm:$0xff]
      %v3002 = vld [vmem:[%s2783 + $0xa] sm:$0xff]
      %v3003 = vld [vmem:[%s2783 + $0x1a] sm:$0xff]
      %v3004 = vld [vmem:[%s2783 + $0x22] sm:$0xff]
      %v3005 = vld [vmem:[%s2783 + $0x32] sm:$0xff]
      %v3006 = vld [vmem:[%s2783 + $0x3a] sm:$0xff]
      %v3007 = vld [vmem:[%s2783 + $0x4a] sm:$0xff]
      %v3008 = vld [vmem:[%s2783 + $0x52] sm:$0xff]
      %v3009 = vld [vmem:[%s2783 + $0x62] sm:$0xff]
      %v3010 = vld [vmem:[%s2783 + $0x6a] sm:$0xff]
      %v3011 = vld [vmem:[%s2783 + $0x7a] sm:$0xff]
      %v3012 = vld [vmem:[%s2783 + $0x82] sm:$0xff]
      %v3013 = vld [vmem:[%s2783 + $0x92] sm:$0xff]
      %v3014 = vld [vmem:[%s2783 + $0x9a] sm:$0xff]
      %v3015 = vld [vmem:[%s2783 + $0xaa] sm:$0xff]
      %v3016 = vld [vmem:[%s2783 + $0xb2] sm:$0xff]
      %v3017 = vld [vmem:[%s2783 + $0xc2] sm:$0xff]
      %v3018 = vld [vmem:[%s2783 + $0xca] sm:$0xff]
      %v3019 = vld [vmem:[%s2783 + $0xda] sm:$0xff]
      %v3020 = vld [vmem:[%s2783 + $0xe2] sm:$0xff]
      %v3021 = vld [vmem:[%s2783 + $0xf2] sm:$0xff]
      %v3022 = vld [vmem:[%s2783 + $0xfa] sm:$0xff]
      %v3023 = vld [vmem:[%s2783 + $0x10a] sm:$0xff]
      %v3024 = vld [vmem:[%s2783 + $0x112] sm:$0xff]
      %v3025 = vld [vmem:[%s2783 + $0x122] sm:$0xff]
      %v3026 = vld [vmem:[%s2783 + $0x12a] sm:$0xff]
      %v3027 = vld [vmem:[%s2783 + $0x13a] sm:$0xff]
      %v3028 = vld [vmem:[%s2783 + $0x142] sm:$0xff]
      %v3029 = vld [vmem:[%s2783 + $0x152] sm:$0xff]
      %v3030 = vld [vmem:[%s2783 + $0x15a] sm:$0xff]
      %v3031 = vld [vmem:[%s2783 + $0x16a] sm:$0xff]
      %v3032 = vld [vmem:[%s2783 + $0x172] sm:$0xff]
      %s3033 = scalar_lea.vmem [#allocation3], 48
      %v3034 = vld [vmem:[%s3033] sm:$0xff]
      %v3035 = vld [vmem:[%s3033 + $0x8] sm:$0xff]
      %v3036 = vld [vmem:[%s3033 + $0x18] sm:$0xff]
      %v3037 = vld [vmem:[%s3033 + $0x20] sm:$0xff]
      %v3038 = vld [vmem:[%s3033 + $0x30] sm:$0xff]
      %v3039 = vld [vmem:[%s3033 + $0x38] sm:$0xff]
      %v3040 = vld [vmem:[%s3033 + $0x48] sm:$0xff]
      %v3041 = vld [vmem:[%s3033 + $0x50] sm:$0xff]
      %v3042 = vld [vmem:[%s3033 + $0x60] sm:$0xff]
      %v3043 = vld [vmem:[%s3033 + $0x68] sm:$0xff]
      %v3044 = vld [vmem:[%s3033 + $0x78] sm:$0xff]
      %v3045 = vld [vmem:[%s3033 + $0x80] sm:$0xff]
      %v3046 = vld [vmem:[%s3033 + $0x90] sm:$0xff]
      %v3047 = vld [vmem:[%s3033 + $0x98] sm:$0xff]
      %v3048 = vld [vmem:[%s3033 + $0xa8] sm:$0xff]
      %v3049 = vld [vmem:[%s3033 + $0xb0] sm:$0xff]
      %v3050 = vld [vmem:[%s3033 + $0xc0] sm:$0xff]
      %v3051 = vld [vmem:[%s3033 + $0xc8] sm:$0xff]
      %v3052 = vld [vmem:[%s3033 + $0xd8] sm:$0xff]
      %v3053 = vld [vmem:[%s3033 + $0xe0] sm:$0xff]
      %v3054 = vld [vmem:[%s3033 + $0xf0] sm:$0xff]
      %v3055 = vld [vmem:[%s3033 + $0xf8] sm:$0xff]
      %v3056 = vld [vmem:[%s3033 + $0x108] sm:$0xff]
      %v3057 = vld [vmem:[%s3033 + $0x110] sm:$0xff]
      %v3058 = vld [vmem:[%s3033 + $0x120] sm:$0xff]
      %v3059 = vld [vmem:[%s3033 + $0x128] sm:$0xff]
      %v3060 = vld [vmem:[%s3033 + $0x138] sm:$0xff]
      %v3061 = vld [vmem:[%s3033 + $0x140] sm:$0xff]
      %v3062 = vld [vmem:[%s3033 + $0x150] sm:$0xff]
      %v3063 = vld [vmem:[%s3033 + $0x158] sm:$0xff]
      %v3064 = vld [vmem:[%s3033 + $0x168] sm:$0xff]
      %v3065 = vld [vmem:[%s3033 + $0x170] sm:$0xff]
      %v3066 = vld [vmem:[%s3033 + $0x1] sm:$0xff]
      %v3067 = vld [vmem:[%s3033 + $0x9] sm:$0xff]
      %v3068 = vld [vmem:[%s3033 + $0x19] sm:$0xff]
      %v3069 = vld [vmem:[%s3033 + $0x21] sm:$0xff]
      %v3070 = vld [vmem:[%s3033 + $0x31] sm:$0xff]
      %v3071 = vld [vmem:[%s3033 + $0x39] sm:$0xff]
      %v3072 = vld [vmem:[%s3033 + $0x49] sm:$0xff]
      %v3073 = vld [vmem:[%s3033 + $0x51] sm:$0xff]
      %v3074 = vld [vmem:[%s3033 + $0x61] sm:$0xff]
      %v3075 = vld [vmem:[%s3033 + $0x69] sm:$0xff]
      %v3076 = vld [vmem:[%s3033 + $0x79] sm:$0xff]
      %v3077 = vld [vmem:[%s3033 + $0x81] sm:$0xff]
      %v3078 = vld [vmem:[%s3033 + $0x91] sm:$0xff]
      %v3079 = vld [vmem:[%s3033 + $0x99] sm:$0xff]
      %v3080 = vld [vmem:[%s3033 + $0xa9] sm:$0xff]
      %v3081 = vld [vmem:[%s3033 + $0xb1] sm:$0xff]
      %v3082 = vld [vmem:[%s3033 + $0xc1] sm:$0xff]
      %v3083 = vld [vmem:[%s3033 + $0xc9] sm:$0xff]
      %v3084 = vld [vmem:[%s3033 + $0xd9] sm:$0xff]
      %v3085 = vld [vmem:[%s3033 + $0xe1] sm:$0xff]
      %v3086 = vld [vmem:[%s3033 + $0xf1] sm:$0xff]
      %v3087 = vld [vmem:[%s3033 + $0xf9] sm:$0xff]
      %v3088 = vld [vmem:[%s3033 + $0x109] sm:$0xff]
      %v3089 = vld [vmem:[%s3033 + $0x111] sm:$0xff]
      %v3090 = vld [vmem:[%s3033 + $0x121] sm:$0xff]
      %v3091 = vld [vmem:[%s3033 + $0x129] sm:$0xff]
      %v3092 = vld [vmem:[%s3033 + $0x139] sm:$0xff]
      %v3093 = vld [vmem:[%s3033 + $0x141] sm:$0xff]
      %v3094 = vld [vmem:[%s3033 + $0x151] sm:$0xff]
      %v3095 = vld [vmem:[%s3033 + $0x159] sm:$0xff]
      %v3096 = vld [vmem:[%s3033 + $0x169] sm:$0xff]
      %v3097 = vld [vmem:[%s3033 + $0x171] sm:$0xff]
      %v3098 = vld [vmem:[%s3033 + $0x2] sm:$0xff]
      %v3099 = vld [vmem:[%s3033 + $0xa] sm:$0xff]
      %v3100 = vld [vmem:[%s3033 + $0x1a] sm:$0xff]
      %v3101 = vld [vmem:[%s3033 + $0x22] sm:$0xff]
      %v3102 = vld [vmem:[%s3033 + $0x32] sm:$0xff]
      %v3103 = vld [vmem:[%s3033 + $0x3a] sm:$0xff]
      %v3104 = vld [vmem:[%s3033 + $0x4a] sm:$0xff]
      %v3105 = vld [vmem:[%s3033 + $0x52] sm:$0xff]
      %v3106 = vld [vmem:[%s3033 + $0x62] sm:$0xff]
      %v3107 = vld [vmem:[%s3033 + $0x6a] sm:$0xff]
      %v3108 = vld [vmem:[%s3033 + $0x7a] sm:$0xff]
      %v3109 = vld [vmem:[%s3033 + $0x82] sm:$0xff]
      %v3110 = vld [vmem:[%s3033 + $0x92] sm:$0xff]
      %v3111 = vld [vmem:[%s3033 + $0x9a] sm:$0xff]
      %v3112 = vld [vmem:[%s3033 + $0xaa] sm:$0xff]
      %v3113 = vld [vmem:[%s3033 + $0xb2] sm:$0xff]
      %v3114 = vld [vmem:[%s3033 + $0xc2] sm:$0xff]
      %v3115 = vld [vmem:[%s3033 + $0xca] sm:$0xff]
      %v3116 = vld [vmem:[%s3033 + $0xda] sm:$0xff]
      %v3117 = vld [vmem:[%s3033 + $0xe2] sm:$0xff]
      %v3118 = vld [vmem:[%s3033 + $0xf2] sm:$0xff]
      %v3119 = vld [vmem:[%s3033 + $0xfa] sm:$0xff]
      %v3120 = vld [vmem:[%s3033 + $0x10a] sm:$0xff]
      %v3121 = vld [vmem:[%s3033 + $0x112] sm:$0xff]
      %v3122 = vld [vmem:[%s3033 + $0x122] sm:$0xff]
      %v3123 = vld [vmem:[%s3033 + $0x12a] sm:$0xff]
      %v3124 = vld [vmem:[%s3033 + $0x13a] sm:$0xff]
      %v3125 = vld [vmem:[%s3033 + $0x142] sm:$0xff]
      %v3126 = vld [vmem:[%s3033 + $0x152] sm:$0xff]
      %v3127 = vld [vmem:[%s3033 + $0x15a] sm:$0xff]
      %v3128 = vld [vmem:[%s3033 + $0x16a] sm:$0xff]
      %v3129 = vld [vmem:[%s3033 + $0x172] sm:$0xff]
      %3162 = vrot.lane.b32.xlu0 %v2873, 32
      %v3163 = vpop.permute.xlu0 %3162
      %3164 = vrot.lane.b32.xlu0 %v2874, 32
      %v3165 = vpop.permute.xlu0 %3164
      %3166 = vrot.lane.b32.xlu0 %v2875, 32
      %v3167 = vpop.permute.xlu0 %3166
      %3168 = vrot.lane.b32.xlu0 %v2876, 32
      %v3169 = vpop.permute.xlu0 %3168
      %3170 = vrot.lane.b32.xlu0 %v2877, 32
      %v3171 = vpop.permute.xlu0 %3170
      %3172 = vrot.lane.b32.xlu0 %v2878, 32
      %v3173 = vpop.permute.xlu0 %3172
      %3174 = vrot.lane.b32.xlu0 %v2879, 32
      %v3175 = vpop.permute.xlu0 %3174
      %3176 = vrot.lane.b32.xlu0 %v2880, 32
      %v3177 = vpop.permute.xlu0 %3176
      %3178 = vrot.lane.b32.xlu0 %v2881, 32
      %v3179 = vpop.permute.xlu0 %3178
      %3180 = vrot.lane.b32.xlu0 %v2882, 32
      %v3181 = vpop.permute.xlu0 %3180
      %3182 = vrot.lane.b32.xlu0 %v2883, 32
      %v3183 = vpop.permute.xlu0 %3182
      %3184 = vrot.lane.b32.xlu0 %v2884, 32
      %v3185 = vpop.permute.xlu0 %3184
      %3186 = vrot.lane.b32.xlu0 %v2885, 32
      %v3187 = vpop.permute.xlu0 %3186
      %3188 = vrot.lane.b32.xlu0 %v2886, 32
      %v3189 = vpop.permute.xlu0 %3188
      %3190 = vrot.lane.b32.xlu0 %v2887, 32
      %v3191 = vpop.permute.xlu0 %3190
      %3192 = vrot.lane.b32.xlu0 %v2888, 32
      %v3193 = vpop.permute.xlu0 %3192
      %3194 = vrot.lane.b32.xlu0 %v2889, 32
      %v3195 = vpop.permute.xlu0 %3194
      %3196 = vrot.lane.b32.xlu0 %v2890, 32
      %v3197 = vpop.permute.xlu0 %3196
      %3198 = vrot.lane.b32.xlu0 %v2891, 32
      %v3199 = vpop.permute.xlu0 %3198
      %3200 = vrot.lane.b32.xlu0 %v2892, 32
      %v3201 = vpop.permute.xlu0 %3200
      %3202 = vrot.lane.b32.xlu0 %v2893, 32
      %v3203 = vpop.permute.xlu0 %3202
      %3204 = vrot.lane.b32.xlu0 %v2894, 32
      %v3205 = vpop.permute.xlu0 %3204
      %3206 = vrot.lane.b32.xlu0 %v2895, 32
      %v3207 = vpop.permute.xlu0 %3206
      %3208 = vrot.lane.b32.xlu0 %v2896, 32
      %v3209 = vpop.permute.xlu0 %3208
      %3210 = vrot.lane.b32.xlu0 %v2897, 32
      %v3211 = vpop.permute.xlu0 %3210
      %3212 = vrot.lane.b32.xlu0 %v2898, 32
      %v3213 = vpop.permute.xlu0 %3212
      %3214 = vrot.lane.b32.xlu0 %v2899, 32
      %v3215 = vpop.permute.xlu0 %3214
      %3216 = vrot.lane.b32.xlu0 %v2900, 32
      %v3217 = vpop.permute.xlu0 %3216
      %3218 = vrot.lane.b32.xlu0 %v2901, 32
      %v3219 = vpop.permute.xlu0 %3218
      %3220 = vrot.lane.b32.xlu0 %v2902, 32
      %v3221 = vpop.permute.xlu0 %3220
      %3222 = vrot.lane.b32.xlu0 %v2903, 32
      %v3223 = vpop.permute.xlu0 %3222
      %3224 = vrot.lane.b32.xlu0 %v2904, 32
      %v3225 = vpop.permute.xlu0 %3224
      %3290 = vrot.lane.b32.xlu0 %v2905, 64
      %v3291 = vpop.permute.xlu0 %3290
      %3292 = vrot.lane.b32.xlu0 %v2906, 64
      %v3293 = vpop.permute.xlu0 %3292
      %3294 = vrot.lane.b32.xlu0 %v2907, 64
      %v3295 = vpop.permute.xlu0 %3294
      %3296 = vrot.lane.b32.xlu0 %v2908, 64
      %v3297 = vpop.permute.xlu0 %3296
      %3298 = vrot.lane.b32.xlu0 %v2909, 64
      %v3299 = vpop.permute.xlu0 %3298
      %3300 = vrot.lane.b32.xlu0 %v2910, 64
      %v3301 = vpop.permute.xlu0 %3300
      %3302 = vrot.lane.b32.xlu0 %v2911, 64
      %v3303 = vpop.permute.xlu0 %3302
      %3304 = vrot.lane.b32.xlu0 %v2912, 64
      %v3305 = vpop.permute.xlu0 %3304
      %3306 = vrot.lane.b32.xlu0 %v2913, 64
      %v3307 = vpop.permute.xlu0 %3306
      %3308 = vrot.lane.b32.xlu0 %v2914, 64
      %v3309 = vpop.permute.xlu0 %3308
      %3310 = vrot.lane.b32.xlu0 %v2915, 64
      %v3311 = vpop.permute.xlu0 %3310
      %3312 = vrot.lane.b32.xlu0 %v2916, 64
      %v3313 = vpop.permute.xlu0 %3312
      %3314 = vrot.lane.b32.xlu0 %v2917, 64
      %v3315 = vpop.permute.xlu0 %3314
      %3316 = vrot.lane.b32.xlu0 %v2918, 64
      %v3317 = vpop.permute.xlu0 %3316
      %3318 = vrot.lane.b32.xlu0 %v2919, 64
      %v3319 = vpop.permute.xlu0 %3318
      %3320 = vrot.lane.b32.xlu0 %v2920, 64
      %v3321 = vpop.permute.xlu0 %3320
      %3322 = vrot.lane.b32.xlu0 %v2921, 64
      %v3323 = vpop.permute.xlu0 %3322
      %3324 = vrot.lane.b32.xlu0 %v2922, 64
      %v3325 = vpop.permute.xlu0 %3324
      %3326 = vrot.lane.b32.xlu0 %v2923, 64
      %v3327 = vpop.permute.xlu0 %3326
      %3328 = vrot.lane.b32.xlu0 %v2924, 64
      %v3329 = vpop.permute.xlu0 %3328
      %3330 = vrot.lane.b32.xlu0 %v2925, 64
      %v3331 = vpop.permute.xlu0 %3330
      %3332 = vrot.lane.b32.xlu0 %v2926, 64
      %v3333 = vpop.permute.xlu0 %3332
      %3334 = vrot.lane.b32.xlu0 %v2927, 64
      %v3335 = vpop.permute.xlu0 %3334
      %3336 = vrot.lane.b32.xlu0 %v2928, 64
      %v3337 = vpop.permute.xlu0 %3336
      %3338 = vrot.lane.b32.xlu0 %v2929, 64
      %v3339 = vpop.permute.xlu0 %3338
      %3340 = vrot.lane.b32.xlu0 %v2930, 64
      %v3341 = vpop.permute.xlu0 %3340
      %3342 = vrot.lane.b32.xlu0 %v2931, 64
      %v3343 = vpop.permute.xlu0 %3342
      %3344 = vrot.lane.b32.xlu0 %v2932, 64
      %v3345 = vpop.permute.xlu0 %3344
      %3346 = vrot.lane.b32.xlu0 %v2933, 64
      %v3347 = vpop.permute.xlu0 %3346
      %3348 = vrot.lane.b32.xlu0 %v2934, 64
      %v3349 = vpop.permute.xlu0 %3348
      %3350 = vrot.lane.b32.xlu0 %v2935, 64
      %v3351 = vpop.permute.xlu0 %3350
      %3352 = vrot.lane.b32.xlu0 %v2936, 64
      %v3353 = vpop.permute.xlu0 %3352
      %3418 = vrot.lane.b32.xlu0 %v2937, 96
      %v3419 = vpop.permute.xlu0 %3418
      %3420 = vrot.lane.b32.xlu0 %v2938, 96
      %v3421 = vpop.permute.xlu0 %3420
      %3422 = vrot.lane.b32.xlu0 %v2939, 96
      %v3423 = vpop.permute.xlu0 %3422
      %3424 = vrot.lane.b32.xlu0 %v2940, 96
      %v3425 = vpop.permute.xlu0 %3424
      %3426 = vrot.lane.b32.xlu0 %v2941, 96
      %v3427 = vpop.permute.xlu0 %3426
      %3428 = vrot.lane.b32.xlu0 %v2942, 96
      %v3429 = vpop.permute.xlu0 %3428
      %3430 = vrot.lane.b32.xlu0 %v2943, 96
      %v3431 = vpop.permute.xlu0 %3430
      %3432 = vrot.lane.b32.xlu0 %v2944, 96
      %v3433 = vpop.permute.xlu0 %3432
      %3434 = vrot.lane.b32.xlu0 %v2945, 96
      %v3435 = vpop.permute.xlu0 %3434
      %3436 = vrot.lane.b32.xlu0 %v2946, 96
      %v3437 = vpop.permute.xlu0 %3436
      %3438 = vrot.lane.b32.xlu0 %v2947, 96
      %v3439 = vpop.permute.xlu0 %3438
      %3440 = vrot.lane.b32.xlu0 %v2948, 96
      %v3441 = vpop.permute.xlu0 %3440
      %3442 = vrot.lane.b32.xlu0 %v2949, 96
      %v3443 = vpop.permute.xlu0 %3442
      %3444 = vrot.lane.b32.xlu0 %v2950, 96
      %v3445 = vpop.permute.xlu0 %3444
      %3446 = vrot.lane.b32.xlu0 %v2951, 96
      %v3447 = vpop.permute.xlu0 %3446
      %3448 = vrot.lane.b32.xlu0 %v2952, 96
      %v3449 = vpop.permute.xlu0 %3448
      %3450 = vrot.lane.b32.xlu0 %v2953, 96
      %v3451 = vpop.permute.xlu0 %3450
      %3452 = vrot.lane.b32.xlu0 %v2954, 96
      %v3453 = vpop.permute.xlu0 %3452
      %3454 = vrot.lane.b32.xlu0 %v2955, 96
      %v3455 = vpop.permute.xlu0 %3454
      %3456 = vrot.lane.b32.xlu0 %v2956, 96
      %v3457 = vpop.permute.xlu0 %3456
      %3458 = vrot.lane.b32.xlu0 %v2957, 96
      %v3459 = vpop.permute.xlu0 %3458
      %3460 = vrot.lane.b32.xlu0 %v2958, 96
      %v3461 = vpop.permute.xlu0 %3460
      %3462 = vrot.lane.b32.xlu0 %v2959, 96
      %v3463 = vpop.permute.xlu0 %3462
      %3464 = vrot.lane.b32.xlu0 %v2960, 96
      %v3465 = vpop.permute.xlu0 %3464
      %3466 = vrot.lane.b32.xlu0 %v2961, 96
      %v3467 = vpop.permute.xlu0 %3466
      %3468 = vrot.lane.b32.xlu0 %v2962, 96
      %v3469 = vpop.permute.xlu0 %3468
      %3470 = vrot.lane.b32.xlu0 %v2963, 96
      %v3471 = vpop.permute.xlu0 %3470
      %3472 = vrot.lane.b32.xlu0 %v2964, 96
      %v3473 = vpop.permute.xlu0 %3472
      %3474 = vrot.lane.b32.xlu0 %v2965, 96
      %v3475 = vpop.permute.xlu0 %3474
      %3476 = vrot.lane.b32.xlu0 %v2966, 96
      %v3477 = vpop.permute.xlu0 %3476
      %3478 = vrot.lane.b32.xlu0 %v2967, 96
      %v3479 = vpop.permute.xlu0 %3478
      %3480 = vrot.lane.b32.xlu0 %v2968, 96
      %v3481 = vpop.permute.xlu0 %3480
      %3546 = vrot.lane.b32.xlu0 %v3001, 32
      %v3547 = vpop.permute.xlu0 %3546
      %3548 = vrot.lane.b32.xlu0 %v3002, 32
      %v3549 = vpop.permute.xlu0 %3548
      %3550 = vrot.lane.b32.xlu0 %v3003, 32
      %v3551 = vpop.permute.xlu0 %3550
      %3552 = vrot.lane.b32.xlu0 %v3004, 32
      %v3553 = vpop.permute.xlu0 %3552
      %3554 = vrot.lane.b32.xlu0 %v3005, 32
      %v3555 = vpop.permute.xlu0 %3554
      %3556 = vrot.lane.b32.xlu0 %v3006, 32
      %v3557 = vpop.permute.xlu0 %3556
      %3558 = vrot.lane.b32.xlu0 %v3007, 32
      %v3559 = vpop.permute.xlu0 %3558
      %3560 = vrot.lane.b32.xlu0 %v3008, 32
      %v3561 = vpop.permute.xlu0 %3560
      %3562 = vrot.lane.b32.xlu0 %v3009, 32
      %v3563 = vpop.permute.xlu0 %3562
      %3564 = vrot.lane.b32.xlu0 %v3010, 32
      %v3565 = vpop.permute.xlu0 %3564
      %3566 = vrot.lane.b32.xlu0 %v3011, 32
      %v3567 = vpop.permute.xlu0 %3566
      %3568 = vrot.lane.b32.xlu0 %v3012, 32
      %v3569 = vpop.permute.xlu0 %3568
      %3570 = vrot.lane.b32.xlu0 %v3013, 32
      %v3571 = vpop.permute.xlu0 %3570
      %3572 = vrot.lane.b32.xlu0 %v3014, 32
      %v3573 = vpop.permute.xlu0 %3572
      %3574 = vrot.lane.b32.xlu0 %v3015, 32
      %v3575 = vpop.permute.xlu0 %3574
      %3576 = vrot.lane.b32.xlu0 %v3016, 32
      %v3577 = vpop.permute.xlu0 %3576
      %3578 = vrot.lane.b32.xlu0 %v3017, 32
      %v3579 = vpop.permute.xlu0 %3578
      %3580 = vrot.lane.b32.xlu0 %v3018, 32
      %v3581 = vpop.permute.xlu0 %3580
      %3582 = vrot.lane.b32.xlu0 %v3019, 32
      %v3583 = vpop.permute.xlu0 %3582
      %3584 = vrot.lane.b32.xlu0 %v3020, 32
      %v3585 = vpop.permute.xlu0 %3584
      %3586 = vrot.lane.b32.xlu0 %v3021, 32
      %v3587 = vpop.permute.xlu0 %3586
      %3588 = vrot.lane.b32.xlu0 %v3022, 32
      %v3589 = vpop.permute.xlu0 %3588
      %3590 = vrot.lane.b32.xlu0 %v3023, 32
      %v3591 = vpop.permute.xlu0 %3590
      %3592 = vrot.lane.b32.xlu0 %v3024, 32
      %v3593 = vpop.permute.xlu0 %3592
      %3594 = vrot.lane.b32.xlu0 %v3025, 32
      %v3595 = vpop.permute.xlu0 %3594
      %3596 = vrot.lane.b32.xlu0 %v3026, 32
      %v3597 = vpop.permute.xlu0 %3596
      %3598 = vrot.lane.b32.xlu0 %v3027, 32
      %v3599 = vpop.permute.xlu0 %3598
      %3600 = vrot.lane.b32.xlu0 %v3028, 32
      %v3601 = vpop.permute.xlu0 %3600
      %3602 = vrot.lane.b32.xlu0 %v3029, 32
      %v3603 = vpop.permute.xlu0 %3602
      %3604 = vrot.lane.b32.xlu0 %v3030, 32
      %v3605 = vpop.permute.xlu0 %3604
      %3606 = vrot.lane.b32.xlu0 %v3031, 32
      %v3607 = vpop.permute.xlu0 %3606
      %3608 = vrot.lane.b32.xlu0 %v3032, 32
      %v3609 = vpop.permute.xlu0 %3608
      %3674 = vrot.lane.b32.xlu0 %v3034, 64
      %v3675 = vpop.permute.xlu0 %3674
      %3676 = vrot.lane.b32.xlu0 %v3035, 64
      %v3677 = vpop.permute.xlu0 %3676
      %3678 = vrot.lane.b32.xlu0 %v3036, 64
      %v3679 = vpop.permute.xlu0 %3678
      %3680 = vrot.lane.b32.xlu0 %v3037, 64
      %v3681 = vpop.permute.xlu0 %3680
      %3682 = vrot.lane.b32.xlu0 %v3038, 64
      %v3683 = vpop.permute.xlu0 %3682
      %3684 = vrot.lane.b32.xlu0 %v3039, 64
      %v3685 = vpop.permute.xlu0 %3684
      %3686 = vrot.lane.b32.xlu0 %v3040, 64
      %v3687 = vpop.permute.xlu0 %3686
      %3688 = vrot.lane.b32.xlu0 %v3041, 64
      %v3689 = vpop.permute.xlu0 %3688
      %3690 = vrot.lane.b32.xlu0 %v3042, 64
      %v3691 = vpop.permute.xlu0 %3690
      %3692 = vrot.lane.b32.xlu0 %v3043, 64
      %v3693 = vpop.permute.xlu0 %3692
      %3694 = vrot.lane.b32.xlu0 %v3044, 64
      %v3695 = vpop.permute.xlu0 %3694
      %3696 = vrot.lane.b32.xlu0 %v3045, 64
      %v3697 = vpop.permute.xlu0 %3696
      %3698 = vrot.lane.b32.xlu0 %v3046, 64
      %v3699 = vpop.permute.xlu0 %3698
      %3700 = vrot.lane.b32.xlu0 %v3047, 64
      %v3701 = vpop.permute.xlu0 %3700
      %3702 = vrot.lane.b32.xlu0 %v3048, 64
      %v3703 = vpop.permute.xlu0 %3702
      %3704 = vrot.lane.b32.xlu0 %v3049, 64
      %v3705 = vpop.permute.xlu0 %3704
      %3706 = vrot.lane.b32.xlu0 %v3050, 64
      %v3707 = vpop.permute.xlu0 %3706
      %3708 = vrot.lane.b32.xlu0 %v3051, 64
      %v3709 = vpop.permute.xlu0 %3708
      %3710 = vrot.lane.b32.xlu0 %v3052, 64
      %v3711 = vpop.permute.xlu0 %3710
      %3712 = vrot.lane.b32.xlu0 %v3053, 64
      %v3713 = vpop.permute.xlu0 %3712
      %3714 = vrot.lane.b32.xlu0 %v3054, 64
      %v3715 = vpop.permute.xlu0 %3714
      %3716 = vrot.lane.b32.xlu0 %v3055, 64
      %v3717 = vpop.permute.xlu0 %3716
      %3718 = vrot.lane.b32.xlu0 %v3056, 64
      %v3719 = vpop.permute.xlu0 %3718
      %3720 = vrot.lane.b32.xlu0 %v3057, 64
      %v3721 = vpop.permute.xlu0 %3720
      %3722 = vrot.lane.b32.xlu0 %v3058, 64
      %v3723 = vpop.permute.xlu0 %3722
      %3724 = vrot.lane.b32.xlu0 %v3059, 64
      %v3725 = vpop.permute.xlu0 %3724
      %3726 = vrot.lane.b32.xlu0 %v3060, 64
      %v3727 = vpop.permute.xlu0 %3726
      %3728 = vrot.lane.b32.xlu0 %v3061, 64
      %v3729 = vpop.permute.xlu0 %3728
      %3730 = vrot.lane.b32.xlu0 %v3062, 64
      %v3731 = vpop.permute.xlu0 %3730
      %3732 = vrot.lane.b32.xlu0 %v3063, 64
      %v3733 = vpop.permute.xlu0 %3732
      %3734 = vrot.lane.b32.xlu0 %v3064, 64
      %v3735 = vpop.permute.xlu0 %3734
      %3736 = vrot.lane.b32.xlu0 %v3065, 64
      %v3737 = vpop.permute.xlu0 %3736
      %3802 = vrot.lane.b32.xlu0 %v3066, 96
      %v3803 = vpop.permute.xlu0 %3802
      %3804 = vrot.lane.b32.xlu0 %v3067, 96
      %v3805 = vpop.permute.xlu0 %3804
      %3806 = vrot.lane.b32.xlu0 %v3068, 96
      %v3807 = vpop.permute.xlu0 %3806
      %3808 = vrot.lane.b32.xlu0 %v3069, 96
      %v3809 = vpop.permute.xlu0 %3808
      %3810 = vrot.lane.b32.xlu0 %v3070, 96
      %v3811 = vpop.permute.xlu0 %3810
      %3812 = vrot.lane.b32.xlu0 %v3071, 96
      %v3813 = vpop.permute.xlu0 %3812
      %3814 = vrot.lane.b32.xlu0 %v3072, 96
      %v3815 = vpop.permute.xlu0 %3814
      %3816 = vrot.lane.b32.xlu0 %v3073, 96
      %v3817 = vpop.permute.xlu0 %3816
      %3818 = vrot.lane.b32.xlu0 %v3074, 96
      %v3819 = vpop.permute.xlu0 %3818
      %3820 = vrot.lane.b32.xlu0 %v3075, 96
      %v3821 = vpop.permute.xlu0 %3820
      %3822 = vrot.lane.b32.xlu0 %v3076, 96
      %v3823 = vpop.permute.xlu0 %3822
      %3824 = vrot.lane.b32.xlu0 %v3077, 96
      %v3825 = vpop.permute.xlu0 %3824
      %3826 = vrot.lane.b32.xlu0 %v3078, 96
      %v3827 = vpop.permute.xlu0 %3826
      %3828 = vrot.lane.b32.xlu0 %v3079, 96
      %v3829 = vpop.permute.xlu0 %3828
      %3830 = vrot.lane.b32.xlu0 %v3080, 96
      %v3831 = vpop.permute.xlu0 %3830
      %3832 = vrot.lane.b32.xlu0 %v3081, 96
      %v3833 = vpop.permute.xlu0 %3832
      %3834 = vrot.lane.b32.xlu0 %v3082, 96
      %v3835 = vpop.permute.xlu0 %3834
      %3836 = vrot.lane.b32.xlu0 %v3083, 96
      %v3837 = vpop.permute.xlu0 %3836
      %3838 = vrot.lane.b32.xlu0 %v3084, 96
      %v3839 = vpop.permute.xlu0 %3838
      %3840 = vrot.lane.b32.xlu0 %v3085, 96
      %v3841 = vpop.permute.xlu0 %3840
      %3842 = vrot.lane.b32.xlu0 %v3086, 96
      %v3843 = vpop.permute.xlu0 %3842
      %3844 = vrot.lane.b32.xlu0 %v3087, 96
      %v3845 = vpop.permute.xlu0 %3844
      %3846 = vrot.lane.b32.xlu0 %v3088, 96
      %v3847 = vpop.permute.xlu0 %3846
      %3848 = vrot.lane.b32.xlu0 %v3089, 96
      %v3849 = vpop.permute.xlu0 %3848
      %3850 = vrot.lane.b32.xlu0 %v3090, 96
      %v3851 = vpop.permute.xlu0 %3850
      %3852 = vrot.lane.b32.xlu0 %v3091, 96
      %v3853 = vpop.permute.xlu0 %3852
      %3854 = vrot.lane.b32.xlu0 %v3092, 96
      %v3855 = vpop.permute.xlu0 %3854
      %3856 = vrot.lane.b32.xlu0 %v3093, 96
      %v3857 = vpop.permute.xlu0 %3856
      %3858 = vrot.lane.b32.xlu0 %v3094, 96
      %v3859 = vpop.permute.xlu0 %3858
      %3860 = vrot.lane.b32.xlu0 %v3095, 96
      %v3861 = vpop.permute.xlu0 %3860
      %3862 = vrot.lane.b32.xlu0 %v3096, 96
      %v3863 = vpop.permute.xlu0 %3862
      %3864 = vrot.lane.b32.xlu0 %v3097, 96
      %v3865 = vpop.permute.xlu0 %3864
      %v3898 = vsel %vm2784, %v2841, %v3163
      %v3899 = vsel %vm2784, %v2842, %v3165
      %v3900 = vsel %vm2784, %v2843, %v3167
      %v3901 = vsel %vm2784, %v2844, %v3169
      %v3902 = vsel %vm2784, %v2845, %v3171
      %v3903 = vsel %vm2784, %v2846, %v3173
      %v3904 = vsel %vm2784, %v2847, %v3175
      %v3905 = vsel %vm2784, %v2848, %v3177
      %v3906 = vsel %vm2784, %v2849, %v3179
      %v3907 = vsel %vm2784, %v2850, %v3181
      %v3908 = vsel %vm2784, %v2851, %v3183
      %v3909 = vsel %vm2784, %v2852, %v3185
      %v3910 = vsel %vm2784, %v2853, %v3187
      %v3911 = vsel %vm2784, %v2854, %v3189
      %v3912 = vsel %vm2784, %v2855, %v3191
      %v3913 = vsel %vm2784, %v2856, %v3193
      %v3914 = vsel %vm2784, %v2857, %v3195
      %v3915 = vsel %vm2784, %v2858, %v3197
      %v3916 = vsel %vm2784, %v2859, %v3199
      %v3917 = vsel %vm2784, %v2860, %v3201
      %v3918 = vsel %vm2784, %v2861, %v3203
      %v3919 = vsel %vm2784, %v2862, %v3205
      %v3920 = vsel %vm2784, %v2863, %v3207
      %v3921 = vsel %vm2784, %v2864, %v3209
      %v3922 = vsel %vm2784, %v2865, %v3211
      %v3923 = vsel %vm2784, %v2866, %v3213
      %v3924 = vsel %vm2784, %v2867, %v3215
      %v3925 = vsel %vm2784, %v2868, %v3217
      %v3926 = vsel %vm2784, %v2869, %v3219
      %v3927 = vsel %vm2784, %v2870, %v3221
      %v3928 = vsel %vm2784, %v2871, %v3223
      %v3929 = vsel %vm2784, %v2872, %v3225
      %vm3930 = vcmask 523264
      %v3931 = vsel %vm3930, %v3898, %v3291
      %v3932 = vsel %vm3930, %v3899, %v3293
      %v3933 = vsel %vm3930, %v3900, %v3295
      %v3934 = vsel %vm3930, %v3901, %v3297
      %v3935 = vsel %vm3930, %v3902, %v3299
      %v3936 = vsel %vm3930, %v3903, %v3301
      %v3937 = vsel %vm3930, %v3904, %v3303
      %v3938 = vsel %vm3930, %v3905, %v3305
      %v3939 = vsel %vm3930, %v3906, %v3307
      %v3940 = vsel %vm3930, %v3907, %v3309
      %v3941 = vsel %vm3930, %v3908, %v3311
      %v3942 = vsel %vm3930, %v3909, %v3313
      %v3943 = vsel %vm3930, %v3910, %v3315
      %v3944 = vsel %vm3930, %v3911, %v3317
      %v3945 = vsel %vm3930, %v3912, %v3319
      %v3946 = vsel %vm3930, %v3913, %v3321
      %v3947 = vsel %vm3930, %v3914, %v3323
      %v3948 = vsel %vm3930, %v3915, %v3325
      %v3949 = vsel %vm3930, %v3916, %v3327
      %v3950 = vsel %vm3930, %v3917, %v3329
      %v3951 = vsel %vm3930, %v3918, %v3331
      %v3952 = vsel %vm3930, %v3919, %v3333
      %v3953 = vsel %vm3930, %v3920, %v3335
      %v3954 = vsel %vm3930, %v3921, %v3337
      %v3955 = vsel %vm3930, %v3922, %v3339
      %v3956 = vsel %vm3930, %v3923, %v3341
      %v3957 = vsel %vm3930, %v3924, %v3343
      %v3958 = vsel %vm3930, %v3925, %v3345
      %v3959 = vsel %vm3930, %v3926, %v3347
      %v3960 = vsel %vm3930, %v3927, %v3349
      %v3961 = vsel %vm3930, %v3928, %v3351
      %v3962 = vsel %vm3930, %v3929, %v3353
      %vm3963 = vcmask 785408
      %v3964 = vsel %vm3963, %v3931, %v3419
      %v3965 = vsel %vm3963, %v3932, %v3421
      %v3966 = vsel %vm3963, %v3933, %v3423
      %v3967 = vsel %vm3963, %v3934, %v3425
      %v3968 = vsel %vm3963, %v3935, %v3427
      %v3969 = vsel %vm3963, %v3936, %v3429
      %v3970 = vsel %vm3963, %v3937, %v3431
      %v3971 = vsel %vm3963, %v3938, %v3433
      %v3972 = vsel %vm3963, %v3939, %v3435
      %v3973 = vsel %vm3963, %v3940, %v3437
      %v3974 = vsel %vm3963, %v3941, %v3439
      %v3975 = vsel %vm3963, %v3942, %v3441
      %v3976 = vsel %vm3963, %v3943, %v3443
      %v3977 = vsel %vm3963, %v3944, %v3445
      %v3978 = vsel %vm3963, %v3945, %v3447
      %v3979 = vsel %vm3963, %v3946, %v3449
      %v3980 = vsel %vm3963, %v3947, %v3451
      %v3981 = vsel %vm3963, %v3948, %v3453
      %v3982 = vsel %vm3963, %v3949, %v3455
      %v3983 = vsel %vm3963, %v3950, %v3457
      %v3984 = vsel %vm3963, %v3951, %v3459
      %v3985 = vsel %vm3963, %v3952, %v3461
      %v3986 = vsel %vm3963, %v3953, %v3463
      %v3987 = vsel %vm3963, %v3954, %v3465
      %v3988 = vsel %vm3963, %v3955, %v3467
      %v3989 = vsel %vm3963, %v3956, %v3469
      %v3990 = vsel %vm3963, %v3957, %v3471
      %v3991 = vsel %vm3963, %v3958, %v3473
      %v3992 = vsel %vm3963, %v3959, %v3475
      %v3993 = vsel %vm3963, %v3960, %v3477
      %v3994 = vsel %vm3963, %v3961, %v3479
      %v3995 = vsel %vm3963, %v3962, %v3481
      %v3996 = vsel %vm2784, %v2969, %v3547
      %v3997 = vsel %vm2784, %v2970, %v3549
      %v3998 = vsel %vm2784, %v2971, %v3551
      %v3999 = vsel %vm2784, %v2972, %v3553
      %v4000 = vsel %vm2784, %v2973, %v3555
      %v4001 = vsel %vm2784, %v2974, %v3557
      %v4002 = vsel %vm2784, %v2975, %v3559
      %v4003 = vsel %vm2784, %v2976, %v3561
      %v4004 = vsel %vm2784, %v2977, %v3563
      %v4005 = vsel %vm2784, %v2978, %v3565
      %v4006 = vsel %vm2784, %v2979, %v3567
      %v4007 = vsel %vm2784, %v2980, %v3569
      %v4008 = vsel %vm2784, %v2981, %v3571
      %v4009 = vsel %vm2784, %v2982, %v3573
      %v4010 = vsel %vm2784, %v2983, %v3575
      %v4011 = vsel %vm2784, %v2984, %v3577
      %v4012 = vsel %vm2784, %v2985, %v3579
      %v4013 = vsel %vm2784, %v2986, %v3581
      %v4014 = vsel %vm2784, %v2987, %v3583
      %v4015 = vsel %vm2784, %v2988, %v3585
      %v4016 = vsel %vm2784, %v2989, %v3587
      %v4017 = vsel %vm2784, %v2990, %v3589
      %v4018 = vsel %vm2784, %v2991, %v3591
      %v4019 = vsel %vm2784, %v2992, %v3593
      %v4020 = vsel %vm2784, %v2993, %v3595
      %v4021 = vsel %vm2784, %v2994, %v3597
      %v4022 = vsel %vm2784, %v2995, %v3599
      %v4023 = vsel %vm2784, %v2996, %v3601
      %v4024 = vsel %vm2784, %v2997, %v3603
      %v4025 = vsel %vm2784, %v2998, %v3605
      %v4026 = vsel %vm2784, %v2999, %v3607
      %v4027 = vsel %vm2784, %v3000, %v3609
      %v4028 = vsel %vm3930, %v3996, %v3675
      %v4029 = vsel %vm3930, %v3997, %v3677
      %v4030 = vsel %vm3930, %v3998, %v3679
      %v4031 = vsel %vm3930, %v3999, %v3681
      %v4032 = vsel %vm3930, %v4000, %v3683
      %v4033 = vsel %vm3930, %v4001, %v3685
      %v4034 = vsel %vm3930, %v4002, %v3687
      %v4035 = vsel %vm3930, %v4003, %v3689
      %v4036 = vsel %vm3930, %v4004, %v3691
      %v4037 = vsel %vm3930, %v4005, %v3693
      %v4038 = vsel %vm3930, %v4006, %v3695
      %v4039 = vsel %vm3930, %v4007, %v3697
      %v4040 = vsel %vm3930, %v4008, %v3699
      %v4041 = vsel %vm3930, %v4009, %v3701
      %v4042 = vsel %vm3930, %v4010, %v3703
      %v4043 = vsel %vm3930, %v4011, %v3705
      %v4044 = vsel %vm3930, %v4012, %v3707
      %v4045 = vsel %vm3930, %v4013, %v3709
      %v4046 = vsel %vm3930, %v4014, %v3711
      %v4047 = vsel %vm3930, %v4015, %v3713
      %v4048 = vsel %vm3930, %v4016, %v3715
      %v4049 = vsel %vm3930, %v4017, %v3717
      %v4050 = vsel %vm3930, %v4018, %v3719
      %v4051 = vsel %vm3930, %v4019, %v3721
      %v4052 = vsel %vm3930, %v4020, %v3723
      %v4053 = vsel %vm3930, %v4021, %v3725
      %v4054 = vsel %vm3930, %v4022, %v3727
      %v4055 = vsel %vm3930, %v4023, %v3729
      %v4056 = vsel %vm3930, %v4024, %v3731
      %v4057 = vsel %vm3930, %v4025, %v3733
      %v4058 = vsel %vm3930, %v4026, %v3735
      %v4059 = vsel %vm3930, %v4027, %v3737
      %v4060 = vsel %vm3963, %v4028, %v3803
      %v4061 = vsel %vm3963, %v4029, %v3805
      %v4062 = vsel %vm3963, %v4030, %v3807
      %v4063 = vsel %vm3963, %v4031, %v3809
      %v4064 = vsel %vm3963, %v4032, %v3811
      %v4065 = vsel %vm3963, %v4033, %v3813
      %v4066 = vsel %vm3963, %v4034, %v3815
      %v4067 = vsel %vm3963, %v4035, %v3817
      %v4068 = vsel %vm3963, %v4036, %v3819
      %v4069 = vsel %vm3963, %v4037, %v3821
      %v4070 = vsel %vm3963, %v4038, %v3823
      %v4071 = vsel %vm3963, %v4039, %v3825
      %v4072 = vsel %vm3963, %v4040, %v3827
      %v4073 = vsel %vm3963, %v4041, %v3829
      %v4074 = vsel %vm3963, %v4042, %v3831
      %v4075 = vsel %vm3963, %v4043, %v3833
      %v4076 = vsel %vm3963, %v4044, %v3835
      %v4077 = vsel %vm3963, %v4045, %v3837
      %v4078 = vsel %vm3963, %v4046, %v3839
      %v4079 = vsel %vm3963, %v4047, %v3841
      %v4080 = vsel %vm3963, %v4048, %v3843
      %v4081 = vsel %vm3963, %v4049, %v3845
      %v4082 = vsel %vm3963, %v4050, %v3847
      %v4083 = vsel %vm3963, %v4051, %v3849
      %v4084 = vsel %vm3963, %v4052, %v3851
      %v4085 = vsel %vm3963, %v4053, %v3853
      %v4086 = vsel %vm3963, %v4054, %v3855
      %v4087 = vsel %vm3963, %v4055, %v3857
      %v4088 = vsel %vm3963, %v4056, %v3859
      %v4089 = vsel %vm3963, %v4057, %v3861
      %v4090 = vsel %vm3963, %v4058, %v3863
      %v4091 = vsel %vm3963, %v4059, %v3865
      %v4092 = vpack.c.bf16 %v3965, %v3964
      %v4093 = vpack.c.bf16 %v4061, %v4060
      %v4094 = vpack.c.bf16 %v3099, %v3098
      %v4095 = vpack.c.bf16 %v3967, %v3966
      %v4096 = vpack.c.bf16 %v4063, %v4062
      %v4097 = vpack.c.bf16 %v3101, %v3100
      %v4098 = vpack.c.bf16 %v3969, %v3968
      %v4099 = vpack.c.bf16 %v4065, %v4064
      %v4100 = vpack.c.bf16 %v3103, %v3102
      %v4101 = vpack.c.bf16 %v3971, %v3970
      %v4102 = vpack.c.bf16 %v4067, %v4066
      %v4103 = vpack.c.bf16 %v3105, %v3104
      %v4104 = vpack.c.bf16 %v3973, %v3972
      %v4105 = vpack.c.bf16 %v4069, %v4068
      %v4106 = vpack.c.bf16 %v3107, %v3106
      %v4107 = vpack.c.bf16 %v3975, %v3974
      %v4108 = vpack.c.bf16 %v4071, %v4070
      %v4109 = vpack.c.bf16 %v3109, %v3108
      %v4110 = vpack.c.bf16 %v3977, %v3976
      %v4111 = vpack.c.bf16 %v4073, %v4072
      %v4112 = vpack.c.bf16 %v3111, %v3110
      %v4113 = vpack.c.bf16 %v3979, %v3978
      %v4114 = vpack.c.bf16 %v4075, %v4074
      %v4115 = vpack.c.bf16 %v3113, %v3112
      %v4116 = vpack.c.bf16 %v3981, %v3980
      %v4117 = vpack.c.bf16 %v4077, %v4076
      %v4118 = vpack.c.bf16 %v3115, %v3114
      %v4119 = vpack.c.bf16 %v3983, %v3982
      %v4120 = vpack.c.bf16 %v4079, %v4078
      %v4121 = vpack.c.bf16 %v3117, %v3116
      %v4122 = vpack.c.bf16 %v3985, %v3984
      %v4123 = vpack.c.bf16 %v4081, %v4080
      %v4124 = vpack.c.bf16 %v3119, %v3118
      %v4125 = vpack.c.bf16 %v3987, %v3986
      %v4126 = vpack.c.bf16 %v4083, %v4082
      %v4127 = vpack.c.bf16 %v3121, %v3120
      %v4128 = vpack.c.bf16 %v3989, %v3988
      %v4129 = vpack.c.bf16 %v4085, %v4084
      %v4130 = vpack.c.bf16 %v3123, %v3122
      %v4131 = vpack.c.bf16 %v3991, %v3990
      %v4132 = vpack.c.bf16 %v4087, %v4086
      %v4133 = vpack.c.bf16 %v3125, %v3124
      %v4134 = vpack.c.bf16 %v3993, %v3992
      %v4135 = vpack.c.bf16 %v4089, %v4088
      %v4136 = vpack.c.bf16 %v3127, %v3126
      %v4137 = vpack.c.bf16 %v3995, %v3994
      %v4138 = vpack.c.bf16 %v4091, %v4090
      %v4139 = vpack.c.bf16 %v3129, %v3128
      %v4140 = vld [vmem:[%s3] sm:$0xf]
      %v4141 = vld [vmem:[%s3 + $0x4] sm:$0xf]
      %v4142 = vld [vmem:[%s3 + $0x8] sm:$0xf]
      %v4143 = vld [vmem:[%s3 + $0xc] sm:$0xf]
      %v4144 = vld [vmem:[%s3 + $0x10] sm:$0xf]
      %v4145 = vld [vmem:[%s3 + $0x14] sm:$0xf]
      %v4146 = vld [vmem:[%s3 + $0x18] sm:$0xf]
      %v4147 = vld [vmem:[%s3 + $0x1c] sm:$0xf]
      %v4148 = vld [vmem:[%s3 + $0x20] sm:$0xf]
      %v4149 = vld [vmem:[%s3 + $0x24] sm:$0xf]
      %v4150 = vld [vmem:[%s3 + $0x28] sm:$0xf]
      %v4151 = vld [vmem:[%s3 + $0x2c] sm:$0xf]
      %v4152 = vld [vmem:[%s3 + $0x30] sm:$0xf]
      %v4153 = vld [vmem:[%s3 + $0x34] sm:$0xf]
      %v4154 = vld [vmem:[%s3 + $0x38] sm:$0xf]
      %v4155 = vld [vmem:[%s3 + $0x3c] sm:$0xf]
      %v4156 = vld [vmem:[%s3 + $0x40] sm:$0xf]
      %v4157 = vld [vmem:[%s3 + $0x44] sm:$0xf]
      %v4158 = vld [vmem:[%s3 + $0x48] sm:$0xf]
      %v4159 = vld [vmem:[%s3 + $0x4c] sm:$0xf]
      %v4160 = vld [vmem:[%s3 + $0x50] sm:$0xf]
      %v4161 = vld [vmem:[%s3 + $0x54] sm:$0xf]
      %v4162 = vld [vmem:[%s3 + $0x58] sm:$0xf]
      %v4163 = vld [vmem:[%s3 + $0x5c] sm:$0xf]
      %v4164 = vld [vmem:[%s3 + $0x60] sm:$0xf]
      %v4165 = vld [vmem:[%s3 + $0x64] sm:$0xf]
      %v4166 = vld [vmem:[%s3 + $0x68] sm:$0xf]
      %v4167 = vld [vmem:[%s3 + $0x6c] sm:$0xf]
      %v4168 = vld [vmem:[%s3 + $0x70] sm:$0xf]
      %v4169 = vld [vmem:[%s3 + $0x74] sm:$0xf]
      %v4170 = vld [vmem:[%s3 + $0x78] sm:$0xf]
      %v4171 = vld [vmem:[%s3 + $0x7c] sm:$0xf]
      %v4172 = vld [vmem:[%s3 + $0x80] sm:$0xf]
      %v4173 = vld [vmem:[%s3 + $0x84] sm:$0xf]
      %v4174 = vld [vmem:[%s3 + $0x88] sm:$0xf]
      %v4175 = vld [vmem:[%s3 + $0x8c] sm:$0xf]
      %v4176 = vld [vmem:[%s4] sm:$0x1]
      %v4178 = vlaneseq
      %v4179 = vshrl.u32 %v4178, 7
      %v4180 = vsub.s32 0, %v4179
      %v4181 = vrot.slane %v4176, %v4180
      %v4219 = vunpack.c.l.b16 %v4140
      %v4220 = vunpack.c.l.b16 %v4141
      %v4221 = vunpack.c.l.b16 %v4142
      %v4222 = vunpack.c.l.b16 %v4143
      %v4223 = vunpack.c.l.b16 %v4144
      %v4224 = vunpack.c.l.b16 %v4145
      %v4225 = vunpack.c.l.b16 %v4146
      %v4226 = vunpack.c.l.b16 %v4147
      %v4227 = vunpack.c.l.b16 %v4148
      %v4228 = vunpack.c.l.b16 %v4149
      %v4229 = vunpack.c.l.b16 %v4150
      %v4230 = vunpack.c.l.b16 %v4151
      %v4231 = vunpack.c.l.b16 %v4152
      %v4232 = vunpack.c.l.b16 %v4153
      %v4233 = vunpack.c.l.b16 %v4154
      %v4234 = vunpack.c.l.b16 %v4155
      %v4235 = vunpack.c.l.b16 %v4156
      %v4236 = vunpack.c.l.b16 %v4157
      %v4237 = vunpack.c.l.b16 %v4158
      %v4238 = vunpack.c.l.b16 %v4159
      %v4239 = vunpack.c.l.b16 %v4160
      %v4240 = vunpack.c.l.b16 %v4161
      %v4241 = vunpack.c.l.b16 %v4162
      %v4242 = vunpack.c.l.b16 %v4163
      %v4243 = vunpack.c.l.b16 %v4164
      %v4244 = vunpack.c.l.b16 %v4165
      %v4245 = vunpack.c.l.b16 %v4166
      %v4246 = vunpack.c.l.b16 %v4167
      %v4247 = vunpack.c.l.b16 %v4168
      %v4248 = vunpack.c.l.b16 %v4169
      %v4249 = vunpack.c.l.b16 %v4170
      %v4250 = vunpack.c.l.b16 %v4171
      %v4251 = vunpack.c.l.b16 %v4172
      %v4252 = vunpack.c.l.b16 %v4173
      %v4253 = vunpack.c.l.b16 %v4174
      %v4254 = vunpack.c.l.b16 %v4175
      %v4255 = vpack.c.b16 %v4220, %v4219
      %v4256 = vpack.c.b16 %v4222, %v4221
      %v4257 = vpack.c.b16 %v4224, %v4223
      %v4258 = vpack.c.b16 %v4226, %v4225
      %v4259 = vpack.c.b16 %v4228, %v4227
      %v4260 = vpack.c.b16 %v4230, %v4229
      %v4261 = vpack.c.b16 %v4232, %v4231
      %v4262 = vpack.c.b16 %v4234, %v4233
      %v4263 = vpack.c.b16 %v4236, %v4235
      %v4264 = vpack.c.b16 %v4238, %v4237
      %v4265 = vpack.c.b16 %v4240, %v4239
      %v4266 = vpack.c.b16 %v4242, %v4241
      %v4267 = vpack.c.b16 %v4244, %v4243
      %v4268 = vpack.c.b16 %v4246, %v4245
      %v4269 = vpack.c.b16 %v4248, %v4247
      %v4270 = vpack.c.b16 %v4250, %v4249
      %v4271 = vpack.c.b16 %v4252, %v4251
      %v4272 = vpack.c.b16 %v4254, %v4253
      %v4292 = vsel %vm2784, %v4094, 0
      %v4295 = vsel %vm2784, %v4097, 0
      %v4298 = vsel %vm2784, %v4100, 0
      %v4301 = vsel %vm2784, %v4103, 0
      %v4304 = vsel %vm2784, %v4106, 0
      %v4307 = vsel %vm2784, %v4109, 0
      %v4310 = vsel %vm2784, %v4112, 0
      %v4313 = vsel %vm2784, %v4115, 0
      %v4316 = vsel %vm2784, %v4118, 0
      %v4319 = vsel %vm2784, %v4121, 0
      %v4322 = vsel %vm2784, %v4124, 0
      %v4325 = vsel %vm2784, %v4127, 0
      %v4328 = vsel %vm2784, %v4130, 0
      %v4331 = vsel %vm2784, %v4133, 0
      %v4334 = vsel %vm2784, %v4136, 0
      %v4337 = vsel %vm2784, %v4139, 0
      %4339 = vmatprep.subr.bf16.mxu0 0
      %4340 = vmatpush1.bf16.msra.mxu0 %v4255
      %4341 = vmatprep.subr.bf16.mxu0 0
      %4342 = vmatpush1.bf16.msra.mxu0 %v4256
      %4343 = vmatprep.subr.bf16.mxu0 0
      %4344 = vmatpush1.bf16.msra.mxu0 %v4257
      %4345 = vmatprep.subr.bf16.mxu0 0
      %4346 = vmatpush1.bf16.msra.mxu0 %v4258
      %4347 = vmatprep.subr.bf16.mxu0 0
      %4348 = vmatpush1.bf16.msra.mxu0 %v4259
      %4349 = vmatprep.subr.bf16.mxu0 0
      %4350 = vmatpush1.bf16.msra.mxu0 %v4260
      %4351 = vmatprep.subr.bf16.mxu0 0
      %4352 = vmatpush1.bf16.msra.mxu0 %v4261
      %4353 = vmatprep.subr.bf16.mxu0 0
      %4354 = vmatpush1.bf16.msra.mxu0 %v4262
      %4355 = vmatprep.subr.bf16.mxu0 0
      %4356 = vmatpush1.bf16.msra.mxu0 %v4263
      %4357 = vmatprep.subr.bf16.mxu0 0
      %4358 = vmatpush1.bf16.msra.mxu0 %v4264
      %4359 = vmatprep.subr.bf16.mxu0 0
      %4360 = vmatpush1.bf16.msra.mxu0 %v4265
      %4361 = vmatprep.subr.bf16.mxu0 0
      %4362 = vmatpush1.bf16.msra.mxu0 %v4266
      %4363 = vmatprep.subr.bf16.mxu0 0
      %4364 = vmatpush1.bf16.msra.mxu0 %v4267
      %4365 = vmatprep.subr.bf16.mxu0 0
      %4366 = vmatpush1.bf16.msra.mxu0 %v4268
      %4367 = vmatprep.subr.bf16.mxu0 0
      %4368 = vmatpush1.bf16.msra.mxu0 %v4269
      %4369 = vmatprep.subr.bf16.mxu0 0
      %4370 = vmatpush1.bf16.msra.mxu0 %v4270
      %4371 = vmatprep.mubr.bf16.mxu0 %v4093
      %4372 = vmatmul.mubr.bf16.gmra.mrb[0].mxu0 %v4092
      %v4373 = vpop.f32.mrb[0].mxu0
      %v4374 = vadd.f32 %v4181, %v4373
      %v4375 = vpop.f32.mrb[0].mxu0
      %v4376 = vpop.f32.mrb[0].mxu0
      %v4377 = vadd.f32 %v4181, %v4376
      %v4378 = vpop.f32.mrb[0].mxu0
      %4379 = vmatprep.mubr.bf16.mxu0 %v4096
      %4380 = vmatmul.mubr.bf16.gmra.mrb[0].mxu0 %v4095
      %v4381 = vpop.f32.mrb[0].mxu0
      %v4382 = vadd.f32 %v4181, %v4381
      %v4383 = vpop.f32.mrb[0].mxu0
      %v4384 = vpop.f32.mrb[0].mxu0
      %v4385 = vadd.f32 %v4181, %v4384
      %v4386 = vpop.f32.mrb[0].mxu0
      %4387 = vmatprep.mubr.bf16.mxu0 %v4099
      %4388 = vmatmul.mubr.bf16.gmra.mrb[0].mxu0 %v4098
      %v4389 = vpop.f32.mrb[0].mxu0
      %v4390 = vadd.f32 %v4181, %v4389
      %v4391 = vpop.f32.mrb[0].mxu0
      %v4392 = vpop.f32.mrb[0].mxu0
      %v4393 = vadd.f32 %v4181, %v4392
      %v4394 = vpop.f32.mrb[0].mxu0
      %4395 = vmatprep.mubr.bf16.mxu0 %v4102
      %4396 = vmatmul.mubr.bf16.gmra.mrb[0].mxu0 %v4101
      %v4397 = vpop.f32.mrb[0].mxu0
      %v4398 = vadd.f32 %v4181, %v4397
      %v4399 = vpop.f32.mrb[0].mxu0
      %v4400 = vpop.f32.mrb[0].mxu0
      %v4401 = vadd.f32 %v4181, %v4400
      %v4402 = vpop.f32.mrb[0].mxu0
      %4403 = vmatprep.mubr.bf16.mxu0 %v4105
      %4404 = vmatmul.mubr.bf16.gmra.mrb[0].mxu0 %v4104
      %v4405 = vpop.f32.mrb[0].mxu0
      %v4406 = vadd.f32 %v4181, %v4405
      %v4407 = vpop.f32.mrb[0].mxu0
      %v4408 = vpop.f32.mrb[0].mxu0
      %v4409 = vadd.f32 %v4181, %v4408
      %v4410 = vpop.f32.mrb[0].mxu0
      %4411 = vmatprep.mubr.bf16.mxu0 %v4108
      %4412 = vmatmul.mubr.bf16.gmra.mrb[0].mxu0 %v4107
      %v4413 = vpop.f32.mrb[0].mxu0
      %v4414 = vadd.f32 %v4181, %v4413
      %v4415 = vpop.f32.mrb[0].mxu0
      %v4416 = vpop.f32.mrb[0].mxu0
      %v4417 = vadd.f32 %v4181, %v4416
      %v4418 = vpop.f32.mrb[0].mxu0
      %4419 = vmatprep.mubr.bf16.mxu0 %v4111
      %4420 = vmatmul.mubr.bf16.gmra.mrb[0].mxu0 %v4110
      %v4421 = vpop.f32.mrb[0].mxu0
      %v4422 = vadd.f32 %v4181, %v4421
      %v4423 = vpop.f32.mrb[0].mxu0
      %v4424 = vpop.f32.mrb[0].mxu0
      %v4425 = vadd.f32 %v4181, %v4424
      %v4426 = vpop.f32.mrb[0].mxu0
      %4427 = vmatprep.mubr.bf16.mxu0 %v4114
      %4428 = vmatmul.mubr.bf16.gmra.mrb[0].mxu0 %v4113
      %v4429 = vpop.f32.mrb[0].mxu0
      %v4430 = vadd.f32 %v4181, %v4429
      %v4431 = vpop.f32.mrb[0].mxu0
      %v4432 = vpop.f32.mrb[0].mxu0
      %v4433 = vadd.f32 %v4181, %v4432
      %v4434 = vpop.f32.mrb[0].mxu0
      %4435 = vmatprep.mubr.bf16.mxu0 %v4117
      %4436 = vmatmul.mubr.bf16.gmra.mrb[0].mxu0 %v4116
      %v4437 = vpop.f32.mrb[0].mxu0
      %v4438 = vadd.f32 %v4181, %v4437
      %v4439 = vpop.f32.mrb[0].mxu0
      %v4440 = vpop.f32.mrb[0].mxu0
      %v4441 = vadd.f32 %v4181, %v4440
      %v4442 = vpop.f32.mrb[0].mxu0
      %4443 = vmatprep.mubr.bf16.mxu0 %v4120
      %4444 = vmatmul.mubr.bf16.gmra.mrb[0].mxu0 %v4119
      %v4445 = vpop.f32.mrb[0].mxu0
      %v4446 = vadd.f32 %v4181, %v4445
      %v4447 = vpop.f32.mrb[0].mxu0
      %v4448 = vpop.f32.mrb[0].mxu0
      %v4449 = vadd.f32 %v4181, %v4448
      %v4450 = vpop.f32.mrb[0].mxu0
      %4451 = vmatprep.mubr.bf16.mxu0 %v4123
      %4452 = vmatmul.mubr.bf16.gmra.mrb[0].mxu0 %v4122
      %v4453 = vpop.f32.mrb[0].mxu0
      %v4454 = vadd.f32 %v4181, %v4453
      %v4455 = vpop.f32.mrb[0].mxu0
      %v4456 = vpop.f32.mrb[0].mxu0
      %v4457 = vadd.f32 %v4181, %v4456
      %v4458 = vpop.f32.mrb[0].mxu0
      %4459 = vmatprep.mubr.bf16.mxu0 %v4126
      %4460 = vmatmul.mubr.bf16.gmra.mrb[0].mxu0 %v4125
      %v4461 = vpop.f32.mrb[0].mxu0
      %v4462 = vadd.f32 %v4181, %v4461
      %v4463 = vpop.f32.mrb[0].mxu0
      %v4464 = vpop.f32.mrb[0].mxu0
      %v4465 = vadd.f32 %v4181, %v4464
      %v4466 = vpop.f32.mrb[0].mxu0
      %4467 = vmatprep.mubr.bf16.mxu0 %v4129
      %4468 = vmatmul.mubr.bf16.gmra.mrb[0].mxu0 %v4128
      %v4469 = vpop.f32.mrb[0].mxu0
      %v4470 = vadd.f32 %v4181, %v4469
      %v4471 = vpop.f32.mrb[0].mxu0
      %v4472 = vpop.f32.mrb[0].mxu0
      %v4473 = vadd.f32 %v4181, %v4472
      %v4474 = vpop.f32.mrb[0].mxu0
      %4475 = vmatprep.mubr.bf16.mxu0 %v4132
      %4476 = vmatmul.mubr.bf16.gmra.mrb[0].mxu0 %v4131
      %v4477 = vpop.f32.mrb[0].mxu0
      %v4478 = vadd.f32 %v4181, %v4477
      %v4479 = vpop.f32.mrb[0].mxu0
      %v4480 = vpop.f32.mrb[0].mxu0
      %v4481 = vadd.f32 %v4181, %v4480
      %v4482 = vpop.f32.mrb[0].mxu0
      %4483 = vmatprep.mubr.bf16.mxu0 %v4135
      %4484 = vmatmul.mubr.bf16.gmra.mrb[0].mxu0 %v4134
      %v4485 = vpop.f32.mrb[0].mxu0
      %v4486 = vadd.f32 %v4181, %v4485
      %v4487 = vpop.f32.mrb[0].mxu0
      %v4488 = vpop.f32.mrb[0].mxu0
      %v4489 = vadd.f32 %v4181, %v4488
      %v4490 = vpop.f32.mrb[0].mxu0
      %4491 = vmatprep.mubr.bf16.mxu0 %v4138
      %4492 = vmatmul.mubr.bf16.gmra.mrb[0].mxu0 %v4137
      %v4493 = vpop.f32.mrb[0].mxu0
      %v4494 = vadd.f32 %v4181, %v4493
      %v4495 = vpop.f32.mrb[0].mxu0
      %v4496 = vpop.f32.mrb[0].mxu0
      %v4497 = vadd.f32 %v4181, %v4496
      %v4498 = vpop.f32.mrb[0].mxu0
      %4499 = vdwg.mxu0
      %4500 = vmatprep.subr.bf16.mxu0 0
      %4501 = vmatpush1.bf16.msra.mxu0 %v4271
      %4502 = vmatprep.subr.bf16.mxu0 0
      %4503 = vmatpush1.bf16.msra.mxu0 %v4272
      %4504 = vmatprep.subr.bf16.mxu0 0
      %4505 = vmatpush1.bf16.msra.mxu0 0
      %4506 = vmatprep.subr.bf16.mxu0 0
      %4507 = vmatpush1.bf16.msra.mxu0 0
      %4508 = vmatprep.subr.bf16.mxu0 0
      %4509 = vmatpush1.bf16.msra.mxu0 0
      %4510 = vmatprep.subr.bf16.mxu0 0
      %4511 = vmatpush1.bf16.msra.mxu0 0
      %4512 = vmatprep.subr.bf16.mxu0 0
      %4513 = vmatpush1.bf16.msra.mxu0 0
      %4514 = vmatprep.subr.bf16.mxu0 0
      %4515 = vmatpush1.bf16.msra.mxu0 0
      %4516 = vmatprep.subr.bf16.mxu0 0
      %4517 = vmatpush1.bf16.msra.mxu0 0
      %4518 = vmatprep.subr.bf16.mxu0 0
      %4519 = vmatpush1.bf16.msra.mxu0 0
      %4520 = vmatprep.subr.bf16.mxu0 0
      %4521 = vmatpush1.bf16.msra.mxu0 0
      %4522 = vmatprep.subr.bf16.mxu0 0
      %4523 = vmatpush1.bf16.msra.mxu0 0
      %4524 = vmatprep.subr.bf16.mxu0 0
      %4525 = vmatpush1.bf16.msra.mxu0 0
      %4526 = vmatprep.subr.bf16.mxu0 0
      %4527 = vmatpush1.bf16.msra.mxu0 0
      %4528 = vmatprep.subr.bf16.mxu0 0
      %4529 = vmatpush1.bf16.msra.mxu0 0
      %4530 = vmatprep.subr.bf16.mxu0 0
      %4531 = vmatpush1.bf16.msra.mxu0 0
      %4532 = vmatprep.mubr.bf16.mxu0 0
      %4533 = vmatmul.mubr.bf16.gmra.mrb[0].mxu0 %v4292
      %v4534 = vpop.f32.mrb[0].mxu0
      %v4535 = vadd.f32 %v4374, %v4534
      %v4536 = vpop.f32.mrb[0].mxu0
      %v4537 = vpop.f32.mrb[0].mxu0
      %v4538 = vadd.f32 %v4377, %v4537
      %v4539 = vpop.f32.mrb[0].mxu0
      %4540 = vmatprep.mubr.bf16.mxu0 0
      %4541 = vmatmul.mubr.bf16.gmra.mrb[0].mxu0 %v4295
      %v4542 = vpop.f32.mrb[0].mxu0
      %v4543 = vadd.f32 %v4382, %v4542
      %v4544 = vpop.f32.mrb[0].mxu0
      %v4545 = vpop.f32.mrb[0].mxu0
      %v4546 = vadd.f32 %v4385, %v4545
      %v4547 = vpop.f32.mrb[0].mxu0
      %4548 = vmatprep.mubr.bf16.mxu0 0
      %4549 = vmatmul.mubr.bf16.gmra.mrb[0].mxu0 %v4298
      %v4550 = vpop.f32.mrb[0].mxu0
      %v4551 = vadd.f32 %v4390, %v4550
      %v4552 = vpop.f32.mrb[0].mxu0
      %v4553 = vpop.f32.mrb[0].mxu0
      %v4554 = vadd.f32 %v4393, %v4553
      %v4555 = vpop.f32.mrb[0].mxu0
      %4556 = vmatprep.mubr.bf16.mxu0 0
      %4557 = vmatmul.mubr.bf16.gmra.mrb[0].mxu0 %v4301
      %v4558 = vpop.f32.mrb[0].mxu0
      %v4559 = vadd.f32 %v4398, %v4558
      %v4560 = vpop.f32.mrb[0].mxu0
      %v4561 = vpop.f32.mrb[0].mxu0
      %v4562 = vadd.f32 %v4401, %v4561
      %v4563 = vpop.f32.mrb[0].mxu0
      %4564 = vmatprep.mubr.bf16.mxu0 0
      %4565 = vmatmul.mubr.bf16.gmra.mrb[0].mxu0 %v4304
      %v4566 = vpop.f32.mrb[0].mxu0
      %v4567 = vadd.f32 %v4406, %v4566
      %v4568 = vpop.f32.mrb[0].mxu0
      %v4569 = vpop.f32.mrb[0].mxu0
      %v4570 = vadd.f32 %v4409, %v4569
      %v4571 = vpop.f32.mrb[0].mxu0
      %4572 = vmatprep.mubr.bf16.mxu0 0
      %4573 = vmatmul.mubr.bf16.gmra.mrb[0].mxu0 %v4307
      %v4574 = vpop.f32.mrb[0].mxu0
      %v4575 = vadd.f32 %v4414, %v4574
      %v4576 = vpop.f32.mrb[0].mxu0
      %v4577 = vpop.f32.mrb[0].mxu0
      %v4578 = vadd.f32 %v4417, %v4577
      %v4579 = vpop.f32.mrb[0].mxu0
      %4580 = vmatprep.mubr.bf16.mxu0 0
      %4581 = vmatmul.mubr.bf16.gmra.mrb[0].mxu0 %v4310
      %v4582 = vpop.f32.mrb[0].mxu0
      %v4583 = vadd.f32 %v4422, %v4582
      %v4584 = vpop.f32.mrb[0].mxu0
      %v4585 = vpop.f32.mrb[0].mxu0
      %v4586 = vadd.f32 %v4425, %v4585
      %v4587 = vpop.f32.mrb[0].mxu0
      %4588 = vmatprep.mubr.bf16.mxu0 0
      %4589 = vmatmul.mubr.bf16.gmra.mrb[0].mxu0 %v4313
      %v4590 = vpop.f32.mrb[0].mxu0
      %v4591 = vadd.f32 %v4430, %v4590
      %v4592 = vpop.f32.mrb[0].mxu0
      %v4593 = vpop.f32.mrb[0].mxu0
      %v4594 = vadd.f32 %v4433, %v4593
      %v4595 = vpop.f32.mrb[0].mxu0
      %4596 = vmatprep.mubr.bf16.mxu0 0
      %4597 = vmatmul.mubr.bf16.gmra.mrb[0].mxu0 %v4316
      %v4598 = vpop.f32.mrb[0].mxu0
      %v4599 = vadd.f32 %v4438, %v4598
      %v4600 = vpop.f32.mrb[0].mxu0
      %v4601 = vpop.f32.mrb[0].mxu0
      %v4602 = vadd.f32 %v4441, %v4601
      %v4603 = vpop.f32.mrb[0].mxu0
      %4604 = vmatprep.mubr.bf16.mxu0 0
      %4605 = vmatmul.mubr.bf16.gmra.mrb[0].mxu0 %v4319
      %v4606 = vpop.f32.mrb[0].mxu0
      %v4607 = vadd.f32 %v4446, %v4606
      %v4608 = vpop.f32.mrb[0].mxu0
      %v4609 = vpop.f32.mrb[0].mxu0
      %v4610 = vadd.f32 %v4449, %v4609
      %v4611 = vpop.f32.mrb[0].mxu0
      %4612 = vmatprep.mubr.bf16.mxu0 0
      %4613 = vmatmul.mubr.bf16.gmra.mrb[0].mxu0 %v4322
      %v4614 = vpop.f32.mrb[0].mxu0
      %v4615 = vadd.f32 %v4454, %v4614
      %v4616 = vpop.f32.mrb[0].mxu0
      %v4617 = vpop.f32.mrb[0].mxu0
      %v4618 = vadd.f32 %v4457, %v4617
      %v4619 = vpop.f32.mrb[0].mxu0
      %4620 = vmatprep.mubr.bf16.mxu0 0
      %4621 = vmatmul.mubr.bf16.gmra.mrb[0].mxu0 %v4325
      %v4622 = vpop.f32.mrb[0].mxu0
      %v4623 = vadd.f32 %v4462, %v4622
      %v4624 = vpop.f32.mrb[0].mxu0
      %v4625 = vpop.f32.mrb[0].mxu0
      %v4626 = vadd.f32 %v4465, %v4625
      %v4627 = vpop.f32.mrb[0].mxu0
      %4628 = vmatprep.mubr.bf16.mxu0 0
      %4629 = vmatmul.mubr.bf16.gmra.mrb[0].mxu0 %v4328
      %v4630 = vpop.f32.mrb[0].mxu0
      %v4631 = vadd.f32 %v4470, %v4630
      %v4632 = vpop.f32.mrb[0].mxu0
      %v4633 = vpop.f32.mrb[0].mxu0
      %v4634 = vadd.f32 %v4473, %v4633
      %v4635 = vpop.f32.mrb[0].mxu0
      %4636 = vmatprep.mubr.bf16.mxu0 0
      %4637 = vmatmul.mubr.bf16.gmra.mrb[0].mxu0 %v4331
      %v4638 = vpop.f32.mrb[0].mxu0
      %v4639 = vadd.f32 %v4478, %v4638
      %v4640 = vpop.f32.mrb[0].mxu0
      %v4641 = vpop.f32.mrb[0].mxu0
      %v4642 = vadd.f32 %v4481, %v4641
      %v4643 = vpop.f32.mrb[0].mxu0
      %4644 = vmatprep.mubr.bf16.mxu0 0
      %4645 = vmatmul.mubr.bf16.gmra.mrb[0].mxu0 %v4334
      %v4646 = vpop.f32.mrb[0].mxu0
      %v4647 = vadd.f32 %v4486, %v4646
      %v4648 = vpop.f32.mrb[0].mxu0
      %v4649 = vpop.f32.mrb[0].mxu0
      %v4650 = vadd.f32 %v4489, %v4649
      %v4651 = vpop.f32.mrb[0].mxu0
      %4652 = vmatprep.mubr.bf16.mxu0 0
      %4653 = vmatmul.mubr.bf16.gmra.mrb[0].mxu0 %v4337
      %v4654 = vpop.f32.mrb[0].mxu0
      %v4655 = vadd.f32 %v4494, %v4654
      %v4656 = vpop.f32.mrb[0].mxu0
      %v4657 = vpop.f32.mrb[0].mxu0
      %v4658 = vadd.f32 %v4497, %v4657
      %v4659 = vpop.f32.mrb[0].mxu0
      %4660 = vdwg.mxu0
      %v4661 = vmax.f32 %v4535, 0.0
      %v4662 = vmax.f32 %v4538, 0.0
      %v4663 = vmax.f32 %v4543, 0.0
      %v4664 = vmax.f32 %v4546, 0.0
      %v4665 = vmax.f32 %v4551, 0.0
      %v4666 = vmax.f32 %v4554, 0.0
      %v4667 = vmax.f32 %v4559, 0.0
      %v4668 = vmax.f32 %v4562, 0.0
      %v4669 = vmax.f32 %v4567, 0.0
      %v4670 = vmax.f32 %v4570, 0.0
      %v4671 = vmax.f32 %v4575, 0.0
      %v4672 = vmax.f32 %v4578, 0.0
      %v4673 = vmax.f32 %v4583, 0.0
      %v4674 = vmax.f32 %v4586, 0.0
      %v4675 = vmax.f32 %v4591, 0.0
      %v4676 = vmax.f32 %v4594, 0.0
      %v4677 = vmax.f32 %v4599, 0.0
      %v4678 = vmax.f32 %v4602, 0.0
      %v4679 = vmax.f32 %v4607, 0.0
      %v4680 = vmax.f32 %v4610, 0.0
      %v4681 = vmax.f32 %v4615, 0.0
      %v4682 = vmax.f32 %v4618, 0.0
      %v4683 = vmax.f32 %v4623, 0.0
      %v4684 = vmax.f32 %v4626, 0.0
      %v4685 = vmax.f32 %v4631, 0.0
      %v4686 = vmax.f32 %v4634, 0.0
      %v4687 = vmax.f32 %v4639, 0.0
      %v4688 = vmax.f32 %v4642, 0.0
      %v4689 = vmax.f32 %v4647, 0.0
      %v4690 = vmax.f32 %v4650, 0.0
      %v4691 = vmax.f32 %v4655, 0.0
      %v4692 = vmax.f32 %v4658, 0.0
      %v4693 = vpack.c.bf16 %v4662, %v4661
      %v4694 = vpack.c.bf16 %v4664, %v4663
      %v4695 = vpack.c.bf16 %v4666, %v4665
      %v4696 = vpack.c.bf16 %v4668, %v4667
      %v4697 = vpack.c.bf16 %v4670, %v4669
      %v4698 = vpack.c.bf16 %v4672, %v4671
      %v4699 = vpack.c.bf16 %v4674, %v4673
      %v4700 = vpack.c.bf16 %v4676, %v4675
      %v4701 = vpack.c.bf16 %v4678, %v4677
      %v4702 = vpack.c.bf16 %v4680, %v4679
      %v4703 = vpack.c.bf16 %v4682, %v4681
      %v4704 = vpack.c.bf16 %v4684, %v4683
      %v4705 = vpack.c.bf16 %v4686, %v4685
      %v4706 = vpack.c.bf16 %v4688, %v4687
      %v4707 = vpack.c.bf16 %v4690, %v4689
      %v4708 = vpack.c.bf16 %v4692, %v4691
      %v4709 = vld [vmem:[%s5] sm:$0xf]
      %v4710 = vld [vmem:[%s5 + $0x4] sm:$0xf]
      %v4711 = vld [vmem:[%s5 + $0x8] sm:$0xf]
      %v4712 = vld [vmem:[%s5 + $0xc] sm:$0xf]
      %v4713 = vld [vmem:[%s6] sm:$0x1]
      %v4715 = vlaneseq
      %v4716 = vshrl.u32 %v4715, 7
      %v4717 = vsub.s32 0, %v4716
      %v4718 = vrot.slane %v4713, %v4717
      %v4724 = vunpack.c.l.b16 %v4709
      %v4725 = vunpack.c.l.b16 %v4710
      %v4726 = vunpack.c.l.b16 %v4711
      %v4727 = vunpack.c.l.b16 %v4712
      %v4728 = vpack.c.b16 %v4725, %v4724
      %v4729 = vpack.c.b16 %v4727, %v4726
      %v4733 = vsel %vm2784, %v4693, 0
      %v4736 = vsel %vm2784, %v4694, 0
      %v4739 = vsel %vm2784, %v4695, 0
      %v4742 = vsel %vm2784, %v4696, 0
      %v4745 = vsel %vm2784, %v4697, 0
      %v4748 = vsel %vm2784, %v4698, 0
      %v4751 = vsel %vm2784, %v4699, 0
      %v4754 = vsel %vm2784, %v4700, 0
      %v4757 = vsel %vm2784, %v4701, 0
      %v4760 = vsel %vm2784, %v4702, 0
      %v4763 = vsel %vm2784, %v4703, 0
      %v4766 = vsel %vm2784, %v4704, 0
      %v4769 = vsel %vm2784, %v4705, 0
      %v4772 = vsel %vm2784, %v4706, 0
      %v4775 = vsel %vm2784, %v4707, 0
      %v4778 = vsel %vm2784, %v4708, 0
      %4780 = vmatprep.subr.bf16.mxu0 0
      %4781 = vmatpush1.bf16.msra.mxu0 %v4728
      %4782 = vmatprep.subr.bf16.mxu0 0
      %4783 = vmatpush1.bf16.msra.mxu0 %v4729
      %4784 = vmatprep.subr.bf16.mxu0 0
      %4785 = vmatpush1.bf16.msra.mxu0 0
      %4786 = vmatprep.subr.bf16.mxu0 0
      %4787 = vmatpush1.bf16.msra.mxu0 0
      %4788 = vmatprep.subr.bf16.mxu0 0
      %4789 = vmatpush1.bf16.msra.mxu0 0
      %4790 = vmatprep.subr.bf16.mxu0 0
      %4791 = vmatpush1.bf16.msra.mxu0 0
      %4792 = vmatprep.subr.bf16.mxu0 0
      %4793 = vmatpush1.bf16.msra.mxu0 0
      %4794 = vmatprep.subr.bf16.mxu0 0
      %4795 = vmatpush1.bf16.msra.mxu0 0
      %4796 = vmatprep.subr.bf16.mxu0 0
      %4797 = vmatpush1.bf16.msra.mxu0 0
      %4798 = vmatprep.subr.bf16.mxu0 0
      %4799 = vmatpush1.bf16.msra.mxu0 0
      %4800 = vmatprep.subr.bf16.mxu0 0
      %4801 = vmatpush1.bf16.msra.mxu0 0
      %4802 = vmatprep.subr.bf16.mxu0 0
      %4803 = vmatpush1.bf16.msra.mxu0 0
      %4804 = vmatprep.subr.bf16.mxu0 0
      %4805 = vmatpush1.bf16.msra.mxu0 0
      %4806 = vmatprep.subr.bf16.mxu0 0
      %4807 = vmatpush1.bf16.msra.mxu0 0
      %4808 = vmatprep.subr.bf16.mxu0 0
      %4809 = vmatpush1.bf16.msra.mxu0 0
      %4810 = vmatprep.subr.bf16.mxu0 0
      %4811 = vmatpush1.bf16.msra.mxu0 0
      %4812 = vmatprep.mubr.bf16.mxu0 0
      %4813 = vmatmul.mubr.bf16.gmra.mrb[0].mxu0 %v4733
      %v4814 = vpop.f32.mrb[0].mxu0
      %v4815 = vadd.f32 %v4718, %v4814
      %v4816 = vpop.f32.mrb[0].mxu0
      %v4817 = vpop.f32.mrb[0].mxu0
      %v4818 = vadd.f32 %v4718, %v4817
      %v4819 = vpop.f32.mrb[0].mxu0
      %4820 = vmatprep.mubr.bf16.mxu0 0
      %4821 = vmatmul.mubr.bf16.gmra.mrb[0].mxu0 %v4736
      %v4822 = vpop.f32.mrb[0].mxu0
      %v4823 = vadd.f32 %v4718, %v4822
      %v4824 = vpop.f32.mrb[0].mxu0
      %v4825 = vpop.f32.mrb[0].mxu0
      %v4826 = vadd.f32 %v4718, %v4825
      %v4827 = vpop.f32.mrb[0].mxu0
      %4828 = vmatprep.mubr.bf16.mxu0 0
      %4829 = vmatmul.mubr.bf16.gmra.mrb[0].mxu0 %v4739
      %v4830 = vpop.f32.mrb[0].mxu0
      %v4831 = vadd.f32 %v4718, %v4830
      %v4832 = vpop.f32.mrb[0].mxu0
      %v4833 = vpop.f32.mrb[0].mxu0
      %v4834 = vadd.f32 %v4718, %v4833
      %v4835 = vpop.f32.mrb[0].mxu0
      %4836 = vmatprep.mubr.bf16.mxu0 0
      %4837 = vmatmul.mubr.bf16.gmra.mrb[0].mxu0 %v4742
      %v4838 = vpop.f32.mrb[0].mxu0
      %v4839 = vadd.f32 %v4718, %v4838
      %v4840 = vpop.f32.mrb[0].mxu0
      %v4841 = vpop.f32.mrb[0].mxu0
      %v4842 = vadd.f32 %v4718, %v4841
      %v4843 = vpop.f32.mrb[0].mxu0
      %4844 = vmatprep.mubr.bf16.mxu0 0
      %4845 = vmatmul.mubr.bf16.gmra.mrb[0].mxu0 %v4745
      %v4846 = vpop.f32.mrb[0].mxu0
      %v4847 = vadd.f32 %v4718, %v4846
      %v4848 = vpop.f32.mrb[0].mxu0
      %v4849 = vpop.f32.mrb[0].mxu0
      %v4850 = vadd.f32 %v4718, %v4849
      %v4851 = vpop.f32.mrb[0].mxu0
      %4852 = vmatprep.mubr.bf16.mxu0 0
      %4853 = vmatmul.mubr.bf16.gmra.mrb[0].mxu0 %v4748
      %v4854 = vpop.f32.mrb[0].mxu0
      %v4855 = vadd.f32 %v4718, %v4854
      %v4856 = vpop.f32.mrb[0].mxu0
      %v4857 = vpop.f32.mrb[0].mxu0
      %v4858 = vadd.f32 %v4718, %v4857
      %v4859 = vpop.f32.mrb[0].mxu0
      %4860 = vmatprep.mubr.bf16.mxu0 0
      %4861 = vmatmul.mubr.bf16.gmra.mrb[0].mxu0 %v4751
      %v4862 = vpop.f32.mrb[0].mxu0
      %v4863 = vadd.f32 %v4718, %v4862
      %v4864 = vpop.f32.mrb[0].mxu0
      %v4865 = vpop.f32.mrb[0].mxu0
      %v4866 = vadd.f32 %v4718, %v4865
      %v4867 = vpop.f32.mrb[0].mxu0
      %4868 = vmatprep.mubr.bf16.mxu0 0
      %4869 = vmatmul.mubr.bf16.gmra.mrb[0].mxu0 %v4754
      %v4870 = vpop.f32.mrb[0].mxu0
      %v4871 = vadd.f32 %v4718, %v4870
      %v4872 = vpop.f32.mrb[0].mxu0
      %v4873 = vpop.f32.mrb[0].mxu0
      %v4874 = vadd.f32 %v4718, %v4873
      %v4875 = vpop.f32.mrb[0].mxu0
      %4876 = vmatprep.mubr.bf16.mxu0 0
      %4877 = vmatmul.mubr.bf16.gmra.mrb[0].mxu0 %v4757
      %v4878 = vpop.f32.mrb[0].mxu0
      %v4879 = vadd.f32 %v4718, %v4878
      %v4880 = vpop.f32.mrb[0].mxu0
      %v4881 = vpop.f32.mrb[0].mxu0
      %v4882 = vadd.f32 %v4718, %v4881
      %v4883 = vpop.f32.mrb[0].mxu0
      %4884 = vmatprep.mubr.bf16.mxu0 0
      %4885 = vmatmul.mubr.bf16.gmra.mrb[0].mxu0 %v4760
      %v4886 = vpop.f32.mrb[0].mxu0
      %v4887 = vadd.f32 %v4718, %v4886
      %v4888 = vpop.f32.mrb[0].mxu0
      %v4889 = vpop.f32.mrb[0].mxu0
      %v4890 = vadd.f32 %v4718, %v4889
      %v4891 = vpop.f32.mrb[0].mxu0
      %4892 = vmatprep.mubr.bf16.mxu0 0
      %4893 = vmatmul.mubr.bf16.gmra.mrb[0].mxu0 %v4763
      %v4894 = vpop.f32.mrb[0].mxu0
      %v4895 = vadd.f32 %v4718, %v4894
      %v4896 = vpop.f32.mrb[0].mxu0
      %v4897 = vpop.f32.mrb[0].mxu0
      %v4898 = vadd.f32 %v4718, %v4897
      %v4899 = vpop.f32.mrb[0].mxu0
      %4900 = vmatprep.mubr.bf16.mxu0 0
      %4901 = vmatmul.mubr.bf16.gmra.mrb[0].mxu0 %v4766
      %v4902 = vpop.f32.mrb[0].mxu0
      %v4903 = vadd.f32 %v4718, %v4902
      %v4904 = vpop.f32.mrb[0].mxu0
      %v4905 = vpop.f32.mrb[0].mxu0
      %v4906 = vadd.f32 %v4718, %v4905
      %v4907 = vpop.f32.mrb[0].mxu0
      %4908 = vmatprep.mubr.bf16.mxu0 0
      %4909 = vmatmul.mubr.bf16.gmra.mrb[0].mxu0 %v4769
      %v4910 = vpop.f32.mrb[0].mxu0
      %v4911 = vadd.f32 %v4718, %v4910
      %v4912 = vpop.f32.mrb[0].mxu0
      %v4913 = vpop.f32.mrb[0].mxu0
      %v4914 = vadd.f32 %v4718, %v4913
      %v4915 = vpop.f32.mrb[0].mxu0
      %4916 = vmatprep.mubr.bf16.mxu0 0
      %4917 = vmatmul.mubr.bf16.gmra.mrb[0].mxu0 %v4772
      %v4918 = vpop.f32.mrb[0].mxu0
      %v4919 = vadd.f32 %v4718, %v4918
      %v4920 = vpop.f32.mrb[0].mxu0
      %v4921 = vpop.f32.mrb[0].mxu0
      %v4922 = vadd.f32 %v4718, %v4921
      %v4923 = vpop.f32.mrb[0].mxu0
      %4924 = vmatprep.mubr.bf16.mxu0 0
      %4925 = vmatmul.mubr.bf16.gmra.mrb[0].mxu0 %v4775
      %v4926 = vpop.f32.mrb[0].mxu0
      %v4927 = vadd.f32 %v4718, %v4926
      %v4928 = vpop.f32.mrb[0].mxu0
      %v4929 = vpop.f32.mrb[0].mxu0
      %v4930 = vadd.f32 %v4718, %v4929
      %v4931 = vpop.f32.mrb[0].mxu0
      %4932 = vmatprep.mubr.bf16.mxu0 0
      %4933 = vmatmul.mubr.bf16.gmra.mrb[0].mxu0 %v4778
      %v4934 = vpop.f32.mrb[0].mxu0
      %v4935 = vadd.f32 %v4718, %v4934
      %v4936 = vpop.f32.mrb[0].mxu0
      %v4937 = vpop.f32.mrb[0].mxu0
      %v4938 = vadd.f32 %v4718, %v4937
      %v4939 = vpop.f32.mrb[0].mxu0
      %4940 = vdwg.mxu0
      %v4941 = vxor.u32 %v4815, 2147483648
      %v4942 = vxor.u32 %v4818, 2147483648
      %v4943 = vxor.u32 %v4823, 2147483648
      %v4944 = vxor.u32 %v4826, 2147483648
      %v4945 = vxor.u32 %v4831, 2147483648
      %v4946 = vxor.u32 %v4834, 2147483648
      %v4947 = vxor.u32 %v4839, 2147483648
      %v4948 = vxor.u32 %v4842, 2147483648
      %v4949 = vxor.u32 %v4847, 2147483648
      %v4950 = vxor.u32 %v4850, 2147483648
      %v4951 = vxor.u32 %v4855, 2147483648
      %v4952 = vxor.u32 %v4858, 2147483648
      %v4953 = vxor.u32 %v4863, 2147483648
      %v4954 = vxor.u32 %v4866, 2147483648
      %v4955 = vxor.u32 %v4871, 2147483648
      %v4956 = vxor.u32 %v4874, 2147483648
      %v4957 = vxor.u32 %v4879, 2147483648
      %v4958 = vxor.u32 %v4882, 2147483648
      %v4959 = vxor.u32 %v4887, 2147483648
      %v4960 = vxor.u32 %v4890, 2147483648
      %v4961 = vxor.u32 %v4895, 2147483648
      %v4962 = vxor.u32 %v4898, 2147483648
      %v4963 = vxor.u32 %v4903, 2147483648
      %v4964 = vxor.u32 %v4906, 2147483648
      %v4965 = vxor.u32 %v4911, 2147483648
      %v4966 = vxor.u32 %v4914, 2147483648
      %v4967 = vxor.u32 %v4919, 2147483648
      %v4968 = vxor.u32 %v4922, 2147483648
      %v4969 = vxor.u32 %v4927, 2147483648
      %v4970 = vxor.u32 %v4930, 2147483648
      %v4971 = vxor.u32 %v4935, 2147483648
      %v4972 = vxor.u32 %v4938, 2147483648
      %v4973 = vmul.f32 %v4941, 1.442695
      %v4974 = vpow.pop %v4973
      %v4975 = vmul.f32 %v4942, 1.442695
      %v4976 = vpow.pop %v4975
      %v4977 = vmul.f32 %v4943, 1.442695
      %v4978 = vpow.pop %v4977
      %v4979 = vmul.f32 %v4944, 1.442695
      %v4980 = vpow.pop %v4979
      %v4981 = vmul.f32 %v4945, 1.442695
      %v4982 = vpow.pop %v4981
      %v4983 = vmul.f32 %v4946, 1.442695
      %v4984 = vpow.pop %v4983
      %v4985 = vmul.f32 %v4947, 1.442695
      %v4986 = vpow.pop %v4985
      %v4987 = vmul.f32 %v4948, 1.442695
      %v4988 = vpow.pop %v4987
      %v4989 = vmul.f32 %v4949, 1.442695
      %v4990 = vpow.pop %v4989
      %v4991 = vmul.f32 %v4950, 1.442695
      %v4992 = vpow.pop %v4991
      %v4993 = vmul.f32 %v4951, 1.442695
      %v4994 = vpow.pop %v4993
      %v4995 = vmul.f32 %v4952, 1.442695
      %v4996 = vpow.pop %v4995
      %v4997 = vmul.f32 %v4953, 1.442695
      %v4998 = vpow.pop %v4997
      %v4999 = vmul.f32 %v4954, 1.442695
      %v5000 = vpow.pop %v4999
      %v5001 = vmul.f32 %v4955, 1.442695
      %v5002 = vpow.pop %v5001
      %v5003 = vmul.f32 %v4956, 1.442695
      %v5004 = vpow.pop %v5003
      %v5005 = vmul.f32 %v4957, 1.442695
      %v5006 = vpow.pop %v5005
      %v5007 = vmul.f32 %v4958, 1.442695
      %v5008 = vpow.pop %v5007
      %v5009 = vmul.f32 %v4959, 1.442695
      %v5010 = vpow.pop %v5009
      %v5011 = vmul.f32 %v4960, 1.442695
      %v5012 = vpow.pop %v5011
      %v5013 = vmul.f32 %v4961, 1.442695
      %v5014 = vpow.pop %v5013
      %v5015 = vmul.f32 %v4962, 1.442695
      %v5016 = vpow.pop %v5015
      %v5017 = vmul.f32 %v4963, 1.442695
      %v5018 = vpow.pop %v5017
      %v5019 = vmul.f32 %v4964, 1.442695
      %v5020 = vpow.pop %v5019
      %v5021 = vmul.f32 %v4965, 1.442695
      %v5022 = vpow.pop %v5021
      %v5023 = vmul.f32 %v4966, 1.442695
      %v5024 = vpow.pop %v5023
      %v5025 = vmul.f32 %v4967, 1.442695
      %v5026 = vpow.pop %v5025
      %v5027 = vmul.f32 %v4968, 1.442695
      %v5028 = vpow.pop %v5027
      %v5029 = vmul.f32 %v4969, 1.442695
      %v5030 = vpow.pop %v5029
      %v5031 = vmul.f32 %v4970, 1.442695
      %v5032 = vpow.pop %v5031
      %v5033 = vmul.f32 %v4971, 1.442695
      %v5034 = vpow.pop %v5033
      %v5035 = vmul.f32 %v4972, 1.442695
      %v5036 = vpow.pop %v5035
      %v5037 = vadd.f32 %v4974, 1.0
      %v5038 = vadd.f32 %v4976, 1.0
      %v5039 = vadd.f32 %v4978, 1.0
      %v5040 = vadd.f32 %v4980, 1.0
      %v5041 = vadd.f32 %v4982, 1.0
      %v5042 = vadd.f32 %v4984, 1.0
      %v5043 = vadd.f32 %v4986, 1.0
      %v5044 = vadd.f32 %v4988, 1.0
      %v5045 = vadd.f32 %v4990, 1.0
      %v5046 = vadd.f32 %v4992, 1.0
      %v5047 = vadd.f32 %v4994, 1.0
      %v5048 = vadd.f32 %v4996, 1.0
      %v5049 = vadd.f32 %v4998, 1.0
      %v5050 = vadd.f32 %v5000, 1.0
      %v5051 = vadd.f32 %v5002, 1.0
      %v5052 = vadd.f32 %v5004, 1.0
      %v5053 = vadd.f32 %v5006, 1.0
      %v5054 = vadd.f32 %v5008, 1.0
      %v5055 = vadd.f32 %v5010, 1.0
      %v5056 = vadd.f32 %v5012, 1.0
      %v5057 = vadd.f32 %v5014, 1.0
      %v5058 = vadd.f32 %v5016, 1.0
      %v5059 = vadd.f32 %v5018, 1.0
      %v5060 = vadd.f32 %v5020, 1.0
      %v5061 = vadd.f32 %v5022, 1.0
      %v5062 = vadd.f32 %v5024, 1.0
      %v5063 = vadd.f32 %v5026, 1.0
      %v5064 = vadd.f32 %v5028, 1.0
      %v5065 = vadd.f32 %v5030, 1.0
      %v5066 = vadd.f32 %v5032, 1.0
      %v5067 = vadd.f32 %v5034, 1.0
      %v5068 = vadd.f32 %v5036, 1.0
      %v5069 = vrcp.pop %v5037
      %v5070 = vmul.f32 1.0, %v5069
      %v5071 = vrcp.pop %v5038
      %v5072 = vmul.f32 1.0, %v5071
      %v5073 = vrcp.pop %v5039
      %v5074 = vmul.f32 1.0, %v5073
      %v5075 = vrcp.pop %v5040
      %v5076 = vmul.f32 1.0, %v5075
      %v5077 = vrcp.pop %v5041
      %v5078 = vmul.f32 1.0, %v5077
      %v5079 = vrcp.pop %v5042
      %v5080 = vmul.f32 1.0, %v5079
      %v5081 = vrcp.pop %v5043
      %v5082 = vmul.f32 1.0, %v5081
      %v5083 = vrcp.pop %v5044
      %v5084 = vmul.f32 1.0, %v5083
      %v5085 = vrcp.pop %v5045
      %v5086 = vmul.f32 1.0, %v5085
      %v5087 = vrcp.pop %v5046
      %v5088 = vmul.f32 1.0, %v5087
      %v5089 = vrcp.pop %v5047
      %v5090 = vmul.f32 1.0, %v5089
      %v5091 = vrcp.pop %v5048
      %v5092 = vmul.f32 1.0, %v5091
      %v5093 = vrcp.pop %v5049
      %v5094 = vmul.f32 1.0, %v5093
      %v5095 = vrcp.pop %v5050
      %v5096 = vmul.f32 1.0, %v5095
      %v5097 = vrcp.pop %v5051
      %v5098 = vmul.f32 1.0, %v5097
      %v5099 = vrcp.pop %v5052
      %v5100 = vmul.f32 1.0, %v5099
      %v5101 = vrcp.pop %v5053
      %v5102 = vmul.f32 1.0, %v5101
      %v5103 = vrcp.pop %v5054
      %v5104 = vmul.f32 1.0, %v5103
      %v5105 = vrcp.pop %v5055
      %v5106 = vmul.f32 1.0, %v5105
      %v5107 = vrcp.pop %v5056
      %v5108 = vmul.f32 1.0, %v5107
      %v5109 = vrcp.pop %v5057
      %v5110 = vmul.f32 1.0, %v5109
      %v5111 = vrcp.pop %v5058
      %v5112 = vmul.f32 1.0, %v5111
      %v5113 = vrcp.pop %v5059
      %v5114 = vmul.f32 1.0, %v5113
      %v5115 = vrcp.pop %v5060
      %v5116 = vmul.f32 1.0, %v5115
      %v5117 = vrcp.pop %v5061
      %v5118 = vmul.f32 1.0, %v5117
      %v5119 = vrcp.pop %v5062
      %v5120 = vmul.f32 1.0, %v5119
      %v5121 = vrcp.pop %v5063
      %v5122 = vmul.f32 1.0, %v5121
      %v5123 = vrcp.pop %v5064
      %v5124 = vmul.f32 1.0, %v5123
      %v5125 = vrcp.pop %v5065
      %v5126 = vmul.f32 1.0, %v5125
      %v5127 = vrcp.pop %v5066
      %v5128 = vmul.f32 1.0, %v5127
      %v5129 = vrcp.pop %v5067
      %v5130 = vmul.f32 1.0, %v5129
      %v5131 = vrcp.pop %v5068
      %v5132 = vmul.f32 1.0, %v5131
      %5133 = vxpose.xlu0.b32.start [1/16] %v4661, 128
      %5134 = vxpose.xlu0.b32.cont [2/16] %v4662, 128
      %5135 = vxpose.xlu0.b32.cont [3/16] %v4663, 128
      %5136 = vxpose.xlu0.b32.cont [4/16] %v4664, 128
      %5137 = vxpose.xlu0.b32.cont [5/16] %v4665, 128
      %5138 = vxpose.xlu0.b32.cont [6/16] %v4666, 128
      %5139 = vxpose.xlu0.b32.cont [7/16] %v4667, 128
      %5140 = vxpose.xlu0.b32.cont [8/16] %v4668, 128
      %5141 = vxpose.xlu0.b32.cont [9/16] %v4669, 128
      %5142 = vxpose.xlu0.b32.cont [10/16] %v4670, 128
      %5143 = vxpose.xlu0.b32.cont [11/16] %v4671, 128
      %5144 = vxpose.xlu0.b32.cont [12/16] %v4672, 128
      %5145 = vxpose.xlu0.b32.cont [13/16] %v4673, 128
      %5146 = vxpose.xlu0.b32.cont [14/16] %v4674, 128
      %5147 = vxpose.xlu0.b32.cont [15/16] %v4675, 128
      %5148 = vxpose.xlu0.b32.end [16/16] %v4676, 128
      %v5149 = vpop.trf.xlu0
      %v5150 = vpop.trf.xlu0
      %v5151 = vpop.trf.xlu0
      %v5152 = vpop.trf.xlu0
      %v5153 = vpop.trf.xlu0
      %v5154 = vpop.trf.xlu0
      %v5155 = vpop.trf.xlu0
      %v5156 = vpop.trf.xlu0
      %v5157 = vpop.trf.xlu0
      %v5158 = vpop.trf.xlu0
      %v5159 = vpop.trf.xlu0
      %v5160 = vpop.trf.xlu0
      %v5161 = vpop.trf.xlu0
      %v5162 = vpop.trf.xlu0
      %v5163 = vpop.trf.xlu0
      %v5164 = vpop.trf.xlu0
      %5165 = vxpose.xlu0.b32.start [1/16] %v4677, 128
      %5166 = vxpose.xlu0.b32.cont [2/16] %v4678, 128
      %5167 = vxpose.xlu0.b32.cont [3/16] %v4679, 128
      %5168 = vxpose.xlu0.b32.cont [4/16] %v4680, 128
      %5169 = vxpose.xlu0.b32.cont [5/16] %v4681, 128
      %5170 = vxpose.xlu0.b32.cont [6/16] %v4682, 128
      %5171 = vxpose.xlu0.b32.cont [7/16] %v4683, 128
      %5172 = vxpose.xlu0.b32.cont [8/16] %v4684, 128
      %5173 = vxpose.xlu0.b32.cont [9/16] %v4685, 128
      %5174 = vxpose.xlu0.b32.cont [10/16] %v4686, 128
      %5175 = vxpose.xlu0.b32.cont [11/16] %v4687, 128
      %5176 = vxpose.xlu0.b32.cont [12/16] %v4688, 128
      %5177 = vxpose.xlu0.b32.cont [13/16] %v4689, 128
      %5178 = vxpose.xlu0.b32.cont [14/16] %v4690, 128
      %5179 = vxpose.xlu0.b32.cont [15/16] %v4691, 128
      %5180 = vxpose.xlu0.b32.end [16/16] %v4692, 128
      %v5181 = vpop.trf.xlu0
      %v5182 = vpop.trf.xlu0
      %v5183 = vpop.trf.xlu0
      %v5184 = vpop.trf.xlu0
      %v5185 = vpop.trf.xlu0
      %v5186 = vpop.trf.xlu0
      %v5187 = vpop.trf.xlu0
      %v5188 = vpop.trf.xlu0
      %v5189 = vpop.trf.xlu0
      %v5190 = vpop.trf.xlu0
      %v5191 = vpop.trf.xlu0
      %v5192 = vpop.trf.xlu0
      %v5193 = vpop.trf.xlu0
      %v5194 = vpop.trf.xlu0
      %v5195 = vpop.trf.xlu0
      %v5196 = vpop.trf.xlu0
      %v5197 = vpack.c.bf16 %v5150, %v5149
      %v5198 = vpack.c.bf16 %v5182, %v5181
      %v5199 = vpack.c.bf16 %v5152, %v5151
      %v5200 = vpack.c.bf16 %v5184, %v5183
      %v5201 = vld [vmem:[%s7] sm:$0x3]
      %v5202 = vld [vmem:[%s8] sm:$0x7]
      %5204 = vset.pattern.permute.xlu0 0
      %5205 = vperm.xlu0 %5204, %v5202
      %v5206 = vpop.permute.xlu0 %5205
      %v5209 = vsel %vm2784, %v5201, 0
      %5211 = vmatprep.subr.bf16.mxu0 %v5198
      %5212 = vmatpush1.bf16.msra.mxu0 %v5197
      %5213 = vmatprep.subr.bf16.mxu0 %v5200
      %5214 = vmatpush1.bf16.msra.mxu0 %v5199
      %5215 = vmatprep.subr.bf16.mxu0 0
      %5216 = vmatpush1.bf16.msra.mxu0 0
      %5217 = vmatprep.subr.bf16.mxu0 0
      %5218 = vmatpush1.bf16.msra.mxu0 0
      %5219 = vmatprep.subr.bf16.mxu0 0
      %5220 = vmatpush1.bf16.msra.mxu0 0
      %5221 = vmatprep.subr.bf16.mxu0 0
      %5222 = vmatpush1.bf16.msra.mxu0 0
      %5223 = vmatprep.subr.bf16.mxu0 0
      %5224 = vmatpush1.bf16.msra.mxu0 0
      %5225 = vmatprep.subr.bf16.mxu0 0
      %5226 = vmatpush1.bf16.msra.mxu0 0
      %5227 = vmatprep.subr.bf16.mxu0 0
      %5228 = vmatpush1.bf16.msra.mxu0 0
      %5229 = vmatprep.subr.bf16.mxu0 0
      %5230 = vmatpush1.bf16.msra.mxu0 0
      %5231 = vmatprep.subr.bf16.mxu0 0
      %5232 = vmatpush1.bf16.msra.mxu0 0
      %5233 = vmatprep.subr.bf16.mxu0 0
      %5234 = vmatpush1.bf16.msra.mxu0 0
      %5235 = vmatprep.subr.bf16.mxu0 0
      %5236 = vmatpush1.bf16.msra.mxu0 0
      %5237 = vmatprep.subr.bf16.mxu0 0
      %5238 = vmatpush1.bf16.msra.mxu0 0
      %5239 = vmatprep.subr.bf16.mxu0 0
      %5240 = vmatpush1.bf16.msra.mxu0 0
      %5241 = vmatprep.subr.bf16.mxu0 0
      %5242 = vmatpush1.bf16.msra.mxu0 0
      %5243 = vmatprep.mubr.bf16.mxu0 0
      %5244 = vmatmul.mubr.bf16.gmra.mrb[0].mxu0 %v5209
      %v5245 = vpop.f32.mrb[0].mxu0
      %v5246 = vadd.f32 %v5206, %v5245
      %v5247 = vpop.f32.mrb[0].mxu0
      %v5248 = vadd.f32 %v5206, %v5247
      %v5249 = vpop.f32.mrb[0].mxu0
      %v5250 = vpop.f32.mrb[0].mxu0
      %5251 = vdwg.mxu0
      %v5252 = vxor.u32 %v5246, 2147483648
      %v5253 = vxor.u32 %v5248, 2147483648
      %v5254 = vmul.f32 %v5252, 1.442695
      %v5255 = vpow.pop %v5254
      %v5256 = vmul.f32 %v5253, 1.442695
      %v5257 = vpow.pop %v5256
      %v5258 = vadd.f32 %v5255, 1.0
      %v5259 = vadd.f32 %v5257, 1.0
      %v5260 = vrcp.pop %v5258
      %v5261 = vmul.f32 1.0, %v5260
      %v5262 = vrcp.pop %v5259
      %v5263 = vmul.f32 1.0, %v5262
      %v5296 = vrot.slane %v5070, 7
      %v5297 = vrot.slane %v5072, 7
      %v5298 = vsel %vm573, %v5296, %v5297
      %v5299 = vrot.slane %v5074, 7
      %v5300 = vrot.slane %v5076, 7
      %v5301 = vsel %vm573, %v5299, %v5300
      %v5302 = vrot.slane %v5078, 7
      %v5303 = vrot.slane %v5080, 7
      %v5304 = vsel %vm573, %v5302, %v5303
      %v5305 = vrot.slane %v5082, 7
      %v5306 = vrot.slane %v5084, 7
      %v5307 = vsel %vm573, %v5305, %v5306
      %v5308 = vrot.slane %v5086, 7
      %v5309 = vrot.slane %v5088, 7
      %v5310 = vsel %vm573, %v5308, %v5309
      %v5311 = vrot.slane %v5090, 7
      %v5312 = vrot.slane %v5092, 7
      %v5313 = vsel %vm573, %v5311, %v5312
      %v5314 = vrot.slane %v5094, 7
      %v5315 = vrot.slane %v5096, 7
      %v5316 = vsel %vm573, %v5314, %v5315
      %v5317 = vrot.slane %v5098, 7
      %v5318 = vrot.slane %v5100, 7
      %v5319 = vsel %vm573, %v5317, %v5318
      %v5320 = vrot.slane %v5102, 7
      %v5321 = vrot.slane %v5104, 7
      %v5322 = vsel %vm573, %v5320, %v5321
      %v5323 = vrot.slane %v5106, 7
      %v5324 = vrot.slane %v5108, 7
      %v5325 = vsel %vm573, %v5323, %v5324
      %v5326 = vrot.slane %v5110, 7
      %v5327 = vrot.slane %v5112, 7
      %v5328 = vsel %vm573, %v5326, %v5327
      %v5329 = vrot.slane %v5114, 7
      %v5330 = vrot.slane %v5116, 7
      %v5331 = vsel %vm573, %v5329, %v5330
      %v5332 = vrot.slane %v5118, 7
      %v5333 = vrot.slane %v5120, 7
      %v5334 = vsel %vm573, %v5332, %v5333
      %v5335 = vrot.slane %v5122, 7
      %v5336 = vrot.slane %v5124, 7
      %v5337 = vsel %vm573, %v5335, %v5336
      %v5338 = vrot.slane %v5126, 7
      %v5339 = vrot.slane %v5128, 7
      %v5340 = vsel %vm573, %v5338, %v5339
      %v5341 = vrot.slane %v5130, 7
      %v5342 = vrot.slane %v5132, 7
      %v5343 = vsel %vm573, %v5341, %v5342
      %v5392 = vsel %vm573, 0.0, %v5296
      %v5393 = vsel %vm573, 0.0, %v5299
      %v5394 = vsel %vm573, 0.0, %v5302
      %v5395 = vsel %vm573, 0.0, %v5305
      %v5396 = vsel %vm573, 0.0, %v5308
      %v5397 = vsel %vm573, 0.0, %v5311
      %v5398 = vsel %vm573, 0.0, %v5314
      %v5399 = vsel %vm573, 0.0, %v5317
      %v5400 = vsel %vm573, 0.0, %v5320
      %v5401 = vsel %vm573, 0.0, %v5323
      %v5402 = vsel %vm573, 0.0, %v5326
      %v5403 = vsel %vm573, 0.0, %v5329
      %v5404 = vsel %vm573, 0.0, %v5332
      %v5405 = vsel %vm573, 0.0, %v5335
      %v5406 = vsel %vm573, 0.0, %v5338
      %v5407 = vsel %vm573, 0.0, %v5341
      %v5408 = vsel %vm573, %v5297, 0.0
      %v5409 = vsel %vm573, %v5300, 0.0
      %v5410 = vsel %vm573, %v5303, 0.0
      %v5411 = vsel %vm573, %v5306, 0.0
      %v5412 = vsel %vm573, %v5309, 0.0
      %v5413 = vsel %vm573, %v5312, 0.0
      %v5414 = vsel %vm573, %v5315, 0.0
      %v5415 = vsel %vm573, %v5318, 0.0
      %v5416 = vsel %vm573, %v5321, 0.0
      %v5417 = vsel %vm573, %v5324, 0.0
      %v5418 = vsel %vm573, %v5327, 0.0
      %v5419 = vsel %vm573, %v5330, 0.0
      %v5420 = vsel %vm573, %v5333, 0.0
      %v5421 = vsel %vm573, %v5336, 0.0
      %v5422 = vsel %vm573, %v5339, 0.0
      %v5423 = vsel %vm573, %v5342, 0.0
      %s5424 = scalar_lea.vmem [#allocation4], 24
      %5425 = vst.msk [vmem:[%s5424] sm:$0xff] %vm703, %v5392
      %5426 = vst.msk [vmem:[%s5424 + $0x8] sm:$0xff] %vm703, %v5298
      %5427 = vst.msk [vmem:[%s5424 + $0x10] sm:$0x3] %vm706, %v5408
      %5428 = vst.msk [vmem:[%s5424 + $0x18] sm:$0xff] %vm703, %v5393
      %5429 = vst.msk [vmem:[%s5424 + $0x20] sm:$0xff] %vm703, %v5301
      %5430 = vst.msk [vmem:[%s5424 + $0x28] sm:$0x3] %vm706, %v5409
      %5431 = vst.msk [vmem:[%s5424 + $0x30] sm:$0xff] %vm703, %v5394
      %5432 = vst.msk [vmem:[%s5424 + $0x38] sm:$0xff] %vm703, %v5304
      %5433 = vst.msk [vmem:[%s5424 + $0x40] sm:$0x3] %vm706, %v5410
      %5434 = vst.msk [vmem:[%s5424 + $0x48] sm:$0xff] %vm703, %v5395
      %5435 = vst.msk [vmem:[%s5424 + $0x50] sm:$0xff] %vm703, %v5307
      %5436 = vst.msk [vmem:[%s5424 + $0x58] sm:$0x3] %vm706, %v5411
      %5437 = vst.msk [vmem:[%s5424 + $0x60] sm:$0xff] %vm703, %v5396
      %5438 = vst.msk [vmem:[%s5424 + $0x68] sm:$0xff] %vm703, %v5310
      %5439 = vst.msk [vmem:[%s5424 + $0x70] sm:$0x3] %vm706, %v5412
      %5440 = vst.msk [vmem:[%s5424 + $0x78] sm:$0xff] %vm703, %v5397
      %5441 = vst.msk [vmem:[%s5424 + $0x80] sm:$0xff] %vm703, %v5313
      %5442 = vst.msk [vmem:[%s5424 + $0x88] sm:$0x3] %vm706, %v5413
      %5443 = vst.msk [vmem:[%s5424 + $0x90] sm:$0xff] %vm703, %v5398
      %5444 = vst.msk [vmem:[%s5424 + $0x98] sm:$0xff] %vm703, %v5316
      %5445 = vst.msk [vmem:[%s5424 + $0xa0] sm:$0x3] %vm706, %v5414
      %5446 = vst.msk [vmem:[%s5424 + $0xa8] sm:$0xff] %vm703, %v5399
      %5447 = vst.msk [vmem:[%s5424 + $0xb0] sm:$0xff] %vm703, %v5319
      %5448 = vst.msk [vmem:[%s5424 + $0xb8] sm:$0x3] %vm706, %v5415
      %5449 = vst.msk [vmem:[%s5424 + $0xc0] sm:$0xff] %vm703, %v5400
      %5450 = vst.msk [vmem:[%s5424 + $0xc8] sm:$0xff] %vm703, %v5322
      %5451 = vst.msk [vmem:[%s5424 + $0xd0] sm:$0x3] %vm706, %v5416
      %5452 = vst.msk [vmem:[%s5424 + $0xd8] sm:$0xff] %vm703, %v5401
      %5453 = vst.msk [vmem:[%s5424 + $0xe0] sm:$0xff] %vm703, %v5325
      %5454 = vst.msk [vmem:[%s5424 + $0xe8] sm:$0x3] %vm706, %v5417
      %5455 = vst.msk [vmem:[%s5424 + $0xf0] sm:$0xff] %vm703, %v5402
      %5456 = vst.msk [vmem:[%s5424 + $0xf8] sm:$0xff] %vm703, %v5328
      %5457 = vst.msk [vmem:[%s5424 + $0x100] sm:$0x3] %vm706, %v5418
      %5458 = vst.msk [vmem:[%s5424 + $0x108] sm:$0xff] %vm703, %v5403
      %5459 = vst.msk [vmem:[%s5424 + $0x110] sm:$0xff] %vm703, %v5331
      %5460 = vst.msk [vmem:[%s5424 + $0x118] sm:$0x3] %vm706, %v5419
      %5461 = vst.msk [vmem:[%s5424 + $0x120] sm:$0xff] %vm703, %v5404
      %5462 = vst.msk [vmem:[%s5424 + $0x128] sm:$0xff] %vm703, %v5334
      %5463 = vst.msk [vmem:[%s5424 + $0x130] sm:$0x3] %vm706, %v5420
      %5464 = vst.msk [vmem:[%s5424 + $0x138] sm:$0xff] %vm703, %v5405
      %5465 = vst.msk [vmem:[%s5424 + $0x140] sm:$0xff] %vm703, %v5337
      %5466 = vst.msk [vmem:[%s5424 + $0x148] sm:$0x3] %vm706, %v5421
      %5467 = vst.msk [vmem:[%s5424 + $0x150] sm:$0xff] %vm703, %v5406
      %5468 = vst.msk [vmem:[%s5424 + $0x158] sm:$0xff] %vm703, %v5340
      %5469 = vst.msk [vmem:[%s5424 + $0x160] sm:$0x3] %vm706, %v5422
      %5470 = vst.msk [vmem:[%s5424 + $0x168] sm:$0xff] %vm703, %v5407
      %5471 = vst.msk [vmem:[%s5424 + $0x170] sm:$0xff] %vm703, %v5343
      %5472 = vst.msk [vmem:[%s5424 + $0x178] sm:$0x3] %vm706, %v5423
      %5473 = vst.msk [vmem:[#allocation4] sm:$0xff] %vm703, 0.0
      %5474 = vst.msk [vmem:[#allocation4 + $0x8] sm:$0xff] %vm703, 0.0
      %5475 = vst.msk [vmem:[#allocation4 + $0x10] sm:$0x3] %vm706, 0.0
      %s5476 = scalar_lea.vmem [#allocation4], 408
      %5477 = vst.msk [vmem:[%s5476] sm:$0xff] %vm703, 0.0
      %5478 = vst.msk [vmem:[%s5476 + $0x8] sm:$0xff] %vm703, 0.0
      %5479 = vst.msk [vmem:[%s5476 + $0x10] sm:$0x3] %vm706, 0.0
      %v5480 = vld [vmem:[#allocation4] sm:$0xff]
      %v5481 = vld [vmem:[#allocation4 + $0x8] sm:$0xff]
      %v5482 = vld [vmem:[#allocation4 + $0x18] sm:$0xff]
      %v5483 = vld [vmem:[#allocation4 + $0x20] sm:$0xff]
      %v5484 = vld [vmem:[#allocation4 + $0x30] sm:$0xff]
      %v5485 = vld [vmem:[#allocation4 + $0x38] sm:$0xff]
      %v5486 = vld [vmem:[#allocation4 + $0x48] sm:$0xff]
      %v5487 = vld [vmem:[#allocation4 + $0x50] sm:$0xff]
      %v5488 = vld [vmem:[#allocation4 + $0x60] sm:$0xff]
      %v5489 = vld [vmem:[#allocation4 + $0x68] sm:$0xff]
      %v5490 = vld [vmem:[#allocation4 + $0x78] sm:$0xff]
      %v5491 = vld [vmem:[#allocation4 + $0x80] sm:$0xff]
      %v5492 = vld [vmem:[#allocation4 + $0x90] sm:$0xff]
      %v5493 = vld [vmem:[#allocation4 + $0x98] sm:$0xff]
      %v5494 = vld [vmem:[#allocation4 + $0xa8] sm:$0xff]
      %v5495 = vld [vmem:[#allocation4 + $0xb0] sm:$0xff]
      %v5496 = vld [vmem:[#allocation4 + $0xc0] sm:$0xff]
      %v5497 = vld [vmem:[#allocation4 + $0xc8] sm:$0xff]
      %v5498 = vld [vmem:[#allocation4 + $0xd8] sm:$0xff]
      %v5499 = vld [vmem:[#allocation4 + $0xe0] sm:$0xff]
      %v5500 = vld [vmem:[#allocation4 + $0xf0] sm:$0xff]
      %v5501 = vld [vmem:[#allocation4 + $0xf8] sm:$0xff]
      %v5502 = vld [vmem:[#allocation4 + $0x108] sm:$0xff]
      %v5503 = vld [vmem:[#allocation4 + $0x110] sm:$0xff]
      %v5504 = vld [vmem:[#allocation4 + $0x120] sm:$0xff]
      %v5505 = vld [vmem:[#allocation4 + $0x128] sm:$0xff]
      %v5506 = vld [vmem:[#allocation4 + $0x138] sm:$0xff]
      %v5507 = vld [vmem:[#allocation4 + $0x140] sm:$0xff]
      %v5508 = vld [vmem:[#allocation4 + $0x150] sm:$0xff]
      %v5509 = vld [vmem:[#allocation4 + $0x158] sm:$0xff]
      %v5510 = vld [vmem:[#allocation4 + $0x168] sm:$0xff]
      %v5511 = vld [vmem:[#allocation4 + $0x170] sm:$0xff]
      %v5512 = vld [vmem:[#allocation4 + $0x1] sm:$0xff]
      %v5513 = vld [vmem:[#allocation4 + $0x9] sm:$0xff]
      %v5514 = vld [vmem:[#allocation4 + $0x19] sm:$0xff]
      %v5515 = vld [vmem:[#allocation4 + $0x21] sm:$0xff]
      %v5516 = vld [vmem:[#allocation4 + $0x31] sm:$0xff]
      %v5517 = vld [vmem:[#allocation4 + $0x39] sm:$0xff]
      %v5518 = vld [vmem:[#allocation4 + $0x49] sm:$0xff]
      %v5519 = vld [vmem:[#allocation4 + $0x51] sm:$0xff]
      %v5520 = vld [vmem:[#allocation4 + $0x61] sm:$0xff]
      %v5521 = vld [vmem:[#allocation4 + $0x69] sm:$0xff]
      %v5522 = vld [vmem:[#allocation4 + $0x79] sm:$0xff]
      %v5523 = vld [vmem:[#allocation4 + $0x81] sm:$0xff]
      %v5524 = vld [vmem:[#allocation4 + $0x91] sm:$0xff]
      %v5525 = vld [vmem:[#allocation4 + $0x99] sm:$0xff]
      %v5526 = vld [vmem:[#allocation4 + $0xa9] sm:$0xff]
      %v5527 = vld [vmem:[#allocation4 + $0xb1] sm:$0xff]
      %v5528 = vld [vmem:[#allocation4 + $0xc1] sm:$0xff]
      %v5529 = vld [vmem:[#allocation4 + $0xc9] sm:$0xff]
      %v5530 = vld [vmem:[#allocation4 + $0xd9] sm:$0xff]
      %v5531 = vld [vmem:[#allocation4 + $0xe1] sm:$0xff]
      %v5532 = vld [vmem:[#allocation4 + $0xf1] sm:$0xff]
      %v5533 = vld [vmem:[#allocation4 + $0xf9] sm:$0xff]
      %v5534 = vld [vmem:[#allocation4 + $0x109] sm:$0xff]
      %v5535 = vld [vmem:[#allocation4 + $0x111] sm:$0xff]
      %v5536 = vld [vmem:[#allocation4 + $0x121] sm:$0xff]
      %v5537 = vld [vmem:[#allocation4 + $0x129] sm:$0xff]
      %v5538 = vld [vmem:[#allocation4 + $0x139] sm:$0xff]
      %v5539 = vld [vmem:[#allocation4 + $0x141] sm:$0xff]
      %v5540 = vld [vmem:[#allocation4 + $0x151] sm:$0xff]
      %v5541 = vld [vmem:[#allocation4 + $0x159] sm:$0xff]
      %v5542 = vld [vmem:[#allocation4 + $0x169] sm:$0xff]
      %v5543 = vld [vmem:[#allocation4 + $0x171] sm:$0xff]
      %v5544 = vld [vmem:[#allocation4 + $0x2] sm:$0xff]
      %v5545 = vld [vmem:[#allocation4 + $0xa] sm:$0xff]
      %v5546 = vld [vmem:[#allocation4 + $0x1a] sm:$0xff]
      %v5547 = vld [vmem:[#allocation4 + $0x22] sm:$0xff]
      %v5548 = vld [vmem:[#allocation4 + $0x32] sm:$0xff]
      %v5549 = vld [vmem:[#allocation4 + $0x3a] sm:$0xff]
      %v5550 = vld [vmem:[#allocation4 + $0x4a] sm:$0xff]
      %v5551 = vld [vmem:[#allocation4 + $0x52] sm:$0xff]
      %v5552 = vld [vmem:[#allocation4 + $0x62] sm:$0xff]
      %v5553 = vld [vmem:[#allocation4 + $0x6a] sm:$0xff]
      %v5554 = vld [vmem:[#allocation4 + $0x7a] sm:$0xff]
      %v5555 = vld [vmem:[#allocation4 + $0x82] sm:$0xff]
      %v5556 = vld [vmem:[#allocation4 + $0x92] sm:$0xff]
      %v5557 = vld [vmem:[#allocation4 + $0x9a] sm:$0xff]
      %v5558 = vld [vmem:[#allocation4 + $0xaa] sm:$0xff]
      %v5559 = vld [vmem:[#allocation4 + $0xb2] sm:$0xff]
      %v5560 = vld [vmem:[#allocation4 + $0xc2] sm:$0xff]
      %v5561 = vld [vmem:[#allocation4 + $0xca] sm:$0xff]
      %v5562 = vld [vmem:[#allocation4 + $0xda] sm:$0xff]
      %v5563 = vld [vmem:[#allocation4 + $0xe2] sm:$0xff]
      %v5564 = vld [vmem:[#allocation4 + $0xf2] sm:$0xff]
      %v5565 = vld [vmem:[#allocation4 + $0xfa] sm:$0xff]
      %v5566 = vld [vmem:[#allocation4 + $0x10a] sm:$0xff]
      %v5567 = vld [vmem:[#allocation4 + $0x112] sm:$0xff]
      %v5568 = vld [vmem:[#allocation4 + $0x122] sm:$0xff]
      %v5569 = vld [vmem:[#allocation4 + $0x12a] sm:$0xff]
      %v5570 = vld [vmem:[#allocation4 + $0x13a] sm:$0xff]
      %v5571 = vld [vmem:[#allocation4 + $0x142] sm:$0xff]
      %v5572 = vld [vmem:[#allocation4 + $0x152] sm:$0xff]
      %v5573 = vld [vmem:[#allocation4 + $0x15a] sm:$0xff]
      %v5574 = vld [vmem:[#allocation4 + $0x16a] sm:$0xff]
      %v5575 = vld [vmem:[#allocation4 + $0x172] sm:$0xff]
      %v5576 = vld [vmem:[%s5424] sm:$0xff]
      %v5577 = vld [vmem:[%s5424 + $0x8] sm:$0xff]
      %v5578 = vld [vmem:[%s5424 + $0x18] sm:$0xff]
      %v5579 = vld [vmem:[%s5424 + $0x20] sm:$0xff]
      %v5580 = vld [vmem:[%s5424 + $0x30] sm:$0xff]
      %v5581 = vld [vmem:[%s5424 + $0x38] sm:$0xff]
      %v5582 = vld [vmem:[%s5424 + $0x48] sm:$0xff]
      %v5583 = vld [vmem:[%s5424 + $0x50] sm:$0xff]
      %v5584 = vld [vmem:[%s5424 + $0x60] sm:$0xff]
      %v5585 = vld [vmem:[%s5424 + $0x68] sm:$0xff]
      %v5586 = vld [vmem:[%s5424 + $0x78] sm:$0xff]
      %v5587 = vld [vmem:[%s5424 + $0x80] sm:$0xff]
      %v5588 = vld [vmem:[%s5424 + $0x90] sm:$0xff]
      %v5589 = vld [vmem:[%s5424 + $0x98] sm:$0xff]
      %v5590 = vld [vmem:[%s5424 + $0xa8] sm:$0xff]
      %v5591 = vld [vmem:[%s5424 + $0xb0] sm:$0xff]
      %v5592 = vld [vmem:[%s5424 + $0xc0] sm:$0xff]
      %v5593 = vld [vmem:[%s5424 + $0xc8] sm:$0xff]
      %v5594 = vld [vmem:[%s5424 + $0xd8] sm:$0xff]
      %v5595 = vld [vmem:[%s5424 + $0xe0] sm:$0xff]
      %v5596 = vld [vmem:[%s5424 + $0xf0] sm:$0xff]
      %v5597 = vld [vmem:[%s5424 + $0xf8] sm:$0xff]
      %v5598 = vld [vmem:[%s5424 + $0x108] sm:$0xff]
      %v5599 = vld [vmem:[%s5424 + $0x110] sm:$0xff]
      %v5600 = vld [vmem:[%s5424 + $0x120] sm:$0xff]
      %v5601 = vld [vmem:[%s5424 + $0x128] sm:$0xff]
      %v5602 = vld [vmem:[%s5424 + $0x138] sm:$0xff]
      %v5603 = vld [vmem:[%s5424 + $0x140] sm:$0xff]
      %v5604 = vld [vmem:[%s5424 + $0x150] sm:$0xff]
      %v5605 = vld [vmem:[%s5424 + $0x158] sm:$0xff]
      %v5606 = vld [vmem:[%s5424 + $0x168] sm:$0xff]
      %v5607 = vld [vmem:[%s5424 + $0x170] sm:$0xff]
      %v5608 = vld [vmem:[%s5424 + $0x1] sm:$0xff]
      %v5609 = vld [vmem:[%s5424 + $0x9] sm:$0xff]
      %v5610 = vld [vmem:[%s5424 + $0x19] sm:$0xff]
      %v5611 = vld [vmem:[%s5424 + $0x21] sm:$0xff]
      %v5612 = vld [vmem:[%s5424 + $0x31] sm:$0xff]
      %v5613 = vld [vmem:[%s5424 + $0x39] sm:$0xff]
      %v5614 = vld [vmem:[%s5424 + $0x49] sm:$0xff]
      %v5615 = vld [vmem:[%s5424 + $0x51] sm:$0xff]
      %v5616 = vld [vmem:[%s5424 + $0x61] sm:$0xff]
      %v5617 = vld [vmem:[%s5424 + $0x69] sm:$0xff]
      %v5618 = vld [vmem:[%s5424 + $0x79] sm:$0xff]
      %v5619 = vld [vmem:[%s5424 + $0x81] sm:$0xff]
      %v5620 = vld [vmem:[%s5424 + $0x91] sm:$0xff]
      %v5621 = vld [vmem:[%s5424 + $0x99] sm:$0xff]
      %v5622 = vld [vmem:[%s5424 + $0xa9] sm:$0xff]
      %v5623 = vld [vmem:[%s5424 + $0xb1] sm:$0xff]
      %v5624 = vld [vmem:[%s5424 + $0xc1] sm:$0xff]
      %v5625 = vld [vmem:[%s5424 + $0xc9] sm:$0xff]
      %v5626 = vld [vmem:[%s5424 + $0xd9] sm:$0xff]
      %v5627 = vld [vmem:[%s5424 + $0xe1] sm:$0xff]
      %v5628 = vld [vmem:[%s5424 + $0xf1] sm:$0xff]
      %v5629 = vld [vmem:[%s5424 + $0xf9] sm:$0xff]
      %v5630 = vld [vmem:[%s5424 + $0x109] sm:$0xff]
      %v5631 = vld [vmem:[%s5424 + $0x111] sm:$0xff]
      %v5632 = vld [vmem:[%s5424 + $0x121] sm:$0xff]
      %v5633 = vld [vmem:[%s5424 + $0x129] sm:$0xff]
      %v5634 = vld [vmem:[%s5424 + $0x139] sm:$0xff]
      %v5635 = vld [vmem:[%s5424 + $0x141] sm:$0xff]
      %v5636 = vld [vmem:[%s5424 + $0x151] sm:$0xff]
      %v5637 = vld [vmem:[%s5424 + $0x159] sm:$0xff]
      %v5638 = vld [vmem:[%s5424 + $0x169] sm:$0xff]
      %v5639 = vld [vmem:[%s5424 + $0x171] sm:$0xff]
      %v5640 = vld [vmem:[%s5424 + $0x2] sm:$0xff]
      %v5641 = vld [vmem:[%s5424 + $0xa] sm:$0xff]
      %v5642 = vld [vmem:[%s5424 + $0x1a] sm:$0xff]
      %v5643 = vld [vmem:[%s5424 + $0x22] sm:$0xff]
      %v5644 = vld [vmem:[%s5424 + $0x32] sm:$0xff]
      %v5645 = vld [vmem:[%s5424 + $0x3a] sm:$0xff]
      %v5646 = vld [vmem:[%s5424 + $0x4a] sm:$0xff]
      %v5647 = vld [vmem:[%s5424 + $0x52] sm:$0xff]
      %v5648 = vld [vmem:[%s5424 + $0x62] sm:$0xff]
      %v5649 = vld [vmem:[%s5424 + $0x6a] sm:$0xff]
      %v5650 = vld [vmem:[%s5424 + $0x7a] sm:$0xff]
      %v5651 = vld [vmem:[%s5424 + $0x82] sm:$0xff]
      %v5652 = vld [vmem:[%s5424 + $0x92] sm:$0xff]
      %v5653 = vld [vmem:[%s5424 + $0x9a] sm:$0xff]
      %v5654 = vld [vmem:[%s5424 + $0xaa] sm:$0xff]
      %v5655 = vld [vmem:[%s5424 + $0xb2] sm:$0xff]
      %v5656 = vld [vmem:[%s5424 + $0xc2] sm:$0xff]
      %v5657 = vld [vmem:[%s5424 + $0xca] sm:$0xff]
      %v5658 = vld [vmem:[%s5424 + $0xda] sm:$0xff]
      %v5659 = vld [vmem:[%s5424 + $0xe2] sm:$0xff]
      %v5660 = vld [vmem:[%s5424 + $0xf2] sm:$0xff]
      %v5661 = vld [vmem:[%s5424 + $0xfa] sm:$0xff]
      %v5662 = vld [vmem:[%s5424 + $0x10a] sm:$0xff]
      %v5663 = vld [vmem:[%s5424 + $0x112] sm:$0xff]
      %v5664 = vld [vmem:[%s5424 + $0x122] sm:$0xff]
      %v5665 = vld [vmem:[%s5424 + $0x12a] sm:$0xff]
      %v5666 = vld [vmem:[%s5424 + $0x13a] sm:$0xff]
      %v5667 = vld [vmem:[%s5424 + $0x142] sm:$0xff]
      %v5668 = vld [vmem:[%s5424 + $0x152] sm:$0xff]
      %v5669 = vld [vmem:[%s5424 + $0x15a] sm:$0xff]
      %v5670 = vld [vmem:[%s5424 + $0x16a] sm:$0xff]
      %v5671 = vld [vmem:[%s5424 + $0x172] sm:$0xff]
      %s5672 = scalar_lea.vmem [#allocation4], 48
      %v5673 = vld [vmem:[%s5672] sm:$0xff]
      %v5674 = vld [vmem:[%s5672 + $0x8] sm:$0xff]
      %v5675 = vld [vmem:[%s5672 + $0x18] sm:$0xff]
      %v5676 = vld [vmem:[%s5672 + $0x20] sm:$0xff]
      %v5677 = vld [vmem:[%s5672 + $0x30] sm:$0xff]
      %v5678 = vld [vmem:[%s5672 + $0x38] sm:$0xff]
      %v5679 = vld [vmem:[%s5672 + $0x48] sm:$0xff]
      %v5680 = vld [vmem:[%s5672 + $0x50] sm:$0xff]
      %v5681 = vld [vmem:[%s5672 + $0x60] sm:$0xff]
      %v5682 = vld [vmem:[%s5672 + $0x68] sm:$0xff]
      %v5683 = vld [vmem:[%s5672 + $0x78] sm:$0xff]
      %v5684 = vld [vmem:[%s5672 + $0x80] sm:$0xff]
      %v5685 = vld [vmem:[%s5672 + $0x90] sm:$0xff]
      %v5686 = vld [vmem:[%s5672 + $0x98] sm:$0xff]
      %v5687 = vld [vmem:[%s5672 + $0xa8] sm:$0xff]
      %v5688 = vld [vmem:[%s5672 + $0xb0] sm:$0xff]
      %v5689 = vld [vmem:[%s5672 + $0xc0] sm:$0xff]
      %v5690 = vld [vmem:[%s5672 + $0xc8] sm:$0xff]
      %v5691 = vld [vmem:[%s5672 + $0xd8] sm:$0xff]
      %v5692 = vld [vmem:[%s5672 + $0xe0] sm:$0xff]
      %v5693 = vld [vmem:[%s5672 + $0xf0] sm:$0xff]
      %v5694 = vld [vmem:[%s5672 + $0xf8] sm:$0xff]
      %v5695 = vld [vmem:[%s5672 + $0x108] sm:$0xff]
      %v5696 = vld [vmem:[%s5672 + $0x110] sm:$0xff]
      %v5697 = vld [vmem:[%s5672 + $0x120] sm:$0xff]
      %v5698 = vld [vmem:[%s5672 + $0x128] sm:$0xff]
      %v5699 = vld [vmem:[%s5672 + $0x138] sm:$0xff]
      %v5700 = vld [vmem:[%s5672 + $0x140] sm:$0xff]
      %v5701 = vld [vmem:[%s5672 + $0x150] sm:$0xff]
      %v5702 = vld [vmem:[%s5672 + $0x158] sm:$0xff]
      %v5703 = vld [vmem:[%s5672 + $0x168] sm:$0xff]
      %v5704 = vld [vmem:[%s5672 + $0x170] sm:$0xff]
      %v5705 = vld [vmem:[%s5672 + $0x1] sm:$0xff]
      %v5706 = vld [vmem:[%s5672 + $0x9] sm:$0xff]
      %v5707 = vld [vmem:[%s5672 + $0x19] sm:$0xff]
      %v5708 = vld [vmem:[%s5672 + $0x21] sm:$0xff]
      %v5709 = vld [vmem:[%s5672 + $0x31] sm:$0xff]
      %v5710 = vld [vmem:[%s5672 + $0x39] sm:$0xff]
      %v5711 = vld [vmem:[%s5672 + $0x49] sm:$0xff]
      %v5712 = vld [vmem:[%s5672 + $0x51] sm:$0xff]
      %v5713 = vld [vmem:[%s5672 + $0x61] sm:$0xff]
      %v5714 = vld [vmem:[%s5672 + $0x69] sm:$0xff]
      %v5715 = vld [vmem:[%s5672 + $0x79] sm:$0xff]
      %v5716 = vld [vmem:[%s5672 + $0x81] sm:$0xff]
      %v5717 = vld [vmem:[%s5672 + $0x91] sm:$0xff]
      %v5718 = vld [vmem:[%s5672 + $0x99] sm:$0xff]
      %v5719 = vld [vmem:[%s5672 + $0xa9] sm:$0xff]
      %v5720 = vld [vmem:[%s5672 + $0xb1] sm:$0xff]
      %v5721 = vld [vmem:[%s5672 + $0xc1] sm:$0xff]
      %v5722 = vld [vmem:[%s5672 + $0xc9] sm:$0xff]
      %v5723 = vld [vmem:[%s5672 + $0xd9] sm:$0xff]
      %v5724 = vld [vmem:[%s5672 + $0xe1] sm:$0xff]
      %v5725 = vld [vmem:[%s5672 + $0xf1] sm:$0xff]
      %v5726 = vld [vmem:[%s5672 + $0xf9] sm:$0xff]
      %v5727 = vld [vmem:[%s5672 + $0x109] sm:$0xff]
      %v5728 = vld [vmem:[%s5672 + $0x111] sm:$0xff]
      %v5729 = vld [vmem:[%s5672 + $0x121] sm:$0xff]
      %v5730 = vld [vmem:[%s5672 + $0x129] sm:$0xff]
      %v5731 = vld [vmem:[%s5672 + $0x139] sm:$0xff]
      %v5732 = vld [vmem:[%s5672 + $0x141] sm:$0xff]
      %v5733 = vld [vmem:[%s5672 + $0x151] sm:$0xff]
      %v5734 = vld [vmem:[%s5672 + $0x159] sm:$0xff]
      %v5735 = vld [vmem:[%s5672 + $0x169] sm:$0xff]
      %v5736 = vld [vmem:[%s5672 + $0x171] sm:$0xff]
      %v5737 = vld [vmem:[%s5672 + $0x2] sm:$0xff]
      %v5738 = vld [vmem:[%s5672 + $0xa] sm:$0xff]
      %v5739 = vld [vmem:[%s5672 + $0x1a] sm:$0xff]
      %v5740 = vld [vmem:[%s5672 + $0x22] sm:$0xff]
      %v5741 = vld [vmem:[%s5672 + $0x32] sm:$0xff]
      %v5742 = vld [vmem:[%s5672 + $0x3a] sm:$0xff]
      %v5743 = vld [vmem:[%s5672 + $0x4a] sm:$0xff]
      %v5744 = vld [vmem:[%s5672 + $0x52] sm:$0xff]
      %v5745 = vld [vmem:[%s5672 + $0x62] sm:$0xff]
      %v5746 = vld [vmem:[%s5672 + $0x6a] sm:$0xff]
      %v5747 = vld [vmem:[%s5672 + $0x7a] sm:$0xff]
      %v5748 = vld [vmem:[%s5672 + $0x82] sm:$0xff]
      %v5749 = vld [vmem:[%s5672 + $0x92] sm:$0xff]
      %v5750 = vld [vmem:[%s5672 + $0x9a] sm:$0xff]
      %v5751 = vld [vmem:[%s5672 + $0xaa] sm:$0xff]
      %v5752 = vld [vmem:[%s5672 + $0xb2] sm:$0xff]
      %v5753 = vld [vmem:[%s5672 + $0xc2] sm:$0xff]
      %v5754 = vld [vmem:[%s5672 + $0xca] sm:$0xff]
      %v5755 = vld [vmem:[%s5672 + $0xda] sm:$0xff]
      %v5756 = vld [vmem:[%s5672 + $0xe2] sm:$0xff]
      %v5757 = vld [vmem:[%s5672 + $0xf2] sm:$0xff]
      %v5758 = vld [vmem:[%s5672 + $0xfa] sm:$0xff]
      %v5759 = vld [vmem:[%s5672 + $0x10a] sm:$0xff]
      %v5760 = vld [vmem:[%s5672 + $0x112] sm:$0xff]
      %v5761 = vld [vmem:[%s5672 + $0x122] sm:$0xff]
      %v5762 = vld [vmem:[%s5672 + $0x12a] sm:$0xff]
      %v5763 = vld [vmem:[%s5672 + $0x13a] sm:$0xff]
      %v5764 = vld [vmem:[%s5672 + $0x142] sm:$0xff]
      %v5765 = vld [vmem:[%s5672 + $0x152] sm:$0xff]
      %v5766 = vld [vmem:[%s5672 + $0x15a] sm:$0xff]
      %v5767 = vld [vmem:[%s5672 + $0x16a] sm:$0xff]
      %v5768 = vld [vmem:[%s5672 + $0x172] sm:$0xff]
      %5801 = vrot.lane.b32.xlu0 %v5512, 3
      %v5802 = vpop.permute.xlu0 %5801
      %5803 = vrot.lane.b32.xlu0 %v5513, 3
      %v5804 = vpop.permute.xlu0 %5803
      %5805 = vrot.lane.b32.xlu0 %v5514, 3
      %v5806 = vpop.permute.xlu0 %5805
      %5807 = vrot.lane.b32.xlu0 %v5515, 3
      %v5808 = vpop.permute.xlu0 %5807
      %5809 = vrot.lane.b32.xlu0 %v5516, 3
      %v5810 = vpop.permute.xlu0 %5809
      %5811 = vrot.lane.b32.xlu0 %v5517, 3
      %v5812 = vpop.permute.xlu0 %5811
      %5813 = vrot.lane.b32.xlu0 %v5518, 3
      %v5814 = vpop.permute.xlu0 %5813
      %5815 = vrot.lane.b32.xlu0 %v5519, 3
      %v5816 = vpop.permute.xlu0 %5815
      %5817 = vrot.lane.b32.xlu0 %v5520, 3
      %v5818 = vpop.permute.xlu0 %5817
      %5819 = vrot.lane.b32.xlu0 %v5521, 3
      %v5820 = vpop.permute.xlu0 %5819
      %5821 = vrot.lane.b32.xlu0 %v5522, 3
      %v5822 = vpop.permute.xlu0 %5821
      %5823 = vrot.lane.b32.xlu0 %v5523, 3
      %v5824 = vpop.permute.xlu0 %5823
      %5825 = vrot.lane.b32.xlu0 %v5524, 3
      %v5826 = vpop.permute.xlu0 %5825
      %5827 = vrot.lane.b32.xlu0 %v5525, 3
      %v5828 = vpop.permute.xlu0 %5827
      %5829 = vrot.lane.b32.xlu0 %v5526, 3
      %v5830 = vpop.permute.xlu0 %5829
      %5831 = vrot.lane.b32.xlu0 %v5527, 3
      %v5832 = vpop.permute.xlu0 %5831
      %5833 = vrot.lane.b32.xlu0 %v5528, 3
      %v5834 = vpop.permute.xlu0 %5833
      %5835 = vrot.lane.b32.xlu0 %v5529, 3
      %v5836 = vpop.permute.xlu0 %5835
      %5837 = vrot.lane.b32.xlu0 %v5530, 3
      %v5838 = vpop.permute.xlu0 %5837
      %5839 = vrot.lane.b32.xlu0 %v5531, 3
      %v5840 = vpop.permute.xlu0 %5839
      %5841 = vrot.lane.b32.xlu0 %v5532, 3
      %v5842 = vpop.permute.xlu0 %5841
      %5843 = vrot.lane.b32.xlu0 %v5533, 3
      %v5844 = vpop.permute.xlu0 %5843
      %5845 = vrot.lane.b32.xlu0 %v5534, 3
      %v5846 = vpop.permute.xlu0 %5845
      %5847 = vrot.lane.b32.xlu0 %v5535, 3
      %v5848 = vpop.permute.xlu0 %5847
      %5849 = vrot.lane.b32.xlu0 %v5536, 3
      %v5850 = vpop.permute.xlu0 %5849
      %5851 = vrot.lane.b32.xlu0 %v5537, 3
      %v5852 = vpop.permute.xlu0 %5851
      %5853 = vrot.lane.b32.xlu0 %v5538, 3
      %v5854 = vpop.permute.xlu0 %5853
      %5855 = vrot.lane.b32.xlu0 %v5539, 3
      %v5856 = vpop.permute.xlu0 %5855
      %5857 = vrot.lane.b32.xlu0 %v5540, 3
      %v5858 = vpop.permute.xlu0 %5857
      %5859 = vrot.lane.b32.xlu0 %v5541, 3
      %v5860 = vpop.permute.xlu0 %5859
      %5861 = vrot.lane.b32.xlu0 %v5542, 3
      %v5862 = vpop.permute.xlu0 %5861
      %5863 = vrot.lane.b32.xlu0 %v5543, 3
      %v5864 = vpop.permute.xlu0 %5863
      %5929 = vrot.lane.b32.xlu0 %v5544, 6
      %v5930 = vpop.permute.xlu0 %5929
      %5931 = vrot.lane.b32.xlu0 %v5545, 6
      %v5932 = vpop.permute.xlu0 %5931
      %5933 = vrot.lane.b32.xlu0 %v5546, 6
      %v5934 = vpop.permute.xlu0 %5933
      %5935 = vrot.lane.b32.xlu0 %v5547, 6
      %v5936 = vpop.permute.xlu0 %5935
      %5937 = vrot.lane.b32.xlu0 %v5548, 6
      %v5938 = vpop.permute.xlu0 %5937
      %5939 = vrot.lane.b32.xlu0 %v5549, 6
      %v5940 = vpop.permute.xlu0 %5939
      %5941 = vrot.lane.b32.xlu0 %v5550, 6
      %v5942 = vpop.permute.xlu0 %5941
      %5943 = vrot.lane.b32.xlu0 %v5551, 6
      %v5944 = vpop.permute.xlu0 %5943
      %5945 = vrot.lane.b32.xlu0 %v5552, 6
      %v5946 = vpop.permute.xlu0 %5945
      %5947 = vrot.lane.b32.xlu0 %v5553, 6
      %v5948 = vpop.permute.xlu0 %5947
      %5949 = vrot.lane.b32.xlu0 %v5554, 6
      %v5950 = vpop.permute.xlu0 %5949
      %5951 = vrot.lane.b32.xlu0 %v5555, 6
      %v5952 = vpop.permute.xlu0 %5951
      %5953 = vrot.lane.b32.xlu0 %v5556, 6
      %v5954 = vpop.permute.xlu0 %5953
      %5955 = vrot.lane.b32.xlu0 %v5557, 6
      %v5956 = vpop.permute.xlu0 %5955
      %5957 = vrot.lane.b32.xlu0 %v5558, 6
      %v5958 = vpop.permute.xlu0 %5957
      %5959 = vrot.lane.b32.xlu0 %v5559, 6
      %v5960 = vpop.permute.xlu0 %5959
      %5961 = vrot.lane.b32.xlu0 %v5560, 6
      %v5962 = vpop.permute.xlu0 %5961
      %5963 = vrot.lane.b32.xlu0 %v5561, 6
      %v5964 = vpop.permute.xlu0 %5963
      %5965 = vrot.lane.b32.xlu0 %v5562, 6
      %v5966 = vpop.permute.xlu0 %5965
      %5967 = vrot.lane.b32.xlu0 %v5563, 6
      %v5968 = vpop.permute.xlu0 %5967
      %5969 = vrot.lane.b32.xlu0 %v5564, 6
      %v5970 = vpop.permute.xlu0 %5969
      %5971 = vrot.lane.b32.xlu0 %v5565, 6
      %v5972 = vpop.permute.xlu0 %5971
      %5973 = vrot.lane.b32.xlu0 %v5566, 6
      %v5974 = vpop.permute.xlu0 %5973
      %5975 = vrot.lane.b32.xlu0 %v5567, 6
      %v5976 = vpop.permute.xlu0 %5975
      %5977 = vrot.lane.b32.xlu0 %v5568, 6
      %v5978 = vpop.permute.xlu0 %5977
      %5979 = vrot.lane.b32.xlu0 %v5569, 6
      %v5980 = vpop.permute.xlu0 %5979
      %5981 = vrot.lane.b32.xlu0 %v5570, 6
      %v5982 = vpop.permute.xlu0 %5981
      %5983 = vrot.lane.b32.xlu0 %v5571, 6
      %v5984 = vpop.permute.xlu0 %5983
      %5985 = vrot.lane.b32.xlu0 %v5572, 6
      %v5986 = vpop.permute.xlu0 %5985
      %5987 = vrot.lane.b32.xlu0 %v5573, 6
      %v5988 = vpop.permute.xlu0 %5987
      %5989 = vrot.lane.b32.xlu0 %v5574, 6
      %v5990 = vpop.permute.xlu0 %5989
      %5991 = vrot.lane.b32.xlu0 %v5575, 6
      %v5992 = vpop.permute.xlu0 %5991
      %6057 = vrot.lane.b32.xlu0 %v5576, 9
      %v6058 = vpop.permute.xlu0 %6057
      %6059 = vrot.lane.b32.xlu0 %v5577, 9
      %v6060 = vpop.permute.xlu0 %6059
      %6061 = vrot.lane.b32.xlu0 %v5578, 9
      %v6062 = vpop.permute.xlu0 %6061
      %6063 = vrot.lane.b32.xlu0 %v5579, 9
      %v6064 = vpop.permute.xlu0 %6063
      %6065 = vrot.lane.b32.xlu0 %v5580, 9
      %v6066 = vpop.permute.xlu0 %6065
      %6067 = vrot.lane.b32.xlu0 %v5581, 9
      %v6068 = vpop.permute.xlu0 %6067
      %6069 = vrot.lane.b32.xlu0 %v5582, 9
      %v6070 = vpop.permute.xlu0 %6069
      %6071 = vrot.lane.b32.xlu0 %v5583, 9
      %v6072 = vpop.permute.xlu0 %6071
      %6073 = vrot.lane.b32.xlu0 %v5584, 9
      %v6074 = vpop.permute.xlu0 %6073
      %6075 = vrot.lane.b32.xlu0 %v5585, 9
      %v6076 = vpop.permute.xlu0 %6075
      %6077 = vrot.lane.b32.xlu0 %v5586, 9
      %v6078 = vpop.permute.xlu0 %6077
      %6079 = vrot.lane.b32.xlu0 %v5587, 9
      %v6080 = vpop.permute.xlu0 %6079
      %6081 = vrot.lane.b32.xlu0 %v5588, 9
      %v6082 = vpop.permute.xlu0 %6081
      %6083 = vrot.lane.b32.xlu0 %v5589, 9
      %v6084 = vpop.permute.xlu0 %6083
      %6085 = vrot.lane.b32.xlu0 %v5590, 9
      %v6086 = vpop.permute.xlu0 %6085
      %6087 = vrot.lane.b32.xlu0 %v5591, 9
      %v6088 = vpop.permute.xlu0 %6087
      %6089 = vrot.lane.b32.xlu0 %v5592, 9
      %v6090 = vpop.permute.xlu0 %6089
      %6091 = vrot.lane.b32.xlu0 %v5593, 9
      %v6092 = vpop.permute.xlu0 %6091
      %6093 = vrot.lane.b32.xlu0 %v5594, 9
      %v6094 = vpop.permute.xlu0 %6093
      %6095 = vrot.lane.b32.xlu0 %v5595, 9
      %v6096 = vpop.permute.xlu0 %6095
      %6097 = vrot.lane.b32.xlu0 %v5596, 9
      %v6098 = vpop.permute.xlu0 %6097
      %6099 = vrot.lane.b32.xlu0 %v5597, 9
      %v6100 = vpop.permute.xlu0 %6099
      %6101 = vrot.lane.b32.xlu0 %v5598, 9
      %v6102 = vpop.permute.xlu0 %6101
      %6103 = vrot.lane.b32.xlu0 %v5599, 9
      %v6104 = vpop.permute.xlu0 %6103
      %6105 = vrot.lane.b32.xlu0 %v5600, 9
      %v6106 = vpop.permute.xlu0 %6105
      %6107 = vrot.lane.b32.xlu0 %v5601, 9
      %v6108 = vpop.permute.xlu0 %6107
      %6109 = vrot.lane.b32.xlu0 %v5602, 9
      %v6110 = vpop.permute.xlu0 %6109
      %6111 = vrot.lane.b32.xlu0 %v5603, 9
      %v6112 = vpop.permute.xlu0 %6111
      %6113 = vrot.lane.b32.xlu0 %v5604, 9
      %v6114 = vpop.permute.xlu0 %6113
      %6115 = vrot.lane.b32.xlu0 %v5605, 9
      %v6116 = vpop.permute.xlu0 %6115
      %6117 = vrot.lane.b32.xlu0 %v5606, 9
      %v6118 = vpop.permute.xlu0 %6117
      %6119 = vrot.lane.b32.xlu0 %v5607, 9
      %v6120 = vpop.permute.xlu0 %6119
      %6185 = vrot.lane.b32.xlu0 %v5608, 12
      %v6186 = vpop.permute.xlu0 %6185
      %6187 = vrot.lane.b32.xlu0 %v5609, 12
      %v6188 = vpop.permute.xlu0 %6187
      %6189 = vrot.lane.b32.xlu0 %v5610, 12
      %v6190 = vpop.permute.xlu0 %6189
      %6191 = vrot.lane.b32.xlu0 %v5611, 12
      %v6192 = vpop.permute.xlu0 %6191
      %6193 = vrot.lane.b32.xlu0 %v5612, 12
      %v6194 = vpop.permute.xlu0 %6193
      %6195 = vrot.lane.b32.xlu0 %v5613, 12
      %v6196 = vpop.permute.xlu0 %6195
      %6197 = vrot.lane.b32.xlu0 %v5614, 12
      %v6198 = vpop.permute.xlu0 %6197
      %6199 = vrot.lane.b32.xlu0 %v5615, 12
      %v6200 = vpop.permute.xlu0 %6199
      %6201 = vrot.lane.b32.xlu0 %v5616, 12
      %v6202 = vpop.permute.xlu0 %6201
      %6203 = vrot.lane.b32.xlu0 %v5617, 12
      %v6204 = vpop.permute.xlu0 %6203
      %6205 = vrot.lane.b32.xlu0 %v5618, 12
      %v6206 = vpop.permute.xlu0 %6205
      %6207 = vrot.lane.b32.xlu0 %v5619, 12
      %v6208 = vpop.permute.xlu0 %6207
      %6209 = vrot.lane.b32.xlu0 %v5620, 12
      %v6210 = vpop.permute.xlu0 %6209
      %6211 = vrot.lane.b32.xlu0 %v5621, 12
      %v6212 = vpop.permute.xlu0 %6211
      %6213 = vrot.lane.b32.xlu0 %v5622, 12
      %v6214 = vpop.permute.xlu0 %6213
      %6215 = vrot.lane.b32.xlu0 %v5623, 12
      %v6216 = vpop.permute.xlu0 %6215
      %6217 = vrot.lane.b32.xlu0 %v5624, 12
      %v6218 = vpop.permute.xlu0 %6217
      %6219 = vrot.lane.b32.xlu0 %v5625, 12
      %v6220 = vpop.permute.xlu0 %6219
      %6221 = vrot.lane.b32.xlu0 %v5626, 12
      %v6222 = vpop.permute.xlu0 %6221
      %6223 = vrot.lane.b32.xlu0 %v5627, 12
      %v6224 = vpop.permute.xlu0 %6223
      %6225 = vrot.lane.b32.xlu0 %v5628, 12
      %v6226 = vpop.permute.xlu0 %6225
      %6227 = vrot.lane.b32.xlu0 %v5629, 12
      %v6228 = vpop.permute.xlu0 %6227
      %6229 = vrot.lane.b32.xlu0 %v5630, 12
      %v6230 = vpop.permute.xlu0 %6229
      %6231 = vrot.lane.b32.xlu0 %v5631, 12
      %v6232 = vpop.permute.xlu0 %6231
      %6233 = vrot.lane.b32.xlu0 %v5632, 12
      %v6234 = vpop.permute.xlu0 %6233
      %6235 = vrot.lane.b32.xlu0 %v5633, 12
      %v6236 = vpop.permute.xlu0 %6235
      %6237 = vrot.lane.b32.xlu0 %v5634, 12
      %v6238 = vpop.permute.xlu0 %6237
      %6239 = vrot.lane.b32.xlu0 %v5635, 12
      %v6240 = vpop.permute.xlu0 %6239
      %6241 = vrot.lane.b32.xlu0 %v5636, 12
      %v6242 = vpop.permute.xlu0 %6241
      %6243 = vrot.lane.b32.xlu0 %v5637, 12
      %v6244 = vpop.permute.xlu0 %6243
      %6245 = vrot.lane.b32.xlu0 %v5638, 12
      %v6246 = vpop.permute.xlu0 %6245
      %6247 = vrot.lane.b32.xlu0 %v5639, 12
      %v6248 = vpop.permute.xlu0 %6247
      %6313 = vrot.lane.b32.xlu0 %v5640, 15
      %v6314 = vpop.permute.xlu0 %6313
      %6315 = vrot.lane.b32.xlu0 %v5641, 15
      %v6316 = vpop.permute.xlu0 %6315
      %6317 = vrot.lane.b32.xlu0 %v5642, 15
      %v6318 = vpop.permute.xlu0 %6317
      %6319 = vrot.lane.b32.xlu0 %v5643, 15
      %v6320 = vpop.permute.xlu0 %6319
      %6321 = vrot.lane.b32.xlu0 %v5644, 15
      %v6322 = vpop.permute.xlu0 %6321
      %6323 = vrot.lane.b32.xlu0 %v5645, 15
      %v6324 = vpop.permute.xlu0 %6323
      %6325 = vrot.lane.b32.xlu0 %v5646, 15
      %v6326 = vpop.permute.xlu0 %6325
      %6327 = vrot.lane.b32.xlu0 %v5647, 15
      %v6328 = vpop.permute.xlu0 %6327
      %6329 = vrot.lane.b32.xlu0 %v5648, 15
      %v6330 = vpop.permute.xlu0 %6329
      %6331 = vrot.lane.b32.xlu0 %v5649, 15
      %v6332 = vpop.permute.xlu0 %6331
      %6333 = vrot.lane.b32.xlu0 %v5650, 15
      %v6334 = vpop.permute.xlu0 %6333
      %6335 = vrot.lane.b32.xlu0 %v5651, 15
      %v6336 = vpop.permute.xlu0 %6335
      %6337 = vrot.lane.b32.xlu0 %v5652, 15
      %v6338 = vpop.permute.xlu0 %6337
      %6339 = vrot.lane.b32.xlu0 %v5653, 15
      %v6340 = vpop.permute.xlu0 %6339
      %6341 = vrot.lane.b32.xlu0 %v5654, 15
      %v6342 = vpop.permute.xlu0 %6341
      %6343 = vrot.lane.b32.xlu0 %v5655, 15
      %v6344 = vpop.permute.xlu0 %6343
      %6345 = vrot.lane.b32.xlu0 %v5656, 15
      %v6346 = vpop.permute.xlu0 %6345
      %6347 = vrot.lane.b32.xlu0 %v5657, 15
      %v6348 = vpop.permute.xlu0 %6347
      %6349 = vrot.lane.b32.xlu0 %v5658, 15
      %v6350 = vpop.permute.xlu0 %6349
      %6351 = vrot.lane.b32.xlu0 %v5659, 15
      %v6352 = vpop.permute.xlu0 %6351
      %6353 = vrot.lane.b32.xlu0 %v5660, 15
      %v6354 = vpop.permute.xlu0 %6353
      %6355 = vrot.lane.b32.xlu0 %v5661, 15
      %v6356 = vpop.permute.xlu0 %6355
      %6357 = vrot.lane.b32.xlu0 %v5662, 15
      %v6358 = vpop.permute.xlu0 %6357
      %6359 = vrot.lane.b32.xlu0 %v5663, 15
      %v6360 = vpop.permute.xlu0 %6359
      %6361 = vrot.lane.b32.xlu0 %v5664, 15
      %v6362 = vpop.permute.xlu0 %6361
      %6363 = vrot.lane.b32.xlu0 %v5665, 15
      %v6364 = vpop.permute.xlu0 %6363
      %6365 = vrot.lane.b32.xlu0 %v5666, 15
      %v6366 = vpop.permute.xlu0 %6365
      %6367 = vrot.lane.b32.xlu0 %v5667, 15
      %v6368 = vpop.permute.xlu0 %6367
      %6369 = vrot.lane.b32.xlu0 %v5668, 15
      %v6370 = vpop.permute.xlu0 %6369
      %6371 = vrot.lane.b32.xlu0 %v5669, 15
      %v6372 = vpop.permute.xlu0 %6371
      %6373 = vrot.lane.b32.xlu0 %v5670, 15
      %v6374 = vpop.permute.xlu0 %6373
      %6375 = vrot.lane.b32.xlu0 %v5671, 15
      %v6376 = vpop.permute.xlu0 %6375
      %6441 = vrot.lane.b32.xlu0 %v5673, 18
      %v6442 = vpop.permute.xlu0 %6441
      %6443 = vrot.lane.b32.xlu0 %v5674, 18
      %v6444 = vpop.permute.xlu0 %6443
      %6445 = vrot.lane.b32.xlu0 %v5675, 18
      %v6446 = vpop.permute.xlu0 %6445
      %6447 = vrot.lane.b32.xlu0 %v5676, 18
      %v6448 = vpop.permute.xlu0 %6447
      %6449 = vrot.lane.b32.xlu0 %v5677, 18
      %v6450 = vpop.permute.xlu0 %6449
      %6451 = vrot.lane.b32.xlu0 %v5678, 18
      %v6452 = vpop.permute.xlu0 %6451
      %6453 = vrot.lane.b32.xlu0 %v5679, 18
      %v6454 = vpop.permute.xlu0 %6453
      %6455 = vrot.lane.b32.xlu0 %v5680, 18
      %v6456 = vpop.permute.xlu0 %6455
      %6457 = vrot.lane.b32.xlu0 %v5681, 18
      %v6458 = vpop.permute.xlu0 %6457
      %6459 = vrot.lane.b32.xlu0 %v5682, 18
      %v6460 = vpop.permute.xlu0 %6459
      %6461 = vrot.lane.b32.xlu0 %v5683, 18
      %v6462 = vpop.permute.xlu0 %6461
      %6463 = vrot.lane.b32.xlu0 %v5684, 18
      %v6464 = vpop.permute.xlu0 %6463
      %6465 = vrot.lane.b32.xlu0 %v5685, 18
      %v6466 = vpop.permute.xlu0 %6465
      %6467 = vrot.lane.b32.xlu0 %v5686, 18
      %v6468 = vpop.permute.xlu0 %6467
      %6469 = vrot.lane.b32.xlu0 %v5687, 18
      %v6470 = vpop.permute.xlu0 %6469
      %6471 = vrot.lane.b32.xlu0 %v5688, 18
      %v6472 = vpop.permute.xlu0 %6471
      %6473 = vrot.lane.b32.xlu0 %v5689, 18
      %v6474 = vpop.permute.xlu0 %6473
      %6475 = vrot.lane.b32.xlu0 %v5690, 18
      %v6476 = vpop.permute.xlu0 %6475
      %6477 = vrot.lane.b32.xlu0 %v5691, 18
      %v6478 = vpop.permute.xlu0 %6477
      %6479 = vrot.lane.b32.xlu0 %v5692, 18
      %v6480 = vpop.permute.xlu0 %6479
      %6481 = vrot.lane.b32.xlu0 %v5693, 18
      %v6482 = vpop.permute.xlu0 %6481
      %6483 = vrot.lane.b32.xlu0 %v5694, 18
      %v6484 = vpop.permute.xlu0 %6483
      %6485 = vrot.lane.b32.xlu0 %v5695, 18
      %v6486 = vpop.permute.xlu0 %6485
      %6487 = vrot.lane.b32.xlu0 %v5696, 18
      %v6488 = vpop.permute.xlu0 %6487
      %6489 = vrot.lane.b32.xlu0 %v5697, 18
      %v6490 = vpop.permute.xlu0 %6489
      %6491 = vrot.lane.b32.xlu0 %v5698, 18
      %v6492 = vpop.permute.xlu0 %6491
      %6493 = vrot.lane.b32.xlu0 %v5699, 18
      %v6494 = vpop.permute.xlu0 %6493
      %6495 = vrot.lane.b32.xlu0 %v5700, 18
      %v6496 = vpop.permute.xlu0 %6495
      %6497 = vrot.lane.b32.xlu0 %v5701, 18
      %v6498 = vpop.permute.xlu0 %6497
      %6499 = vrot.lane.b32.xlu0 %v5702, 18
      %v6500 = vpop.permute.xlu0 %6499
      %6501 = vrot.lane.b32.xlu0 %v5703, 18
      %v6502 = vpop.permute.xlu0 %6501
      %6503 = vrot.lane.b32.xlu0 %v5704, 18
      %v6504 = vpop.permute.xlu0 %6503
      %6569 = vrot.lane.b32.xlu0 %v5705, 21
      %v6570 = vpop.permute.xlu0 %6569
      %6571 = vrot.lane.b32.xlu0 %v5706, 21
      %v6572 = vpop.permute.xlu0 %6571
      %6573 = vrot.lane.b32.xlu0 %v5707, 21
      %v6574 = vpop.permute.xlu0 %6573
      %6575 = vrot.lane.b32.xlu0 %v5708, 21
      %v6576 = vpop.permute.xlu0 %6575
      %6577 = vrot.lane.b32.xlu0 %v5709, 21
      %v6578 = vpop.permute.xlu0 %6577
      %6579 = vrot.lane.b32.xlu0 %v5710, 21
      %v6580 = vpop.permute.xlu0 %6579
      %6581 = vrot.lane.b32.xlu0 %v5711, 21
      %v6582 = vpop.permute.xlu0 %6581
      %6583 = vrot.lane.b32.xlu0 %v5712, 21
      %v6584 = vpop.permute.xlu0 %6583
      %6585 = vrot.lane.b32.xlu0 %v5713, 21
      %v6586 = vpop.permute.xlu0 %6585
      %6587 = vrot.lane.b32.xlu0 %v5714, 21
      %v6588 = vpop.permute.xlu0 %6587
      %6589 = vrot.lane.b32.xlu0 %v5715, 21
      %v6590 = vpop.permute.xlu0 %6589
      %6591 = vrot.lane.b32.xlu0 %v5716, 21
      %v6592 = vpop.permute.xlu0 %6591
      %6593 = vrot.lane.b32.xlu0 %v5717, 21
      %v6594 = vpop.permute.xlu0 %6593
      %6595 = vrot.lane.b32.xlu0 %v5718, 21
      %v6596 = vpop.permute.xlu0 %6595
      %6597 = vrot.lane.b32.xlu0 %v5719, 21
      %v6598 = vpop.permute.xlu0 %6597
      %6599 = vrot.lane.b32.xlu0 %v5720, 21
      %v6600 = vpop.permute.xlu0 %6599
      %6601 = vrot.lane.b32.xlu0 %v5721, 21
      %v6602 = vpop.permute.xlu0 %6601
      %6603 = vrot.lane.b32.xlu0 %v5722, 21
      %v6604 = vpop.permute.xlu0 %6603
      %6605 = vrot.lane.b32.xlu0 %v5723, 21
      %v6606 = vpop.permute.xlu0 %6605
      %6607 = vrot.lane.b32.xlu0 %v5724, 21
      %v6608 = vpop.permute.xlu0 %6607
      %6609 = vrot.lane.b32.xlu0 %v5725, 21
      %v6610 = vpop.permute.xlu0 %6609
      %6611 = vrot.lane.b32.xlu0 %v5726, 21
      %v6612 = vpop.permute.xlu0 %6611
      %6613 = vrot.lane.b32.xlu0 %v5727, 21
      %v6614 = vpop.permute.xlu0 %6613
      %6615 = vrot.lane.b32.xlu0 %v5728, 21
      %v6616 = vpop.permute.xlu0 %6615
      %6617 = vrot.lane.b32.xlu0 %v5729, 21
      %v6618 = vpop.permute.xlu0 %6617
      %6619 = vrot.lane.b32.xlu0 %v5730, 21
      %v6620 = vpop.permute.xlu0 %6619
      %6621 = vrot.lane.b32.xlu0 %v5731, 21
      %v6622 = vpop.permute.xlu0 %6621
      %6623 = vrot.lane.b32.xlu0 %v5732, 21
      %v6624 = vpop.permute.xlu0 %6623
      %6625 = vrot.lane.b32.xlu0 %v5733, 21
      %v6626 = vpop.permute.xlu0 %6625
      %6627 = vrot.lane.b32.xlu0 %v5734, 21
      %v6628 = vpop.permute.xlu0 %6627
      %6629 = vrot.lane.b32.xlu0 %v5735, 21
      %v6630 = vpop.permute.xlu0 %6629
      %6631 = vrot.lane.b32.xlu0 %v5736, 21
      %v6632 = vpop.permute.xlu0 %6631
      %6697 = vrot.lane.b32.xlu0 %v5737, 24
      %v6698 = vpop.permute.xlu0 %6697
      %6699 = vrot.lane.b32.xlu0 %v5738, 24
      %v6700 = vpop.permute.xlu0 %6699
      %6701 = vrot.lane.b32.xlu0 %v5739, 24
      %v6702 = vpop.permute.xlu0 %6701
      %6703 = vrot.lane.b32.xlu0 %v5740, 24
      %v6704 = vpop.permute.xlu0 %6703
      %6705 = vrot.lane.b32.xlu0 %v5741, 24
      %v6706 = vpop.permute.xlu0 %6705
      %6707 = vrot.lane.b32.xlu0 %v5742, 24
      %v6708 = vpop.permute.xlu0 %6707
      %6709 = vrot.lane.b32.xlu0 %v5743, 24
      %v6710 = vpop.permute.xlu0 %6709
      %6711 = vrot.lane.b32.xlu0 %v5744, 24
      %v6712 = vpop.permute.xlu0 %6711
      %6713 = vrot.lane.b32.xlu0 %v5745, 24
      %v6714 = vpop.permute.xlu0 %6713
      %6715 = vrot.lane.b32.xlu0 %v5746, 24
      %v6716 = vpop.permute.xlu0 %6715
      %6717 = vrot.lane.b32.xlu0 %v5747, 24
      %v6718 = vpop.permute.xlu0 %6717
      %6719 = vrot.lane.b32.xlu0 %v5748, 24
      %v6720 = vpop.permute.xlu0 %6719
      %6721 = vrot.lane.b32.xlu0 %v5749, 24
      %v6722 = vpop.permute.xlu0 %6721
      %6723 = vrot.lane.b32.xlu0 %v5750, 24
      %v6724 = vpop.permute.xlu0 %6723
      %6725 = vrot.lane.b32.xlu0 %v5751, 24
      %v6726 = vpop.permute.xlu0 %6725
      %6727 = vrot.lane.b32.xlu0 %v5752, 24
      %v6728 = vpop.permute.xlu0 %6727
      %6729 = vrot.lane.b32.xlu0 %v5753, 24
      %v6730 = vpop.permute.xlu0 %6729
      %6731 = vrot.lane.b32.xlu0 %v5754, 24
      %v6732 = vpop.permute.xlu0 %6731
      %6733 = vrot.lane.b32.xlu0 %v5755, 24
      %v6734 = vpop.permute.xlu0 %6733
      %6735 = vrot.lane.b32.xlu0 %v5756, 24
      %v6736 = vpop.permute.xlu0 %6735
      %6737 = vrot.lane.b32.xlu0 %v5757, 24
      %v6738 = vpop.permute.xlu0 %6737
      %6739 = vrot.lane.b32.xlu0 %v5758, 24
      %v6740 = vpop.permute.xlu0 %6739
      %6741 = vrot.lane.b32.xlu0 %v5759, 24
      %v6742 = vpop.permute.xlu0 %6741
      %6743 = vrot.lane.b32.xlu0 %v5760, 24
      %v6744 = vpop.permute.xlu0 %6743
      %6745 = vrot.lane.b32.xlu0 %v5761, 24
      %v6746 = vpop.permute.xlu0 %6745
      %6747 = vrot.lane.b32.xlu0 %v5762, 24
      %v6748 = vpop.permute.xlu0 %6747
      %6749 = vrot.lane.b32.xlu0 %v5763, 24
      %v6750 = vpop.permute.xlu0 %6749
      %6751 = vrot.lane.b32.xlu0 %v5764, 24
      %v6752 = vpop.permute.xlu0 %6751
      %6753 = vrot.lane.b32.xlu0 %v5765, 24
      %v6754 = vpop.permute.xlu0 %6753
      %6755 = vrot.lane.b32.xlu0 %v5766, 24
      %v6756 = vpop.permute.xlu0 %6755
      %6757 = vrot.lane.b32.xlu0 %v5767, 24
      %v6758 = vpop.permute.xlu0 %6757
      %6759 = vrot.lane.b32.xlu0 %v5768, 24
      %v6760 = vpop.permute.xlu0 %6759
      %v6793 = vsel %vm703, %v5480, %v5802
      %v6794 = vsel %vm703, %v5481, %v5804
      %v6795 = vsel %vm703, %v5482, %v5806
      %v6796 = vsel %vm703, %v5483, %v5808
      %v6797 = vsel %vm703, %v5484, %v5810
      %v6798 = vsel %vm703, %v5485, %v5812
      %v6799 = vsel %vm703, %v5486, %v5814
      %v6800 = vsel %vm703, %v5487, %v5816
      %v6801 = vsel %vm703, %v5488, %v5818
      %v6802 = vsel %vm703, %v5489, %v5820
      %v6803 = vsel %vm703, %v5490, %v5822
      %v6804 = vsel %vm703, %v5491, %v5824
      %v6805 = vsel %vm703, %v5492, %v5826
      %v6806 = vsel %vm703, %v5493, %v5828
      %v6807 = vsel %vm703, %v5494, %v5830
      %v6808 = vsel %vm703, %v5495, %v5832
      %v6809 = vsel %vm703, %v5496, %v5834
      %v6810 = vsel %vm703, %v5497, %v5836
      %v6811 = vsel %vm703, %v5498, %v5838
      %v6812 = vsel %vm703, %v5499, %v5840
      %v6813 = vsel %vm703, %v5500, %v5842
      %v6814 = vsel %vm703, %v5501, %v5844
      %v6815 = vsel %vm703, %v5502, %v5846
      %v6816 = vsel %vm703, %v5503, %v5848
      %v6817 = vsel %vm703, %v5504, %v5850
      %v6818 = vsel %vm703, %v5505, %v5852
      %v6819 = vsel %vm703, %v5506, %v5854
      %v6820 = vsel %vm703, %v5507, %v5856
      %v6821 = vsel %vm703, %v5508, %v5858
      %v6822 = vsel %vm703, %v5509, %v5860
      %v6823 = vsel %vm703, %v5510, %v5862
      %v6824 = vsel %vm703, %v5511, %v5864
      %v6825 = vsel %vm2105, %v6793, %v5930
      %v6826 = vsel %vm2105, %v6794, %v5932
      %v6827 = vsel %vm2105, %v6795, %v5934
      %v6828 = vsel %vm2105, %v6796, %v5936
      %v6829 = vsel %vm2105, %v6797, %v5938
      %v6830 = vsel %vm2105, %v6798, %v5940
      %v6831 = vsel %vm2105, %v6799, %v5942
      %v6832 = vsel %vm2105, %v6800, %v5944
      %v6833 = vsel %vm2105, %v6801, %v5946
      %v6834 = vsel %vm2105, %v6802, %v5948
      %v6835 = vsel %vm2105, %v6803, %v5950
      %v6836 = vsel %vm2105, %v6804, %v5952
      %v6837 = vsel %vm2105, %v6805, %v5954
      %v6838 = vsel %vm2105, %v6806, %v5956
      %v6839 = vsel %vm2105, %v6807, %v5958
      %v6840 = vsel %vm2105, %v6808, %v5960
      %v6841 = vsel %vm2105, %v6809, %v5962
      %v6842 = vsel %vm2105, %v6810, %v5964
      %v6843 = vsel %vm2105, %v6811, %v5966
      %v6844 = vsel %vm2105, %v6812, %v5968
      %v6845 = vsel %vm2105, %v6813, %v5970
      %v6846 = vsel %vm2105, %v6814, %v5972
      %v6847 = vsel %vm2105, %v6815, %v5974
      %v6848 = vsel %vm2105, %v6816, %v5976
      %v6849 = vsel %vm2105, %v6817, %v5978
      %v6850 = vsel %vm2105, %v6818, %v5980
      %v6851 = vsel %vm2105, %v6819, %v5982
      %v6852 = vsel %vm2105, %v6820, %v5984
      %v6853 = vsel %vm2105, %v6821, %v5986
      %v6854 = vsel %vm2105, %v6822, %v5988
      %v6855 = vsel %vm2105, %v6823, %v5990
      %v6856 = vsel %vm2105, %v6824, %v5992
      %v6857 = vsel %vm2138, %v6825, %v6058
      %v6858 = vsel %vm2138, %v6826, %v6060
      %v6859 = vsel %vm2138, %v6827, %v6062
      %v6860 = vsel %vm2138, %v6828, %v6064
      %v6861 = vsel %vm2138, %v6829, %v6066
      %v6862 = vsel %vm2138, %v6830, %v6068
      %v6863 = vsel %vm2138, %v6831, %v6070
      %v6864 = vsel %vm2138, %v6832, %v6072
      %v6865 = vsel %vm2138, %v6833, %v6074
      %v6866 = vsel %vm2138, %v6834, %v6076
      %v6867 = vsel %vm2138, %v6835, %v6078
      %v6868 = vsel %vm2138, %v6836, %v6080
      %v6869 = vsel %vm2138, %v6837, %v6082
      %v6870 = vsel %vm2138, %v6838, %v6084
      %v6871 = vsel %vm2138, %v6839, %v6086
      %v6872 = vsel %vm2138, %v6840, %v6088
      %v6873 = vsel %vm2138, %v6841, %v6090
      %v6874 = vsel %vm2138, %v6842, %v6092
      %v6875 = vsel %vm2138, %v6843, %v6094
      %v6876 = vsel %vm2138, %v6844, %v6096
      %v6877 = vsel %vm2138, %v6845, %v6098
      %v6878 = vsel %vm2138, %v6846, %v6100
      %v6879 = vsel %vm2138, %v6847, %v6102
      %v6880 = vsel %vm2138, %v6848, %v6104
      %v6881 = vsel %vm2138, %v6849, %v6106
      %v6882 = vsel %vm2138, %v6850, %v6108
      %v6883 = vsel %vm2138, %v6851, %v6110
      %v6884 = vsel %vm2138, %v6852, %v6112
      %v6885 = vsel %vm2138, %v6853, %v6114
      %v6886 = vsel %vm2138, %v6854, %v6116
      %v6887 = vsel %vm2138, %v6855, %v6118
      %v6888 = vsel %vm2138, %v6856, %v6120
      %v6889 = vsel %vm2171, %v6857, %v6186
      %v6890 = vsel %vm2171, %v6858, %v6188
      %v6891 = vsel %vm2171, %v6859, %v6190
      %v6892 = vsel %vm2171, %v6860, %v6192
      %v6893 = vsel %vm2171, %v6861, %v6194
      %v6894 = vsel %vm2171, %v6862, %v6196
      %v6895 = vsel %vm2171, %v6863, %v6198
      %v6896 = vsel %vm2171, %v6864, %v6200
      %v6897 = vsel %vm2171, %v6865, %v6202
      %v6898 = vsel %vm2171, %v6866, %v6204
      %v6899 = vsel %vm2171, %v6867, %v6206
      %v6900 = vsel %vm2171, %v6868, %v6208
      %v6901 = vsel %vm2171, %v6869, %v6210
      %v6902 = vsel %vm2171, %v6870, %v6212
      %v6903 = vsel %vm2171, %v6871, %v6214
      %v6904 = vsel %vm2171, %v6872, %v6216
      %v6905 = vsel %vm2171, %v6873, %v6218
      %v6906 = vsel %vm2171, %v6874, %v6220
      %v6907 = vsel %vm2171, %v6875, %v6222
      %v6908 = vsel %vm2171, %v6876, %v6224
      %v6909 = vsel %vm2171, %v6877, %v6226
      %v6910 = vsel %vm2171, %v6878, %v6228
      %v6911 = vsel %vm2171, %v6879, %v6230
      %v6912 = vsel %vm2171, %v6880, %v6232
      %v6913 = vsel %vm2171, %v6881, %v6234
      %v6914 = vsel %vm2171, %v6882, %v6236
      %v6915 = vsel %vm2171, %v6883, %v6238
      %v6916 = vsel %vm2171, %v6884, %v6240
      %v6917 = vsel %vm2171, %v6885, %v6242
      %v6918 = vsel %vm2171, %v6886, %v6244
      %v6919 = vsel %vm2171, %v6887, %v6246
      %v6920 = vsel %vm2171, %v6888, %v6248
      %v6921 = vsel %vm2204, %v6889, %v6314
      %v6922 = vsel %vm2204, %v6890, %v6316
      %v6923 = vsel %vm2204, %v6891, %v6318
      %v6924 = vsel %vm2204, %v6892, %v6320
      %v6925 = vsel %vm2204, %v6893, %v6322
      %v6926 = vsel %vm2204, %v6894, %v6324
      %v6927 = vsel %vm2204, %v6895, %v6326
      %v6928 = vsel %vm2204, %v6896, %v6328
      %v6929 = vsel %vm2204, %v6897, %v6330
      %v6930 = vsel %vm2204, %v6898, %v6332
      %v6931 = vsel %vm2204, %v6899, %v6334
      %v6932 = vsel %vm2204, %v6900, %v6336
      %v6933 = vsel %vm2204, %v6901, %v6338
      %v6934 = vsel %vm2204, %v6902, %v6340
      %v6935 = vsel %vm2204, %v6903, %v6342
      %v6936 = vsel %vm2204, %v6904, %v6344
      %v6937 = vsel %vm2204, %v6905, %v6346
      %v6938 = vsel %vm2204, %v6906, %v6348
      %v6939 = vsel %vm2204, %v6907, %v6350
      %v6940 = vsel %vm2204, %v6908, %v6352
      %v6941 = vsel %vm2204, %v6909, %v6354
      %v6942 = vsel %vm2204, %v6910, %v6356
      %v6943 = vsel %vm2204, %v6911, %v6358
      %v6944 = vsel %vm2204, %v6912, %v6360
      %v6945 = vsel %vm2204, %v6913, %v6362
      %v6946 = vsel %vm2204, %v6914, %v6364
      %v6947 = vsel %vm2204, %v6915, %v6366
      %v6948 = vsel %vm2204, %v6916, %v6368
      %v6949 = vsel %vm2204, %v6917, %v6370
      %v6950 = vsel %vm2204, %v6918, %v6372
      %v6951 = vsel %vm2204, %v6919, %v6374
      %v6952 = vsel %vm2204, %v6920, %v6376
      %v6953 = vsel %vm2237, %v6921, %v6442
      %v6954 = vsel %vm2237, %v6922, %v6444
      %v6955 = vsel %vm2237, %v6923, %v6446
      %v6956 = vsel %vm2237, %v6924, %v6448
      %v6957 = vsel %vm2237, %v6925, %v6450
      %v6958 = vsel %vm2237, %v6926, %v6452
      %v6959 = vsel %vm2237, %v6927, %v6454
      %v6960 = vsel %vm2237, %v6928, %v6456
      %v6961 = vsel %vm2237, %v6929, %v6458
      %v6962 = vsel %vm2237, %v6930, %v6460
      %v6963 = vsel %vm2237, %v6931, %v6462
      %v6964 = vsel %vm2237, %v6932, %v6464
      %v6965 = vsel %vm2237, %v6933, %v6466
      %v6966 = vsel %vm2237, %v6934, %v6468
      %v6967 = vsel %vm2237, %v6935, %v6470
      %v6968 = vsel %vm2237, %v6936, %v6472
      %v6969 = vsel %vm2237, %v6937, %v6474
      %v6970 = vsel %vm2237, %v6938, %v6476
      %v6971 = vsel %vm2237, %v6939, %v6478
      %v6972 = vsel %vm2237, %v6940, %v6480
      %v6973 = vsel %vm2237, %v6941, %v6482
      %v6974 = vsel %vm2237, %v6942, %v6484
      %v6975 = vsel %vm2237, %v6943, %v6486
      %v6976 = vsel %vm2237, %v6944, %v6488
      %v6977 = vsel %vm2237, %v6945, %v6490
      %v6978 = vsel %vm2237, %v6946, %v6492
      %v6979 = vsel %vm2237, %v6947, %v6494
      %v6980 = vsel %vm2237, %v6948, %v6496
      %v6981 = vsel %vm2237, %v6949, %v6498
      %v6982 = vsel %vm2237, %v6950, %v6500
      %v6983 = vsel %vm2237, %v6951, %v6502
      %v6984 = vsel %vm2237, %v6952, %v6504
      %v6985 = vsel %vm2270, %v6953, %v6570
      %v6986 = vsel %vm2270, %v6954, %v6572
      %v6987 = vsel %vm2270, %v6955, %v6574
      %v6988 = vsel %vm2270, %v6956, %v6576
      %v6989 = vsel %vm2270, %v6957, %v6578
      %v6990 = vsel %vm2270, %v6958, %v6580
      %v6991 = vsel %vm2270, %v6959, %v6582
      %v6992 = vsel %vm2270, %v6960, %v6584
      %v6993 = vsel %vm2270, %v6961, %v6586
      %v6994 = vsel %vm2270, %v6962, %v6588
      %v6995 = vsel %vm2270, %v6963, %v6590
      %v6996 = vsel %vm2270, %v6964, %v6592
      %v6997 = vsel %vm2270, %v6965, %v6594
      %v6998 = vsel %vm2270, %v6966, %v6596
      %v6999 = vsel %vm2270, %v6967, %v6598
      %v7000 = vsel %vm2270, %v6968, %v6600
      %v7001 = vsel %vm2270, %v6969, %v6602
      %v7002 = vsel %vm2270, %v6970, %v6604
      %v7003 = vsel %vm2270, %v6971, %v6606
      %v7004 = vsel %vm2270, %v6972, %v6608
      %v7005 = vsel %vm2270, %v6973, %v6610
      %v7006 = vsel %vm2270, %v6974, %v6612
      %v7007 = vsel %vm2270, %v6975, %v6614
      %v7008 = vsel %vm2270, %v6976, %v6616
      %v7009 = vsel %vm2270, %v6977, %v6618
      %v7010 = vsel %vm2270, %v6978, %v6620
      %v7011 = vsel %vm2270, %v6979, %v6622
      %v7012 = vsel %vm2270, %v6980, %v6624
      %v7013 = vsel %vm2270, %v6981, %v6626
      %v7014 = vsel %vm2270, %v6982, %v6628
      %v7015 = vsel %vm2270, %v6983, %v6630
      %v7016 = vsel %vm2270, %v6984, %v6632
      %v7017 = vsel %vm2303, %v6985, %v6698
      %v7018 = vsel %vm2303, %v6986, %v6700
      %v7019 = vsel %vm2303, %v6987, %v6702
      %v7020 = vsel %vm2303, %v6988, %v6704
      %v7021 = vsel %vm2303, %v6989, %v6706
      %v7022 = vsel %vm2303, %v6990, %v6708
      %v7023 = vsel %vm2303, %v6991, %v6710
      %v7024 = vsel %vm2303, %v6992, %v6712
      %v7025 = vsel %vm2303, %v6993, %v6714
      %v7026 = vsel %vm2303, %v6994, %v6716
      %v7027 = vsel %vm2303, %v6995, %v6718
      %v7028 = vsel %vm2303, %v6996, %v6720
      %v7029 = vsel %vm2303, %v6997, %v6722
      %v7030 = vsel %vm2303, %v6998, %v6724
      %v7031 = vsel %vm2303, %v6999, %v6726
      %v7032 = vsel %vm2303, %v7000, %v6728
      %v7033 = vsel %vm2303, %v7001, %v6730
      %v7034 = vsel %vm2303, %v7002, %v6732
      %v7035 = vsel %vm2303, %v7003, %v6734
      %v7036 = vsel %vm2303, %v7004, %v6736
      %v7037 = vsel %vm2303, %v7005, %v6738
      %v7038 = vsel %vm2303, %v7006, %v6740
      %v7039 = vsel %vm2303, %v7007, %v6742
      %v7040 = vsel %vm2303, %v7008, %v6744
      %v7041 = vsel %vm2303, %v7009, %v6746
      %v7042 = vsel %vm2303, %v7010, %v6748
      %v7043 = vsel %vm2303, %v7011, %v6750
      %v7044 = vsel %vm2303, %v7012, %v6752
      %v7045 = vsel %vm2303, %v7013, %v6754
      %v7046 = vsel %vm2303, %v7014, %v6756
      %v7047 = vsel %vm2303, %v7015, %v6758
      %v7048 = vsel %vm2303, %v7016, %v6760
      %v7049 = vpack.c.bf16 %v7018, %v7017
      %v7050 = vpack.c.bf16 %v7020, %v7019
      %v7051 = vpack.c.bf16 %v7022, %v7021
      %v7052 = vpack.c.bf16 %v7024, %v7023
      %v7053 = vpack.c.bf16 %v7026, %v7025
      %v7054 = vpack.c.bf16 %v7028, %v7027
      %v7055 = vpack.c.bf16 %v7030, %v7029
      %v7056 = vpack.c.bf16 %v7032, %v7031
      %v7057 = vpack.c.bf16 %v7034, %v7033
      %v7058 = vpack.c.bf16 %v7036, %v7035
      %v7059 = vpack.c.bf16 %v7038, %v7037
      %v7060 = vpack.c.bf16 %v7040, %v7039
      %v7061 = vpack.c.bf16 %v7042, %v7041
      %v7062 = vpack.c.bf16 %v7044, %v7043
      %v7063 = vpack.c.bf16 %v7046, %v7045
      %v7064 = vpack.c.bf16 %v7048, %v7047
      %v7065 = vld [vmem:[%s9] sm:$0xf]
      %v7066 = vld [vmem:[%s9 + $0x4] sm:$0xf]
      %v7067 = vld [vmem:[%s9 + $0x8] sm:$0xf]
      %v7068 = vld [vmem:[%s9 + $0xc] sm:$0xf]
      %v7069 = vld [vmem:[%s9 + $0x10] sm:$0xf]
      %v7070 = vld [vmem:[%s9 + $0x14] sm:$0xf]
      %v7071 = vld [vmem:[%s9 + $0x18] sm:$0xf]
      %v7072 = vld [vmem:[%s9 + $0x1c] sm:$0xf]
      %v7073 = vld [vmem:[%s9 + $0x20] sm:$0xf]
      %v7074 = vld [vmem:[%s9 + $0x24] sm:$0xf]
      %v7075 = vld [vmem:[%s9 + $0x28] sm:$0xf]
      %v7076 = vld [vmem:[%s9 + $0x2c] sm:$0xf]
      %v7077 = vld [vmem:[%s9 + $0x30] sm:$0xf]
      %v7078 = vld [vmem:[%s9 + $0x34] sm:$0xf]
      %v7079 = vld [vmem:[%s9 + $0x38] sm:$0xf]
      %v7080 = vld [vmem:[%s9 + $0x3c] sm:$0xf]
      %v7081 = vld [vmem:[%s9 + $0x40] sm:$0xf]
      %v7082 = vld [vmem:[%s9 + $0x44] sm:$0xf]
      %v7083 = vld [vmem:[%s9 + $0x48] sm:$0xf]
      %v7084 = vld [vmem:[%s9 + $0x4c] sm:$0xf]
      %v7085 = vld [vmem:[%s9 + $0x50] sm:$0xf]
      %v7086 = vld [vmem:[%s9 + $0x54] sm:$0xf]
      %v7087 = vld [vmem:[%s9 + $0x58] sm:$0xf]
      %v7088 = vld [vmem:[%s9 + $0x5c] sm:$0xf]
      %v7089 = vld [vmem:[%s9 + $0x60] sm:$0xf]
      %v7090 = vld [vmem:[%s9 + $0x64] sm:$0xf]
      %v7091 = vld [vmem:[%s9 + $0x68] sm:$0xf]
      %v7092 = vld [vmem:[%s9 + $0x6c] sm:$0xf]
      %v7093 = vld [vmem:[%s9 + $0x70] sm:$0xf]
      %v7094 = vld [vmem:[%s9 + $0x74] sm:$0xf]
      %v7095 = vld [vmem:[%s9 + $0x78] sm:$0xf]
      %v7096 = vld [vmem:[%s9 + $0x7c] sm:$0xf]
      %v7097 = vld [vmem:[%s9 + $0x80] sm:$0xf]
      %v7098 = vld [vmem:[%s9 + $0x84] sm:$0xf]
      %v7099 = vld [vmem:[%s9 + $0x88] sm:$0xf]
      %v7100 = vld [vmem:[%s9 + $0x8c] sm:$0xf]
      %v7101 = vld [vmem:[%s10] sm:$0xf]
      %v7102 = vld [vmem:[%s10 + $0x4] sm:$0xf]
      %v7103 = vld [vmem:[%s10 + $0x8] sm:$0xf]
      %v7104 = vld [vmem:[%s10 + $0xc] sm:$0x3]
      %v7109 = vunpack.c.l.b16 %v7101
      %v7110 = vunpack.c.l.b16 %v7102
      %v7111 = vunpack.c.l.b16 %v7103
      %v7112 = vunpack.c.l.b16 %v7104
      %v7113 = vpack.c.b16 %v7110, %v7109
      %v7114 = vpack.c.b16 %v7112, %v7111
      %v7117 = vsel %vm2374, %v7049, 0
      %v7120 = vsel %vm2374, %v7050, 0
      %v7123 = vsel %vm2374, %v7051, 0
      %v7126 = vsel %vm2374, %v7052, 0
      %v7129 = vsel %vm2374, %v7053, 0
      %v7132 = vsel %vm2374, %v7054, 0
      %v7135 = vsel %vm2374, %v7055, 0
      %v7138 = vsel %vm2374, %v7056, 0
      %v7141 = vsel %vm2374, %v7057, 0
      %v7144 = vsel %vm2374, %v7058, 0
      %v7147 = vsel %vm2374, %v7059, 0
      %v7150 = vsel %vm2374, %v7060, 0
      %v7153 = vsel %vm2374, %v7061, 0
      %v7156 = vsel %vm2374, %v7062, 0
      %v7159 = vsel %vm2374, %v7063, 0
      %v7162 = vsel %vm2374, %v7064, 0
      %v7165 = vand.u32 %v7114, %v2426
      %7167 = vmatprep.subr.bf16.mxu0 0
      %7168 = vmatpush1.bf16.msra.mxu0 %v7113
      %7169 = vmatprep.subr.bf16.mxu0 0
      %7170 = vmatpush1.bf16.msra.mxu0 %v7165
      %7171 = vmatprep.subr.bf16.mxu0 0
      %7172 = vmatpush1.bf16.msra.mxu0 0
      %7173 = vmatprep.subr.bf16.mxu0 0
      %7174 = vmatpush1.bf16.msra.mxu0 0
      %7175 = vmatprep.subr.bf16.mxu0 0
      %7176 = vmatpush1.bf16.msra.mxu0 0
      %7177 = vmatprep.subr.bf16.mxu0 0
      %7178 = vmatpush1.bf16.msra.mxu0 0
      %7179 = vmatprep.subr.bf16.mxu0 0
      %7180 = vmatpush1.bf16.msra.mxu0 0
      %7181 = vmatprep.subr.bf16.mxu0 0
      %7182 = vmatpush1.bf16.msra.mxu0 0
      %7183 = vmatprep.subr.bf16.mxu0 0
      %7184 = vmatpush1.bf16.msra.mxu0 0
      %7185 = vmatprep.subr.bf16.mxu0 0
      %7186 = vmatpush1.bf16.msra.mxu0 0
      %7187 = vmatprep.subr.bf16.mxu0 0
      %7188 = vmatpush1.bf16.msra.mxu0 0
      %7189 = vmatprep.subr.bf16.mxu0 0
      %7190 = vmatpush1.bf16.msra.mxu0 0
      %7191 = vmatprep.subr.bf16.mxu0 0
      %7192 = vmatpush1.bf16.msra.mxu0 0
      %7193 = vmatprep.subr.bf16.mxu0 0
      %7194 = vmatpush1.bf16.msra.mxu0 0
      %7195 = vmatprep.subr.bf16.mxu0 0
      %7196 = vmatpush1.bf16.msra.mxu0 0
      %7197 = vmatprep.subr.bf16.mxu0 0
      %7198 = vmatpush1.bf16.msra.mxu0 0
      %7199 = vmatprep.mubr.bf16.mxu0 0
      %7200 = vmatmul.mubr.bf16.gmra.mrb[0].mxu0 %v7117
      %v7201 = vpop.f32.mrb[0].mxu0
      %v7202 = vadd.f32 0.0, %v7201
      %v7203 = vpop.f32.mrb[0].mxu0
      %v7204 = vpop.f32.mrb[0].mxu0
      %v7205 = vadd.f32 0.0, %v7204
      %v7206 = vpop.f32.mrb[0].mxu0
      %7207 = vmatprep.mubr.bf16.mxu0 0
      %7208 = vmatmul.mubr.bf16.gmra.mrb[0].mxu0 %v7120
      %v7209 = vpop.f32.mrb[0].mxu0
      %v7210 = vadd.f32 0.0, %v7209
      %v7211 = vpop.f32.mrb[0].mxu0
      %v7212 = vpop.f32.mrb[0].mxu0
      %v7213 = vadd.f32 0.0, %v7212
      %v7214 = vpop.f32.mrb[0].mxu0
      %7215 = vmatprep.mubr.bf16.mxu0 0
      %7216 = vmatmul.mubr.bf16.gmra.mrb[0].mxu0 %v7123
      %v7217 = vpop.f32.mrb[0].mxu0
      %v7218 = vadd.f32 0.0, %v7217
      %v7219 = vpop.f32.mrb[0].mxu0
      %v7220 = vpop.f32.mrb[0].mxu0
      %v7221 = vadd.f32 0.0, %v7220
      %v7222 = vpop.f32.mrb[0].mxu0
      %7223 = vmatprep.mubr.bf16.mxu0 0
      %7224 = vmatmul.mubr.bf16.gmra.mrb[0].mxu0 %v7126
      %v7225 = vpop.f32.mrb[0].mxu0
      %v7226 = vadd.f32 0.0, %v7225
      %v7227 = vpop.f32.mrb[0].mxu0
      %v7228 = vpop.f32.mrb[0].mxu0
      %v7229 = vadd.f32 0.0, %v7228
      %v7230 = vpop.f32.mrb[0].mxu0
      %7231 = vmatprep.mubr.bf16.mxu0 0
      %7232 = vmatmul.mubr.bf16.gmra.mrb[0].mxu0 %v7129
      %v7233 = vpop.f32.mrb[0].mxu0
      %v7234 = vadd.f32 0.0, %v7233
      %v7235 = vpop.f32.mrb[0].mxu0
      %v7236 = vpop.f32.mrb[0].mxu0
      %v7237 = vadd.f32 0.0, %v7236
      %v7238 = vpop.f32.mrb[0].mxu0
      %7239 = vmatprep.mubr.bf16.mxu0 0
      %7240 = vmatmul.mubr.bf16.gmra.mrb[0].mxu0 %v7132
      %v7241 = vpop.f32.mrb[0].mxu0
      %v7242 = vadd.f32 0.0, %v7241
      %v7243 = vpop.f32.mrb[0].mxu0
      %v7244 = vpop.f32.mrb[0].mxu0
      %v7245 = vadd.f32 0.0, %v7244
      %v7246 = vpop.f32.mrb[0].mxu0
      %7247 = vmatprep.mubr.bf16.mxu0 0
      %7248 = vmatmul.mubr.bf16.gmra.mrb[0].mxu0 %v7135
      %v7249 = vpop.f32.mrb[0].mxu0
      %v7250 = vadd.f32 0.0, %v7249
      %v7251 = vpop.f32.mrb[0].mxu0
      %v7252 = vpop.f32.mrb[0].mxu0
      %v7253 = vadd.f32 0.0, %v7252
      %v7254 = vpop.f32.mrb[0].mxu0
      %7255 = vmatprep.mubr.bf16.mxu0 0
      %7256 = vmatmul.mubr.bf16.gmra.mrb[0].mxu0 %v7138
      %v7257 = vpop.f32.mrb[0].mxu0
      %v7258 = vadd.f32 0.0, %v7257
      %v7259 = vpop.f32.mrb[0].mxu0
      %v7260 = vpop.f32.mrb[0].mxu0
      %v7261 = vadd.f32 0.0, %v7260
      %v7262 = vpop.f32.mrb[0].mxu0
      %7263 = vmatprep.mubr.bf16.mxu0 0
      %7264 = vmatmul.mubr.bf16.gmra.mrb[0].mxu0 %v7141
      %v7265 = vpop.f32.mrb[0].mxu0
      %v7266 = vadd.f32 0.0, %v7265
      %v7267 = vpop.f32.mrb[0].mxu0
      %v7268 = vpop.f32.mrb[0].mxu0
      %v7269 = vadd.f32 0.0, %v7268
      %v7270 = vpop.f32.mrb[0].mxu0
      %7271 = vmatprep.mubr.bf16.mxu0 0
      %7272 = vmatmul.mubr.bf16.gmra.mrb[0].mxu0 %v7144
      %v7273 = vpop.f32.mrb[0].mxu0
      %v7274 = vadd.f32 0.0, %v7273
      %v7275 = vpop.f32.mrb[0].mxu0
      %v7276 = vpop.f32.mrb[0].mxu0
      %v7277 = vadd.f32 0.0, %v7276
      %v7278 = vpop.f32.mrb[0].mxu0
      %7279 = vmatprep.mubr.bf16.mxu0 0
      %7280 = vmatmul.mubr.bf16.gmra.mrb[0].mxu0 %v7147
      %v7281 = vpop.f32.mrb[0].mxu0
      %v7282 = vadd.f32 0.0, %v7281
      %v7283 = vpop.f32.mrb[0].mxu0
      %v7284 = vpop.f32.mrb[0].mxu0
      %v7285 = vadd.f32 0.0, %v7284
      %v7286 = vpop.f32.mrb[0].mxu0
      %7287 = vmatprep.mubr.bf16.mxu0 0
      %7288 = vmatmul.mubr.bf16.gmra.mrb[0].mxu0 %v7150
      %v7289 = vpop.f32.mrb[0].mxu0
      %v7290 = vadd.f32 0.0, %v7289
      %v7291 = vpop.f32.mrb[0].mxu0
      %v7292 = vpop.f32.mrb[0].mxu0
      %v7293 = vadd.f32 0.0, %v7292
      %v7294 = vpop.f32.mrb[0].mxu0
      %7295 = vmatprep.mubr.bf16.mxu0 0
      %7296 = vmatmul.mubr.bf16.gmra.mrb[0].mxu0 %v7153
      %v7297 = vpop.f32.mrb[0].mxu0
      %v7298 = vadd.f32 0.0, %v7297
      %v7299 = vpop.f32.mrb[0].mxu0
      %v7300 = vpop.f32.mrb[0].mxu0
      %v7301 = vadd.f32 0.0, %v7300
      %v7302 = vpop.f32.mrb[0].mxu0
      %7303 = vmatprep.mubr.bf16.mxu0 0
      %7304 = vmatmul.mubr.bf16.gmra.mrb[0].mxu0 %v7156
      %v7305 = vpop.f32.mrb[0].mxu0
      %v7306 = vadd.f32 0.0, %v7305
      %v7307 = vpop.f32.mrb[0].mxu0
      %v7308 = vpop.f32.mrb[0].mxu0
      %v7309 = vadd.f32 0.0, %v7308
      %v7310 = vpop.f32.mrb[0].mxu0
      %7311 = vmatprep.mubr.bf16.mxu0 0
      %7312 = vmatmul.mubr.bf16.gmra.mrb[0].mxu0 %v7159
      %v7313 = vpop.f32.mrb[0].mxu0
      %v7314 = vadd.f32 0.0, %v7313
      %v7315 = vpop.f32.mrb[0].mxu0
      %v7316 = vpop.f32.mrb[0].mxu0
      %v7317 = vadd.f32 0.0, %v7316
      %v7318 = vpop.f32.mrb[0].mxu0
      %7319 = vmatprep.mubr.bf16.mxu0 0
      %7320 = vmatmul.mubr.bf16.gmra.mrb[0].mxu0 %v7162
      %v7321 = vpop.f32.mrb[0].mxu0
      %v7322 = vadd.f32 0.0, %v7321
      %v7323 = vpop.f32.mrb[0].mxu0
      %v7324 = vpop.f32.mrb[0].mxu0
      %v7325 = vadd.f32 0.0, %v7324
      %v7326 = vpop.f32.mrb[0].mxu0
      %7327 = vdwg.mxu0
      %v7364 = vunpack.c.l.b16 %v7065
      %v7365 = vunpack.c.l.b16 %v7066
      %v7366 = vunpack.c.l.b16 %v7067
      %v7367 = vunpack.c.l.b16 %v7068
      %v7368 = vunpack.c.l.b16 %v7069
      %v7369 = vunpack.c.l.b16 %v7070
      %v7370 = vunpack.c.l.b16 %v7071
      %v7371 = vunpack.c.l.b16 %v7072
      %v7372 = vunpack.c.l.b16 %v7073
      %v7373 = vunpack.c.l.b16 %v7074
      %v7374 = vunpack.c.l.b16 %v7075
      %v7375 = vunpack.c.l.b16 %v7076
      %v7376 = vunpack.c.l.b16 %v7077
      %v7377 = vunpack.c.l.b16 %v7078
      %v7378 = vunpack.c.l.b16 %v7079
      %v7379 = vunpack.c.l.b16 %v7080
      %v7380 = vunpack.c.l.b16 %v7081
      %v7381 = vunpack.c.l.b16 %v7082
      %v7382 = vunpack.c.l.b16 %v7083
      %v7383 = vunpack.c.l.b16 %v7084
      %v7384 = vunpack.c.l.b16 %v7085
      %v7385 = vunpack.c.l.b16 %v7086
      %v7386 = vunpack.c.l.b16 %v7087
      %v7387 = vunpack.c.l.b16 %v7088
      %v7388 = vunpack.c.l.b16 %v7089
      %v7389 = vunpack.c.l.b16 %v7090
      %v7390 = vunpack.c.l.b16 %v7091
      %v7391 = vunpack.c.l.b16 %v7092
      %v7392 = vunpack.c.l.b16 %v7093
      %v7393 = vunpack.c.l.b16 %v7094
      %v7394 = vunpack.c.l.b16 %v7095
      %v7395 = vunpack.c.l.b16 %v7096
      %v7396 = vunpack.c.l.b16 %v7097
      %v7397 = vunpack.c.l.b16 %v7098
      %v7398 = vunpack.c.l.b16 %v7099
      %v7399 = vunpack.c.l.b16 %v7100
      %v7400 = vpack.c.b16 %v7365, %v7364
      %v7401 = vpack.c.b16 %v7367, %v7366
      %v7402 = vpack.c.b16 %v7369, %v7368
      %v7403 = vpack.c.b16 %v7371, %v7370
      %v7404 = vpack.c.b16 %v7373, %v7372
      %v7405 = vpack.c.b16 %v7375, %v7374
      %v7406 = vpack.c.b16 %v7377, %v7376
      %v7407 = vpack.c.b16 %v7379, %v7378
      %v7408 = vpack.c.b16 %v7381, %v7380
      %v7409 = vpack.c.b16 %v7383, %v7382
      %v7410 = vpack.c.b16 %v7385, %v7384
      %v7411 = vpack.c.b16 %v7387, %v7386
      %v7412 = vpack.c.b16 %v7389, %v7388
      %v7413 = vpack.c.b16 %v7391, %v7390
      %v7414 = vpack.c.b16 %v7393, %v7392
      %v7415 = vpack.c.b16 %v7395, %v7394
      %v7416 = vpack.c.b16 %v7397, %v7396
      %v7417 = vpack.c.b16 %v7399, %v7398
      %7436 = vmatprep.subr.bf16.mxu0 0
      %7437 = vmatpush1.bf16.msra.mxu0 %v7400
      %7438 = vmatprep.subr.bf16.mxu0 0
      %7439 = vmatpush1.bf16.msra.mxu0 %v7401
      %7440 = vmatprep.subr.bf16.mxu0 0
      %7441 = vmatpush1.bf16.msra.mxu0 %v7402
      %7442 = vmatprep.subr.bf16.mxu0 0
      %7443 = vmatpush1.bf16.msra.mxu0 %v7403
      %7444 = vmatprep.subr.bf16.mxu0 0
      %7445 = vmatpush1.bf16.msra.mxu0 %v7404
      %7446 = vmatprep.subr.bf16.mxu0 0
      %7447 = vmatpush1.bf16.msra.mxu0 %v7405
      %7448 = vmatprep.subr.bf16.mxu0 0
      %7449 = vmatpush1.bf16.msra.mxu0 %v7406
      %7450 = vmatprep.subr.bf16.mxu0 0
      %7451 = vmatpush1.bf16.msra.mxu0 %v7407
      %7452 = vmatprep.subr.bf16.mxu0 0
      %7453 = vmatpush1.bf16.msra.mxu0 %v7408
      %7454 = vmatprep.subr.bf16.mxu0 0
      %7455 = vmatpush1.bf16.msra.mxu0 %v7409
      %7456 = vmatprep.subr.bf16.mxu0 0
      %7457 = vmatpush1.bf16.msra.mxu0 %v7410
      %7458 = vmatprep.subr.bf16.mxu0 0
      %7459 = vmatpush1.bf16.msra.mxu0 %v7411
      %7460 = vmatprep.subr.bf16.mxu0 0
      %7461 = vmatpush1.bf16.msra.mxu0 %v7412
      %7462 = vmatprep.subr.bf16.mxu0 0
      %7463 = vmatpush1.bf16.msra.mxu0 %v7413
      %7464 = vmatprep.subr.bf16.mxu0 0
      %7465 = vmatpush1.bf16.msra.mxu0 %v7414
      %7466 = vmatprep.subr.bf16.mxu0 0
      %7467 = vmatpush1.bf16.msra.mxu0 %v7415
      %7468 = vmatprep.mubr.bf16.mxu0 %v4093
      %7469 = vmatmul.mubr.bf16.gmra.mrb[0].mxu0 %v4092
      %v7470 = vpop.f32.mrb[0].mxu0
      %v7471 = vadd.f32 %v7202, %v7470
      %v7472 = vpop.f32.mrb[0].mxu0
      %v7473 = vpop.f32.mrb[0].mxu0
      %v7474 = vadd.f32 %v7205, %v7473
      %v7475 = vpop.f32.mrb[0].mxu0
      %7476 = vmatprep.mubr.bf16.mxu0 %v4096
      %7477 = vmatmul.mubr.bf16.gmra.mrb[0].mxu0 %v4095
      %v7478 = vpop.f32.mrb[0].mxu0
      %v7479 = vadd.f32 %v7210, %v7478
      %v7480 = vpop.f32.mrb[0].mxu0
      %v7481 = vpop.f32.mrb[0].mxu0
      %v7482 = vadd.f32 %v7213, %v7481
      %v7483 = vpop.f32.mrb[0].mxu0
      %7484 = vmatprep.mubr.bf16.mxu0 %v4099
      %7485 = vmatmul.mubr.bf16.gmra.mrb[0].mxu0 %v4098
      %v7486 = vpop.f32.mrb[0].mxu0
      %v7487 = vadd.f32 %v7218, %v7486
      %v7488 = vpop.f32.mrb[0].mxu0
      %v7489 = vpop.f32.mrb[0].mxu0
      %v7490 = vadd.f32 %v7221, %v7489
      %v7491 = vpop.f32.mrb[0].mxu0
      %7492 = vmatprep.mubr.bf16.mxu0 %v4102
      %7493 = vmatmul.mubr.bf16.gmra.mrb[0].mxu0 %v4101
      %v7494 = vpop.f32.mrb[0].mxu0
      %v7495 = vadd.f32 %v7226, %v7494
      %v7496 = vpop.f32.mrb[0].mxu0
      %v7497 = vpop.f32.mrb[0].mxu0
      %v7498 = vadd.f32 %v7229, %v7497
      %v7499 = vpop.f32.mrb[0].mxu0
      %7500 = vmatprep.mubr.bf16.mxu0 %v4105
      %7501 = vmatmul.mubr.bf16.gmra.mrb[0].mxu0 %v4104
      %v7502 = vpop.f32.mrb[0].mxu0
      %v7503 = vadd.f32 %v7234, %v7502
      %v7504 = vpop.f32.mrb[0].mxu0
      %v7505 = vpop.f32.mrb[0].mxu0
      %v7506 = vadd.f32 %v7237, %v7505
      %v7507 = vpop.f32.mrb[0].mxu0
      %7508 = vmatprep.mubr.bf16.mxu0 %v4108
      %7509 = vmatmul.mubr.bf16.gmra.mrb[0].mxu0 %v4107
      %v7510 = vpop.f32.mrb[0].mxu0
      %v7511 = vadd.f32 %v7242, %v7510
      %v7512 = vpop.f32.mrb[0].mxu0
      %v7513 = vpop.f32.mrb[0].mxu0
      %v7514 = vadd.f32 %v7245, %v7513
      %v7515 = vpop.f32.mrb[0].mxu0
      %7516 = vmatprep.mubr.bf16.mxu0 %v4111
      %7517 = vmatmul.mubr.bf16.gmra.mrb[0].mxu0 %v4110
      %v7518 = vpop.f32.mrb[0].mxu0
      %v7519 = vadd.f32 %v7250, %v7518
      %v7520 = vpop.f32.mrb[0].mxu0
      %v7521 = vpop.f32.mrb[0].mxu0
      %v7522 = vadd.f32 %v7253, %v7521
      %v7523 = vpop.f32.mrb[0].mxu0
      %7524 = vmatprep.mubr.bf16.mxu0 %v4114
      %7525 = vmatmul.mubr.bf16.gmra.mrb[0].mxu0 %v4113
      %v7526 = vpop.f32.mrb[0].mxu0
      %v7527 = vadd.f32 %v7258, %v7526
      %v7528 = vpop.f32.mrb[0].mxu0
      %v7529 = vpop.f32.mrb[0].mxu0
      %v7530 = vadd.f32 %v7261, %v7529
      %v7531 = vpop.f32.mrb[0].mxu0
      %7532 = vmatprep.mubr.bf16.mxu0 %v4117
      %7533 = vmatmul.mubr.bf16.gmra.mrb[0].mxu0 %v4116
      %v7534 = vpop.f32.mrb[0].mxu0
      %v7535 = vadd.f32 %v7266, %v7534
      %v7536 = vpop.f32.mrb[0].mxu0
      %v7537 = vpop.f32.mrb[0].mxu0
      %v7538 = vadd.f32 %v7269, %v7537
      %v7539 = vpop.f32.mrb[0].mxu0
      %7540 = vmatprep.mubr.bf16.mxu0 %v4120
      %7541 = vmatmul.mubr.bf16.gmra.mrb[0].mxu0 %v4119
      %v7542 = vpop.f32.mrb[0].mxu0
      %v7543 = vadd.f32 %v7274, %v7542
      %v7544 = vpop.f32.mrb[0].mxu0
      %v7545 = vpop.f32.mrb[0].mxu0
      %v7546 = vadd.f32 %v7277, %v7545
      %v7547 = vpop.f32.mrb[0].mxu0
      %7548 = vmatprep.mubr.bf16.mxu0 %v4123
      %7549 = vmatmul.mubr.bf16.gmra.mrb[0].mxu0 %v4122
      %v7550 = vpop.f32.mrb[0].mxu0
      %v7551 = vadd.f32 %v7282, %v7550
      %v7552 = vpop.f32.mrb[0].mxu0
      %v7553 = vpop.f32.mrb[0].mxu0
      %v7554 = vadd.f32 %v7285, %v7553
      %v7555 = vpop.f32.mrb[0].mxu0
      %7556 = vmatprep.mubr.bf16.mxu0 %v4126
      %7557 = vmatmul.mubr.bf16.gmra.mrb[0].mxu0 %v4125
      %v7558 = vpop.f32.mrb[0].mxu0
      %v7559 = vadd.f32 %v7290, %v7558
      %v7560 = vpop.f32.mrb[0].mxu0
      %v7561 = vpop.f32.mrb[0].mxu0
      %v7562 = vadd.f32 %v7293, %v7561
      %v7563 = vpop.f32.mrb[0].mxu0
      %7564 = vmatprep.mubr.bf16.mxu0 %v4129
      %7565 = vmatmul.mubr.bf16.gmra.mrb[0].mxu0 %v4128
      %v7566 = vpop.f32.mrb[0].mxu0
      %v7567 = vadd.f32 %v7298, %v7566
      %v7568 = vpop.f32.mrb[0].mxu0
      %v7569 = vpop.f32.mrb[0].mxu0
      %v7570 = vadd.f32 %v7301, %v7569
      %v7571 = vpop.f32.mrb[0].mxu0
      %7572 = vmatprep.mubr.bf16.mxu0 %v4132
      %7573 = vmatmul.mubr.bf16.gmra.mrb[0].mxu0 %v4131
      %v7574 = vpop.f32.mrb[0].mxu0
      %v7575 = vadd.f32 %v7306, %v7574
      %v7576 = vpop.f32.mrb[0].mxu0
      %v7577 = vpop.f32.mrb[0].mxu0
      %v7578 = vadd.f32 %v7309, %v7577
      %v7579 = vpop.f32.mrb[0].mxu0
      %7580 = vmatprep.mubr.bf16.mxu0 %v4135
      %7581 = vmatmul.mubr.bf16.gmra.mrb[0].mxu0 %v4134
      %v7582 = vpop.f32.mrb[0].mxu0
      %v7583 = vadd.f32 %v7314, %v7582
      %v7584 = vpop.f32.mrb[0].mxu0
      %v7585 = vpop.f32.mrb[0].mxu0
      %v7586 = vadd.f32 %v7317, %v7585
      %v7587 = vpop.f32.mrb[0].mxu0
      %7588 = vmatprep.mubr.bf16.mxu0 %v4138
      %7589 = vmatmul.mubr.bf16.gmra.mrb[0].mxu0 %v4137
      %v7590 = vpop.f32.mrb[0].mxu0
      %v7591 = vadd.f32 %v7322, %v7590
      %v7592 = vpop.f32.mrb[0].mxu0
      %v7593 = vpop.f32.mrb[0].mxu0
      %v7594 = vadd.f32 %v7325, %v7593
      %v7595 = vpop.f32.mrb[0].mxu0
      %7596 = vdwg.mxu0
      %7597 = vmatprep.subr.bf16.mxu0 0
      %7598 = vmatpush1.bf16.msra.mxu0 %v7416
      %7599 = vmatprep.subr.bf16.mxu0 0
      %7600 = vmatpush1.bf16.msra.mxu0 %v7417
      %7601 = vmatprep.subr.bf16.mxu0 0
      %7602 = vmatpush1.bf16.msra.mxu0 0
      %7603 = vmatprep.subr.bf16.mxu0 0
      %7604 = vmatpush1.bf16.msra.mxu0 0
      %7605 = vmatprep.subr.bf16.mxu0 0
      %7606 = vmatpush1.bf16.msra.mxu0 0
      %7607 = vmatprep.subr.bf16.mxu0 0
      %7608 = vmatpush1.bf16.msra.mxu0 0
      %7609 = vmatprep.subr.bf16.mxu0 0
      %7610 = vmatpush1.bf16.msra.mxu0 0
      %7611 = vmatprep.subr.bf16.mxu0 0
      %7612 = vmatpush1.bf16.msra.mxu0 0
      %7613 = vmatprep.subr.bf16.mxu0 0
      %7614 = vmatpush1.bf16.msra.mxu0 0
      %7615 = vmatprep.subr.bf16.mxu0 0
      %7616 = vmatpush1.bf16.msra.mxu0 0
      %7617 = vmatprep.subr.bf16.mxu0 0
      %7618 = vmatpush1.bf16.msra.mxu0 0
      %7619 = vmatprep.subr.bf16.mxu0 0
      %7620 = vmatpush1.bf16.msra.mxu0 0
      %7621 = vmatprep.subr.bf16.mxu0 0
      %7622 = vmatpush1.bf16.msra.mxu0 0
      %7623 = vmatprep.subr.bf16.mxu0 0
      %7624 = vmatpush1.bf16.msra.mxu0 0
      %7625 = vmatprep.subr.bf16.mxu0 0
      %7626 = vmatpush1.bf16.msra.mxu0 0
      %7627 = vmatprep.subr.bf16.mxu0 0
      %7628 = vmatpush1.bf16.msra.mxu0 0
      %7629 = vmatprep.mubr.bf16.mxu0 0
      %7630 = vmatmul.mubr.bf16.gmra.mrb[0].mxu0 %v4292
      %v7631 = vpop.f32.mrb[0].mxu0
      %v7632 = vadd.f32 %v7471, %v7631
      %v7633 = vpop.f32.mrb[0].mxu0
      %v7634 = vpop.f32.mrb[0].mxu0
      %v7635 = vadd.f32 %v7474, %v7634
      %v7636 = vpop.f32.mrb[0].mxu0
      %7637 = vmatprep.mubr.bf16.mxu0 0
      %7638 = vmatmul.mubr.bf16.gmra.mrb[0].mxu0 %v4295
      %v7639 = vpop.f32.mrb[0].mxu0
      %v7640 = vadd.f32 %v7479, %v7639
      %v7641 = vpop.f32.mrb[0].mxu0
      %v7642 = vpop.f32.mrb[0].mxu0
      %v7643 = vadd.f32 %v7482, %v7642
      %v7644 = vpop.f32.mrb[0].mxu0
      %7645 = vmatprep.mubr.bf16.mxu0 0
      %7646 = vmatmul.mubr.bf16.gmra.mrb[0].mxu0 %v4298
      %v7647 = vpop.f32.mrb[0].mxu0
      %v7648 = vadd.f32 %v7487, %v7647
      %v7649 = vpop.f32.mrb[0].mxu0
      %v7650 = vpop.f32.mrb[0].mxu0
      %v7651 = vadd.f32 %v7490, %v7650
      %v7652 = vpop.f32.mrb[0].mxu0
      %7653 = vmatprep.mubr.bf16.mxu0 0
      %7654 = vmatmul.mubr.bf16.gmra.mrb[0].mxu0 %v4301
      %v7655 = vpop.f32.mrb[0].mxu0
      %v7656 = vadd.f32 %v7495, %v7655
      %v7657 = vpop.f32.mrb[0].mxu0
      %v7658 = vpop.f32.mrb[0].mxu0
      %v7659 = vadd.f32 %v7498, %v7658
      %v7660 = vpop.f32.mrb[0].mxu0
      %7661 = vmatprep.mubr.bf16.mxu0 0
      %7662 = vmatmul.mubr.bf16.gmra.mrb[0].mxu0 %v4304
      %v7663 = vpop.f32.mrb[0].mxu0
      %v7664 = vadd.f32 %v7503, %v7663
      %v7665 = vpop.f32.mrb[0].mxu0
      %v7666 = vpop.f32.mrb[0].mxu0
      %v7667 = vadd.f32 %v7506, %v7666
      %v7668 = vpop.f32.mrb[0].mxu0
      %7669 = vmatprep.mubr.bf16.mxu0 0
      %7670 = vmatmul.mubr.bf16.gmra.mrb[0].mxu0 %v4307
      %v7671 = vpop.f32.mrb[0].mxu0
      %v7672 = vadd.f32 %v7511, %v7671
      %v7673 = vpop.f32.mrb[0].mxu0
      %v7674 = vpop.f32.mrb[0].mxu0
      %v7675 = vadd.f32 %v7514, %v7674
      %v7676 = vpop.f32.mrb[0].mxu0
      %7677 = vmatprep.mubr.bf16.mxu0 0
      %7678 = vmatmul.mubr.bf16.gmra.mrb[0].mxu0 %v4310
      %v7679 = vpop.f32.mrb[0].mxu0
      %v7680 = vadd.f32 %v7519, %v7679
      %v7681 = vpop.f32.mrb[0].mxu0
      %v7682 = vpop.f32.mrb[0].mxu0
      %v7683 = vadd.f32 %v7522, %v7682
      %v7684 = vpop.f32.mrb[0].mxu0
      %7685 = vmatprep.mubr.bf16.mxu0 0
      %7686 = vmatmul.mubr.bf16.gmra.mrb[0].mxu0 %v4313
      %v7687 = vpop.f32.mrb[0].mxu0
      %v7688 = vadd.f32 %v7527, %v7687
      %v7689 = vpop.f32.mrb[0].mxu0
      %v7690 = vpop.f32.mrb[0].mxu0
      %v7691 = vadd.f32 %v7530, %v7690
      %v7692 = vpop.f32.mrb[0].mxu0
      %7693 = vmatprep.mubr.bf16.mxu0 0
      %7694 = vmatmul.mubr.bf16.gmra.mrb[0].mxu0 %v4316
      %v7695 = vpop.f32.mrb[0].mxu0
      %v7696 = vadd.f32 %v7535, %v7695
      %v7697 = vpop.f32.mrb[0].mxu0
      %v7698 = vpop.f32.mrb[0].mxu0
      %v7699 = vadd.f32 %v7538, %v7698
      %v7700 = vpop.f32.mrb[0].mxu0
      %7701 = vmatprep.mubr.bf16.mxu0 0
      %7702 = vmatmul.mubr.bf16.gmra.mrb[0].mxu0 %v4319
      %v7703 = vpop.f32.mrb[0].mxu0
      %v7704 = vadd.f32 %v7543, %v7703
      %v7705 = vpop.f32.mrb[0].mxu0
      %v7706 = vpop.f32.mrb[0].mxu0
      %v7707 = vadd.f32 %v7546, %v7706
      %v7708 = vpop.f32.mrb[0].mxu0
      %7709 = vmatprep.mubr.bf16.mxu0 0
      %7710 = vmatmul.mubr.bf16.gmra.mrb[0].mxu0 %v4322
      %v7711 = vpop.f32.mrb[0].mxu0
      %v7712 = vadd.f32 %v7551, %v7711
      %v7713 = vpop.f32.mrb[0].mxu0
      %v7714 = vpop.f32.mrb[0].mxu0
      %v7715 = vadd.f32 %v7554, %v7714
      %v7716 = vpop.f32.mrb[0].mxu0
      %7717 = vmatprep.mubr.bf16.mxu0 0
      %7718 = vmatmul.mubr.bf16.gmra.mrb[0].mxu0 %v4325
      %v7719 = vpop.f32.mrb[0].mxu0
      %v7720 = vadd.f32 %v7559, %v7719
      %v7721 = vpop.f32.mrb[0].mxu0
      %v7722 = vpop.f32.mrb[0].mxu0
      %v7723 = vadd.f32 %v7562, %v7722
      %v7724 = vpop.f32.mrb[0].mxu0
      %7725 = vmatprep.mubr.bf16.mxu0 0
      %7726 = vmatmul.mubr.bf16.gmra.mrb[0].mxu0 %v4328
      %v7727 = vpop.f32.mrb[0].mxu0
      %v7728 = vadd.f32 %v7567, %v7727
      %v7729 = vpop.f32.mrb[0].mxu0
      %v7730 = vpop.f32.mrb[0].mxu0
      %v7731 = vadd.f32 %v7570, %v7730
      %v7732 = vpop.f32.mrb[0].mxu0
      %7733 = vmatprep.mubr.bf16.mxu0 0
      %7734 = vmatmul.mubr.bf16.gmra.mrb[0].mxu0 %v4331
      %v7735 = vpop.f32.mrb[0].mxu0
      %v7736 = vadd.f32 %v7575, %v7735
      %v7737 = vpop.f32.mrb[0].mxu0
      %v7738 = vpop.f32.mrb[0].mxu0
      %v7739 = vadd.f32 %v7578, %v7738
      %v7740 = vpop.f32.mrb[0].mxu0
      %7741 = vmatprep.mubr.bf16.mxu0 0
      %7742 = vmatmul.mubr.bf16.gmra.mrb[0].mxu0 %v4334
      %v7743 = vpop.f32.mrb[0].mxu0
      %v7744 = vadd.f32 %v7583, %v7743
      %v7745 = vpop.f32.mrb[0].mxu0
      %v7746 = vpop.f32.mrb[0].mxu0
      %v7747 = vadd.f32 %v7586, %v7746
      %v7748 = vpop.f32.mrb[0].mxu0
      %7749 = vmatprep.mubr.bf16.mxu0 0
      %7750 = vmatmul.mubr.bf16.gmra.mrb[0].mxu0 %v4337
      %v7751 = vpop.f32.mrb[0].mxu0
      %v7752 = vadd.f32 %v7591, %v7751
      %v7753 = vpop.f32.mrb[0].mxu0
      %v7754 = vpop.f32.mrb[0].mxu0
      %v7755 = vadd.f32 %v7594, %v7754
      %v7756 = vpop.f32.mrb[0].mxu0
      %7757 = vdwg.mxu0
      %v7758 = vld [vmem:[%s11] sm:$0x1]
      %v7760 = vlaneseq
      %v7761 = vshrl.u32 %v7760, 7
      %v7762 = vsub.s32 0, %v7761
      %v7763 = vrot.slane %v7758, %v7762
      %v7765 = vadd.f32 %v7632, %v7763
      %v7766 = vadd.f32 %v7635, %v7763
      %v7767 = vadd.f32 %v7640, %v7763
      %v7768 = vadd.f32 %v7643, %v7763
      %v7769 = vadd.f32 %v7648, %v7763
      %v7770 = vadd.f32 %v7651, %v7763
      %v7771 = vadd.f32 %v7656, %v7763
      %v7772 = vadd.f32 %v7659, %v7763
      %v7773 = vadd.f32 %v7664, %v7763
      %v7774 = vadd.f32 %v7667, %v7763
      %v7775 = vadd.f32 %v7672, %v7763
      %v7776 = vadd.f32 %v7675, %v7763
      %v7777 = vadd.f32 %v7680, %v7763
      %v7778 = vadd.f32 %v7683, %v7763
      %v7779 = vadd.f32 %v7688, %v7763
      %v7780 = vadd.f32 %v7691, %v7763
      %v7781 = vadd.f32 %v7696, %v7763
      %v7782 = vadd.f32 %v7699, %v7763
      %v7783 = vadd.f32 %v7704, %v7763
      %v7784 = vadd.f32 %v7707, %v7763
      %v7785 = vadd.f32 %v7712, %v7763
      %v7786 = vadd.f32 %v7715, %v7763
      %v7787 = vadd.f32 %v7720, %v7763
      %v7788 = vadd.f32 %v7723, %v7763
      %v7789 = vadd.f32 %v7728, %v7763
      %v7790 = vadd.f32 %v7731, %v7763
      %v7791 = vadd.f32 %v7736, %v7763
      %v7792 = vadd.f32 %v7739, %v7763
      %v7793 = vadd.f32 %v7744, %v7763
      %v7794 = vadd.f32 %v7747, %v7763
      %v7795 = vadd.f32 %v7752, %v7763
      %v7796 = vadd.f32 %v7755, %v7763
      %v7797 = vmax.f32 %v7765, 0.0
      %v7798 = vmax.f32 %v7766, 0.0
      %v7799 = vmax.f32 %v7767, 0.0
      %v7800 = vmax.f32 %v7768, 0.0
      %v7801 = vmax.f32 %v7769, 0.0
      %v7802 = vmax.f32 %v7770, 0.0
      %v7803 = vmax.f32 %v7771, 0.0
      %v7804 = vmax.f32 %v7772, 0.0
      %v7805 = vmax.f32 %v7773, 0.0
      %v7806 = vmax.f32 %v7774, 0.0
      %v7807 = vmax.f32 %v7775, 0.0
      %v7808 = vmax.f32 %v7776, 0.0
      %v7809 = vmax.f32 %v7777, 0.0
      %v7810 = vmax.f32 %v7778, 0.0
      %v7811 = vmax.f32 %v7779, 0.0
      %v7812 = vmax.f32 %v7780, 0.0
      %v7813 = vmax.f32 %v7781, 0.0
      %v7814 = vmax.f32 %v7782, 0.0
      %v7815 = vmax.f32 %v7783, 0.0
      %v7816 = vmax.f32 %v7784, 0.0
      %v7817 = vmax.f32 %v7785, 0.0
      %v7818 = vmax.f32 %v7786, 0.0
      %v7819 = vmax.f32 %v7787, 0.0
      %v7820 = vmax.f32 %v7788, 0.0
      %v7821 = vmax.f32 %v7789, 0.0
      %v7822 = vmax.f32 %v7790, 0.0
      %v7823 = vmax.f32 %v7791, 0.0
      %v7824 = vmax.f32 %v7792, 0.0
      %v7825 = vmax.f32 %v7793, 0.0
      %v7826 = vmax.f32 %v7794, 0.0
      %v7827 = vmax.f32 %v7795, 0.0
      %v7828 = vmax.f32 %v7796, 0.0
      %7829 = vxpose.xlu0.b32.start [1/16] %v7797, 128
      %7830 = vxpose.xlu0.b32.cont [2/16] %v7798, 128
      %7831 = vxpose.xlu0.b32.cont [3/16] %v7799, 128
      %7832 = vxpose.xlu0.b32.cont [4/16] %v7800, 128
      %7833 = vxpose.xlu0.b32.cont [5/16] %v7801, 128
      %7834 = vxpose.xlu0.b32.cont [6/16] %v7802, 128
      %7835 = vxpose.xlu0.b32.cont [7/16] %v7803, 128
      %7836 = vxpose.xlu0.b32.cont [8/16] %v7804, 128
      %7837 = vxpose.xlu0.b32.cont [9/16] %v7805, 128
      %7838 = vxpose.xlu0.b32.cont [10/16] %v7806, 128
      %7839 = vxpose.xlu0.b32.cont [11/16] %v7807, 128
      %7840 = vxpose.xlu0.b32.cont [12/16] %v7808, 128
      %7841 = vxpose.xlu0.b32.cont [13/16] %v7809, 128
      %7842 = vxpose.xlu0.b32.cont [14/16] %v7810, 128
      %7843 = vxpose.xlu0.b32.cont [15/16] %v7811, 128
      %7844 = vxpose.xlu0.b32.end [16/16] %v7812, 128
      %v7845 = vpop.trf.xlu0
      %v7846 = vpop.trf.xlu0
      %v7847 = vpop.trf.xlu0
      %v7848 = vpop.trf.xlu0
      %v7849 = vpop.trf.xlu0
      %v7850 = vpop.trf.xlu0
      %v7851 = vpop.trf.xlu0
      %v7852 = vpop.trf.xlu0
      %v7853 = vpop.trf.xlu0
      %v7854 = vpop.trf.xlu0
      %v7855 = vpop.trf.xlu0
      %v7856 = vpop.trf.xlu0
      %v7857 = vpop.trf.xlu0
      %v7858 = vpop.trf.xlu0
      %v7859 = vpop.trf.xlu0
      %v7860 = vpop.trf.xlu0
      %7861 = vxpose.xlu0.b32.start [1/16] %v7813, 128
      %7862 = vxpose.xlu0.b32.cont [2/16] %v7814, 128
      %7863 = vxpose.xlu0.b32.cont [3/16] %v7815, 128
      %7864 = vxpose.xlu0.b32.cont [4/16] %v7816, 128
      %7865 = vxpose.xlu0.b32.cont [5/16] %v7817, 128
      %7866 = vxpose.xlu0.b32.cont [6/16] %v7818, 128
      %7867 = vxpose.xlu0.b32.cont [7/16] %v7819, 128
      %7868 = vxpose.xlu0.b32.cont [8/16] %v7820, 128
      %7869 = vxpose.xlu0.b32.cont [9/16] %v7821, 128
      %7870 = vxpose.xlu0.b32.cont [10/16] %v7822, 128
      %7871 = vxpose.xlu0.b32.cont [11/16] %v7823, 128
      %7872 = vxpose.xlu0.b32.cont [12/16] %v7824, 128
      %7873 = vxpose.xlu0.b32.cont [13/16] %v7825, 128
      %7874 = vxpose.xlu0.b32.cont [14/16] %v7826, 128
      %7875 = vxpose.xlu0.b32.cont [15/16] %v7827, 128
      %7876 = vxpose.xlu0.b32.end [16/16] %v7828, 128
      %v7877 = vpop.trf.xlu0
      %v7878 = vpop.trf.xlu0
      %v7879 = vpop.trf.xlu0
      %v7880 = vpop.trf.xlu0
      %v7881 = vpop.trf.xlu0
      %v7882 = vpop.trf.xlu0
      %v7883 = vpop.trf.xlu0
      %v7884 = vpop.trf.xlu0
      %v7885 = vpop.trf.xlu0
      %v7886 = vpop.trf.xlu0
      %v7887 = vpop.trf.xlu0
      %v7888 = vpop.trf.xlu0
      %v7889 = vpop.trf.xlu0
      %v7890 = vpop.trf.xlu0
      %v7891 = vpop.trf.xlu0
      %v7892 = vpop.trf.xlu0
      %v7893 = vpack.c.bf16 %v7846, %v7845
      %v7894 = vpack.c.bf16 %v7878, %v7877
      %v7895 = vpack.c.bf16 %v7848, %v7847
      %v7896 = vpack.c.bf16 %v7880, %v7879
      %v7897 = vld [vmem:[%s12] sm:$0x3]
      %v7898 = vld [vmem:[%s13] sm:$0xf]
      %7900 = vset.pattern.permute.xlu0 0
      %7901 = vperm.xlu0 %7900, %v7898
      %v7902 = vpop.permute.xlu0 %7901
      %v7905 = vsel %vm2784, %v7897, 0
      %7907 = vmatprep.subr.bf16.mxu0 %v7894
      %7908 = vmatpush1.bf16.msra.mxu0 %v7893
      %7909 = vmatprep.subr.bf16.mxu0 %v7896
      %7910 = vmatpush1.bf16.msra.mxu0 %v7895
      %7911 = vmatprep.subr.bf16.mxu0 0
      %7912 = vmatpush1.bf16.msra.mxu0 0
      %7913 = vmatprep.subr.bf16.mxu0 0
      %7914 = vmatpush1.bf16.msra.mxu0 0
      %7915 = vmatprep.subr.bf16.mxu0 0
      %7916 = vmatpush1.bf16.msra.mxu0 0
      %7917 = vmatprep.subr.bf16.mxu0 0
      %7918 = vmatpush1.bf16.msra.mxu0 0
      %7919 = vmatprep.subr.bf16.mxu0 0
      %7920 = vmatpush1.bf16.msra.mxu0 0
      %7921 = vmatprep.subr.bf16.mxu0 0
      %7922 = vmatpush1.bf16.msra.mxu0 0
      %7923 = vmatprep.subr.bf16.mxu0 0
      %7924 = vmatpush1.bf16.msra.mxu0 0
      %7925 = vmatprep.subr.bf16.mxu0 0
      %7926 = vmatpush1.bf16.msra.mxu0 0
      %7927 = vmatprep.subr.bf16.mxu0 0
      %7928 = vmatpush1.bf16.msra.mxu0 0
      %7929 = vmatprep.subr.bf16.mxu0 0
      %7930 = vmatpush1.bf16.msra.mxu0 0
      %7931 = vmatprep.subr.bf16.mxu0 0
      %7932 = vmatpush1.bf16.msra.mxu0 0
      %7933 = vmatprep.subr.bf16.mxu0 0
      %7934 = vmatpush1.bf16.msra.mxu0 0
      %7935 = vmatprep.subr.bf16.mxu0 0
      %7936 = vmatpush1.bf16.msra.mxu0 0
      %7937 = vmatprep.subr.bf16.mxu0 0
      %7938 = vmatpush1.bf16.msra.mxu0 0
      %7939 = vmatprep.mubr.bf16.mxu0 0
      %7940 = vmatmul.mubr.bf16.gmra.mrb[0].mxu0 %v7905
      %v7941 = vpop.f32.mrb[0].mxu0
      %v7942 = vadd.f32 %v7902, %v7941
      %v7943 = vpop.f32.mrb[0].mxu0
      %v7944 = vadd.f32 %v7902, %v7943
      %v7945 = vpop.f32.mrb[0].mxu0
      %v7946 = vpop.f32.mrb[0].mxu0
      %7947 = vdwg.mxu0
      %v7948 = vtanh.pop %v7942
      %v7949 = vtanh.pop %v7944
      %v7950 = vmul.f32 %v7948, 2.0
      %v7951 = vmul.f32 %v7949, 2.0
      %v7954 = vcombine.low %v5261, %v5263
      %7956 = vst [vmem:[%s502] sm:$0x77] %v7954
      %v7959 = vcombine.low %v7950, %v7951
      %7961 = vst [vmem:[%s507] sm:$0xff] %v7959
      %p7962 = scmp.lt.s32.totalorder %s27, 1
      %s7963 = scalar_select %p7962, %s27, 1
      %s7964 = smul.addr %s7963, 2
      %s7965 = smul.addr %s7964, 4
      %s7966 = scalar_lea.vmem %s14, %s7965
      %p7967 = scmp.lt.s32.totalorder %s27, 1
      %s7968 = scalar_select %p7967, %s27, 1
      %s7969 = smul.addr %s7968, 2
      %s7970 = smul.addr %s7969, 4
      %s7971 = scalar_lea.vmem %s15, %s7970
      // Predicated region
      $region77: #{encoder_decoder_forward.1} parent=75 // pred_check
        %p7972 = pneg %p344
      $region78: #{encoder_decoder_forward.1} parent=75 // pred_check_branch
        %7974 = sbr.rel (%p7972) target = $region80
      $region79: #{encoder_decoder_forward.1} parent=75 // pred_region
        _
      $region80: #{encoder_decoder_forward.1} parent=75 // pred_fallthru
        _
      // Predicated region
      $region81: #{encoder_decoder_forward.1} parent=75 // pred_check
        %p7975 = pneg %p370
      $region82: #{encoder_decoder_forward.1} parent=75 // pred_check_branch
        %7977 = sbr.rel (%p7975) target = $region84
      $region83: #{encoder_decoder_forward.1} parent=75 // pred_region
        _
      $region84: #{encoder_decoder_forward.1} parent=75 // pred_fallthru
        _
    $region76: #{encoder_decoder_forward.1} parent=5 // pred_fallthru
      _
    %p7978 = scmp.le.s32.totalorder 2, %s22
    // Predicated region
    $region85: #{encoder_decoder_forward.1} parent=5 // pred_check
      %p7979 = pneg %p7978
    $region86: #{encoder_decoder_forward.1} parent=5 // pred_check_branch
      %7981 = sbr.rel (%p7979) target = $region88
    $region87: #{encoder_decoder_forward.1} parent=5 // pred_region
      %s7982 = ssub.s32 %s22, 2
      // Predicated region
      $region89: #{encoder_decoder_forward.1} parent=87 // pred_check
        %p7983 = pneg %p350
      $region90: #{encoder_decoder_forward.1} parent=87 // pred_check_branch
        %7985 = sbr.rel (%p7983) target = $region92
      $region91: #{encoder_decoder_forward.1} parent=87 // pred_region
        %p7986 = scmp.lt.s32.totalorder %s28, 1
        %s7987 = scalar_select %p7986, %s28, 1
        %s7988 = smul.addr %s7987, 2
        %s7989 = smul.addr %s7988, 4
        %s7990 = scalar_lea.vmem %s14, %s7989
      $region92: #{encoder_decoder_forward.1} parent=87 // pred_fallthru
        _
      // Predicated region
      $region93: #{encoder_decoder_forward.1} parent=87 // pred_check
        %p7991 = pneg %p376
      $region94: #{encoder_decoder_forward.1} parent=87 // pred_check_branch
        %7993 = sbr.rel (%p7991) target = $region96
      $region95: #{encoder_decoder_forward.1} parent=87 // pred_region
        %p7994 = scmp.lt.s32.totalorder %s28, 1
        %s7995 = scalar_select %p7994, %s28, 1
        %s7996 = smul.addr %s7995, 2
        %s7997 = smul.addr %s7996, 4
        %s7998 = scalar_lea.vmem %s15, %s7997
      $region96: #{encoder_decoder_forward.1} parent=87 // pred_fallthru
        _
    $region88: #{encoder_decoder_forward.1} parent=5 // pred_fallthru
      _
  $region6: #{encoder_decoder_forward.1} parent=0 // loop_footer
    %s26 = sadd.s32 1, %s22
  $region7: #{encoder_decoder_forward.1} parent=0 // loop_footer_branch
    %21 = sbr.rel target = $region3
  $region8: #{encoder_decoder_forward.1} parent=0 // loop_exit
    _

</llo_original>
